<compile_context>
chip_gen: v6e
topology: v6e:2x2x1
jax: 0.10.0
libtpu: 0.0.40
codegen_flags: <defaults>
</compile_context>

<pallas_src>
import functools

import jax
import jax.numpy as jnp
from jax import lax
from jax.experimental import pallas as pl
from jax.experimental.pallas import tpu as pltpu


# ----------------------------- Pallas kernel ------------------------------ #
def _encoder_kernel(x_ref,            # (L*NP, 2D) f32  [x_t | x_{L-1-t}] per row-group
                    wih_ref,          # (2D, 8H)  f32   block-structured, interleaved gates
                    b_ref,            # (1, 8H)   f32   folded biases, interleaved gates
                    whh_ref,          # (2H, 8H)  bf16  block-diagonal recurrent weights
                    w_head_ref,       # (2H, 128) bf16  [wmu | wvar | 0-pad]
                    b_head_ref,       # (1, 128)  f32   [bmu | bvar | 0-pad]
                    out_ref,          # (L, 128)  f32   [mu | var | 0-pad]
                    xw_ref,           # scratch (L*NP, 8H) f32
                    feat_ref,         # scratch (L, 2H) f32
                    *, L, NP, N, H):
    # ---- hoisted input projection for BOTH directions, one MXU call ----
    # Gate column layout (both here and for the recurrent matmul):
    #   [i_f, i_b, f_f, f_b, o_f, o_b, g_f, g_b]
    xw_ref[...] = (jnp.dot(x_ref[...], wih_ref[...],
                           preferred_element_type=jnp.float32) + b_ref[...])

    h = jnp.zeros((NP, 2 * H), jnp.float32)     # fused state [h_fwd | h_bwd]
    c = jnp.zeros((NP, 2 * H), jnp.float32)     # fused state [c_fwd | c_bwd]

    # ---- fully-unrolled recurrence; ONE matmul + 3 EUP kickoffs per step ----
    for t in range(L):
        tb = L - 1 - t
        xw_t = xw_ref[pl.ds(t * NP, NP), :]     # sublane-tile-aligned (NP, 8H) read
        gates = xw_t + jnp.dot(h.astype(jnp.bfloat16), whh_ref[...],
                               preferred_element_type=jnp.float32)
        sig = jax.nn.sigmoid(gates[:, 0:6 * H])          # [i_f,i_b,f_f,f_b,o_f,o_b]
        i_g = sig[:, 0 * H:2 * H]
        f_g = sig[:, 2 * H:4 * H]
        o_g = sig[:, 4 * H:6 * H]
        g_g = jnp.tanh(gates[:, 6 * H:8 * H])            # [g_f | g_b]
        c = f_g * c + i_g * g_g
        h = o_g * jnp.tanh(c)
        # feat rows: VMEM stores, off the serial dependency chain.
        feat_ref[t:t + 1, 0:H] = h[N - 1:N, 0:H]         # torch h[:, -1, :H] @ time t
        feat_ref[tb:tb + 1, H:2 * H] = h[0:1, H:2 * H]   # torch h[:, 0, H:]  @ time tb

    # ---- fused, lane-dense head: [fc_mu | fc_var | 0] in one MXU call ----
    out_ref[...] = (jnp.dot(feat_ref[...].astype(jnp.bfloat16), w_head_ref[...],
                            preferred_element_type=jnp.float32) + b_head_ref[...])


# ------------------------------- wrapper ----------------------------------- #
def _split_ifgo(w, H):
    # PyTorch gate order along the last axis: [i, f, g, o]
    return (w[..., 0 * H:1 * H], w[..., 1 * H:2 * H],
            w[..., 2 * H:3 * H], w[..., 3 * H:4 * H])


def _interleave_gates(wf, wb, H):
    # per-direction [i,f,g,o] -> fused layout [i_f,i_b,f_f,f_b,o_f,o_b,g_f,g_b]
    i_f, f_f, g_f, o_f = _split_ifgo(wf, H)
    i_b, f_b, g_b, o_b = _split_ifgo(wb, H)
    return jnp.concatenate([i_f, i_b, f_f, f_b, o_f, o_b, g_f, g_b], axis=-1)


def encoder_forward(x, params):
    L, N, D = x.shape
    H = params["whh_f"].shape[0]          # whh stored transposed: (H, 4H)
    LAT = params["wmu"].shape[1]
    NP = ((N + 7) // 8) * 8               # pad batch to a full sublane tile
    OUT_LANES = max(128, ((2 * LAT + 127) // 128) * 128)   # lane-dense output

    f32, bf16 = jnp.float32, jnp.bfloat16

    # ---- host-side weight prep (one-time) ----
    # input projection for the lane-concatenated [x_t | x_{L-1-t}] input:
    # rows 0:D drive the fwd gate columns, rows D:2D the bwd gate columns.
    zi = jnp.zeros_like(params["wih_f"])
    wih_all = jnp.concatenate(
        [_interleave_gates(params["wih_f"], zi, H),
         _interleave_gates(zi, params["wih_b"], H)], axis=0).astype(f32)      # (2D, 8H)
    b_all = _interleave_gates(params["b_f"], params["b_b"], H).astype(f32)    # (1, 8H)

    # block-diagonal recurrent weight: one K=2H matmul drives both directions.
    zh = jnp.zeros((H, 4 * H), f32)
    whh_blk = jnp.concatenate(
        [_interleave_gates(params["whh_f"], zh, H),
         _interleave_gates(zh, params["whh_b"], H)], axis=0).astype(bf16)     # (2H, 8H)

    # fused, zero-padded (lane-dense) head.
    w_head = jnp.concatenate([params["wmu"], params["wvar"]], axis=1)         # (2H, 2*LAT)
    w_head_pad = (jnp.zeros((2 * H, OUT_LANES), f32)
                  .at[:, :2 * LAT].set(w_head).astype(bf16))
    b_head = jnp.concatenate([params["bmu"], params["bvar"]], axis=1)         # (1, 2*LAT)
    b_head_pad = jnp.zeros((1, OUT_LANES), f32).at[:, :2 * LAT].set(b_head)

    # per-step-aligned bidirectional input, padded to NP sublanes.
    x_bi = jnp.concatenate([x, x[::-1]], axis=-1)                             # (L, N, 2D)
    x_pad = jnp.zeros((L, NP, 2 * D), f32).at[:, :N, :].set(x_bi)
    x_flat = x_pad.reshape(L * NP, 2 * D)

    flops = int(2 * L * NP * (2 * D) * (8 * H)          # input projection
                + 2 * L * NP * (2 * H) * (8 * H)        # recurrence
                + 2 * L * (2 * H) * OUT_LANES)          # head
    transcendentals = int(L * NP * 10 * H)              # sigmoid 6H + tanh 2H + tanh 2H
    bytes_accessed = int(x_flat.size * 4 + wih_all.size * 4 + b_all.size * 4
                         + whh_blk.size * 2 + w_head_pad.size * 2
                         + b_head_pad.size * 4 + L * OUT_LANES * 4)

    vmem = pl.BlockSpec(memory_space=pltpu.MemorySpace.VMEM)
    kernel = pl.pallas_call(
        functools.partial(_encoder_kernel, L=L, NP=NP, N=N, H=H),
        out_shape=jax.ShapeDtypeStruct((L, OUT_LANES), jnp.float32),
        in_specs=[vmem] * 6,
        out_specs=vmem,
        scratch_shapes=[
            pltpu.VMEM((L * NP, 8 * H), jnp.float32),   # hoisted xW (both directions)
            pltpu.VMEM((L, 2 * H), jnp.float32),        # feat accumulator
        ],
        cost_estimate=pl.CostEstimate(flops=flops,
                                      transcendentals=transcendentals,
                                      bytes_accessed=bytes_accessed),
    )
    out = kernel(x_flat, wih_all, b_all, whh_blk, w_head_pad, b_head_pad)
    return out[:, :LAT], out[:, LAT:2 * LAT]


# ----------------------- pure-JAX reference (check) ------------------------ #
def encoder_reference(x, params):
    L, N, D = x.shape
    H = params["whh_f"].shape[0]

    def make_step(wih, whh, b):
        def step(carry, x_t):
            h, c = carry
            gates = x_t @ wih + h @ whh + b
            i = jax.nn.sigmoid(gates[:, 0 * H:1 * H])
            f = jax.nn.sigmoid(gates[:, 1 * H:2 * H])
            g = jnp.tanh(gates[:, 2 * H:3 * H])
            o = jax.nn.sigmoid(gates[:, 3 * H:4 * H])
            c = f * c + i * g
            h = o * jnp.tanh(c)
            return (h, c), h
        return step

    init = (jnp.zeros((N, H), jnp.float32), jnp.zeros((N, H), jnp.float32))
    _, h_fwd = lax.scan(make_step(params["wih_f"], params["whh_f"], params["b_f"]), init, x)
    _, h_bwd_rev = lax.scan(make_step(params["wih_b"], params["whh_b"], params["b_b"]), init, x[::-1])
    h_bwd = h_bwd_rev[::-1]
    feat = jnp.concatenate([h_fwd[:, -1, :], h_bwd[:, 0, :]], axis=-1)   # (L, 2H)
    mu = feat @ params["wmu"] + params["bmu"]
    var = feat @ params["wvar"] + params["bvar"]
    return mu, var


# --------------------------------- main ------------------------------------ #
if __name__ == "__main__":
    # small shapes consistent with the module: input_dim=5, hidden aligned to
    # the TPU lane width for clean gate slicing, latent_dim=2
    L, N, D, H, LAT = 8, 2, 5, 128, 2

    key = jax.random.PRNGKey(0)
    ks = jax.random.split(key, 12)
    k_lstm = 1.0 / jnp.sqrt(jnp.float32(H))
    k_fc = 1.0 / jnp.sqrt(jnp.float32(2 * H))

    def u(kk, shape, scale):
        return jax.random.uniform(kk, shape, jnp.float32, -scale, scale)

    params = {
        # LSTM weights stored pre-transposed for (x @ W) matmuls; PyTorch gate
        # order [i,f,g,o] (the wrapper permutes/fuses them for the kernel).
        "wih_f": u(ks[0], (D, 4 * H), k_lstm),
        "whh_f": u(ks[1], (H, 4 * H), k_lstm),
        "b_f":   u(ks[2], (1, 4 * H), k_lstm),   # = bias_ih + bias_hh folded together
        "wih_b": u(ks[3], (D, 4 * H), k_lstm),
        "whh_b": u(ks[4], (H, 4 * H), k_lstm),
        "b_b":   u(ks[5], (1, 4 * H), k_lstm),
        "wmu":   u(ks[6], (2 * H, LAT), k_fc),
        "bmu":   u(ks[7], (1, LAT), k_fc),
        "wvar":  u(ks[8], (2 * H, LAT), k_fc),
        "bvar":  u(ks[9], (1, LAT), k_fc),
    }

    x = jax.random.normal(ks[10], (L, N, D), jnp.float32)

    mu, var = encoder_forward(x, params)
    jax.block_until_ready((mu, var))

    mu_ref, var_ref = encoder_reference(x, params)
    assert mu.shape == (L, LAT) and var.shape == (L, LAT)
    assert jnp.allclose(mu, mu_ref, rtol=1e-2, atol=1e-2)
    assert jnp.allclose(var, var_ref, rtol=1e-2, atol=1e-2)

    print("KERNEL_OK")
</pallas_src>

<mosaic_0001>
module attributes {stable_mosaic.version = 11 : i64} {
  func.func @_encoder_kernel(%arg0: memref<64x10xf32, #tpu.memory_space<vmem>>, %arg1: memref<10x1024xf32, #tpu.memory_space<vmem>>, %arg2: memref<1x1024xf32, #tpu.memory_space<vmem>>, %arg3: memref<256x1024xbf16, #tpu.memory_space<vmem>>, %arg4: memref<256x128xbf16, #tpu.memory_space<vmem>>, %arg5: memref<1x128xf32, #tpu.memory_space<vmem>>, %arg6: memref<8x128xf32, #tpu.memory_space<vmem>>, %arg7: memref<64x1024xf32, #tpu.memory_space<vmem>>, %arg8: memref<8x256xf32, #tpu.memory_space<vmem>>) attributes {dimension_semantics = [], scalar_prefetch = 0 : i64, scratch_operands = 2 : i64, tpu.core_type = #tpu.core_type<tc>} {
    %c0 = arith.constant 0 : index
    %c0_0 = arith.constant 0 : index
    %0 = vector.load %arg0[%c0, %c0_0] : memref<64x10xf32, #tpu.memory_space<vmem>>, vector<64x10xf32>
    %c0_1 = arith.constant 0 : index
    %c0_2 = arith.constant 0 : index
    %1 = vector.load %arg1[%c0_1, %c0_2] : memref<10x1024xf32, #tpu.memory_space<vmem>>, vector<10x1024xf32>
    %cst = arith.constant dense<0.000000e+00> : vector<64x1024xf32>
    %2 = tpu.matmul %0, %1, %cst {dimension_numbers = #tpu.dot_dimension_numbers<[1], [0], [0], [1], [0, 0, 1, 1], [], []>} : vector<64x10xf32>, vector<10x1024xf32>, vector<64x1024xf32> -> vector<64x1024xf32>
    %c0_3 = arith.constant 0 : index
    %c0_4 = arith.constant 0 : index
    %3 = vector.load %arg2[%c0_3, %c0_4] : memref<1x1024xf32, #tpu.memory_space<vmem>>, vector<1x1024xf32>
    %4 = vector.broadcast %3 : vector<1x1024xf32> to vector<64x1024xf32>
    %5 = arith.addf %2, %4 : vector<64x1024xf32>
    %c0_5 = arith.constant 0 : index
    %c0_6 = arith.constant 0 : index
    %6 = vector.load %arg7[%c0_5, %c0_6] : memref<64x1024xf32, #tpu.memory_space<vmem>>, vector<64x1024xf32>
    tpu.vector_store %arg7[%c0_5, %c0_6], %5 {strides = array<i32>} : memref<64x1024xf32, #tpu.memory_space<vmem>>, vector<64x1024xf32>,
    %cst_7 = arith.constant 0.000000e+00 : f32
    %7 = vector.broadcast %cst_7 : f32 to vector<8x256xf32>
    %cst_8 = arith.constant 0.000000e+00 : f32
    %8 = vector.broadcast %cst_8 : f32 to vector<8x256xf32>
    %c0_9 = arith.constant 0 : index
    %c0_10 = arith.constant 0 : index
    %9 = vector.load %arg7[%c0_9, %c0_10] : memref<64x1024xf32, #tpu.memory_space<vmem>>, vector<8x1024xf32>
    %10 = arith.truncf %7 : vector<8x256xf32> to vector<8x256xbf16>
    %c0_11 = arith.constant 0 : index
    %c0_12 = arith.constant 0 : index
    %11 = vector.load %arg3[%c0_11, %c0_12] : memref<256x1024xbf16, #tpu.memory_space<vmem>>, vector<256x1024xbf16>
    %cst_13 = arith.constant dense<0.000000e+00> : vector<8x1024xf32>
    %12 = tpu.matmul %10, %11, %cst_13 {dimension_numbers = #tpu.dot_dimension_numbers<[1], [0], [0], [1], [0, 0, 1, 1], [], []>} : vector<8x256xbf16>, vector<256x1024xbf16>, vector<8x1024xf32> -> vector<8x1024xf32>
    %13 = arith.addf %9, %12 : vector<8x1024xf32>
    %14 = vector.extract_strided_slice %13 {offsets = [0, 0], sizes = [8, 768], strides = [1, 1]} : vector<8x1024xf32> to vector<8x768xf32>
    %15 = arith.negf %14 : vector<8x768xf32>
    %16 = math.exp %15 : vector<8x768xf32>
    %cst_14 = arith.constant 1.000000e+00 : f32
    %17 = vector.broadcast %cst_14 : f32 to vector<8x768xf32>
    %18 = arith.addf %17, %16 : vector<8x768xf32>
    %19 = arith.divf %17, %18 : vector<8x768xf32>
    %20 = vector.extract_strided_slice %19 {offsets = [0, 0], sizes = [8, 256], strides = [1, 1]} : vector<8x768xf32> to vector<8x256xf32>
    %21 = vector.extract_strided_slice %19 {offsets = [0, 256], sizes = [8, 256], strides = [1, 1]} : vector<8x768xf32> to vector<8x256xf32>
    %22 = vector.extract_strided_slice %19 {offsets = [0, 512], sizes = [8, 256], strides = [1, 1]} : vector<8x768xf32> to vector<8x256xf32>
    %23 = vector.extract_strided_slice %13 {offsets = [0, 768], sizes = [8, 256], strides = [1, 1]} : vector<8x1024xf32> to vector<8x256xf32>
    %24 = math.tanh %23 : vector<8x256xf32>
    %25 = arith.mulf %21, %8 : vector<8x256xf32>
    %26 = arith.mulf %20, %24 : vector<8x256xf32>
    %27 = arith.addf %25, %26 : vector<8x256xf32>
    %28 = math.tanh %27 : vector<8x256xf32>
    %29 = arith.mulf %22, %28 : vector<8x256xf32>
    %30 = vector.extract_strided_slice %29 {offsets = [1, 0], sizes = [1, 128], strides = [1, 1]} : vector<8x256xf32> to vector<1x128xf32>
    %c0_15 = arith.constant 0 : index
    %c0_16 = arith.constant 0 : index
    %31 = vector.load %arg8[%c0_15, %c0_16] : memref<8x256xf32, #tpu.memory_space<vmem>>, vector<1x128xf32>
    tpu.vector_store %arg8[%c0_15, %c0_16], %30 {strides = array<i32>} : memref<8x256xf32, #tpu.memory_space<vmem>>, vector<1x128xf32>,
    %32 = vector.extract_strided_slice %29 {offsets = [0, 128], sizes = [1, 128], strides = [1, 1]} : vector<8x256xf32> to vector<1x128xf32>
    %c7 = arith.constant 7 : index
    %c128 = arith.constant 128 : index
    %33 = vector.load %arg8[%c7, %c128] : memref<8x256xf32, #tpu.memory_space<vmem>>, vector<1x128xf32>
    tpu.vector_store %arg8[%c7, %c128], %32 {strides = array<i32>} : memref<8x256xf32, #tpu.memory_space<vmem>>, vector<1x128xf32>,
    %c8 = arith.constant 8 : index
    %c0_17 = arith.constant 0 : index
    %34 = vector.load %arg7[%c8, %c0_17] : memref<64x1024xf32, #tpu.memory_space<vmem>>, vector<8x1024xf32>
    %35 = arith.truncf %29 : vector<8x256xf32> to vector<8x256xbf16>
    %c0_18 = arith.constant 0 : index
    %c0_19 = arith.constant 0 : index
    %36 = vector.load %arg3[%c0_18, %c0_19] : memref<256x1024xbf16, #tpu.memory_space<vmem>>, vector<256x1024xbf16>
    %cst_20 = arith.constant dense<0.000000e+00> : vector<8x1024xf32>
    %37 = tpu.matmul %35, %36, %cst_20 {dimension_numbers = #tpu.dot_dimension_numbers<[1], [0], [0], [1], [0, 0, 1, 1], [], []>} : vector<8x256xbf16>, vector<256x1024xbf16>, vector<8x1024xf32> -> vector<8x1024xf32>
    %38 = arith.addf %34, %37 : vector<8x1024xf32>
    %39 = vector.extract_strided_slice %38 {offsets = [0, 0], sizes = [8, 768], strides = [1, 1]} : vector<8x1024xf32> to vector<8x768xf32>
    %40 = arith.negf %39 : vector<8x768xf32>
    %41 = math.exp %40 : vector<8x768xf32>
    %cst_21 = arith.constant 1.000000e+00 : f32
    %42 = vector.broadcast %cst_21 : f32 to vector<8x768xf32>
    %43 = arith.addf %42, %41 : vector<8x768xf32>
    %44 = arith.divf %42, %43 : vector<8x768xf32>
    %45 = vector.extract_strided_slice %44 {offsets = [0, 0], sizes = [8, 256], strides = [1, 1]} : vector<8x768xf32> to vector<8x256xf32>
    %46 = vector.extract_strided_slice %44 {offsets = [0, 256], sizes = [8, 256], strides = [1, 1]} : vector<8x768xf32> to vector<8x256xf32>
    %47 = vector.extract_strided_slice %44 {offsets = [0, 512], sizes = [8, 256], strides = [1, 1]} : vector<8x768xf32> to vector<8x256xf32>
    %48 = vector.extract_strided_slice %38 {offsets = [0, 768], sizes = [8, 256], strides = [1, 1]} : vector<8x1024xf32> to vector<8x256xf32>
    %49 = math.tanh %48 : vector<8x256xf32>
    %50 = arith.mulf %46, %27 : vector<8x256xf32>
    %51 = arith.mulf %45, %49 : vector<8x256xf32>
    %52 = arith.addf %50, %51 : vector<8x256xf32>
    %53 = math.tanh %52 : vector<8x256xf32>
    %54 = arith.mulf %47, %53 : vector<8x256xf32>
    %55 = vector.extract_strided_slice %54 {offsets = [1, 0], sizes = [1, 128], strides = [1, 1]} : vector<8x256xf32> to vector<1x128xf32>
    %c1 = arith.constant 1 : index
    %c0_22 = arith.constant 0 : index
    %56 = vector.load %arg8[%c1, %c0_22] : memref<8x256xf32, #tpu.memory_space<vmem>>, vector<1x128xf32>
    tpu.vector_store %arg8[%c1, %c0_22], %55 {strides = array<i32>} : memref<8x256xf32, #tpu.memory_space<vmem>>, vector<1x128xf32>,
    %57 = vector.extract_strided_slice %54 {offsets = [0, 128], sizes = [1, 128], strides = [1, 1]} : vector<8x256xf32> to vector<1x128xf32>
    %c6 = arith.constant 6 : index
    %c128_23 = arith.constant 128 : index
    %58 = vector.load %arg8[%c6, %c128_23] : memref<8x256xf32, #tpu.memory_space<vmem>>, vector<1x128xf32>
    tpu.vector_store %arg8[%c6, %c128_23], %57 {strides = array<i32>} : memref<8x256xf32, #tpu.memory_space<vmem>>, vector<1x128xf32>,
    %c16 = arith.constant 16 : index
    %c0_24 = arith.constant 0 : index
    %59 = vector.load %arg7[%c16, %c0_24] : memref<64x1024xf32, #tpu.memory_space<vmem>>, vector<8x1024xf32>
    %60 = arith.truncf %54 : vector<8x256xf32> to vector<8x256xbf16>
    %c0_25 = arith.constant 0 : index
    %c0_26 = arith.constant 0 : index
    %61 = vector.load %arg3[%c0_25, %c0_26] : memref<256x1024xbf16, #tpu.memory_space<vmem>>, vector<256x1024xbf16>
    %cst_27 = arith.constant dense<0.000000e+00> : vector<8x1024xf32>
    %62 = tpu.matmul %60, %61, %cst_27 {dimension_numbers = #tpu.dot_dimension_numbers<[1], [0], [0], [1], [0, 0, 1, 1], [], []>} : vector<8x256xbf16>, vector<256x1024xbf16>, vector<8x1024xf32> -> vector<8x1024xf32>
    %63 = arith.addf %59, %62 : vector<8x1024xf32>
    %64 = vector.extract_strided_slice %63 {offsets = [0, 0], sizes = [8, 768], strides = [1, 1]} : vector<8x1024xf32> to vector<8x768xf32>
    %65 = arith.negf %64 : vector<8x768xf32>
    %66 = math.exp %65 : vector<8x768xf32>
    %cst_28 = arith.constant 1.000000e+00 : f32
    %67 = vector.broadcast %cst_28 : f32 to vector<8x768xf32>
    %68 = arith.addf %67, %66 : vector<8x768xf32>
    %69 = arith.divf %67, %68 : vector<8x768xf32>
    %70 = vector.extract_strided_slice %69 {offsets = [0, 0], sizes = [8, 256], strides = [1, 1]} : vector<8x768xf32> to vector<8x256xf32>
    %71 = vector.extract_strided_slice %69 {offsets = [0, 256], sizes = [8, 256], strides = [1, 1]} : vector<8x768xf32> to vector<8x256xf32>
    %72 = vector.extract_strided_slice %69 {offsets = [0, 512], sizes = [8, 256], strides = [1, 1]} : vector<8x768xf32> to vector<8x256xf32>
    %73 = vector.extract_strided_slice %63 {offsets = [0, 768], sizes = [8, 256], strides = [1, 1]} : vector<8x1024xf32> to vector<8x256xf32>
    %74 = math.tanh %73 : vector<8x256xf32>
    %75 = arith.mulf %71, %52 : vector<8x256xf32>
    %76 = arith.mulf %70, %74 : vector<8x256xf32>
    %77 = arith.addf %75, %76 : vector<8x256xf32>
    %78 = math.tanh %77 : vector<8x256xf32>
    %79 = arith.mulf %72, %78 : vector<8x256xf32>
    %80 = vector.extract_strided_slice %79 {offsets = [1, 0], sizes = [1, 128], strides = [1, 1]} : vector<8x256xf32> to vector<1x128xf32>
    %c2 = arith.constant 2 : index
    %c0_29 = arith.constant 0 : index
    %81 = vector.load %arg8[%c2, %c0_29] : memref<8x256xf32, #tpu.memory_space<vmem>>, vector<1x128xf32>
    tpu.vector_store %arg8[%c2, %c0_29], %80 {strides = array<i32>} : memref<8x256xf32, #tpu.memory_space<vmem>>, vector<1x128xf32>,
    %82 = vector.extract_strided_slice %79 {offsets = [0, 128], sizes = [1, 128], strides = [1, 1]} : vector<8x256xf32> to vector<1x128xf32>
    %c5 = arith.constant 5 : index
    %c128_30 = arith.constant 128 : index
    %83 = vector.load %arg8[%c5, %c128_30] : memref<8x256xf32, #tpu.memory_space<vmem>>, vector<1x128xf32>
    tpu.vector_store %arg8[%c5, %c128_30], %82 {strides = array<i32>} : memref<8x256xf32, #tpu.memory_space<vmem>>, vector<1x128xf32>,
    %c24 = arith.constant 24 : index
    %c0_31 = arith.constant 0 : index
    %84 = vector.load %arg7[%c24, %c0_31] : memref<64x1024xf32, #tpu.memory_space<vmem>>, vector<8x1024xf32>
    %85 = arith.truncf %79 : vector<8x256xf32> to vector<8x256xbf16>
    %c0_32 = arith.constant 0 : index
    %c0_33 = arith.constant 0 : index
    %86 = vector.load %arg3[%c0_32, %c0_33] : memref<256x1024xbf16, #tpu.memory_space<vmem>>, vector<256x1024xbf16>
    %cst_34 = arith.constant dense<0.000000e+00> : vector<8x1024xf32>
    %87 = tpu.matmul %85, %86, %cst_34 {dimension_numbers = #tpu.dot_dimension_numbers<[1], [0], [0], [1], [0, 0, 1, 1], [], []>} : vector<8x256xbf16>, vector<256x1024xbf16>, vector<8x1024xf32> -> vector<8x1024xf32>
    %88 = arith.addf %84, %87 : vector<8x1024xf32>
    %89 = vector.extract_strided_slice %88 {offsets = [0, 0], sizes = [8, 768], strides = [1, 1]} : vector<8x1024xf32> to vector<8x768xf32>
    %90 = arith.negf %89 : vector<8x768xf32>
    %91 = math.exp %90 : vector<8x768xf32>
    %cst_35 = arith.constant 1.000000e+00 : f32
    %92 = vector.broadcast %cst_35 : f32 to vector<8x768xf32>
    %93 = arith.addf %92, %91 : vector<8x768xf32>
    %94 = arith.divf %92, %93 : vector<8x768xf32>
    %95 = vector.extract_strided_slice %94 {offsets = [0, 0], sizes = [8, 256], strides = [1, 1]} : vector<8x768xf32> to vector<8x256xf32>
    %96 = vector.extract_strided_slice %94 {offsets = [0, 256], sizes = [8, 256], strides = [1, 1]} : vector<8x768xf32> to vector<8x256xf32>
    %97 = vector.extract_strided_slice %94 {offsets = [0, 512], sizes = [8, 256], strides = [1, 1]} : vector<8x768xf32> to vector<8x256xf32>
    %98 = vector.extract_strided_slice %88 {offsets = [0, 768], sizes = [8, 256], strides = [1, 1]} : vector<8x1024xf32> to vector<8x256xf32>
    %99 = math.tanh %98 : vector<8x256xf32>
    %100 = arith.mulf %96, %77 : vector<8x256xf32>
    %101 = arith.mulf %95, %99 : vector<8x256xf32>
    %102 = arith.addf %100, %101 : vector<8x256xf32>
    %103 = math.tanh %102 : vector<8x256xf32>
    %104 = arith.mulf %97, %103 : vector<8x256xf32>
    %105 = vector.extract_strided_slice %104 {offsets = [1, 0], sizes = [1, 128], strides = [1, 1]} : vector<8x256xf32> to vector<1x128xf32>
    %c3 = arith.constant 3 : index
    %c0_36 = arith.constant 0 : index
    %106 = vector.load %arg8[%c3, %c0_36] : memref<8x256xf32, #tpu.memory_space<vmem>>, vector<1x128xf32>
    tpu.vector_store %arg8[%c3, %c0_36], %105 {strides = array<i32>} : memref<8x256xf32, #tpu.memory_space<vmem>>, vector<1x128xf32>,
    %107 = vector.extract_strided_slice %104 {offsets = [0, 128], sizes = [1, 128], strides = [1, 1]} : vector<8x256xf32> to vector<1x128xf32>
    %c4 = arith.constant 4 : index
    %c128_37 = arith.constant 128 : index
    %108 = vector.load %arg8[%c4, %c128_37] : memref<8x256xf32, #tpu.memory_space<vmem>>, vector<1x128xf32>
    tpu.vector_store %arg8[%c4, %c128_37], %107 {strides = array<i32>} : memref<8x256xf32, #tpu.memory_space<vmem>>, vector<1x128xf32>,
    %c32 = arith.constant 32 : index
    %c0_38 = arith.constant 0 : index
    %109 = vector.load %arg7[%c32, %c0_38] : memref<64x1024xf32, #tpu.memory_space<vmem>>, vector<8x1024xf32>
    %110 = arith.truncf %104 : vector<8x256xf32> to vector<8x256xbf16>
    %c0_39 = arith.constant 0 : index
    %c0_40 = arith.constant 0 : index
    %111 = vector.load %arg3[%c0_39, %c0_40] : memref<256x1024xbf16, #tpu.memory_space<vmem>>, vector<256x1024xbf16>
    %cst_41 = arith.constant dense<0.000000e+00> : vector<8x1024xf32>
    %112 = tpu.matmul %110, %111, %cst_41 {dimension_numbers = #tpu.dot_dimension_numbers<[1], [0], [0], [1], [0, 0, 1, 1], [], []>} : vector<8x256xbf16>, vector<256x1024xbf16>, vector<8x1024xf32> -> vector<8x1024xf32>
    %113 = arith.addf %109, %112 : vector<8x1024xf32>
    %114 = vector.extract_strided_slice %113 {offsets = [0, 0], sizes = [8, 768], strides = [1, 1]} : vector<8x1024xf32> to vector<8x768xf32>
    %115 = arith.negf %114 : vector<8x768xf32>
    %116 = math.exp %115 : vector<8x768xf32>
    %cst_42 = arith.constant 1.000000e+00 : f32
    %117 = vector.broadcast %cst_42 : f32 to vector<8x768xf32>
    %118 = arith.addf %117, %116 : vector<8x768xf32>
    %119 = arith.divf %117, %118 : vector<8x768xf32>
    %120 = vector.extract_strided_slice %119 {offsets = [0, 0], sizes = [8, 256], strides = [1, 1]} : vector<8x768xf32> to vector<8x256xf32>
    %121 = vector.extract_strided_slice %119 {offsets = [0, 256], sizes = [8, 256], strides = [1, 1]} : vector<8x768xf32> to vector<8x256xf32>
    %122 = vector.extract_strided_slice %119 {offsets = [0, 512], sizes = [8, 256], strides = [1, 1]} : vector<8x768xf32> to vector<8x256xf32>
    %123 = vector.extract_strided_slice %113 {offsets = [0, 768], sizes = [8, 256], strides = [1, 1]} : vector<8x1024xf32> to vector<8x256xf32>
    %124 = math.tanh %123 : vector<8x256xf32>
    %125 = arith.mulf %121, %102 : vector<8x256xf32>
    %126 = arith.mulf %120, %124 : vector<8x256xf32>
    %127 = arith.addf %125, %126 : vector<8x256xf32>
    %128 = math.tanh %127 : vector<8x256xf32>
    %129 = arith.mulf %122, %128 : vector<8x256xf32>
    %130 = vector.extract_strided_slice %129 {offsets = [1, 0], sizes = [1, 128], strides = [1, 1]} : vector<8x256xf32> to vector<1x128xf32>
    %c4_43 = arith.constant 4 : index
    %c0_44 = arith.constant 0 : index
    %131 = vector.load %arg8[%c4_43, %c0_44] : memref<8x256xf32, #tpu.memory_space<vmem>>, vector<1x128xf32>
    tpu.vector_store %arg8[%c4_43, %c0_44], %130 {strides = array<i32>} : memref<8x256xf32, #tpu.memory_space<vmem>>, vector<1x128xf32>,
    %132 = vector.extract_strided_slice %129 {offsets = [0, 128], sizes = [1, 128], strides = [1, 1]} : vector<8x256xf32> to vector<1x128xf32>
    %c3_45 = arith.constant 3 : index
    %c128_46 = arith.constant 128 : index
    %133 = vector.load %arg8[%c3_45, %c128_46] : memref<8x256xf32, #tpu.memory_space<vmem>>, vector<1x128xf32>
    tpu.vector_store %arg8[%c3_45, %c128_46], %132 {strides = array<i32>} : memref<8x256xf32, #tpu.memory_space<vmem>>, vector<1x128xf32>,
    %c40 = arith.constant 40 : index
    %c0_47 = arith.constant 0 : index
    %134 = vector.load %arg7[%c40, %c0_47] : memref<64x1024xf32, #tpu.memory_space<vmem>>, vector<8x1024xf32>
    %135 = arith.truncf %129 : vector<8x256xf32> to vector<8x256xbf16>
    %c0_48 = arith.constant 0 : index
    %c0_49 = arith.constant 0 : index
    %136 = vector.load %arg3[%c0_48, %c0_49] : memref<256x1024xbf16, #tpu.memory_space<vmem>>, vector<256x1024xbf16>
    %cst_50 = arith.constant dense<0.000000e+00> : vector<8x1024xf32>
    %137 = tpu.matmul %135, %136, %cst_50 {dimension_numbers = #tpu.dot_dimension_numbers<[1], [0], [0], [1], [0, 0, 1, 1], [], []>} : vector<8x256xbf16>, vector<256x1024xbf16>, vector<8x1024xf32> -> vector<8x1024xf32>
    %138 = arith.addf %134, %137 : vector<8x1024xf32>
    %139 = vector.extract_strided_slice %138 {offsets = [0, 0], sizes = [8, 768], strides = [1, 1]} : vector<8x1024xf32> to vector<8x768xf32>
    %140 = arith.negf %139 : vector<8x768xf32>
    %141 = math.exp %140 : vector<8x768xf32>
    %cst_51 = arith.constant 1.000000e+00 : f32
    %142 = vector.broadcast %cst_51 : f32 to vector<8x768xf32>
    %143 = arith.addf %142, %141 : vector<8x768xf32>
    %144 = arith.divf %142, %143 : vector<8x768xf32>
    %145 = vector.extract_strided_slice %144 {offsets = [0, 0], sizes = [8, 256], strides = [1, 1]} : vector<8x768xf32> to vector<8x256xf32>
    %146 = vector.extract_strided_slice %144 {offsets = [0, 256], sizes = [8, 256], strides = [1, 1]} : vector<8x768xf32> to vector<8x256xf32>
    %147 = vector.extract_strided_slice %144 {offsets = [0, 512], sizes = [8, 256], strides = [1, 1]} : vector<8x768xf32> to vector<8x256xf32>
    %148 = vector.extract_strided_slice %138 {offsets = [0, 768], sizes = [8, 256], strides = [1, 1]} : vector<8x1024xf32> to vector<8x256xf32>
    %149 = math.tanh %148 : vector<8x256xf32>
    %150 = arith.mulf %146, %127 : vector<8x256xf32>
    %151 = arith.mulf %145, %149 : vector<8x256xf32>
    %152 = arith.addf %150, %151 : vector<8x256xf32>
    %153 = math.tanh %152 : vector<8x256xf32>
    %154 = arith.mulf %147, %153 : vector<8x256xf32>
    %155 = vector.extract_strided_slice %154 {offsets = [1, 0], sizes = [1, 128], strides = [1, 1]} : vector<8x256xf32> to vector<1x128xf32>
    %c5_52 = arith.constant 5 : index
    %c0_53 = arith.constant 0 : index
    %156 = vector.load %arg8[%c5_52, %c0_53] : memref<8x256xf32, #tpu.memory_space<vmem>>, vector<1x128xf32>
    tpu.vector_store %arg8[%c5_52, %c0_53], %155 {strides = array<i32>} : memref<8x256xf32, #tpu.memory_space<vmem>>, vector<1x128xf32>,
    %157 = vector.extract_strided_slice %154 {offsets = [0, 128], sizes = [1, 128], strides = [1, 1]} : vector<8x256xf32> to vector<1x128xf32>
    %c2_54 = arith.constant 2 : index
    %c128_55 = arith.constant 128 : index
    %158 = vector.load %arg8[%c2_54, %c128_55] : memref<8x256xf32, #tpu.memory_space<vmem>>, vector<1x128xf32>
    tpu.vector_store %arg8[%c2_54, %c128_55], %157 {strides = array<i32>} : memref<8x256xf32, #tpu.memory_space<vmem>>, vector<1x128xf32>,
    %c48 = arith.constant 48 : index
    %c0_56 = arith.constant 0 : index
    %159 = vector.load %arg7[%c48, %c0_56] : memref<64x1024xf32, #tpu.memory_space<vmem>>, vector<8x1024xf32>
    %160 = arith.truncf %154 : vector<8x256xf32> to vector<8x256xbf16>
    %c0_57 = arith.constant 0 : index
    %c0_58 = arith.constant 0 : index
    %161 = vector.load %arg3[%c0_57, %c0_58] : memref<256x1024xbf16, #tpu.memory_space<vmem>>, vector<256x1024xbf16>
    %cst_59 = arith.constant dense<0.000000e+00> : vector<8x1024xf32>
    %162 = tpu.matmul %160, %161, %cst_59 {dimension_numbers = #tpu.dot_dimension_numbers<[1], [0], [0], [1], [0, 0, 1, 1], [], []>} : vector<8x256xbf16>, vector<256x1024xbf16>, vector<8x1024xf32> -> vector<8x1024xf32>
    %163 = arith.addf %159, %162 : vector<8x1024xf32>
    %164 = vector.extract_strided_slice %163 {offsets = [0, 0], sizes = [8, 768], strides = [1, 1]} : vector<8x1024xf32> to vector<8x768xf32>
    %165 = arith.negf %164 : vector<8x768xf32>
    %166 = math.exp %165 : vector<8x768xf32>
    %cst_60 = arith.constant 1.000000e+00 : f32
    %167 = vector.broadcast %cst_60 : f32 to vector<8x768xf32>
    %168 = arith.addf %167, %166 : vector<8x768xf32>
    %169 = arith.divf %167, %168 : vector<8x768xf32>
    %170 = vector.extract_strided_slice %169 {offsets = [0, 0], sizes = [8, 256], strides = [1, 1]} : vector<8x768xf32> to vector<8x256xf32>
    %171 = vector.extract_strided_slice %169 {offsets = [0, 256], sizes = [8, 256], strides = [1, 1]} : vector<8x768xf32> to vector<8x256xf32>
    %172 = vector.extract_strided_slice %169 {offsets = [0, 512], sizes = [8, 256], strides = [1, 1]} : vector<8x768xf32> to vector<8x256xf32>
    %173 = vector.extract_strided_slice %163 {offsets = [0, 768], sizes = [8, 256], strides = [1, 1]} : vector<8x1024xf32> to vector<8x256xf32>
    %174 = math.tanh %173 : vector<8x256xf32>
    %175 = arith.mulf %171, %152 : vector<8x256xf32>
    %176 = arith.mulf %170, %174 : vector<8x256xf32>
    %177 = arith.addf %175, %176 : vector<8x256xf32>
    %178 = math.tanh %177 : vector<8x256xf32>
    %179 = arith.mulf %172, %178 : vector<8x256xf32>
    %180 = vector.extract_strided_slice %179 {offsets = [1, 0], sizes = [1, 128], strides = [1, 1]} : vector<8x256xf32> to vector<1x128xf32>
    %c6_61 = arith.constant 6 : index
    %c0_62 = arith.constant 0 : index
    %181 = vector.load %arg8[%c6_61, %c0_62] : memref<8x256xf32, #tpu.memory_space<vmem>>, vector<1x128xf32>
    tpu.vector_store %arg8[%c6_61, %c0_62], %180 {strides = array<i32>} : memref<8x256xf32, #tpu.memory_space<vmem>>, vector<1x128xf32>,
    %182 = vector.extract_strided_slice %179 {offsets = [0, 128], sizes = [1, 128], strides = [1, 1]} : vector<8x256xf32> to vector<1x128xf32>
    %c1_63 = arith.constant 1 : index
    %c128_64 = arith.constant 128 : index
    %183 = vector.load %arg8[%c1_63, %c128_64] : memref<8x256xf32, #tpu.memory_space<vmem>>, vector<1x128xf32>
    tpu.vector_store %arg8[%c1_63, %c128_64], %182 {strides = array<i32>} : memref<8x256xf32, #tpu.memory_space<vmem>>, vector<1x128xf32>,
    %c56 = arith.constant 56 : index
    %c0_65 = arith.constant 0 : index
    %184 = vector.load %arg7[%c56, %c0_65] : memref<64x1024xf32, #tpu.memory_space<vmem>>, vector<8x1024xf32>
    %185 = arith.truncf %179 : vector<8x256xf32> to vector<8x256xbf16>
    %c0_66 = arith.constant 0 : index
    %c0_67 = arith.constant 0 : index
    %186 = vector.load %arg3[%c0_66, %c0_67] : memref<256x1024xbf16, #tpu.memory_space<vmem>>, vector<256x1024xbf16>
    %cst_68 = arith.constant dense<0.000000e+00> : vector<8x1024xf32>
    %187 = tpu.matmul %185, %186, %cst_68 {dimension_numbers = #tpu.dot_dimension_numbers<[1], [0], [0], [1], [0, 0, 1, 1], [], []>} : vector<8x256xbf16>, vector<256x1024xbf16>, vector<8x1024xf32> -> vector<8x1024xf32>
    %188 = arith.addf %184, %187 : vector<8x1024xf32>
    %189 = vector.extract_strided_slice %188 {offsets = [0, 0], sizes = [8, 768], strides = [1, 1]} : vector<8x1024xf32> to vector<8x768xf32>
    %190 = arith.negf %189 : vector<8x768xf32>
    %191 = math.exp %190 : vector<8x768xf32>
    %cst_69 = arith.constant 1.000000e+00 : f32
    %192 = vector.broadcast %cst_69 : f32 to vector<8x768xf32>
    %193 = arith.addf %192, %191 : vector<8x768xf32>
    %194 = arith.divf %192, %193 : vector<8x768xf32>
    %195 = vector.extract_strided_slice %194 {offsets = [0, 0], sizes = [8, 256], strides = [1, 1]} : vector<8x768xf32> to vector<8x256xf32>
    %196 = vector.extract_strided_slice %194 {offsets = [0, 256], sizes = [8, 256], strides = [1, 1]} : vector<8x768xf32> to vector<8x256xf32>
    %197 = vector.extract_strided_slice %194 {offsets = [0, 512], sizes = [8, 256], strides = [1, 1]} : vector<8x768xf32> to vector<8x256xf32>
    %198 = vector.extract_strided_slice %188 {offsets = [0, 768], sizes = [8, 256], strides = [1, 1]} : vector<8x1024xf32> to vector<8x256xf32>
    %199 = math.tanh %198 : vector<8x256xf32>
    %200 = arith.mulf %196, %177 : vector<8x256xf32>
    %201 = arith.mulf %195, %199 : vector<8x256xf32>
    %202 = arith.addf %200, %201 : vector<8x256xf32>
    %203 = math.tanh %202 : vector<8x256xf32>
    %204 = arith.mulf %197, %203 : vector<8x256xf32>
    %205 = vector.extract_strided_slice %204 {offsets = [1, 0], sizes = [1, 128], strides = [1, 1]} : vector<8x256xf32> to vector<1x128xf32>
    %c7_70 = arith.constant 7 : index
    %c0_71 = arith.constant 0 : index
    %206 = vector.load %arg8[%c7_70, %c0_71] : memref<8x256xf32, #tpu.memory_space<vmem>>, vector<1x128xf32>
    tpu.vector_store %arg8[%c7_70, %c0_71], %205 {strides = array<i32>} : memref<8x256xf32, #tpu.memory_space<vmem>>, vector<1x128xf32>,
    %207 = vector.extract_strided_slice %204 {offsets = [0, 128], sizes = [1, 128], strides = [1, 1]} : vector<8x256xf32> to vector<1x128xf32>
    %c0_72 = arith.constant 0 : index
    %c128_73 = arith.constant 128 : index
    %208 = vector.load %arg8[%c0_72, %c128_73] : memref<8x256xf32, #tpu.memory_space<vmem>>, vector<1x128xf32>
    tpu.vector_store %arg8[%c0_72, %c128_73], %207 {strides = array<i32>} : memref<8x256xf32, #tpu.memory_space<vmem>>, vector<1x128xf32>,
    %c0_74 = arith.constant 0 : index
    %c0_75 = arith.constant 0 : index
    %209 = vector.load %arg8[%c0_74, %c0_75] : memref<8x256xf32, #tpu.memory_space<vmem>>, vector<8x256xf32>
    %210 = arith.truncf %209 : vector<8x256xf32> to vector<8x256xbf16>
    %c0_76 = arith.constant 0 : index
    %c0_77 = arith.constant 0 : index
    %211 = vector.load %arg4[%c0_76, %c0_77] : memref<256x128xbf16, #tpu.memory_space<vmem>>, vector<256x128xbf16>
    %cst_78 = arith.constant dense<0.000000e+00> : vector<8x128xf32>
    %212 = tpu.matmul %210, %211, %cst_78 {dimension_numbers = #tpu.dot_dimension_numbers<[1], [0], [0], [1], [0, 0, 1, 1], [], []>} : vector<8x256xbf16>, vector<256x128xbf16>, vector<8x128xf32> -> vector<8x128xf32>
    %c0_79 = arith.constant 0 : index
    %c0_80 = arith.constant 0 : index
    %213 = vector.load %arg5[%c0_79, %c0_80] : memref<1x128xf32, #tpu.memory_space<vmem>>, vector<1x128xf32>
    %214 = vector.broadcast %213 : vector<1x128xf32> to vector<8x128xf32>
    %215 = arith.addf %212, %214 : vector<8x128xf32>
    %c0_81 = arith.constant 0 : index
    %c0_82 = arith.constant 0 : index
    %216 = vector.load %arg6[%c0_81, %c0_82] : memref<8x128xf32, #tpu.memory_space<vmem>>, vector<8x128xf32>
    tpu.vector_store %arg6[%c0_81, %c0_82], %215 {strides = array<i32>} : memref<8x128xf32, #tpu.memory_space<vmem>>, vector<8x128xf32>,
    return
  }
}

</mosaic_0001>

<llo_original>
// kernel: tpu_custom_call.1
$region0: #{tpu_custom_call.1}
  #allocation0 [shape = 'u32[]', space=smem, size = 0x4, offset = 0x4, fixed_abs, tag = 'smem constant byte address 0x4 - core index']
  #allocation1 [shape = 'u32[144,128]{1,0:T(1,128)}', space=vmem, size = 0x12000, scoped, tag = 'internal scratch']
  #allocation2 [shape = 'f32[64,1024]{1,0:T(8,128)}', space=vmem, size = 0x40000, scoped, tag = 'scratch operand']
  #allocation3 [shape = 'f32[8,256]{1,0:T(8,128)}', space=vmem, size = 0x2000, scoped, tag = 'scratch operand']
  %s0 = inlined_call_operand.vmem [shape: f32[64,10], index: 0, kind: input, shape index: {}]
  %s1 = inlined_call_operand.hbm [shape: f32[10,1024], index: 1, kind: input, shape index: {}]
  %s2 = inlined_call_operand.vmem [shape: f32[1,1024], index: 2, kind: input, shape index: {}]
  %s3 = inlined_call_operand.hbm [shape: bf16[256,1024], index: 3, kind: input, shape index: {}]
  %s4 = inlined_call_operand.hbm [shape: bf16[256,128], index: 4, kind: input, shape index: {}]
  %s5 = inlined_call_operand.vmem [shape: f32[1,128], index: 5, kind: input, shape index: {}]
  %s6 = inlined_call_operand.hbm [shape: f32[8,128], index: 6, kind: output, shape index: {}]
  %s7 = sld [smem:[#allocation0]]
  $region46: #{tpu_custom_call.1} parent=0
    _
  %s9 = ssub.s32 1, %s7
  %s10 = scalar_select 0, %s9, %s7
  $region1: #{tpu_custom_call.1} parent=0
    #allocation4 [shape = 'u8[65536]{0}', space=vmem, size = 0x10000, scoped, tag = 'input window, operand 1, single buffered']
    #allocation5 [shape = 's32[1]{0}', space=sflag, size = 0x4, scoped, tag = 'scoped memory for tpu_custom_call.1']
    #allocation6 [shape = 's32[1]{0}', space=sflag, size = 0x4, scoped, tag = 'scoped memory for tpu_custom_call.1']
    #allocation7 [shape = 'u8[524288]{0}', space=vmem, size = 0x80000, scoped, tag = 'input window, operand 3, single buffered']
    #allocation8 [shape = 's32[1]{0}', space=sflag, size = 0x4, scoped, tag = 'scoped memory for tpu_custom_call.1']
    #allocation9 [shape = 'u8[65536]{0}', space=vmem, size = 0x10000, scoped, tag = 'input window, operand 4, single buffered']
    #allocation10 [shape = 'u8[4096]{0}', space=vmem, size = 0x1000, scoped, tag = 'output window, operand 0, single buffered']
    %11 = vsyncpa [#allocation5], 0
    %12 = vsyncpa [#allocation8], 0
    %13 = vsyncpa [#allocation6], 0
    // Predicated region
    $region2: #{tpu_custom_call.1} parent=1 // pred_check
      _
    $region3: #{tpu_custom_call.1} parent=1 // pred_check_branch
      %15 = sbr.rel (0) target = $region5
    $region4: #{tpu_custom_call.1} parent=1 // pred_region
      _
    $region5: #{tpu_custom_call.1} parent=1 // pred_fallthru
      _
    // Predicated region
    $region6: #{tpu_custom_call.1} parent=1 // pred_check
      _
    $region7: #{tpu_custom_call.1} parent=1 // pred_check_branch
      %17 = sbr.rel (0) target = $region9
    $region8: #{tpu_custom_call.1} parent=1 // pred_region
      %s19 = ssub.s32 2048, 2048
      %20 = vsyncadd [#allocation5], %s19
      %s21 = sshll.u32 [#allocation4], 4
      %s22 = int_to_ptr.vmem [resolvable:$true] %s21
      %27 = dma.hbm_to_vmem [thread:$0]  %s1, 2048, %s22, [#allocation5], 1024, 1024, 64
    $region9: #{tpu_custom_call.1} parent=1 // pred_fallthru
      _
    // Predicated region
    $region10: #{tpu_custom_call.1} parent=1 // pred_check
      _
    $region11: #{tpu_custom_call.1} parent=1 // pred_check_branch
      %29 = sbr.rel (0) target = $region13
    $region12: #{tpu_custom_call.1} parent=1 // pred_region
      _
    $region13: #{tpu_custom_call.1} parent=1 // pred_fallthru
      _
    // Predicated region
    $region14: #{tpu_custom_call.1} parent=1 // pred_check
      _
    $region15: #{tpu_custom_call.1} parent=1 // pred_check_branch
      %31 = sbr.rel (0) target = $region17
    $region16: #{tpu_custom_call.1} parent=1 // pred_region
      %s33 = ssub.s32 16384, 16384
      %34 = vsyncadd [#allocation8], %s33
      %s35 = sshll.u32 [#allocation7], 4
      %s36 = int_to_ptr.vmem [resolvable:$true] %s35
      %41 = dma.hbm_to_vmem [thread:$0]  %s3, 16384, %s36, [#allocation8], 512, 512, 32
    $region17: #{tpu_custom_call.1} parent=1 // pred_fallthru
      _
    // Predicated region
    $region18: #{tpu_custom_call.1} parent=1 // pred_check
      _
    $region19: #{tpu_custom_call.1} parent=1 // pred_check_branch
      %43 = sbr.rel (0) target = $region21
    $region20: #{tpu_custom_call.1} parent=1 // pred_region
      %s45 = ssub.s32 2048, 2048
      %46 = vsyncadd [#allocation8], %s45
      %s47 = sshll.u32 [#allocation9], 4
      %s48 = int_to_ptr.vmem [resolvable:$true] %s47
      %53 = dma.hbm_to_vmem [thread:$0]  %s4, 2048, %s48, [#allocation8], 64, 64, 4
    $region21: #{tpu_custom_call.1} parent=1 // pred_fallthru
      _
    // Predicated region
    $region22: #{tpu_custom_call.1} parent=1 // pred_check
      _
    $region23: #{tpu_custom_call.1} parent=1 // pred_check_branch
      %55 = sbr.rel (0) target = $region25
    $region24: #{tpu_custom_call.1} parent=1 // pred_region
      _
    $region25: #{tpu_custom_call.1} parent=1 // pred_fallthru
      _
    // Predicated region
    $region26: #{tpu_custom_call.1} parent=1 // pred_check
      _
    $region27: #{tpu_custom_call.1} parent=1 // pred_check_branch
      %57 = sbr.rel (0) target = $region29
    $region28: #{tpu_custom_call.1} parent=1 // pred_region
      %58 = dma.done [#allocation5], 2048
    $region29: #{tpu_custom_call.1} parent=1 // pred_fallthru
      _
    // Predicated region
    $region30: #{tpu_custom_call.1} parent=1 // pred_check
      _
    $region31: #{tpu_custom_call.1} parent=1 // pred_check_branch
      %60 = sbr.rel (0) target = $region33
    $region32: #{tpu_custom_call.1} parent=1 // pred_region
      %61 = dma.done [#allocation8], 16384
    $region33: #{tpu_custom_call.1} parent=1 // pred_fallthru
      _
    // Predicated region
    $region34: #{tpu_custom_call.1} parent=1 // pred_check
      _
    $region35: #{tpu_custom_call.1} parent=1 // pred_check_branch
      %63 = sbr.rel (0) target = $region37
    $region36: #{tpu_custom_call.1} parent=1 // pred_region
      %64 = dma.done [#allocation8], 2048
    $region37: #{tpu_custom_call.1} parent=1 // pred_fallthru
      _
    %v66 = vld [vmem:[%s0] sm:$0xff]
    %v67 = vld [vmem:[%s0 + $0x8] sm:$0xff]
    %v68 = vld [vmem:[%s0 + $0x10] sm:$0xff]
    %v69 = vld [vmem:[%s0 + $0x18] sm:$0xff]
    %v70 = vld [vmem:[%s0 + $0x20] sm:$0xff]
    %v71 = vld [vmem:[%s0 + $0x28] sm:$0xff]
    %v72 = vld [vmem:[%s0 + $0x30] sm:$0xff]
    %v73 = vld [vmem:[%s0 + $0x38] sm:$0xff]
    %v74 = vld [vmem:[#allocation4] sm:$0xff]
    %v75 = vld [vmem:[#allocation4 + $0x8] sm:$0xff]
    %v76 = vld [vmem:[#allocation4 + $0x10] sm:$0xff]
    %v77 = vld [vmem:[#allocation4 + $0x18] sm:$0xff]
    %v78 = vld [vmem:[#allocation4 + $0x20] sm:$0xff]
    %v79 = vld [vmem:[#allocation4 + $0x28] sm:$0xff]
    %v80 = vld [vmem:[#allocation4 + $0x30] sm:$0xff]
    %v81 = vld [vmem:[#allocation4 + $0x38] sm:$0xff]
    %v82 = vld [vmem:[#allocation4 + $0x40] sm:$0x3]
    %v83 = vld [vmem:[#allocation4 + $0x48] sm:$0x3]
    %v84 = vld [vmem:[#allocation4 + $0x50] sm:$0x3]
    %v85 = vld [vmem:[#allocation4 + $0x58] sm:$0x3]
    %v86 = vld [vmem:[#allocation4 + $0x60] sm:$0x3]
    %v87 = vld [vmem:[#allocation4 + $0x68] sm:$0x3]
    %v88 = vld [vmem:[#allocation4 + $0x70] sm:$0x3]
    %v89 = vld [vmem:[#allocation4 + $0x78] sm:$0x3]
    %v90 = vld [vmem:[%s2] sm:$0xff]
    %v92 = vlaneseq
    %v93 = vshrl.u32 %v92, 7
    %v94 = vsub.s32 0, %v93
    %v95 = vrot.slane %v90, %v94
    %v96 = vlaneseq
    %v97 = vshrl.u32 %v96, 7
    %v98 = vsub.s32 1, %v97
    %v99 = vrot.slane %v90, %v98
    %v100 = vlaneseq
    %v101 = vshrl.u32 %v100, 7
    %v102 = vsub.s32 2, %v101
    %v103 = vrot.slane %v90, %v102
    %v104 = vlaneseq
    %v105 = vshrl.u32 %v104, 7
    %v106 = vsub.s32 3, %v105
    %v107 = vrot.slane %v90, %v106
    %v108 = vlaneseq
    %v109 = vshrl.u32 %v108, 7
    %v110 = vsub.s32 4, %v109
    %v111 = vrot.slane %v90, %v110
    %v112 = vlaneseq
    %v113 = vshrl.u32 %v112, 7
    %v114 = vsub.s32 5, %v113
    %v115 = vrot.slane %v90, %v114
    %v116 = vlaneseq
    %v117 = vshrl.u32 %v116, 7
    %v118 = vsub.s32 6, %v117
    %v119 = vrot.slane %v90, %v118
    %v120 = vlaneseq
    %v121 = vshrl.u32 %v120, 7
    %v122 = vsub.s32 7, %v121
    %v123 = vrot.slane %v90, %v122
    %vm132 = vcmask 80896
    %v134 = vsel %vm132, %v66, 0
    %v137 = vsel %vm132, %v67, 0
    %v140 = vsel %vm132, %v68, 0
    %v143 = vsel %vm132, %v69, 0
    %v146 = vsel %vm132, %v70, 0
    %v149 = vsel %vm132, %v71, 0
    %v152 = vsel %vm132, %v72, 0
    %v155 = vsel %vm132, %v73, 0
    %vm157 = vcmask 1041408
    %v159 = vsel %vm157, %v82, 0
    %v162 = vsel %vm157, %v83, 0
    %v165 = vsel %vm157, %v84, 0
    %v168 = vsel %vm157, %v85, 0
    %v171 = vsel %vm157, %v86, 0
    %v174 = vsel %vm157, %v87, 0
    %v177 = vsel %vm157, %v88, 0
    %v180 = vsel %vm157, %v89, 0
    %182 = vmatprep.subr.mxu0 0.0
    %183 = vmatpush1.msra.mxu0 0.0
    %184 = vmatprep.subr.mxu0 0.0
    %185 = vmatpush1.msra.mxu0 0.0
    %186 = vmatprep.subr.mxu0 0.0
    %187 = vmatpush1.msra.mxu0 0.0
    %188 = vmatprep.subr.mxu0 0.0
    %189 = vmatpush1.msra.mxu0 0.0
    %190 = vmatprep.subr.mxu0 0.0
    %191 = vmatpush1.msra.mxu0 0.0
    %192 = vmatprep.subr.mxu0 0.0
    %193 = vmatpush1.msra.mxu0 0.0
    %194 = vmatprep.subr.mxu0 0.0
    %195 = vmatpush1.msra.mxu0 0.0
    %196 = vmatprep.subr.mxu0 0.0
    %197 = vmatpush1.msra.mxu0 0.0
    %198 = vmatprep.subr.mxu0 0.0
    %199 = vmatpush1.msra.mxu0 0.0
    %200 = vmatprep.subr.mxu0 0.0
    %201 = vmatpush1.msra.mxu0 0.0
    %202 = vmatprep.subr.mxu0 0.0
    %203 = vmatpush1.msra.mxu0 0.0
    %204 = vmatprep.subr.mxu0 0.0
    %205 = vmatpush1.msra.mxu0 0.0
    %206 = vmatprep.subr.mxu0 0.0
    %207 = vmatpush1.msra.mxu0 0.0
    %208 = vmatprep.subr.mxu0 0.0
    %209 = vmatpush1.msra.mxu0 0.0
    %210 = vmatprep.subr.mxu0 %v162
    %211 = vmatpush1.msra.mxu0 %v159
    %212 = vmatprep.subr.mxu0 %v75
    %213 = vmatpush1.msra.mxu0 %v74
    %214 = vmatprep.subr.mxu0 0.0
    %215 = vmatpush2.msra.mxu0 0.0
    %216 = vmatprep.subr.mxu0 0.0
    %217 = vmatpush2.msra.mxu0 0.0
    %218 = vmatprep.subr.mxu0 0.0
    %219 = vmatpush2.msra.mxu0 0.0
    %220 = vmatprep.subr.mxu0 0.0
    %221 = vmatpush2.msra.mxu0 0.0
    %222 = vmatprep.subr.mxu0 0.0
    %223 = vmatpush2.msra.mxu0 0.0
    %224 = vmatprep.subr.mxu0 0.0
    %225 = vmatpush2.msra.mxu0 0.0
    %226 = vmatprep.subr.mxu0 0.0
    %227 = vmatpush2.msra.mxu0 0.0
    %228 = vmatprep.subr.mxu0 0.0
    %229 = vmatpush2.msra.mxu0 0.0
    %230 = vmatprep.subr.mxu0 0.0
    %231 = vmatpush2.msra.mxu0 0.0
    %232 = vmatprep.subr.mxu0 0.0
    %233 = vmatpush2.msra.mxu0 0.0
    %234 = vmatprep.subr.mxu0 0.0
    %235 = vmatpush2.msra.mxu0 0.0
    %236 = vmatprep.subr.mxu0 0.0
    %237 = vmatpush2.msra.mxu0 0.0
    %238 = vmatprep.subr.mxu0 0.0
    %239 = vmatpush2.msra.mxu0 0.0
    %240 = vmatprep.subr.mxu0 0.0
    %241 = vmatpush2.msra.mxu0 0.0
    %242 = vmatprep.subr.mxu0 0.0
    %243 = vmatpush2.msra.mxu0 0.0
    %244 = vmatprep.subr.mxu0 0.0
    %245 = vmatpush2.msra.mxu0 0.0
    %246 = vmatprep.mubr.f32.mxu0 0.0
    %247 = vmatmul.mubr.f32.gmra.mxu0 %v134
    %v248 = vpop.f32.mrf.mxu0
    %v249 = vadd.f32 %v95, %v248
    %v250 = vpop.f32.mrf.mxu0
    %v251 = vadd.f32 %v99, %v250
    %252 = vmatprep.mubr.f32.mxu0 0.0
    %253 = vmatmul.mubr.f32.gmra.mxu0 %v137
    %v254 = vpop.f32.mrf.mxu0
    %v255 = vadd.f32 %v95, %v254
    %v256 = vpop.f32.mrf.mxu0
    %v257 = vadd.f32 %v99, %v256
    %258 = vmatprep.mubr.f32.mxu0 0.0
    %259 = vmatmul.mubr.f32.gmra.mxu0 %v140
    %v260 = vpop.f32.mrf.mxu0
    %v261 = vadd.f32 %v95, %v260
    %v262 = vpop.f32.mrf.mxu0
    %v263 = vadd.f32 %v99, %v262
    %264 = vmatprep.mubr.f32.mxu0 0.0
    %265 = vmatmul.mubr.f32.gmra.mxu0 %v143
    %v266 = vpop.f32.mrf.mxu0
    %v267 = vadd.f32 %v95, %v266
    %v268 = vpop.f32.mrf.mxu0
    %v269 = vadd.f32 %v99, %v268
    %270 = vmatprep.mubr.f32.mxu0 0.0
    %271 = vmatmul.mubr.f32.gmra.mxu0 %v146
    %v272 = vpop.f32.mrf.mxu0
    %v273 = vadd.f32 %v95, %v272
    %v274 = vpop.f32.mrf.mxu0
    %v275 = vadd.f32 %v99, %v274
    %276 = vmatprep.mubr.f32.mxu0 0.0
    %277 = vmatmul.mubr.f32.gmra.mxu0 %v149
    %v278 = vpop.f32.mrf.mxu0
    %v279 = vadd.f32 %v95, %v278
    %v280 = vpop.f32.mrf.mxu0
    %v281 = vadd.f32 %v99, %v280
    %282 = vmatprep.mubr.f32.mxu0 0.0
    %283 = vmatmul.mubr.f32.gmra.mxu0 %v152
    %v284 = vpop.f32.mrf.mxu0
    %v285 = vadd.f32 %v95, %v284
    %v286 = vpop.f32.mrf.mxu0
    %v287 = vadd.f32 %v99, %v286
    %288 = vmatprep.mubr.f32.mxu0 0.0
    %289 = vmatmul.mubr.f32.gmra.mxu0 %v155
    %v290 = vpop.f32.mrf.mxu0
    %v291 = vadd.f32 %v95, %v290
    %v292 = vpop.f32.mrf.mxu0
    %v293 = vadd.f32 %v99, %v292
    %294 = vdwg.mxu0
    %295 = vmatprep.subr.mxu0 0.0
    %296 = vmatpush1.msra.mxu0 0.0
    %297 = vmatprep.subr.mxu0 0.0
    %298 = vmatpush1.msra.mxu0 0.0
    %299 = vmatprep.subr.mxu0 0.0
    %300 = vmatpush1.msra.mxu0 0.0
    %301 = vmatprep.subr.mxu0 0.0
    %302 = vmatpush1.msra.mxu0 0.0
    %303 = vmatprep.subr.mxu0 0.0
    %304 = vmatpush1.msra.mxu0 0.0
    %305 = vmatprep.subr.mxu0 0.0
    %306 = vmatpush1.msra.mxu0 0.0
    %307 = vmatprep.subr.mxu0 0.0
    %308 = vmatpush1.msra.mxu0 0.0
    %309 = vmatprep.subr.mxu0 0.0
    %310 = vmatpush1.msra.mxu0 0.0
    %311 = vmatprep.subr.mxu0 0.0
    %312 = vmatpush1.msra.mxu0 0.0
    %313 = vmatprep.subr.mxu0 0.0
    %314 = vmatpush1.msra.mxu0 0.0
    %315 = vmatprep.subr.mxu0 0.0
    %316 = vmatpush1.msra.mxu0 0.0
    %317 = vmatprep.subr.mxu0 0.0
    %318 = vmatpush1.msra.mxu0 0.0
    %319 = vmatprep.subr.mxu0 0.0
    %320 = vmatpush1.msra.mxu0 0.0
    %321 = vmatprep.subr.mxu0 0.0
    %322 = vmatpush1.msra.mxu0 0.0
    %323 = vmatprep.subr.mxu0 %v168
    %324 = vmatpush1.msra.mxu0 %v165
    %325 = vmatprep.subr.mxu0 %v77
    %326 = vmatpush1.msra.mxu0 %v76
    %327 = vmatprep.subr.mxu0 0.0
    %328 = vmatpush2.msra.mxu0 0.0
    %329 = vmatprep.subr.mxu0 0.0
    %330 = vmatpush2.msra.mxu0 0.0
    %331 = vmatprep.subr.mxu0 0.0
    %332 = vmatpush2.msra.mxu0 0.0
    %333 = vmatprep.subr.mxu0 0.0
    %334 = vmatpush2.msra.mxu0 0.0
    %335 = vmatprep.subr.mxu0 0.0
    %336 = vmatpush2.msra.mxu0 0.0
    %337 = vmatprep.subr.mxu0 0.0
    %338 = vmatpush2.msra.mxu0 0.0
    %339 = vmatprep.subr.mxu0 0.0
    %340 = vmatpush2.msra.mxu0 0.0
    %341 = vmatprep.subr.mxu0 0.0
    %342 = vmatpush2.msra.mxu0 0.0
    %343 = vmatprep.subr.mxu0 0.0
    %344 = vmatpush2.msra.mxu0 0.0
    %345 = vmatprep.subr.mxu0 0.0
    %346 = vmatpush2.msra.mxu0 0.0
    %347 = vmatprep.subr.mxu0 0.0
    %348 = vmatpush2.msra.mxu0 0.0
    %349 = vmatprep.subr.mxu0 0.0
    %350 = vmatpush2.msra.mxu0 0.0
    %351 = vmatprep.subr.mxu0 0.0
    %352 = vmatpush2.msra.mxu0 0.0
    %353 = vmatprep.subr.mxu0 0.0
    %354 = vmatpush2.msra.mxu0 0.0
    %355 = vmatprep.subr.mxu0 0.0
    %356 = vmatpush2.msra.mxu0 0.0
    %357 = vmatprep.subr.mxu0 0.0
    %358 = vmatpush2.msra.mxu0 0.0
    %359 = vmatprep.mubr.f32.mxu0 0.0
    %360 = vmatmul.mubr.f32.gmra.mxu0 %v134
    %v361 = vpop.f32.mrf.mxu0
    %v362 = vadd.f32 %v103, %v361
    %v363 = vpop.f32.mrf.mxu0
    %v364 = vadd.f32 %v107, %v363
    %365 = vmatprep.mubr.f32.mxu0 0.0
    %366 = vmatmul.mubr.f32.gmra.mxu0 %v137
    %v367 = vpop.f32.mrf.mxu0
    %v368 = vadd.f32 %v103, %v367
    %v369 = vpop.f32.mrf.mxu0
    %v370 = vadd.f32 %v107, %v369
    %371 = vmatprep.mubr.f32.mxu0 0.0
    %372 = vmatmul.mubr.f32.gmra.mxu0 %v140
    %v373 = vpop.f32.mrf.mxu0
    %v374 = vadd.f32 %v103, %v373
    %v375 = vpop.f32.mrf.mxu0
    %v376 = vadd.f32 %v107, %v375
    %377 = vmatprep.mubr.f32.mxu0 0.0
    %378 = vmatmul.mubr.f32.gmra.mxu0 %v143
    %v379 = vpop.f32.mrf.mxu0
    %v380 = vadd.f32 %v103, %v379
    %v381 = vpop.f32.mrf.mxu0
    %v382 = vadd.f32 %v107, %v381
    %383 = vmatprep.mubr.f32.mxu0 0.0
    %384 = vmatmul.mubr.f32.gmra.mxu0 %v146
    %v385 = vpop.f32.mrf.mxu0
    %v386 = vadd.f32 %v103, %v385
    %v387 = vpop.f32.mrf.mxu0
    %v388 = vadd.f32 %v107, %v387
    %389 = vmatprep.mubr.f32.mxu0 0.0
    %390 = vmatmul.mubr.f32.gmra.mxu0 %v149
    %v391 = vpop.f32.mrf.mxu0
    %v392 = vadd.f32 %v103, %v391
    %v393 = vpop.f32.mrf.mxu0
    %v394 = vadd.f32 %v107, %v393
    %395 = vmatprep.mubr.f32.mxu0 0.0
    %396 = vmatmul.mubr.f32.gmra.mxu0 %v152
    %v397 = vpop.f32.mrf.mxu0
    %v398 = vadd.f32 %v103, %v397
    %v399 = vpop.f32.mrf.mxu0
    %v400 = vadd.f32 %v107, %v399
    %401 = vmatprep.mubr.f32.mxu0 0.0
    %402 = vmatmul.mubr.f32.gmra.mxu0 %v155
    %v403 = vpop.f32.mrf.mxu0
    %v404 = vadd.f32 %v103, %v403
    %v405 = vpop.f32.mrf.mxu0
    %v406 = vadd.f32 %v107, %v405
    %407 = vdwg.mxu0
    %408 = vmatprep.subr.mxu0 0.0
    %409 = vmatpush1.msra.mxu0 0.0
    %410 = vmatprep.subr.mxu0 0.0
    %411 = vmatpush1.msra.mxu0 0.0
    %412 = vmatprep.subr.mxu0 0.0
    %413 = vmatpush1.msra.mxu0 0.0
    %414 = vmatprep.subr.mxu0 0.0
    %415 = vmatpush1.msra.mxu0 0.0
    %416 = vmatprep.subr.mxu0 0.0
    %417 = vmatpush1.msra.mxu0 0.0
    %418 = vmatprep.subr.mxu0 0.0
    %419 = vmatpush1.msra.mxu0 0.0
    %420 = vmatprep.subr.mxu0 0.0
    %421 = vmatpush1.msra.mxu0 0.0
    %422 = vmatprep.subr.mxu0 0.0
    %423 = vmatpush1.msra.mxu0 0.0
    %424 = vmatprep.subr.mxu0 0.0
    %425 = vmatpush1.msra.mxu0 0.0
    %426 = vmatprep.subr.mxu0 0.0
    %427 = vmatpush1.msra.mxu0 0.0
    %428 = vmatprep.subr.mxu0 0.0
    %429 = vmatpush1.msra.mxu0 0.0
    %430 = vmatprep.subr.mxu0 0.0
    %431 = vmatpush1.msra.mxu0 0.0
    %432 = vmatprep.subr.mxu0 0.0
    %433 = vmatpush1.msra.mxu0 0.0
    %434 = vmatprep.subr.mxu0 0.0
    %435 = vmatpush1.msra.mxu0 0.0
    %436 = vmatprep.subr.mxu0 %v174
    %437 = vmatpush1.msra.mxu0 %v171
    %438 = vmatprep.subr.mxu0 %v79
    %439 = vmatpush1.msra.mxu0 %v78
    %440 = vmatprep.subr.mxu0 0.0
    %441 = vmatpush2.msra.mxu0 0.0
    %442 = vmatprep.subr.mxu0 0.0
    %443 = vmatpush2.msra.mxu0 0.0
    %444 = vmatprep.subr.mxu0 0.0
    %445 = vmatpush2.msra.mxu0 0.0
    %446 = vmatprep.subr.mxu0 0.0
    %447 = vmatpush2.msra.mxu0 0.0
    %448 = vmatprep.subr.mxu0 0.0
    %449 = vmatpush2.msra.mxu0 0.0
    %450 = vmatprep.subr.mxu0 0.0
    %451 = vmatpush2.msra.mxu0 0.0
    %452 = vmatprep.subr.mxu0 0.0
    %453 = vmatpush2.msra.mxu0 0.0
    %454 = vmatprep.subr.mxu0 0.0
    %455 = vmatpush2.msra.mxu0 0.0
    %456 = vmatprep.subr.mxu0 0.0
    %457 = vmatpush2.msra.mxu0 0.0
    %458 = vmatprep.subr.mxu0 0.0
    %459 = vmatpush2.msra.mxu0 0.0
    %460 = vmatprep.subr.mxu0 0.0
    %461 = vmatpush2.msra.mxu0 0.0
    %462 = vmatprep.subr.mxu0 0.0
    %463 = vmatpush2.msra.mxu0 0.0
    %464 = vmatprep.subr.mxu0 0.0
    %465 = vmatpush2.msra.mxu0 0.0
    %466 = vmatprep.subr.mxu0 0.0
    %467 = vmatpush2.msra.mxu0 0.0
    %468 = vmatprep.subr.mxu0 0.0
    %469 = vmatpush2.msra.mxu0 0.0
    %470 = vmatprep.subr.mxu0 0.0
    %471 = vmatpush2.msra.mxu0 0.0
    %472 = vmatprep.mubr.f32.mxu0 0.0
    %473 = vmatmul.mubr.f32.gmra.mxu0 %v134
    %v474 = vpop.f32.mrf.mxu0
    %v475 = vadd.f32 %v111, %v474
    %v476 = vpop.f32.mrf.mxu0
    %v477 = vadd.f32 %v115, %v476
    %478 = vmatprep.mubr.f32.mxu0 0.0
    %479 = vmatmul.mubr.f32.gmra.mxu0 %v137
    %v480 = vpop.f32.mrf.mxu0
    %v481 = vadd.f32 %v111, %v480
    %v482 = vpop.f32.mrf.mxu0
    %v483 = vadd.f32 %v115, %v482
    %484 = vmatprep.mubr.f32.mxu0 0.0
    %485 = vmatmul.mubr.f32.gmra.mxu0 %v140
    %v486 = vpop.f32.mrf.mxu0
    %v487 = vadd.f32 %v111, %v486
    %v488 = vpop.f32.mrf.mxu0
    %v489 = vadd.f32 %v115, %v488
    %490 = vmatprep.mubr.f32.mxu0 0.0
    %491 = vmatmul.mubr.f32.gmra.mxu0 %v143
    %v492 = vpop.f32.mrf.mxu0
    %v493 = vadd.f32 %v111, %v492
    %v494 = vpop.f32.mrf.mxu0
    %v495 = vadd.f32 %v115, %v494
    %496 = vmatprep.mubr.f32.mxu0 0.0
    %497 = vmatmul.mubr.f32.gmra.mxu0 %v146
    %v498 = vpop.f32.mrf.mxu0
    %v499 = vadd.f32 %v111, %v498
    %v500 = vpop.f32.mrf.mxu0
    %v501 = vadd.f32 %v115, %v500
    %502 = vmatprep.mubr.f32.mxu0 0.0
    %503 = vmatmul.mubr.f32.gmra.mxu0 %v149
    %v504 = vpop.f32.mrf.mxu0
    %v505 = vadd.f32 %v111, %v504
    %v506 = vpop.f32.mrf.mxu0
    %v507 = vadd.f32 %v115, %v506
    %508 = vmatprep.mubr.f32.mxu0 0.0
    %509 = vmatmul.mubr.f32.gmra.mxu0 %v152
    %v510 = vpop.f32.mrf.mxu0
    %v511 = vadd.f32 %v111, %v510
    %v512 = vpop.f32.mrf.mxu0
    %v513 = vadd.f32 %v115, %v512
    %514 = vmatprep.mubr.f32.mxu0 0.0
    %515 = vmatmul.mubr.f32.gmra.mxu0 %v155
    %v516 = vpop.f32.mrf.mxu0
    %v517 = vadd.f32 %v111, %v516
    %v518 = vpop.f32.mrf.mxu0
    %v519 = vadd.f32 %v115, %v518
    %520 = vdwg.mxu0
    %521 = vmatprep.subr.mxu0 0.0
    %522 = vmatpush1.msra.mxu0 0.0
    %523 = vmatprep.subr.mxu0 0.0
    %524 = vmatpush1.msra.mxu0 0.0
    %525 = vmatprep.subr.mxu0 0.0
    %526 = vmatpush1.msra.mxu0 0.0
    %527 = vmatprep.subr.mxu0 0.0
    %528 = vmatpush1.msra.mxu0 0.0
    %529 = vmatprep.subr.mxu0 0.0
    %530 = vmatpush1.msra.mxu0 0.0
    %531 = vmatprep.subr.mxu0 0.0
    %532 = vmatpush1.msra.mxu0 0.0
    %533 = vmatprep.subr.mxu0 0.0
    %534 = vmatpush1.msra.mxu0 0.0
    %535 = vmatprep.subr.mxu0 0.0
    %536 = vmatpush1.msra.mxu0 0.0
    %537 = vmatprep.subr.mxu0 0.0
    %538 = vmatpush1.msra.mxu0 0.0
    %539 = vmatprep.subr.mxu0 0.0
    %540 = vmatpush1.msra.mxu0 0.0
    %541 = vmatprep.subr.mxu0 0.0
    %542 = vmatpush1.msra.mxu0 0.0
    %543 = vmatprep.subr.mxu0 0.0
    %544 = vmatpush1.msra.mxu0 0.0
    %545 = vmatprep.subr.mxu0 0.0
    %546 = vmatpush1.msra.mxu0 0.0
    %547 = vmatprep.subr.mxu0 0.0
    %548 = vmatpush1.msra.mxu0 0.0
    %549 = vmatprep.subr.mxu0 %v180
    %550 = vmatpush1.msra.mxu0 %v177
    %551 = vmatprep.subr.mxu0 %v81
    %552 = vmatpush1.msra.mxu0 %v80
    %553 = vmatprep.subr.mxu0 0.0
    %554 = vmatpush2.msra.mxu0 0.0
    %555 = vmatprep.subr.mxu0 0.0
    %556 = vmatpush2.msra.mxu0 0.0
    %557 = vmatprep.subr.mxu0 0.0
    %558 = vmatpush2.msra.mxu0 0.0
    %559 = vmatprep.subr.mxu0 0.0
    %560 = vmatpush2.msra.mxu0 0.0
    %561 = vmatprep.subr.mxu0 0.0
    %562 = vmatpush2.msra.mxu0 0.0
    %563 = vmatprep.subr.mxu0 0.0
    %564 = vmatpush2.msra.mxu0 0.0
    %565 = vmatprep.subr.mxu0 0.0
    %566 = vmatpush2.msra.mxu0 0.0
    %567 = vmatprep.subr.mxu0 0.0
    %568 = vmatpush2.msra.mxu0 0.0
    %569 = vmatprep.subr.mxu0 0.0
    %570 = vmatpush2.msra.mxu0 0.0
    %571 = vmatprep.subr.mxu0 0.0
    %572 = vmatpush2.msra.mxu0 0.0
    %573 = vmatprep.subr.mxu0 0.0
    %574 = vmatpush2.msra.mxu0 0.0
    %575 = vmatprep.subr.mxu0 0.0
    %576 = vmatpush2.msra.mxu0 0.0
    %577 = vmatprep.subr.mxu0 0.0
    %578 = vmatpush2.msra.mxu0 0.0
    %579 = vmatprep.subr.mxu0 0.0
    %580 = vmatpush2.msra.mxu0 0.0
    %581 = vmatprep.subr.mxu0 0.0
    %582 = vmatpush2.msra.mxu0 0.0
    %583 = vmatprep.subr.mxu0 0.0
    %584 = vmatpush2.msra.mxu0 0.0
    %585 = vmatprep.mubr.f32.mxu0 0.0
    %586 = vmatmul.mubr.f32.gmra.mxu0 %v134
    %v587 = vpop.f32.mrf.mxu0
    %v588 = vadd.f32 %v119, %v587
    %v589 = vpop.f32.mrf.mxu0
    %v590 = vadd.f32 %v123, %v589
    %591 = vmatprep.mubr.f32.mxu0 0.0
    %592 = vmatmul.mubr.f32.gmra.mxu0 %v137
    %v593 = vpop.f32.mrf.mxu0
    %v594 = vadd.f32 %v119, %v593
    %v595 = vpop.f32.mrf.mxu0
    %v596 = vadd.f32 %v123, %v595
    %597 = vmatprep.mubr.f32.mxu0 0.0
    %598 = vmatmul.mubr.f32.gmra.mxu0 %v140
    %v599 = vpop.f32.mrf.mxu0
    %v600 = vadd.f32 %v119, %v599
    %v601 = vpop.f32.mrf.mxu0
    %v602 = vadd.f32 %v123, %v601
    %603 = vmatprep.mubr.f32.mxu0 0.0
    %604 = vmatmul.mubr.f32.gmra.mxu0 %v143
    %v605 = vpop.f32.mrf.mxu0
    %v606 = vadd.f32 %v119, %v605
    %v607 = vpop.f32.mrf.mxu0
    %v608 = vadd.f32 %v123, %v607
    %609 = vmatprep.mubr.f32.mxu0 0.0
    %610 = vmatmul.mubr.f32.gmra.mxu0 %v146
    %v611 = vpop.f32.mrf.mxu0
    %v612 = vadd.f32 %v119, %v611
    %v613 = vpop.f32.mrf.mxu0
    %v614 = vadd.f32 %v123, %v613
    %615 = vmatprep.mubr.f32.mxu0 0.0
    %616 = vmatmul.mubr.f32.gmra.mxu0 %v149
    %v617 = vpop.f32.mrf.mxu0
    %v618 = vadd.f32 %v119, %v617
    %v619 = vpop.f32.mrf.mxu0
    %v620 = vadd.f32 %v123, %v619
    %621 = vmatprep.mubr.f32.mxu0 0.0
    %622 = vmatmul.mubr.f32.gmra.mxu0 %v152
    %v623 = vpop.f32.mrf.mxu0
    %v624 = vadd.f32 %v119, %v623
    %v625 = vpop.f32.mrf.mxu0
    %v626 = vadd.f32 %v123, %v625
    %627 = vmatprep.mubr.f32.mxu0 0.0
    %628 = vmatmul.mubr.f32.gmra.mxu0 %v155
    %v629 = vpop.f32.mrf.mxu0
    %v630 = vadd.f32 %v119, %v629
    %v631 = vpop.f32.mrf.mxu0
    %v632 = vadd.f32 %v123, %v631
    %633 = vdwg.mxu0
    %634 = vst [vmem:[#allocation2] sm:$0xff] %v249
    %635 = vst [vmem:[#allocation2 + $0x8] sm:$0xff] %v251
    %636 = vst [vmem:[#allocation2 + $0x10] sm:$0xff] %v362
    %637 = vst [vmem:[#allocation2 + $0x18] sm:$0xff] %v364
    %638 = vst [vmem:[#allocation2 + $0x20] sm:$0xff] %v475
    %639 = vst [vmem:[#allocation2 + $0x28] sm:$0xff] %v477
    %640 = vst [vmem:[#allocation2 + $0x30] sm:$0xff] %v588
    %641 = vst [vmem:[#allocation2 + $0x38] sm:$0xff] %v590
    %642 = vst [vmem:[#allocation2 + $0x40] sm:$0xff] %v255
    %643 = vst [vmem:[#allocation2 + $0x48] sm:$0xff] %v257
    %644 = vst [vmem:[#allocation2 + $0x50] sm:$0xff] %v368
    %645 = vst [vmem:[#allocation2 + $0x58] sm:$0xff] %v370
    %646 = vst [vmem:[#allocation2 + $0x60] sm:$0xff] %v481
    %647 = vst [vmem:[#allocation2 + $0x68] sm:$0xff] %v483
    %648 = vst [vmem:[#allocation2 + $0x70] sm:$0xff] %v594
    %649 = vst [vmem:[#allocation2 + $0x78] sm:$0xff] %v596
    %650 = vst [vmem:[#allocation2 + $0x80] sm:$0xff] %v261
    %651 = vst [vmem:[#allocation2 + $0x88] sm:$0xff] %v263
    %652 = vst [vmem:[#allocation2 + $0x90] sm:$0xff] %v374
    %653 = vst [vmem:[#allocation2 + $0x98] sm:$0xff] %v376
    %654 = vst [vmem:[#allocation2 + $0xa0] sm:$0xff] %v487
    %655 = vst [vmem:[#allocation2 + $0xa8] sm:$0xff] %v489
    %656 = vst [vmem:[#allocation2 + $0xb0] sm:$0xff] %v600
    %657 = vst [vmem:[#allocation2 + $0xb8] sm:$0xff] %v602
    %658 = vst [vmem:[#allocation2 + $0xc0] sm:$0xff] %v267
    %659 = vst [vmem:[#allocation2 + $0xc8] sm:$0xff] %v269
    %660 = vst [vmem:[#allocation2 + $0xd0] sm:$0xff] %v380
    %661 = vst [vmem:[#allocation2 + $0xd8] sm:$0xff] %v382
    %662 = vst [vmem:[#allocation2 + $0xe0] sm:$0xff] %v493
    %663 = vst [vmem:[#allocation2 + $0xe8] sm:$0xff] %v495
    %664 = vst [vmem:[#allocation2 + $0xf0] sm:$0xff] %v606
    %665 = vst [vmem:[#allocation2 + $0xf8] sm:$0xff] %v608
    %666 = vst [vmem:[#allocation2 + $0x100] sm:$0xff] %v273
    %667 = vst [vmem:[#allocation2 + $0x108] sm:$0xff] %v275
    %668 = vst [vmem:[#allocation2 + $0x110] sm:$0xff] %v386
    %669 = vst [vmem:[#allocation2 + $0x118] sm:$0xff] %v388
    %670 = vst [vmem:[#allocation2 + $0x120] sm:$0xff] %v499
    %671 = vst [vmem:[#allocation2 + $0x128] sm:$0xff] %v501
    %672 = vst [vmem:[#allocation2 + $0x130] sm:$0xff] %v612
    %673 = vst [vmem:[#allocation2 + $0x138] sm:$0xff] %v614
    %674 = vst [vmem:[#allocation2 + $0x140] sm:$0xff] %v279
    %675 = vst [vmem:[#allocation2 + $0x148] sm:$0xff] %v281
    %676 = vst [vmem:[#allocation2 + $0x150] sm:$0xff] %v392
    %677 = vst [vmem:[#allocation2 + $0x158] sm:$0xff] %v394
    %678 = vst [vmem:[#allocation2 + $0x160] sm:$0xff] %v505
    %679 = vst [vmem:[#allocation2 + $0x168] sm:$0xff] %v507
    %680 = vst [vmem:[#allocation2 + $0x170] sm:$0xff] %v618
    %681 = vst [vmem:[#allocation2 + $0x178] sm:$0xff] %v620
    %682 = vst [vmem:[#allocation2 + $0x180] sm:$0xff] %v285
    %683 = vst [vmem:[#allocation2 + $0x188] sm:$0xff] %v287
    %684 = vst [vmem:[#allocation2 + $0x190] sm:$0xff] %v398
    %685 = vst [vmem:[#allocation2 + $0x198] sm:$0xff] %v400
    %686 = vst [vmem:[#allocation2 + $0x1a0] sm:$0xff] %v511
    %687 = vst [vmem:[#allocation2 + $0x1a8] sm:$0xff] %v513
    %688 = vst [vmem:[#allocation2 + $0x1b0] sm:$0xff] %v624
    %689 = vst [vmem:[#allocation2 + $0x1b8] sm:$0xff] %v626
    %690 = vst [vmem:[#allocation2 + $0x1c0] sm:$0xff] %v291
    %691 = vst [vmem:[#allocation2 + $0x1c8] sm:$0xff] %v293
    %692 = vst [vmem:[#allocation2 + $0x1d0] sm:$0xff] %v404
    %693 = vst [vmem:[#allocation2 + $0x1d8] sm:$0xff] %v406
    %694 = vst [vmem:[#allocation2 + $0x1e0] sm:$0xff] %v517
    %695 = vst [vmem:[#allocation2 + $0x1e8] sm:$0xff] %v519
    %696 = vst [vmem:[#allocation2 + $0x1f0] sm:$0xff] %v630
    %697 = vst [vmem:[#allocation2 + $0x1f8] sm:$0xff] %v632
    %v698 = vld [vmem:[#allocation2] sm:$0xff]
    %v699 = vld [vmem:[#allocation2 + $0x8] sm:$0xff]
    %v700 = vld [vmem:[#allocation2 + $0x10] sm:$0xff]
    %v701 = vld [vmem:[#allocation2 + $0x18] sm:$0xff]
    %v702 = vld [vmem:[#allocation2 + $0x20] sm:$0xff]
    %v703 = vld [vmem:[#allocation2 + $0x28] sm:$0xff]
    %v704 = vld [vmem:[#allocation2 + $0x30] sm:$0xff]
    %v705 = vld [vmem:[#allocation2 + $0x38] sm:$0xff]
    %v706 = vld [vmem:[#allocation7] sm:$0xff]
    %v707 = vld [vmem:[#allocation7 + $0x8] sm:$0xff]
    %v708 = vld [vmem:[#allocation7 + $0x10] sm:$0xff]
    %v709 = vld [vmem:[#allocation7 + $0x18] sm:$0xff]
    %v710 = vld [vmem:[#allocation7 + $0x20] sm:$0xff]
    %v711 = vld [vmem:[#allocation7 + $0x28] sm:$0xff]
    %v712 = vld [vmem:[#allocation7 + $0x30] sm:$0xff]
    %v713 = vld [vmem:[#allocation7 + $0x38] sm:$0xff]
    %v714 = vld [vmem:[#allocation7 + $0x40] sm:$0xff]
    %v715 = vld [vmem:[#allocation7 + $0x48] sm:$0xff]
    %v716 = vld [vmem:[#allocation7 + $0x50] sm:$0xff]
    %v717 = vld [vmem:[#allocation7 + $0x58] sm:$0xff]
    %v718 = vld [vmem:[#allocation7 + $0x60] sm:$0xff]
    %v719 = vld [vmem:[#allocation7 + $0x68] sm:$0xff]
    %v720 = vld [vmem:[#allocation7 + $0x70] sm:$0xff]
    %v721 = vld [vmem:[#allocation7 + $0x78] sm:$0xff]
    %v722 = vld [vmem:[#allocation7 + $0x80] sm:$0xff]
    %v723 = vld [vmem:[#allocation7 + $0x88] sm:$0xff]
    %v724 = vld [vmem:[#allocation7 + $0x90] sm:$0xff]
    %v725 = vld [vmem:[#allocation7 + $0x98] sm:$0xff]
    %v726 = vld [vmem:[#allocation7 + $0xa0] sm:$0xff]
    %v727 = vld [vmem:[#allocation7 + $0xa8] sm:$0xff]
    %v728 = vld [vmem:[#allocation7 + $0xb0] sm:$0xff]
    %v729 = vld [vmem:[#allocation7 + $0xb8] sm:$0xff]
    %v730 = vld [vmem:[#allocation7 + $0xc0] sm:$0xff]
    %v731 = vld [vmem:[#allocation7 + $0xc8] sm:$0xff]
    %v732 = vld [vmem:[#allocation7 + $0xd0] sm:$0xff]
    %v733 = vld [vmem:[#allocation7 + $0xd8] sm:$0xff]
    %v734 = vld [vmem:[#allocation7 + $0xe0] sm:$0xff]
    %v735 = vld [vmem:[#allocation7 + $0xe8] sm:$0xff]
    %v736 = vld [vmem:[#allocation7 + $0xf0] sm:$0xff]
    %v737 = vld [vmem:[#allocation7 + $0xf8] sm:$0xff]
    %v738 = vld [vmem:[#allocation7 + $0x100] sm:$0xff]
    %v739 = vld [vmem:[#allocation7 + $0x108] sm:$0xff]
    %v740 = vld [vmem:[#allocation7 + $0x110] sm:$0xff]
    %v741 = vld [vmem:[#allocation7 + $0x118] sm:$0xff]
    %v742 = vld [vmem:[#allocation7 + $0x120] sm:$0xff]
    %v743 = vld [vmem:[#allocation7 + $0x128] sm:$0xff]
    %v744 = vld [vmem:[#allocation7 + $0x130] sm:$0xff]
    %v745 = vld [vmem:[#allocation7 + $0x138] sm:$0xff]
    %v746 = vld [vmem:[#allocation7 + $0x140] sm:$0xff]
    %v747 = vld [vmem:[#allocation7 + $0x148] sm:$0xff]
    %v748 = vld [vmem:[#allocation7 + $0x150] sm:$0xff]
    %v749 = vld [vmem:[#allocation7 + $0x158] sm:$0xff]
    %v750 = vld [vmem:[#allocation7 + $0x160] sm:$0xff]
    %v751 = vld [vmem:[#allocation7 + $0x168] sm:$0xff]
    %v752 = vld [vmem:[#allocation7 + $0x170] sm:$0xff]
    %v753 = vld [vmem:[#allocation7 + $0x178] sm:$0xff]
    %v754 = vld [vmem:[#allocation7 + $0x180] sm:$0xff]
    %v755 = vld [vmem:[#allocation7 + $0x188] sm:$0xff]
    %v756 = vld [vmem:[#allocation7 + $0x190] sm:$0xff]
    %v757 = vld [vmem:[#allocation7 + $0x198] sm:$0xff]
    %v758 = vld [vmem:[#allocation7 + $0x1a0] sm:$0xff]
    %v759 = vld [vmem:[#allocation7 + $0x1a8] sm:$0xff]
    %v760 = vld [vmem:[#allocation7 + $0x1b0] sm:$0xff]
    %v761 = vld [vmem:[#allocation7 + $0x1b8] sm:$0xff]
    %v762 = vld [vmem:[#allocation7 + $0x1c0] sm:$0xff]
    %v763 = vld [vmem:[#allocation7 + $0x1c8] sm:$0xff]
    %v764 = vld [vmem:[#allocation7 + $0x1d0] sm:$0xff]
    %v765 = vld [vmem:[#allocation7 + $0x1d8] sm:$0xff]
    %v766 = vld [vmem:[#allocation7 + $0x1e0] sm:$0xff]
    %v767 = vld [vmem:[#allocation7 + $0x1e8] sm:$0xff]
    %v768 = vld [vmem:[#allocation7 + $0x1f0] sm:$0xff]
    %v769 = vld [vmem:[#allocation7 + $0x1f8] sm:$0xff]
    %v770 = vld [vmem:[#allocation7 + $0x200] sm:$0xff]
    %v771 = vld [vmem:[#allocation7 + $0x208] sm:$0xff]
    %v772 = vld [vmem:[#allocation7 + $0x210] sm:$0xff]
    %v773 = vld [vmem:[#allocation7 + $0x218] sm:$0xff]
    %v774 = vld [vmem:[#allocation7 + $0x220] sm:$0xff]
    %v775 = vld [vmem:[#allocation7 + $0x228] sm:$0xff]
    %v776 = vld [vmem:[#allocation7 + $0x230] sm:$0xff]
    %v777 = vld [vmem:[#allocation7 + $0x238] sm:$0xff]
    %v778 = vld [vmem:[#allocation7 + $0x240] sm:$0xff]
    %v779 = vld [vmem:[#allocation7 + $0x248] sm:$0xff]
    %v780 = vld [vmem:[#allocation7 + $0x250] sm:$0xff]
    %v781 = vld [vmem:[#allocation7 + $0x258] sm:$0xff]
    %v782 = vld [vmem:[#allocation7 + $0x260] sm:$0xff]
    %v783 = vld [vmem:[#allocation7 + $0x268] sm:$0xff]
    %v784 = vld [vmem:[#allocation7 + $0x270] sm:$0xff]
    %v785 = vld [vmem:[#allocation7 + $0x278] sm:$0xff]
    %v786 = vld [vmem:[#allocation7 + $0x280] sm:$0xff]
    %v787 = vld [vmem:[#allocation7 + $0x288] sm:$0xff]
    %v788 = vld [vmem:[#allocation7 + $0x290] sm:$0xff]
    %v789 = vld [vmem:[#allocation7 + $0x298] sm:$0xff]
    %v790 = vld [vmem:[#allocation7 + $0x2a0] sm:$0xff]
    %v791 = vld [vmem:[#allocation7 + $0x2a8] sm:$0xff]
    %v792 = vld [vmem:[#allocation7 + $0x2b0] sm:$0xff]
    %v793 = vld [vmem:[#allocation7 + $0x2b8] sm:$0xff]
    %v794 = vld [vmem:[#allocation7 + $0x2c0] sm:$0xff]
    %v795 = vld [vmem:[#allocation7 + $0x2c8] sm:$0xff]
    %v796 = vld [vmem:[#allocation7 + $0x2d0] sm:$0xff]
    %v797 = vld [vmem:[#allocation7 + $0x2d8] sm:$0xff]
    %v798 = vld [vmem:[#allocation7 + $0x2e0] sm:$0xff]
    %v799 = vld [vmem:[#allocation7 + $0x2e8] sm:$0xff]
    %v800 = vld [vmem:[#allocation7 + $0x2f0] sm:$0xff]
    %v801 = vld [vmem:[#allocation7 + $0x2f8] sm:$0xff]
    %v802 = vld [vmem:[#allocation7 + $0x300] sm:$0xff]
    %v803 = vld [vmem:[#allocation7 + $0x308] sm:$0xff]
    %v804 = vld [vmem:[#allocation7 + $0x310] sm:$0xff]
    %v805 = vld [vmem:[#allocation7 + $0x318] sm:$0xff]
    %v806 = vld [vmem:[#allocation7 + $0x320] sm:$0xff]
    %v807 = vld [vmem:[#allocation7 + $0x328] sm:$0xff]
    %v808 = vld [vmem:[#allocation7 + $0x330] sm:$0xff]
    %v809 = vld [vmem:[#allocation7 + $0x338] sm:$0xff]
    %v810 = vld [vmem:[#allocation7 + $0x340] sm:$0xff]
    %v811 = vld [vmem:[#allocation7 + $0x348] sm:$0xff]
    %v812 = vld [vmem:[#allocation7 + $0x350] sm:$0xff]
    %v813 = vld [vmem:[#allocation7 + $0x358] sm:$0xff]
    %v814 = vld [vmem:[#allocation7 + $0x360] sm:$0xff]
    %v815 = vld [vmem:[#allocation7 + $0x368] sm:$0xff]
    %v816 = vld [vmem:[#allocation7 + $0x370] sm:$0xff]
    %v817 = vld [vmem:[#allocation7 + $0x378] sm:$0xff]
    %v818 = vld [vmem:[#allocation7 + $0x380] sm:$0xff]
    %v819 = vld [vmem:[#allocation7 + $0x388] sm:$0xff]
    %v820 = vld [vmem:[#allocation7 + $0x390] sm:$0xff]
    %v821 = vld [vmem:[#allocation7 + $0x398] sm:$0xff]
    %v822 = vld [vmem:[#allocation7 + $0x3a0] sm:$0xff]
    %v823 = vld [vmem:[#allocation7 + $0x3a8] sm:$0xff]
    %v824 = vld [vmem:[#allocation7 + $0x3b0] sm:$0xff]
    %v825 = vld [vmem:[#allocation7 + $0x3b8] sm:$0xff]
    %v826 = vld [vmem:[#allocation7 + $0x3c0] sm:$0xff]
    %v827 = vld [vmem:[#allocation7 + $0x3c8] sm:$0xff]
    %v828 = vld [vmem:[#allocation7 + $0x3d0] sm:$0xff]
    %v829 = vld [vmem:[#allocation7 + $0x3d8] sm:$0xff]
    %v830 = vld [vmem:[#allocation7 + $0x3e0] sm:$0xff]
    %v831 = vld [vmem:[#allocation7 + $0x3e8] sm:$0xff]
    %v832 = vld [vmem:[#allocation7 + $0x3f0] sm:$0xff]
    %v833 = vld [vmem:[#allocation7 + $0x3f8] sm:$0xff]
    %v962 = vunpack.c.l.b16 %v706
    %v963 = vunpack.c.h.b16 %v706
    %v964 = vunpack.c.l.b16 %v707
    %v965 = vunpack.c.h.b16 %v707
    %v966 = vunpack.c.l.b16 %v708
    %v967 = vunpack.c.h.b16 %v708
    %v968 = vunpack.c.l.b16 %v709
    %v969 = vunpack.c.h.b16 %v709
    %v970 = vunpack.c.l.b16 %v710
    %v971 = vunpack.c.h.b16 %v710
    %v972 = vunpack.c.l.b16 %v711
    %v973 = vunpack.c.h.b16 %v711
    %v974 = vunpack.c.l.b16 %v712
    %v975 = vunpack.c.h.b16 %v712
    %v976 = vunpack.c.l.b16 %v713
    %v977 = vunpack.c.h.b16 %v713
    %v978 = vunpack.c.l.b16 %v714
    %v979 = vunpack.c.h.b16 %v714
    %v980 = vunpack.c.l.b16 %v715
    %v981 = vunpack.c.h.b16 %v715
    %v982 = vunpack.c.l.b16 %v716
    %v983 = vunpack.c.h.b16 %v716
    %v984 = vunpack.c.l.b16 %v717
    %v985 = vunpack.c.h.b16 %v717
    %v986 = vunpack.c.l.b16 %v718
    %v987 = vunpack.c.h.b16 %v718
    %v988 = vunpack.c.l.b16 %v719
    %v989 = vunpack.c.h.b16 %v719
    %v990 = vunpack.c.l.b16 %v720
    %v991 = vunpack.c.h.b16 %v720
    %v992 = vunpack.c.l.b16 %v721
    %v993 = vunpack.c.h.b16 %v721
    %v994 = vunpack.c.l.b16 %v722
    %v995 = vunpack.c.h.b16 %v722
    %v996 = vunpack.c.l.b16 %v723
    %v997 = vunpack.c.h.b16 %v723
    %v998 = vunpack.c.l.b16 %v724
    %v999 = vunpack.c.h.b16 %v724
    %v1000 = vunpack.c.l.b16 %v725
    %v1001 = vunpack.c.h.b16 %v725
    %v1002 = vunpack.c.l.b16 %v726
    %v1003 = vunpack.c.h.b16 %v726
    %v1004 = vunpack.c.l.b16 %v727
    %v1005 = vunpack.c.h.b16 %v727
    %v1006 = vunpack.c.l.b16 %v728
    %v1007 = vunpack.c.h.b16 %v728
    %v1008 = vunpack.c.l.b16 %v729
    %v1009 = vunpack.c.h.b16 %v729
    %v1010 = vunpack.c.l.b16 %v730
    %v1011 = vunpack.c.h.b16 %v730
    %v1012 = vunpack.c.l.b16 %v731
    %v1013 = vunpack.c.h.b16 %v731
    %v1014 = vunpack.c.l.b16 %v732
    %v1015 = vunpack.c.h.b16 %v732
    %v1016 = vunpack.c.l.b16 %v733
    %v1017 = vunpack.c.h.b16 %v733
    %v1018 = vunpack.c.l.b16 %v734
    %v1019 = vunpack.c.h.b16 %v734
    %v1020 = vunpack.c.l.b16 %v735
    %v1021 = vunpack.c.h.b16 %v735
    %v1022 = vunpack.c.l.b16 %v736
    %v1023 = vunpack.c.h.b16 %v736
    %v1024 = vunpack.c.l.b16 %v737
    %v1025 = vunpack.c.h.b16 %v737
    %v1026 = vunpack.c.l.b16 %v738
    %v1027 = vunpack.c.h.b16 %v738
    %v1028 = vunpack.c.l.b16 %v739
    %v1029 = vunpack.c.h.b16 %v739
    %v1030 = vunpack.c.l.b16 %v740
    %v1031 = vunpack.c.h.b16 %v740
    %v1032 = vunpack.c.l.b16 %v741
    %v1033 = vunpack.c.h.b16 %v741
    %v1034 = vunpack.c.l.b16 %v742
    %v1035 = vunpack.c.h.b16 %v742
    %v1036 = vunpack.c.l.b16 %v743
    %v1037 = vunpack.c.h.b16 %v743
    %v1038 = vunpack.c.l.b16 %v744
    %v1039 = vunpack.c.h.b16 %v744
    %v1040 = vunpack.c.l.b16 %v745
    %v1041 = vunpack.c.h.b16 %v745
    %v1042 = vunpack.c.l.b16 %v746
    %v1043 = vunpack.c.h.b16 %v746
    %v1044 = vunpack.c.l.b16 %v747
    %v1045 = vunpack.c.h.b16 %v747
    %v1046 = vunpack.c.l.b16 %v748
    %v1047 = vunpack.c.h.b16 %v748
    %v1048 = vunpack.c.l.b16 %v749
    %v1049 = vunpack.c.h.b16 %v749
    %v1050 = vunpack.c.l.b16 %v750
    %v1051 = vunpack.c.h.b16 %v750
    %v1052 = vunpack.c.l.b16 %v751
    %v1053 = vunpack.c.h.b16 %v751
    %v1054 = vunpack.c.l.b16 %v752
    %v1055 = vunpack.c.h.b16 %v752
    %v1056 = vunpack.c.l.b16 %v753
    %v1057 = vunpack.c.h.b16 %v753
    %v1058 = vunpack.c.l.b16 %v754
    %v1059 = vunpack.c.h.b16 %v754
    %v1060 = vunpack.c.l.b16 %v755
    %v1061 = vunpack.c.h.b16 %v755
    %v1062 = vunpack.c.l.b16 %v756
    %v1063 = vunpack.c.h.b16 %v756
    %v1064 = vunpack.c.l.b16 %v757
    %v1065 = vunpack.c.h.b16 %v757
    %v1066 = vunpack.c.l.b16 %v758
    %v1067 = vunpack.c.h.b16 %v758
    %v1068 = vunpack.c.l.b16 %v759
    %v1069 = vunpack.c.h.b16 %v759
    %v1070 = vunpack.c.l.b16 %v760
    %v1071 = vunpack.c.h.b16 %v760
    %v1072 = vunpack.c.l.b16 %v761
    %v1073 = vunpack.c.h.b16 %v761
    %v1074 = vunpack.c.l.b16 %v762
    %v1075 = vunpack.c.h.b16 %v762
    %v1076 = vunpack.c.l.b16 %v763
    %v1077 = vunpack.c.h.b16 %v763
    %v1078 = vunpack.c.l.b16 %v764
    %v1079 = vunpack.c.h.b16 %v764
    %v1080 = vunpack.c.l.b16 %v765
    %v1081 = vunpack.c.h.b16 %v765
    %v1082 = vunpack.c.l.b16 %v766
    %v1083 = vunpack.c.h.b16 %v766
    %v1084 = vunpack.c.l.b16 %v767
    %v1085 = vunpack.c.h.b16 %v767
    %v1086 = vunpack.c.l.b16 %v768
    %v1087 = vunpack.c.h.b16 %v768
    %v1088 = vunpack.c.l.b16 %v769
    %v1089 = vunpack.c.h.b16 %v769
    %v1090 = vunpack.c.l.b16 %v770
    %v1091 = vunpack.c.h.b16 %v770
    %v1092 = vunpack.c.l.b16 %v771
    %v1093 = vunpack.c.h.b16 %v771
    %v1094 = vunpack.c.l.b16 %v772
    %v1095 = vunpack.c.h.b16 %v772
    %v1096 = vunpack.c.l.b16 %v773
    %v1097 = vunpack.c.h.b16 %v773
    %v1098 = vunpack.c.l.b16 %v774
    %v1099 = vunpack.c.h.b16 %v774
    %v1100 = vunpack.c.l.b16 %v775
    %v1101 = vunpack.c.h.b16 %v775
    %v1102 = vunpack.c.l.b16 %v776
    %v1103 = vunpack.c.h.b16 %v776
    %v1104 = vunpack.c.l.b16 %v777
    %v1105 = vunpack.c.h.b16 %v777
    %v1106 = vunpack.c.l.b16 %v778
    %v1107 = vunpack.c.h.b16 %v778
    %v1108 = vunpack.c.l.b16 %v779
    %v1109 = vunpack.c.h.b16 %v779
    %v1110 = vunpack.c.l.b16 %v780
    %v1111 = vunpack.c.h.b16 %v780
    %v1112 = vunpack.c.l.b16 %v781
    %v1113 = vunpack.c.h.b16 %v781
    %v1114 = vunpack.c.l.b16 %v782
    %v1115 = vunpack.c.h.b16 %v782
    %v1116 = vunpack.c.l.b16 %v783
    %v1117 = vunpack.c.h.b16 %v783
    %v1118 = vunpack.c.l.b16 %v784
    %v1119 = vunpack.c.h.b16 %v784
    %v1120 = vunpack.c.l.b16 %v785
    %v1121 = vunpack.c.h.b16 %v785
    %v1122 = vunpack.c.l.b16 %v786
    %v1123 = vunpack.c.h.b16 %v786
    %v1124 = vunpack.c.l.b16 %v787
    %v1125 = vunpack.c.h.b16 %v787
    %v1126 = vunpack.c.l.b16 %v788
    %v1127 = vunpack.c.h.b16 %v788
    %v1128 = vunpack.c.l.b16 %v789
    %v1129 = vunpack.c.h.b16 %v789
    %v1130 = vunpack.c.l.b16 %v790
    %v1131 = vunpack.c.h.b16 %v790
    %v1132 = vunpack.c.l.b16 %v791
    %v1133 = vunpack.c.h.b16 %v791
    %v1134 = vunpack.c.l.b16 %v792
    %v1135 = vunpack.c.h.b16 %v792
    %v1136 = vunpack.c.l.b16 %v793
    %v1137 = vunpack.c.h.b16 %v793
    %v1138 = vunpack.c.l.b16 %v794
    %v1139 = vunpack.c.h.b16 %v794
    %v1140 = vunpack.c.l.b16 %v795
    %v1141 = vunpack.c.h.b16 %v795
    %v1142 = vunpack.c.l.b16 %v796
    %v1143 = vunpack.c.h.b16 %v796
    %v1144 = vunpack.c.l.b16 %v797
    %v1145 = vunpack.c.h.b16 %v797
    %v1146 = vunpack.c.l.b16 %v798
    %v1147 = vunpack.c.h.b16 %v798
    %v1148 = vunpack.c.l.b16 %v799
    %v1149 = vunpack.c.h.b16 %v799
    %v1150 = vunpack.c.l.b16 %v800
    %v1151 = vunpack.c.h.b16 %v800
    %v1152 = vunpack.c.l.b16 %v801
    %v1153 = vunpack.c.h.b16 %v801
    %v1154 = vunpack.c.l.b16 %v802
    %v1155 = vunpack.c.h.b16 %v802
    %v1156 = vunpack.c.l.b16 %v803
    %v1157 = vunpack.c.h.b16 %v803
    %v1158 = vunpack.c.l.b16 %v804
    %v1159 = vunpack.c.h.b16 %v804
    %v1160 = vunpack.c.l.b16 %v805
    %v1161 = vunpack.c.h.b16 %v805
    %v1162 = vunpack.c.l.b16 %v806
    %v1163 = vunpack.c.h.b16 %v806
    %v1164 = vunpack.c.l.b16 %v807
    %v1165 = vunpack.c.h.b16 %v807
    %v1166 = vunpack.c.l.b16 %v808
    %v1167 = vunpack.c.h.b16 %v808
    %v1168 = vunpack.c.l.b16 %v809
    %v1169 = vunpack.c.h.b16 %v809
    %v1170 = vunpack.c.l.b16 %v810
    %v1171 = vunpack.c.h.b16 %v810
    %v1172 = vunpack.c.l.b16 %v811
    %v1173 = vunpack.c.h.b16 %v811
    %v1174 = vunpack.c.l.b16 %v812
    %v1175 = vunpack.c.h.b16 %v812
    %v1176 = vunpack.c.l.b16 %v813
    %v1177 = vunpack.c.h.b16 %v813
    %v1178 = vunpack.c.l.b16 %v814
    %v1179 = vunpack.c.h.b16 %v814
    %v1180 = vunpack.c.l.b16 %v815
    %v1181 = vunpack.c.h.b16 %v815
    %v1182 = vunpack.c.l.b16 %v816
    %v1183 = vunpack.c.h.b16 %v816
    %v1184 = vunpack.c.l.b16 %v817
    %v1185 = vunpack.c.h.b16 %v817
    %v1186 = vunpack.c.l.b16 %v818
    %v1187 = vunpack.c.h.b16 %v818
    %v1188 = vunpack.c.l.b16 %v819
    %v1189 = vunpack.c.h.b16 %v819
    %v1190 = vunpack.c.l.b16 %v820
    %v1191 = vunpack.c.h.b16 %v820
    %v1192 = vunpack.c.l.b16 %v821
    %v1193 = vunpack.c.h.b16 %v821
    %v1194 = vunpack.c.l.b16 %v822
    %v1195 = vunpack.c.h.b16 %v822
    %v1196 = vunpack.c.l.b16 %v823
    %v1197 = vunpack.c.h.b16 %v823
    %v1198 = vunpack.c.l.b16 %v824
    %v1199 = vunpack.c.h.b16 %v824
    %v1200 = vunpack.c.l.b16 %v825
    %v1201 = vunpack.c.h.b16 %v825
    %v1202 = vunpack.c.l.b16 %v826
    %v1203 = vunpack.c.h.b16 %v826
    %v1204 = vunpack.c.l.b16 %v827
    %v1205 = vunpack.c.h.b16 %v827
    %v1206 = vunpack.c.l.b16 %v828
    %v1207 = vunpack.c.h.b16 %v828
    %v1208 = vunpack.c.l.b16 %v829
    %v1209 = vunpack.c.h.b16 %v829
    %v1210 = vunpack.c.l.b16 %v830
    %v1211 = vunpack.c.h.b16 %v830
    %v1212 = vunpack.c.l.b16 %v831
    %v1213 = vunpack.c.h.b16 %v831
    %v1214 = vunpack.c.l.b16 %v832
    %v1215 = vunpack.c.h.b16 %v832
    %v1216 = vunpack.c.l.b16 %v833
    %v1217 = vunpack.c.h.b16 %v833
    %v1218 = vpack.c.b16 %v970, %v962
    %v1219 = vpack.c.b16 %v971, %v963
    %v1220 = vpack.c.b16 %v972, %v964
    %v1221 = vpack.c.b16 %v973, %v965
    %v1222 = vpack.c.b16 %v974, %v966
    %v1223 = vpack.c.b16 %v975, %v967
    %v1224 = vpack.c.b16 %v976, %v968
    %v1225 = vpack.c.b16 %v977, %v969
    %v1226 = vpack.c.b16 %v986, %v978
    %v1227 = vpack.c.b16 %v987, %v979
    %v1228 = vpack.c.b16 %v988, %v980
    %v1229 = vpack.c.b16 %v989, %v981
    %v1230 = vpack.c.b16 %v990, %v982
    %v1231 = vpack.c.b16 %v991, %v983
    %v1232 = vpack.c.b16 %v992, %v984
    %v1233 = vpack.c.b16 %v993, %v985
    %v1234 = vpack.c.b16 %v1002, %v994
    %v1235 = vpack.c.b16 %v1003, %v995
    %v1236 = vpack.c.b16 %v1004, %v996
    %v1237 = vpack.c.b16 %v1005, %v997
    %v1238 = vpack.c.b16 %v1006, %v998
    %v1239 = vpack.c.b16 %v1007, %v999
    %v1240 = vpack.c.b16 %v1008, %v1000
    %v1241 = vpack.c.b16 %v1009, %v1001
    %v1242 = vpack.c.b16 %v1018, %v1010
    %v1243 = vpack.c.b16 %v1019, %v1011
    %v1244 = vpack.c.b16 %v1020, %v1012
    %v1245 = vpack.c.b16 %v1021, %v1013
    %v1246 = vpack.c.b16 %v1022, %v1014
    %v1247 = vpack.c.b16 %v1023, %v1015
    %v1248 = vpack.c.b16 %v1024, %v1016
    %v1249 = vpack.c.b16 %v1025, %v1017
    %v1250 = vpack.c.b16 %v1034, %v1026
    %v1251 = vpack.c.b16 %v1035, %v1027
    %v1252 = vpack.c.b16 %v1036, %v1028
    %v1253 = vpack.c.b16 %v1037, %v1029
    %v1254 = vpack.c.b16 %v1038, %v1030
    %v1255 = vpack.c.b16 %v1039, %v1031
    %v1256 = vpack.c.b16 %v1040, %v1032
    %v1257 = vpack.c.b16 %v1041, %v1033
    %v1258 = vpack.c.b16 %v1050, %v1042
    %v1259 = vpack.c.b16 %v1051, %v1043
    %v1260 = vpack.c.b16 %v1052, %v1044
    %v1261 = vpack.c.b16 %v1053, %v1045
    %v1262 = vpack.c.b16 %v1054, %v1046
    %v1263 = vpack.c.b16 %v1055, %v1047
    %v1264 = vpack.c.b16 %v1056, %v1048
    %v1265 = vpack.c.b16 %v1057, %v1049
    %v1266 = vpack.c.b16 %v1066, %v1058
    %v1267 = vpack.c.b16 %v1067, %v1059
    %v1268 = vpack.c.b16 %v1068, %v1060
    %v1269 = vpack.c.b16 %v1069, %v1061
    %v1270 = vpack.c.b16 %v1070, %v1062
    %v1271 = vpack.c.b16 %v1071, %v1063
    %v1272 = vpack.c.b16 %v1072, %v1064
    %v1273 = vpack.c.b16 %v1073, %v1065
    %v1274 = vpack.c.b16 %v1082, %v1074
    %v1275 = vpack.c.b16 %v1083, %v1075
    %v1276 = vpack.c.b16 %v1084, %v1076
    %v1277 = vpack.c.b16 %v1085, %v1077
    %v1278 = vpack.c.b16 %v1086, %v1078
    %v1279 = vpack.c.b16 %v1087, %v1079
    %v1280 = vpack.c.b16 %v1088, %v1080
    %v1281 = vpack.c.b16 %v1089, %v1081
    %v1282 = vpack.c.b16 %v1098, %v1090
    %v1283 = vpack.c.b16 %v1099, %v1091
    %v1284 = vpack.c.b16 %v1100, %v1092
    %v1285 = vpack.c.b16 %v1101, %v1093
    %v1286 = vpack.c.b16 %v1102, %v1094
    %v1287 = vpack.c.b16 %v1103, %v1095
    %v1288 = vpack.c.b16 %v1104, %v1096
    %v1289 = vpack.c.b16 %v1105, %v1097
    %v1290 = vpack.c.b16 %v1114, %v1106
    %v1291 = vpack.c.b16 %v1115, %v1107
    %v1292 = vpack.c.b16 %v1116, %v1108
    %v1293 = vpack.c.b16 %v1117, %v1109
    %v1294 = vpack.c.b16 %v1118, %v1110
    %v1295 = vpack.c.b16 %v1119, %v1111
    %v1296 = vpack.c.b16 %v1120, %v1112
    %v1297 = vpack.c.b16 %v1121, %v1113
    %v1298 = vpack.c.b16 %v1130, %v1122
    %v1299 = vpack.c.b16 %v1131, %v1123
    %v1300 = vpack.c.b16 %v1132, %v1124
    %v1301 = vpack.c.b16 %v1133, %v1125
    %v1302 = vpack.c.b16 %v1134, %v1126
    %v1303 = vpack.c.b16 %v1135, %v1127
    %v1304 = vpack.c.b16 %v1136, %v1128
    %v1305 = vpack.c.b16 %v1137, %v1129
    %v1306 = vpack.c.b16 %v1146, %v1138
    %v1307 = vpack.c.b16 %v1147, %v1139
    %v1308 = vpack.c.b16 %v1148, %v1140
    %v1309 = vpack.c.b16 %v1149, %v1141
    %v1310 = vpack.c.b16 %v1150, %v1142
    %v1311 = vpack.c.b16 %v1151, %v1143
    %v1312 = vpack.c.b16 %v1152, %v1144
    %v1313 = vpack.c.b16 %v1153, %v1145
    %v1314 = vpack.c.b16 %v1162, %v1154
    %v1315 = vpack.c.b16 %v1163, %v1155
    %v1316 = vpack.c.b16 %v1164, %v1156
    %v1317 = vpack.c.b16 %v1165, %v1157
    %v1318 = vpack.c.b16 %v1166, %v1158
    %v1319 = vpack.c.b16 %v1167, %v1159
    %v1320 = vpack.c.b16 %v1168, %v1160
    %v1321 = vpack.c.b16 %v1169, %v1161
    %v1322 = vpack.c.b16 %v1178, %v1170
    %v1323 = vpack.c.b16 %v1179, %v1171
    %v1324 = vpack.c.b16 %v1180, %v1172
    %v1325 = vpack.c.b16 %v1181, %v1173
    %v1326 = vpack.c.b16 %v1182, %v1174
    %v1327 = vpack.c.b16 %v1183, %v1175
    %v1328 = vpack.c.b16 %v1184, %v1176
    %v1329 = vpack.c.b16 %v1185, %v1177
    %v1330 = vpack.c.b16 %v1194, %v1186
    %v1331 = vpack.c.b16 %v1195, %v1187
    %v1332 = vpack.c.b16 %v1196, %v1188
    %v1333 = vpack.c.b16 %v1197, %v1189
    %v1334 = vpack.c.b16 %v1198, %v1190
    %v1335 = vpack.c.b16 %v1199, %v1191
    %v1336 = vpack.c.b16 %v1200, %v1192
    %v1337 = vpack.c.b16 %v1201, %v1193
    %v1338 = vpack.c.b16 %v1210, %v1202
    %v1339 = vpack.c.b16 %v1211, %v1203
    %v1340 = vpack.c.b16 %v1212, %v1204
    %v1341 = vpack.c.b16 %v1213, %v1205
    %v1342 = vpack.c.b16 %v1214, %v1206
    %v1343 = vpack.c.b16 %v1215, %v1207
    %v1344 = vpack.c.b16 %v1216, %v1208
    %v1345 = vpack.c.b16 %v1217, %v1209
    %1474 = vmatprep.subr.bf16.mxu0 %v1275
    %1475 = vmatpush1.bf16.msra.mxu0 %v1274
    %1476 = vmatprep.subr.bf16.mxu0 %v1267
    %1477 = vmatpush1.bf16.msra.mxu0 %v1266
    %1478 = vmatprep.subr.bf16.mxu0 %v1259
    %1479 = vmatpush1.bf16.msra.mxu0 %v1258
    %1480 = vmatprep.subr.bf16.mxu0 %v1251
    %1481 = vmatpush1.bf16.msra.mxu0 %v1250
    %1482 = vmatprep.subr.bf16.mxu0 %v1243
    %1483 = vmatpush1.bf16.msra.mxu0 %v1242
    %1484 = vmatprep.subr.bf16.mxu0 %v1235
    %1485 = vmatpush1.bf16.msra.mxu0 %v1234
    %1486 = vmatprep.subr.bf16.mxu0 %v1227
    %1487 = vmatpush1.bf16.msra.mxu0 %v1226
    %1488 = vmatprep.subr.bf16.mxu0 %v1219
    %1489 = vmatpush1.bf16.msra.mxu0 %v1218
    %1490 = vmatprep.subr.bf16.mxu0 %v1339
    %1491 = vmatpush2.bf16.msra.mxu0 %v1338
    %1492 = vmatprep.subr.bf16.mxu0 %v1331
    %1493 = vmatpush2.bf16.msra.mxu0 %v1330
    %1494 = vmatprep.subr.bf16.mxu0 %v1323
    %1495 = vmatpush2.bf16.msra.mxu0 %v1322
    %1496 = vmatprep.subr.bf16.mxu0 %v1315
    %1497 = vmatpush2.bf16.msra.mxu0 %v1314
    %1498 = vmatprep.subr.bf16.mxu0 %v1307
    %1499 = vmatpush2.bf16.msra.mxu0 %v1306
    %1500 = vmatprep.subr.bf16.mxu0 %v1299
    %1501 = vmatpush2.bf16.msra.mxu0 %v1298
    %1502 = vmatprep.subr.bf16.mxu0 %v1291
    %1503 = vmatpush2.bf16.msra.mxu0 %v1290
    %1504 = vmatprep.subr.bf16.mxu0 %v1283
    %1505 = vmatpush2.bf16.msra.mxu0 %v1282
    %1506 = vmatprep.mubr.bf16.mxu0 0
    %1507 = vmatmul.mubr.bf16.gmra.mxu0 0
    %v1508 = vpop.f32.mrf.mxu0
    %v1509 = vadd.f32 0.0, %v1508
    %v1510 = vpop.f32.mrf.mxu0
    %v1511 = vadd.f32 0.0, %v1510
    %v1512 = vpop.f32.mrf.mxu0
    %v1513 = vpop.f32.mrf.mxu0
    %1514 = vdwg.mxu0
    %1515 = vmatprep.subr.bf16.mxu0 %v1277
    %1516 = vmatpush1.bf16.msra.mxu0 %v1276
    %1517 = vmatprep.subr.bf16.mxu0 %v1269
    %1518 = vmatpush1.bf16.msra.mxu0 %v1268
    %1519 = vmatprep.subr.bf16.mxu0 %v1261
    %1520 = vmatpush1.bf16.msra.mxu0 %v1260
    %1521 = vmatprep.subr.bf16.mxu0 %v1253
    %1522 = vmatpush1.bf16.msra.mxu0 %v1252
    %1523 = vmatprep.subr.bf16.mxu0 %v1245
    %1524 = vmatpush1.bf16.msra.mxu0 %v1244
    %1525 = vmatprep.subr.bf16.mxu0 %v1237
    %1526 = vmatpush1.bf16.msra.mxu0 %v1236
    %1527 = vmatprep.subr.bf16.mxu0 %v1229
    %1528 = vmatpush1.bf16.msra.mxu0 %v1228
    %1529 = vmatprep.subr.bf16.mxu0 %v1221
    %1530 = vmatpush1.bf16.msra.mxu0 %v1220
    %1531 = vmatprep.subr.bf16.mxu0 %v1341
    %1532 = vmatpush2.bf16.msra.mxu0 %v1340
    %1533 = vmatprep.subr.bf16.mxu0 %v1333
    %1534 = vmatpush2.bf16.msra.mxu0 %v1332
    %1535 = vmatprep.subr.bf16.mxu0 %v1325
    %1536 = vmatpush2.bf16.msra.mxu0 %v1324
    %1537 = vmatprep.subr.bf16.mxu0 %v1317
    %1538 = vmatpush2.bf16.msra.mxu0 %v1316
    %1539 = vmatprep.subr.bf16.mxu0 %v1309
    %1540 = vmatpush2.bf16.msra.mxu0 %v1308
    %1541 = vmatprep.subr.bf16.mxu0 %v1301
    %1542 = vmatpush2.bf16.msra.mxu0 %v1300
    %1543 = vmatprep.subr.bf16.mxu0 %v1293
    %1544 = vmatpush2.bf16.msra.mxu0 %v1292
    %1545 = vmatprep.subr.bf16.mxu0 %v1285
    %1546 = vmatpush2.bf16.msra.mxu0 %v1284
    %1547 = vmatprep.mubr.bf16.mxu0 0
    %1548 = vmatmul.mubr.bf16.gmra.mxu0 0
    %v1549 = vpop.f32.mrf.mxu0
    %v1550 = vadd.f32 0.0, %v1549
    %v1551 = vpop.f32.mrf.mxu0
    %v1552 = vadd.f32 0.0, %v1551
    %v1553 = vpop.f32.mrf.mxu0
    %v1554 = vpop.f32.mrf.mxu0
    %1555 = vdwg.mxu0
    %1556 = vmatprep.subr.bf16.mxu0 %v1279
    %1557 = vmatpush1.bf16.msra.mxu0 %v1278
    %1558 = vmatprep.subr.bf16.mxu0 %v1271
    %1559 = vmatpush1.bf16.msra.mxu0 %v1270
    %1560 = vmatprep.subr.bf16.mxu0 %v1263
    %1561 = vmatpush1.bf16.msra.mxu0 %v1262
    %1562 = vmatprep.subr.bf16.mxu0 %v1255
    %1563 = vmatpush1.bf16.msra.mxu0 %v1254
    %1564 = vmatprep.subr.bf16.mxu0 %v1247
    %1565 = vmatpush1.bf16.msra.mxu0 %v1246
    %1566 = vmatprep.subr.bf16.mxu0 %v1239
    %1567 = vmatpush1.bf16.msra.mxu0 %v1238
    %1568 = vmatprep.subr.bf16.mxu0 %v1231
    %1569 = vmatpush1.bf16.msra.mxu0 %v1230
    %1570 = vmatprep.subr.bf16.mxu0 %v1223
    %1571 = vmatpush1.bf16.msra.mxu0 %v1222
    %1572 = vmatprep.subr.bf16.mxu0 %v1343
    %1573 = vmatpush2.bf16.msra.mxu0 %v1342
    %1574 = vmatprep.subr.bf16.mxu0 %v1335
    %1575 = vmatpush2.bf16.msra.mxu0 %v1334
    %1576 = vmatprep.subr.bf16.mxu0 %v1327
    %1577 = vmatpush2.bf16.msra.mxu0 %v1326
    %1578 = vmatprep.subr.bf16.mxu0 %v1319
    %1579 = vmatpush2.bf16.msra.mxu0 %v1318
    %1580 = vmatprep.subr.bf16.mxu0 %v1311
    %1581 = vmatpush2.bf16.msra.mxu0 %v1310
    %1582 = vmatprep.subr.bf16.mxu0 %v1303
    %1583 = vmatpush2.bf16.msra.mxu0 %v1302
    %1584 = vmatprep.subr.bf16.mxu0 %v1295
    %1585 = vmatpush2.bf16.msra.mxu0 %v1294
    %1586 = vmatprep.subr.bf16.mxu0 %v1287
    %1587 = vmatpush2.bf16.msra.mxu0 %v1286
    %1588 = vmatprep.mubr.bf16.mxu0 0
    %1589 = vmatmul.mubr.bf16.gmra.mxu0 0
    %v1590 = vpop.f32.mrf.mxu0
    %v1591 = vadd.f32 0.0, %v1590
    %v1592 = vpop.f32.mrf.mxu0
    %v1593 = vadd.f32 0.0, %v1592
    %v1594 = vpop.f32.mrf.mxu0
    %v1595 = vpop.f32.mrf.mxu0
    %1596 = vdwg.mxu0
    %1597 = vmatprep.subr.bf16.mxu0 %v1281
    %1598 = vmatpush1.bf16.msra.mxu0 %v1280
    %1599 = vmatprep.subr.bf16.mxu0 %v1273
    %1600 = vmatpush1.bf16.msra.mxu0 %v1272
    %1601 = vmatprep.subr.bf16.mxu0 %v1265
    %1602 = vmatpush1.bf16.msra.mxu0 %v1264
    %1603 = vmatprep.subr.bf16.mxu0 %v1257
    %1604 = vmatpush1.bf16.msra.mxu0 %v1256
    %1605 = vmatprep.subr.bf16.mxu0 %v1249
    %1606 = vmatpush1.bf16.msra.mxu0 %v1248
    %1607 = vmatprep.subr.bf16.mxu0 %v1241
    %1608 = vmatpush1.bf16.msra.mxu0 %v1240
    %1609 = vmatprep.subr.bf16.mxu0 %v1233
    %1610 = vmatpush1.bf16.msra.mxu0 %v1232
    %1611 = vmatprep.subr.bf16.mxu0 %v1225
    %1612 = vmatpush1.bf16.msra.mxu0 %v1224
    %1613 = vmatprep.subr.bf16.mxu0 %v1345
    %1614 = vmatpush2.bf16.msra.mxu0 %v1344
    %1615 = vmatprep.subr.bf16.mxu0 %v1337
    %1616 = vmatpush2.bf16.msra.mxu0 %v1336
    %1617 = vmatprep.subr.bf16.mxu0 %v1329
    %1618 = vmatpush2.bf16.msra.mxu0 %v1328
    %1619 = vmatprep.subr.bf16.mxu0 %v1321
    %1620 = vmatpush2.bf16.msra.mxu0 %v1320
    %1621 = vmatprep.subr.bf16.mxu0 %v1313
    %1622 = vmatpush2.bf16.msra.mxu0 %v1312
    %1623 = vmatprep.subr.bf16.mxu0 %v1305
    %1624 = vmatpush2.bf16.msra.mxu0 %v1304
    %1625 = vmatprep.subr.bf16.mxu0 %v1297
    %1626 = vmatpush2.bf16.msra.mxu0 %v1296
    %1627 = vmatprep.subr.bf16.mxu0 %v1289
    %1628 = vmatpush2.bf16.msra.mxu0 %v1288
    %1629 = vmatprep.mubr.bf16.mxu0 0
    %1630 = vmatmul.mubr.bf16.gmra.mxu0 0
    %v1631 = vpop.f32.mrf.mxu0
    %v1632 = vadd.f32 0.0, %v1631
    %v1633 = vpop.f32.mrf.mxu0
    %v1634 = vadd.f32 0.0, %v1633
    %v1635 = vpop.f32.mrf.mxu0
    %v1636 = vpop.f32.mrf.mxu0
    %1637 = vdwg.mxu0
    %v1638 = vadd.f32 %v698, %v1509
    %v1639 = vadd.f32 %v699, %v1511
    %v1640 = vadd.f32 %v700, %v1550
    %v1641 = vadd.f32 %v701, %v1552
    %v1642 = vadd.f32 %v702, %v1591
    %v1643 = vadd.f32 %v703, %v1593
    %v1644 = vadd.f32 %v704, %v1632
    %v1645 = vadd.f32 %v705, %v1634
    %v1646 = vxor.u32 %v1638, 2147483648
    %v1647 = vxor.u32 %v1639, 2147483648
    %v1648 = vxor.u32 %v1640, 2147483648
    %v1649 = vxor.u32 %v1641, 2147483648
    %v1650 = vxor.u32 %v1642, 2147483648
    %v1651 = vxor.u32 %v1643, 2147483648
    %v1652 = vmul.f32 %v1646, 1.442695
    %v1653 = vpow.pop %v1652
    %v1654 = vmul.f32 %v1647, 1.442695
    %v1655 = vpow.pop %v1654
    %v1656 = vmul.f32 %v1648, 1.442695
    %v1657 = vpow.pop %v1656
    %v1658 = vmul.f32 %v1649, 1.442695
    %v1659 = vpow.pop %v1658
    %v1660 = vmul.f32 %v1650, 1.442695
    %v1661 = vpow.pop %v1660
    %v1662 = vmul.f32 %v1651, 1.442695
    %v1663 = vpow.pop %v1662
    %v1664 = vadd.f32 %v1653, 1.0
    %v1665 = vadd.f32 %v1655, 1.0
    %v1666 = vadd.f32 %v1657, 1.0
    %v1667 = vadd.f32 %v1659, 1.0
    %v1668 = vadd.f32 %v1661, 1.0
    %v1669 = vadd.f32 %v1663, 1.0
    %v1670 = vrcp.pop %v1664
    %v1671 = vmul.f32 1.0, %v1670
    %v1672 = vrcp.pop %v1665
    %v1673 = vmul.f32 1.0, %v1672
    %v1674 = vrcp.pop %v1666
    %v1675 = vmul.f32 1.0, %v1674
    %v1676 = vrcp.pop %v1667
    %v1677 = vmul.f32 1.0, %v1676
    %v1678 = vrcp.pop %v1668
    %v1679 = vmul.f32 1.0, %v1678
    %v1680 = vrcp.pop %v1669
    %v1681 = vmul.f32 1.0, %v1680
    %v1682 = vtanh.pop %v1644
    %v1683 = vtanh.pop %v1645
    %v1684 = vmul.f32 %v1675, 0.0
    %v1685 = vmul.f32 %v1677, 0.0
    %v1686 = vmul.f32 %v1671, %v1682
    %v1687 = vmul.f32 %v1673, %v1683
    %v1688 = vadd.f32 %v1684, %v1686
    %v1689 = vadd.f32 %v1685, %v1687
    %v1690 = vtanh.pop %v1688
    %v1691 = vtanh.pop %v1689
    %v1692 = vmul.f32 %v1679, %v1690
    %v1693 = vmul.f32 %v1681, %v1691
    %v1695 = vrot.slane %v1692, 1
    %1697 = vst [vmem:[#allocation3] sm:$0x1] %v1695
    %1698 = vst [vmem:[#allocation3 + $0xf] sm:$0x1] %v1693
    %v1699 = vld [vmem:[#allocation2 + $0x40] sm:$0xff]
    %v1700 = vld [vmem:[#allocation2 + $0x48] sm:$0xff]
    %v1701 = vld [vmem:[#allocation2 + $0x50] sm:$0xff]
    %v1702 = vld [vmem:[#allocation2 + $0x58] sm:$0xff]
    %v1703 = vld [vmem:[#allocation2 + $0x60] sm:$0xff]
    %v1704 = vld [vmem:[#allocation2 + $0x68] sm:$0xff]
    %v1705 = vld [vmem:[#allocation2 + $0x70] sm:$0xff]
    %v1706 = vld [vmem:[#allocation2 + $0x78] sm:$0xff]
    %v1707 = vpack.c.bf16 %v1692, %v1692
    %v1708 = vpack.c.bf16 %v1693, %v1693
    %v1709 = vld [vmem:[#allocation7] sm:$0xff]
    %v1710 = vld [vmem:[#allocation7 + $0x8] sm:$0xff]
    %v1711 = vld [vmem:[#allocation7 + $0x10] sm:$0xff]
    %v1712 = vld [vmem:[#allocation7 + $0x18] sm:$0xff]
    %v1713 = vld [vmem:[#allocation7 + $0x20] sm:$0xff]
    %v1714 = vld [vmem:[#allocation7 + $0x28] sm:$0xff]
    %v1715 = vld [vmem:[#allocation7 + $0x30] sm:$0xff]
    %v1716 = vld [vmem:[#allocation7 + $0x38] sm:$0xff]
    %v1717 = vld [vmem:[#allocation7 + $0x40] sm:$0xff]
    %v1718 = vld [vmem:[#allocation7 + $0x48] sm:$0xff]
    %v1719 = vld [vmem:[#allocation7 + $0x50] sm:$0xff]
    %v1720 = vld [vmem:[#allocation7 + $0x58] sm:$0xff]
    %v1721 = vld [vmem:[#allocation7 + $0x60] sm:$0xff]
    %v1722 = vld [vmem:[#allocation7 + $0x68] sm:$0xff]
    %v1723 = vld [vmem:[#allocation7 + $0x70] sm:$0xff]
    %v1724 = vld [vmem:[#allocation7 + $0x78] sm:$0xff]
    %v1725 = vld [vmem:[#allocation7 + $0x80] sm:$0xff]
    %v1726 = vld [vmem:[#allocation7 + $0x88] sm:$0xff]
    %v1727 = vld [vmem:[#allocation7 + $0x90] sm:$0xff]
    %v1728 = vld [vmem:[#allocation7 + $0x98] sm:$0xff]
    %v1729 = vld [vmem:[#allocation7 + $0xa0] sm:$0xff]
    %v1730 = vld [vmem:[#allocation7 + $0xa8] sm:$0xff]
    %v1731 = vld [vmem:[#allocation7 + $0xb0] sm:$0xff]
    %v1732 = vld [vmem:[#allocation7 + $0xb8] sm:$0xff]
    %v1733 = vld [vmem:[#allocation7 + $0xc0] sm:$0xff]
    %v1734 = vld [vmem:[#allocation7 + $0xc8] sm:$0xff]
    %v1735 = vld [vmem:[#allocation7 + $0xd0] sm:$0xff]
    %v1736 = vld [vmem:[#allocation7 + $0xd8] sm:$0xff]
    %v1737 = vld [vmem:[#allocation7 + $0xe0] sm:$0xff]
    %v1738 = vld [vmem:[#allocation7 + $0xe8] sm:$0xff]
    %v1739 = vld [vmem:[#allocation7 + $0xf0] sm:$0xff]
    %v1740 = vld [vmem:[#allocation7 + $0xf8] sm:$0xff]
    %v1741 = vld [vmem:[#allocation7 + $0x100] sm:$0xff]
    %v1742 = vld [vmem:[#allocation7 + $0x108] sm:$0xff]
    %v1743 = vld [vmem:[#allocation7 + $0x110] sm:$0xff]
    %v1744 = vld [vmem:[#allocation7 + $0x118] sm:$0xff]
    %v1745 = vld [vmem:[#allocation7 + $0x120] sm:$0xff]
    %v1746 = vld [vmem:[#allocation7 + $0x128] sm:$0xff]
    %v1747 = vld [vmem:[#allocation7 + $0x130] sm:$0xff]
    %v1748 = vld [vmem:[#allocation7 + $0x138] sm:$0xff]
    %v1749 = vld [vmem:[#allocation7 + $0x140] sm:$0xff]
    %v1750 = vld [vmem:[#allocation7 + $0x148] sm:$0xff]
    %v1751 = vld [vmem:[#allocation7 + $0x150] sm:$0xff]
    %v1752 = vld [vmem:[#allocation7 + $0x158] sm:$0xff]
    %v1753 = vld [vmem:[#allocation7 + $0x160] sm:$0xff]
    %v1754 = vld [vmem:[#allocation7 + $0x168] sm:$0xff]
    %v1755 = vld [vmem:[#allocation7 + $0x170] sm:$0xff]
    %v1756 = vld [vmem:[#allocation7 + $0x178] sm:$0xff]
    %v1757 = vld [vmem:[#allocation7 + $0x180] sm:$0xff]
    %v1758 = vld [vmem:[#allocation7 + $0x188] sm:$0xff]
    %v1759 = vld [vmem:[#allocation7 + $0x190] sm:$0xff]
    %v1760 = vld [vmem:[#allocation7 + $0x198] sm:$0xff]
    %v1761 = vld [vmem:[#allocation7 + $0x1a0] sm:$0xff]
    %v1762 = vld [vmem:[#allocation7 + $0x1a8] sm:$0xff]
    %v1763 = vld [vmem:[#allocation7 + $0x1b0] sm:$0xff]
    %v1764 = vld [vmem:[#allocation7 + $0x1b8] sm:$0xff]
    %v1765 = vld [vmem:[#allocation7 + $0x1c0] sm:$0xff]
    %v1766 = vld [vmem:[#allocation7 + $0x1c8] sm:$0xff]
    %v1767 = vld [vmem:[#allocation7 + $0x1d0] sm:$0xff]
    %v1768 = vld [vmem:[#allocation7 + $0x1d8] sm:$0xff]
    %v1769 = vld [vmem:[#allocation7 + $0x1e0] sm:$0xff]
    %v1770 = vld [vmem:[#allocation7 + $0x1e8] sm:$0xff]
    %v1771 = vld [vmem:[#allocation7 + $0x1f0] sm:$0xff]
    %v1772 = vld [vmem:[#allocation7 + $0x1f8] sm:$0xff]
    %v1773 = vld [vmem:[#allocation7 + $0x200] sm:$0xff]
    %v1774 = vld [vmem:[#allocation7 + $0x208] sm:$0xff]
    %v1775 = vld [vmem:[#allocation7 + $0x210] sm:$0xff]
    %v1776 = vld [vmem:[#allocation7 + $0x218] sm:$0xff]
    %v1777 = vld [vmem:[#allocation7 + $0x220] sm:$0xff]
    %v1778 = vld [vmem:[#allocation7 + $0x228] sm:$0xff]
    %v1779 = vld [vmem:[#allocation7 + $0x230] sm:$0xff]
    %v1780 = vld [vmem:[#allocation7 + $0x238] sm:$0xff]
    %v1781 = vld [vmem:[#allocation7 + $0x240] sm:$0xff]
    %v1782 = vld [vmem:[#allocation7 + $0x248] sm:$0xff]
    %v1783 = vld [vmem:[#allocation7 + $0x250] sm:$0xff]
    %v1784 = vld [vmem:[#allocation7 + $0x258] sm:$0xff]
    %v1785 = vld [vmem:[#allocation7 + $0x260] sm:$0xff]
    %v1786 = vld [vmem:[#allocation7 + $0x268] sm:$0xff]
    %v1787 = vld [vmem:[#allocation7 + $0x270] sm:$0xff]
    %v1788 = vld [vmem:[#allocation7 + $0x278] sm:$0xff]
    %v1789 = vld [vmem:[#allocation7 + $0x280] sm:$0xff]
    %v1790 = vld [vmem:[#allocation7 + $0x288] sm:$0xff]
    %v1791 = vld [vmem:[#allocation7 + $0x290] sm:$0xff]
    %v1792 = vld [vmem:[#allocation7 + $0x298] sm:$0xff]
    %v1793 = vld [vmem:[#allocation7 + $0x2a0] sm:$0xff]
    %v1794 = vld [vmem:[#allocation7 + $0x2a8] sm:$0xff]
    %v1795 = vld [vmem:[#allocation7 + $0x2b0] sm:$0xff]
    %v1796 = vld [vmem:[#allocation7 + $0x2b8] sm:$0xff]
    %v1797 = vld [vmem:[#allocation7 + $0x2c0] sm:$0xff]
    %v1798 = vld [vmem:[#allocation7 + $0x2c8] sm:$0xff]
    %v1799 = vld [vmem:[#allocation7 + $0x2d0] sm:$0xff]
    %v1800 = vld [vmem:[#allocation7 + $0x2d8] sm:$0xff]
    %v1801 = vld [vmem:[#allocation7 + $0x2e0] sm:$0xff]
    %v1802 = vld [vmem:[#allocation7 + $0x2e8] sm:$0xff]
    %v1803 = vld [vmem:[#allocation7 + $0x2f0] sm:$0xff]
    %v1804 = vld [vmem:[#allocation7 + $0x2f8] sm:$0xff]
    %v1805 = vld [vmem:[#allocation7 + $0x300] sm:$0xff]
    %v1806 = vld [vmem:[#allocation7 + $0x308] sm:$0xff]
    %v1807 = vld [vmem:[#allocation7 + $0x310] sm:$0xff]
    %v1808 = vld [vmem:[#allocation7 + $0x318] sm:$0xff]
    %v1809 = vld [vmem:[#allocation7 + $0x320] sm:$0xff]
    %v1810 = vld [vmem:[#allocation7 + $0x328] sm:$0xff]
    %v1811 = vld [vmem:[#allocation7 + $0x330] sm:$0xff]
    %v1812 = vld [vmem:[#allocation7 + $0x338] sm:$0xff]
    %v1813 = vld [vmem:[#allocation7 + $0x340] sm:$0xff]
    %v1814 = vld [vmem:[#allocation7 + $0x348] sm:$0xff]
    %v1815 = vld [vmem:[#allocation7 + $0x350] sm:$0xff]
    %v1816 = vld [vmem:[#allocation7 + $0x358] sm:$0xff]
    %v1817 = vld [vmem:[#allocation7 + $0x360] sm:$0xff]
    %v1818 = vld [vmem:[#allocation7 + $0x368] sm:$0xff]
    %v1819 = vld [vmem:[#allocation7 + $0x370] sm:$0xff]
    %v1820 = vld [vmem:[#allocation7 + $0x378] sm:$0xff]
    %v1821 = vld [vmem:[#allocation7 + $0x380] sm:$0xff]
    %v1822 = vld [vmem:[#allocation7 + $0x388] sm:$0xff]
    %v1823 = vld [vmem:[#allocation7 + $0x390] sm:$0xff]
    %v1824 = vld [vmem:[#allocation7 + $0x398] sm:$0xff]
    %v1825 = vld [vmem:[#allocation7 + $0x3a0] sm:$0xff]
    %v1826 = vld [vmem:[#allocation7 + $0x3a8] sm:$0xff]
    %v1827 = vld [vmem:[#allocation7 + $0x3b0] sm:$0xff]
    %v1828 = vld [vmem:[#allocation7 + $0x3b8] sm:$0xff]
    %v1829 = vld [vmem:[#allocation7 + $0x3c0] sm:$0xff]
    %v1830 = vld [vmem:[#allocation7 + $0x3c8] sm:$0xff]
    %v1831 = vld [vmem:[#allocation7 + $0x3d0] sm:$0xff]
    %v1832 = vld [vmem:[#allocation7 + $0x3d8] sm:$0xff]
    %v1833 = vld [vmem:[#allocation7 + $0x3e0] sm:$0xff]
    %v1834 = vld [vmem:[#allocation7 + $0x3e8] sm:$0xff]
    %v1835 = vld [vmem:[#allocation7 + $0x3f0] sm:$0xff]
    %v1836 = vld [vmem:[#allocation7 + $0x3f8] sm:$0xff]
    %v1965 = vunpack.c.l.b16 %v1709
    %v1966 = vunpack.c.h.b16 %v1709
    %v1967 = vunpack.c.l.b16 %v1710
    %v1968 = vunpack.c.h.b16 %v1710
    %v1969 = vunpack.c.l.b16 %v1711
    %v1970 = vunpack.c.h.b16 %v1711
    %v1971 = vunpack.c.l.b16 %v1712
    %v1972 = vunpack.c.h.b16 %v1712
    %v1973 = vunpack.c.l.b16 %v1713
    %v1974 = vunpack.c.h.b16 %v1713
    %v1975 = vunpack.c.l.b16 %v1714
    %v1976 = vunpack.c.h.b16 %v1714
    %v1977 = vunpack.c.l.b16 %v1715
    %v1978 = vunpack.c.h.b16 %v1715
    %v1979 = vunpack.c.l.b16 %v1716
    %v1980 = vunpack.c.h.b16 %v1716
    %v1981 = vunpack.c.l.b16 %v1717
    %v1982 = vunpack.c.h.b16 %v1717
    %v1983 = vunpack.c.l.b16 %v1718
    %v1984 = vunpack.c.h.b16 %v1718
    %v1985 = vunpack.c.l.b16 %v1719
    %v1986 = vunpack.c.h.b16 %v1719
    %v1987 = vunpack.c.l.b16 %v1720
    %v1988 = vunpack.c.h.b16 %v1720
    %v1989 = vunpack.c.l.b16 %v1721
    %v1990 = vunpack.c.h.b16 %v1721
    %v1991 = vunpack.c.l.b16 %v1722
    %v1992 = vunpack.c.h.b16 %v1722
    %v1993 = vunpack.c.l.b16 %v1723
    %v1994 = vunpack.c.h.b16 %v1723
    %v1995 = vunpack.c.l.b16 %v1724
    %v1996 = vunpack.c.h.b16 %v1724
    %v1997 = vunpack.c.l.b16 %v1725
    %v1998 = vunpack.c.h.b16 %v1725
    %v1999 = vunpack.c.l.b16 %v1726
    %v2000 = vunpack.c.h.b16 %v1726
    %v2001 = vunpack.c.l.b16 %v1727
    %v2002 = vunpack.c.h.b16 %v1727
    %v2003 = vunpack.c.l.b16 %v1728
    %v2004 = vunpack.c.h.b16 %v1728
    %v2005 = vunpack.c.l.b16 %v1729
    %v2006 = vunpack.c.h.b16 %v1729
    %v2007 = vunpack.c.l.b16 %v1730
    %v2008 = vunpack.c.h.b16 %v1730
    %v2009 = vunpack.c.l.b16 %v1731
    %v2010 = vunpack.c.h.b16 %v1731
    %v2011 = vunpack.c.l.b16 %v1732
    %v2012 = vunpack.c.h.b16 %v1732
    %v2013 = vunpack.c.l.b16 %v1733
    %v2014 = vunpack.c.h.b16 %v1733
    %v2015 = vunpack.c.l.b16 %v1734
    %v2016 = vunpack.c.h.b16 %v1734
    %v2017 = vunpack.c.l.b16 %v1735
    %v2018 = vunpack.c.h.b16 %v1735
    %v2019 = vunpack.c.l.b16 %v1736
    %v2020 = vunpack.c.h.b16 %v1736
    %v2021 = vunpack.c.l.b16 %v1737
    %v2022 = vunpack.c.h.b16 %v1737
    %v2023 = vunpack.c.l.b16 %v1738
    %v2024 = vunpack.c.h.b16 %v1738
    %v2025 = vunpack.c.l.b16 %v1739
    %v2026 = vunpack.c.h.b16 %v1739
    %v2027 = vunpack.c.l.b16 %v1740
    %v2028 = vunpack.c.h.b16 %v1740
    %v2029 = vunpack.c.l.b16 %v1741
    %v2030 = vunpack.c.h.b16 %v1741
    %v2031 = vunpack.c.l.b16 %v1742
    %v2032 = vunpack.c.h.b16 %v1742
    %v2033 = vunpack.c.l.b16 %v1743
    %v2034 = vunpack.c.h.b16 %v1743
    %v2035 = vunpack.c.l.b16 %v1744
    %v2036 = vunpack.c.h.b16 %v1744
    %v2037 = vunpack.c.l.b16 %v1745
    %v2038 = vunpack.c.h.b16 %v1745
    %v2039 = vunpack.c.l.b16 %v1746
    %v2040 = vunpack.c.h.b16 %v1746
    %v2041 = vunpack.c.l.b16 %v1747
    %v2042 = vunpack.c.h.b16 %v1747
    %v2043 = vunpack.c.l.b16 %v1748
    %v2044 = vunpack.c.h.b16 %v1748
    %v2045 = vunpack.c.l.b16 %v1749
    %v2046 = vunpack.c.h.b16 %v1749
    %v2047 = vunpack.c.l.b16 %v1750
    %v2048 = vunpack.c.h.b16 %v1750
    %v2049 = vunpack.c.l.b16 %v1751
    %v2050 = vunpack.c.h.b16 %v1751
    %v2051 = vunpack.c.l.b16 %v1752
    %v2052 = vunpack.c.h.b16 %v1752
    %v2053 = vunpack.c.l.b16 %v1753
    %v2054 = vunpack.c.h.b16 %v1753
    %v2055 = vunpack.c.l.b16 %v1754
    %v2056 = vunpack.c.h.b16 %v1754
    %v2057 = vunpack.c.l.b16 %v1755
    %v2058 = vunpack.c.h.b16 %v1755
    %v2059 = vunpack.c.l.b16 %v1756
    %v2060 = vunpack.c.h.b16 %v1756
    %v2061 = vunpack.c.l.b16 %v1757
    %v2062 = vunpack.c.h.b16 %v1757
    %v2063 = vunpack.c.l.b16 %v1758
    %v2064 = vunpack.c.h.b16 %v1758
    %v2065 = vunpack.c.l.b16 %v1759
    %v2066 = vunpack.c.h.b16 %v1759
    %v2067 = vunpack.c.l.b16 %v1760
    %v2068 = vunpack.c.h.b16 %v1760
    %v2069 = vunpack.c.l.b16 %v1761
    %v2070 = vunpack.c.h.b16 %v1761
    %v2071 = vunpack.c.l.b16 %v1762
    %v2072 = vunpack.c.h.b16 %v1762
    %v2073 = vunpack.c.l.b16 %v1763
    %v2074 = vunpack.c.h.b16 %v1763
    %v2075 = vunpack.c.l.b16 %v1764
    %v2076 = vunpack.c.h.b16 %v1764
    %v2077 = vunpack.c.l.b16 %v1765
    %v2078 = vunpack.c.h.b16 %v1765
    %v2079 = vunpack.c.l.b16 %v1766
    %v2080 = vunpack.c.h.b16 %v1766
    %v2081 = vunpack.c.l.b16 %v1767
    %v2082 = vunpack.c.h.b16 %v1767
    %v2083 = vunpack.c.l.b16 %v1768
    %v2084 = vunpack.c.h.b16 %v1768
    %v2085 = vunpack.c.l.b16 %v1769
    %v2086 = vunpack.c.h.b16 %v1769
    %v2087 = vunpack.c.l.b16 %v1770
    %v2088 = vunpack.c.h.b16 %v1770
    %v2089 = vunpack.c.l.b16 %v1771
    %v2090 = vunpack.c.h.b16 %v1771
    %v2091 = vunpack.c.l.b16 %v1772
    %v2092 = vunpack.c.h.b16 %v1772
    %v2093 = vunpack.c.l.b16 %v1773
    %v2094 = vunpack.c.h.b16 %v1773
    %v2095 = vunpack.c.l.b16 %v1774
    %v2096 = vunpack.c.h.b16 %v1774
    %v2097 = vunpack.c.l.b16 %v1775
    %v2098 = vunpack.c.h.b16 %v1775
    %v2099 = vunpack.c.l.b16 %v1776
    %v2100 = vunpack.c.h.b16 %v1776
    %v2101 = vunpack.c.l.b16 %v1777
    %v2102 = vunpack.c.h.b16 %v1777
    %v2103 = vunpack.c.l.b16 %v1778
    %v2104 = vunpack.c.h.b16 %v1778
    %v2105 = vunpack.c.l.b16 %v1779
    %v2106 = vunpack.c.h.b16 %v1779
    %v2107 = vunpack.c.l.b16 %v1780
    %v2108 = vunpack.c.h.b16 %v1780
    %v2109 = vunpack.c.l.b16 %v1781
    %v2110 = vunpack.c.h.b16 %v1781
    %v2111 = vunpack.c.l.b16 %v1782
    %v2112 = vunpack.c.h.b16 %v1782
    %v2113 = vunpack.c.l.b16 %v1783
    %v2114 = vunpack.c.h.b16 %v1783
    %v2115 = vunpack.c.l.b16 %v1784
    %v2116 = vunpack.c.h.b16 %v1784
    %v2117 = vunpack.c.l.b16 %v1785
    %v2118 = vunpack.c.h.b16 %v1785
    %v2119 = vunpack.c.l.b16 %v1786
    %v2120 = vunpack.c.h.b16 %v1786
    %v2121 = vunpack.c.l.b16 %v1787
    %v2122 = vunpack.c.h.b16 %v1787
    %v2123 = vunpack.c.l.b16 %v1788
    %v2124 = vunpack.c.h.b16 %v1788
    %v2125 = vunpack.c.l.b16 %v1789
    %v2126 = vunpack.c.h.b16 %v1789
    %v2127 = vunpack.c.l.b16 %v1790
    %v2128 = vunpack.c.h.b16 %v1790
    %v2129 = vunpack.c.l.b16 %v1791
    %v2130 = vunpack.c.h.b16 %v1791
    %v2131 = vunpack.c.l.b16 %v1792
    %v2132 = vunpack.c.h.b16 %v1792
    %v2133 = vunpack.c.l.b16 %v1793
    %v2134 = vunpack.c.h.b16 %v1793
    %v2135 = vunpack.c.l.b16 %v1794
    %v2136 = vunpack.c.h.b16 %v1794
    %v2137 = vunpack.c.l.b16 %v1795
    %v2138 = vunpack.c.h.b16 %v1795
    %v2139 = vunpack.c.l.b16 %v1796
    %v2140 = vunpack.c.h.b16 %v1796
    %v2141 = vunpack.c.l.b16 %v1797
    %v2142 = vunpack.c.h.b16 %v1797
    %v2143 = vunpack.c.l.b16 %v1798
    %v2144 = vunpack.c.h.b16 %v1798
    %v2145 = vunpack.c.l.b16 %v1799
    %v2146 = vunpack.c.h.b16 %v1799
    %v2147 = vunpack.c.l.b16 %v1800
    %v2148 = vunpack.c.h.b16 %v1800
    %v2149 = vunpack.c.l.b16 %v1801
    %v2150 = vunpack.c.h.b16 %v1801
    %v2151 = vunpack.c.l.b16 %v1802
    %v2152 = vunpack.c.h.b16 %v1802
    %v2153 = vunpack.c.l.b16 %v1803
    %v2154 = vunpack.c.h.b16 %v1803
    %v2155 = vunpack.c.l.b16 %v1804
    %v2156 = vunpack.c.h.b16 %v1804
    %v2157 = vunpack.c.l.b16 %v1805
    %v2158 = vunpack.c.h.b16 %v1805
    %v2159 = vunpack.c.l.b16 %v1806
    %v2160 = vunpack.c.h.b16 %v1806
    %v2161 = vunpack.c.l.b16 %v1807
    %v2162 = vunpack.c.h.b16 %v1807
    %v2163 = vunpack.c.l.b16 %v1808
    %v2164 = vunpack.c.h.b16 %v1808
    %v2165 = vunpack.c.l.b16 %v1809
    %v2166 = vunpack.c.h.b16 %v1809
    %v2167 = vunpack.c.l.b16 %v1810
    %v2168 = vunpack.c.h.b16 %v1810
    %v2169 = vunpack.c.l.b16 %v1811
    %v2170 = vunpack.c.h.b16 %v1811
    %v2171 = vunpack.c.l.b16 %v1812
    %v2172 = vunpack.c.h.b16 %v1812
    %v2173 = vunpack.c.l.b16 %v1813
    %v2174 = vunpack.c.h.b16 %v1813
    %v2175 = vunpack.c.l.b16 %v1814
    %v2176 = vunpack.c.h.b16 %v1814
    %v2177 = vunpack.c.l.b16 %v1815
    %v2178 = vunpack.c.h.b16 %v1815
    %v2179 = vunpack.c.l.b16 %v1816
    %v2180 = vunpack.c.h.b16 %v1816
    %v2181 = vunpack.c.l.b16 %v1817
    %v2182 = vunpack.c.h.b16 %v1817
    %v2183 = vunpack.c.l.b16 %v1818
    %v2184 = vunpack.c.h.b16 %v1818
    %v2185 = vunpack.c.l.b16 %v1819
    %v2186 = vunpack.c.h.b16 %v1819
    %v2187 = vunpack.c.l.b16 %v1820
    %v2188 = vunpack.c.h.b16 %v1820
    %v2189 = vunpack.c.l.b16 %v1821
    %v2190 = vunpack.c.h.b16 %v1821
    %v2191 = vunpack.c.l.b16 %v1822
    %v2192 = vunpack.c.h.b16 %v1822
    %v2193 = vunpack.c.l.b16 %v1823
    %v2194 = vunpack.c.h.b16 %v1823
    %v2195 = vunpack.c.l.b16 %v1824
    %v2196 = vunpack.c.h.b16 %v1824
    %v2197 = vunpack.c.l.b16 %v1825
    %v2198 = vunpack.c.h.b16 %v1825
    %v2199 = vunpack.c.l.b16 %v1826
    %v2200 = vunpack.c.h.b16 %v1826
    %v2201 = vunpack.c.l.b16 %v1827
    %v2202 = vunpack.c.h.b16 %v1827
    %v2203 = vunpack.c.l.b16 %v1828
    %v2204 = vunpack.c.h.b16 %v1828
    %v2205 = vunpack.c.l.b16 %v1829
    %v2206 = vunpack.c.h.b16 %v1829
    %v2207 = vunpack.c.l.b16 %v1830
    %v2208 = vunpack.c.h.b16 %v1830
    %v2209 = vunpack.c.l.b16 %v1831
    %v2210 = vunpack.c.h.b16 %v1831
    %v2211 = vunpack.c.l.b16 %v1832
    %v2212 = vunpack.c.h.b16 %v1832
    %v2213 = vunpack.c.l.b16 %v1833
    %v2214 = vunpack.c.h.b16 %v1833
    %v2215 = vunpack.c.l.b16 %v1834
    %v2216 = vunpack.c.h.b16 %v1834
    %v2217 = vunpack.c.l.b16 %v1835
    %v2218 = vunpack.c.h.b16 %v1835
    %v2219 = vunpack.c.l.b16 %v1836
    %v2220 = vunpack.c.h.b16 %v1836
    %v2221 = vpack.c.b16 %v1973, %v1965
    %v2222 = vpack.c.b16 %v1974, %v1966
    %v2223 = vpack.c.b16 %v1975, %v1967
    %v2224 = vpack.c.b16 %v1976, %v1968
    %v2225 = vpack.c.b16 %v1977, %v1969
    %v2226 = vpack.c.b16 %v1978, %v1970
    %v2227 = vpack.c.b16 %v1979, %v1971
    %v2228 = vpack.c.b16 %v1980, %v1972
    %v2229 = vpack.c.b16 %v1989, %v1981
    %v2230 = vpack.c.b16 %v1990, %v1982
    %v2231 = vpack.c.b16 %v1991, %v1983
    %v2232 = vpack.c.b16 %v1992, %v1984
    %v2233 = vpack.c.b16 %v1993, %v1985
    %v2234 = vpack.c.b16 %v1994, %v1986
    %v2235 = vpack.c.b16 %v1995, %v1987
    %v2236 = vpack.c.b16 %v1996, %v1988
    %v2237 = vpack.c.b16 %v2005, %v1997
    %v2238 = vpack.c.b16 %v2006, %v1998
    %v2239 = vpack.c.b16 %v2007, %v1999
    %v2240 = vpack.c.b16 %v2008, %v2000
    %v2241 = vpack.c.b16 %v2009, %v2001
    %v2242 = vpack.c.b16 %v2010, %v2002
    %v2243 = vpack.c.b16 %v2011, %v2003
    %v2244 = vpack.c.b16 %v2012, %v2004
    %v2245 = vpack.c.b16 %v2021, %v2013
    %v2246 = vpack.c.b16 %v2022, %v2014
    %v2247 = vpack.c.b16 %v2023, %v2015
    %v2248 = vpack.c.b16 %v2024, %v2016
    %v2249 = vpack.c.b16 %v2025, %v2017
    %v2250 = vpack.c.b16 %v2026, %v2018
    %v2251 = vpack.c.b16 %v2027, %v2019
    %v2252 = vpack.c.b16 %v2028, %v2020
    %v2253 = vpack.c.b16 %v2037, %v2029
    %v2254 = vpack.c.b16 %v2038, %v2030
    %v2255 = vpack.c.b16 %v2039, %v2031
    %v2256 = vpack.c.b16 %v2040, %v2032
    %v2257 = vpack.c.b16 %v2041, %v2033
    %v2258 = vpack.c.b16 %v2042, %v2034
    %v2259 = vpack.c.b16 %v2043, %v2035
    %v2260 = vpack.c.b16 %v2044, %v2036
    %v2261 = vpack.c.b16 %v2053, %v2045
    %v2262 = vpack.c.b16 %v2054, %v2046
    %v2263 = vpack.c.b16 %v2055, %v2047
    %v2264 = vpack.c.b16 %v2056, %v2048
    %v2265 = vpack.c.b16 %v2057, %v2049
    %v2266 = vpack.c.b16 %v2058, %v2050
    %v2267 = vpack.c.b16 %v2059, %v2051
    %v2268 = vpack.c.b16 %v2060, %v2052
    %v2269 = vpack.c.b16 %v2069, %v2061
    %v2270 = vpack.c.b16 %v2070, %v2062
    %v2271 = vpack.c.b16 %v2071, %v2063
    %v2272 = vpack.c.b16 %v2072, %v2064
    %v2273 = vpack.c.b16 %v2073, %v2065
    %v2274 = vpack.c.b16 %v2074, %v2066
    %v2275 = vpack.c.b16 %v2075, %v2067
    %v2276 = vpack.c.b16 %v2076, %v2068
    %v2277 = vpack.c.b16 %v2085, %v2077
    %v2278 = vpack.c.b16 %v2086, %v2078
    %v2279 = vpack.c.b16 %v2087, %v2079
    %v2280 = vpack.c.b16 %v2088, %v2080
    %v2281 = vpack.c.b16 %v2089, %v2081
    %v2282 = vpack.c.b16 %v2090, %v2082
    %v2283 = vpack.c.b16 %v2091, %v2083
    %v2284 = vpack.c.b16 %v2092, %v2084
    %v2285 = vpack.c.b16 %v2101, %v2093
    %v2286 = vpack.c.b16 %v2102, %v2094
    %v2287 = vpack.c.b16 %v2103, %v2095
    %v2288 = vpack.c.b16 %v2104, %v2096
    %v2289 = vpack.c.b16 %v2105, %v2097
    %v2290 = vpack.c.b16 %v2106, %v2098
    %v2291 = vpack.c.b16 %v2107, %v2099
    %v2292 = vpack.c.b16 %v2108, %v2100
    %v2293 = vpack.c.b16 %v2117, %v2109
    %v2294 = vpack.c.b16 %v2118, %v2110
    %v2295 = vpack.c.b16 %v2119, %v2111
    %v2296 = vpack.c.b16 %v2120, %v2112
    %v2297 = vpack.c.b16 %v2121, %v2113
    %v2298 = vpack.c.b16 %v2122, %v2114
    %v2299 = vpack.c.b16 %v2123, %v2115
    %v2300 = vpack.c.b16 %v2124, %v2116
    %v2301 = vpack.c.b16 %v2133, %v2125
    %v2302 = vpack.c.b16 %v2134, %v2126
    %v2303 = vpack.c.b16 %v2135, %v2127
    %v2304 = vpack.c.b16 %v2136, %v2128
    %v2305 = vpack.c.b16 %v2137, %v2129
    %v2306 = vpack.c.b16 %v2138, %v2130
    %v2307 = vpack.c.b16 %v2139, %v2131
    %v2308 = vpack.c.b16 %v2140, %v2132
    %v2309 = vpack.c.b16 %v2149, %v2141
    %v2310 = vpack.c.b16 %v2150, %v2142
    %v2311 = vpack.c.b16 %v2151, %v2143
    %v2312 = vpack.c.b16 %v2152, %v2144
    %v2313 = vpack.c.b16 %v2153, %v2145
    %v2314 = vpack.c.b16 %v2154, %v2146
    %v2315 = vpack.c.b16 %v2155, %v2147
    %v2316 = vpack.c.b16 %v2156, %v2148
    %v2317 = vpack.c.b16 %v2165, %v2157
    %v2318 = vpack.c.b16 %v2166, %v2158
    %v2319 = vpack.c.b16 %v2167, %v2159
    %v2320 = vpack.c.b16 %v2168, %v2160
    %v2321 = vpack.c.b16 %v2169, %v2161
    %v2322 = vpack.c.b16 %v2170, %v2162
    %v2323 = vpack.c.b16 %v2171, %v2163
    %v2324 = vpack.c.b16 %v2172, %v2164
    %v2325 = vpack.c.b16 %v2181, %v2173
    %v2326 = vpack.c.b16 %v2182, %v2174
    %v2327 = vpack.c.b16 %v2183, %v2175
    %v2328 = vpack.c.b16 %v2184, %v2176
    %v2329 = vpack.c.b16 %v2185, %v2177
    %v2330 = vpack.c.b16 %v2186, %v2178
    %v2331 = vpack.c.b16 %v2187, %v2179
    %v2332 = vpack.c.b16 %v2188, %v2180
    %v2333 = vpack.c.b16 %v2197, %v2189
    %v2334 = vpack.c.b16 %v2198, %v2190
    %v2335 = vpack.c.b16 %v2199, %v2191
    %v2336 = vpack.c.b16 %v2200, %v2192
    %v2337 = vpack.c.b16 %v2201, %v2193
    %v2338 = vpack.c.b16 %v2202, %v2194
    %v2339 = vpack.c.b16 %v2203, %v2195
    %v2340 = vpack.c.b16 %v2204, %v2196
    %v2341 = vpack.c.b16 %v2213, %v2205
    %v2342 = vpack.c.b16 %v2214, %v2206
    %v2343 = vpack.c.b16 %v2215, %v2207
    %v2344 = vpack.c.b16 %v2216, %v2208
    %v2345 = vpack.c.b16 %v2217, %v2209
    %v2346 = vpack.c.b16 %v2218, %v2210
    %v2347 = vpack.c.b16 %v2219, %v2211
    %v2348 = vpack.c.b16 %v2220, %v2212
    %2477 = vmatprep.subr.bf16.mxu0 %v2278
    %2478 = vmatpush1.bf16.msra.mxu0 %v2277
    %2479 = vmatprep.subr.bf16.mxu0 %v2270
    %2480 = vmatpush1.bf16.msra.mxu0 %v2269
    %2481 = vmatprep.subr.bf16.mxu0 %v2262
    %2482 = vmatpush1.bf16.msra.mxu0 %v2261
    %2483 = vmatprep.subr.bf16.mxu0 %v2254
    %2484 = vmatpush1.bf16.msra.mxu0 %v2253
    %2485 = vmatprep.subr.bf16.mxu0 %v2246
    %2486 = vmatpush1.bf16.msra.mxu0 %v2245
    %2487 = vmatprep.subr.bf16.mxu0 %v2238
    %2488 = vmatpush1.bf16.msra.mxu0 %v2237
    %2489 = vmatprep.subr.bf16.mxu0 %v2230
    %2490 = vmatpush1.bf16.msra.mxu0 %v2229
    %2491 = vmatprep.subr.bf16.mxu0 %v2222
    %2492 = vmatpush1.bf16.msra.mxu0 %v2221
    %2493 = vmatprep.subr.bf16.mxu0 %v2342
    %2494 = vmatpush2.bf16.msra.mxu0 %v2341
    %2495 = vmatprep.subr.bf16.mxu0 %v2334
    %2496 = vmatpush2.bf16.msra.mxu0 %v2333
    %2497 = vmatprep.subr.bf16.mxu0 %v2326
    %2498 = vmatpush2.bf16.msra.mxu0 %v2325
    %2499 = vmatprep.subr.bf16.mxu0 %v2318
    %2500 = vmatpush2.bf16.msra.mxu0 %v2317
    %2501 = vmatprep.subr.bf16.mxu0 %v2310
    %2502 = vmatpush2.bf16.msra.mxu0 %v2309
    %2503 = vmatprep.subr.bf16.mxu0 %v2302
    %2504 = vmatpush2.bf16.msra.mxu0 %v2301
    %2505 = vmatprep.subr.bf16.mxu0 %v2294
    %2506 = vmatpush2.bf16.msra.mxu0 %v2293
    %2507 = vmatprep.subr.bf16.mxu0 %v2286
    %2508 = vmatpush2.bf16.msra.mxu0 %v2285
    %2509 = vmatprep.mubr.bf16.mxu0 %v1708
    %2510 = vmatmul.mubr.bf16.gmra.mxu0 %v1707
    %v2511 = vpop.f32.mrf.mxu0
    %v2512 = vadd.f32 0.0, %v2511
    %v2513 = vpop.f32.mrf.mxu0
    %v2514 = vadd.f32 0.0, %v2513
    %v2515 = vpop.f32.mrf.mxu0
    %v2516 = vpop.f32.mrf.mxu0
    %2517 = vdwg.mxu0
    %2518 = vmatprep.subr.bf16.mxu0 %v2280
    %2519 = vmatpush1.bf16.msra.mxu0 %v2279
    %2520 = vmatprep.subr.bf16.mxu0 %v2272
    %2521 = vmatpush1.bf16.msra.mxu0 %v2271
    %2522 = vmatprep.subr.bf16.mxu0 %v2264
    %2523 = vmatpush1.bf16.msra.mxu0 %v2263
    %2524 = vmatprep.subr.bf16.mxu0 %v2256
    %2525 = vmatpush1.bf16.msra.mxu0 %v2255
    %2526 = vmatprep.subr.bf16.mxu0 %v2248
    %2527 = vmatpush1.bf16.msra.mxu0 %v2247
    %2528 = vmatprep.subr.bf16.mxu0 %v2240
    %2529 = vmatpush1.bf16.msra.mxu0 %v2239
    %2530 = vmatprep.subr.bf16.mxu0 %v2232
    %2531 = vmatpush1.bf16.msra.mxu0 %v2231
    %2532 = vmatprep.subr.bf16.mxu0 %v2224
    %2533 = vmatpush1.bf16.msra.mxu0 %v2223
    %2534 = vmatprep.subr.bf16.mxu0 %v2344
    %2535 = vmatpush2.bf16.msra.mxu0 %v2343
    %2536 = vmatprep.subr.bf16.mxu0 %v2336
    %2537 = vmatpush2.bf16.msra.mxu0 %v2335
    %2538 = vmatprep.subr.bf16.mxu0 %v2328
    %2539 = vmatpush2.bf16.msra.mxu0 %v2327
    %2540 = vmatprep.subr.bf16.mxu0 %v2320
    %2541 = vmatpush2.bf16.msra.mxu0 %v2319
    %2542 = vmatprep.subr.bf16.mxu0 %v2312
    %2543 = vmatpush2.bf16.msra.mxu0 %v2311
    %2544 = vmatprep.subr.bf16.mxu0 %v2304
    %2545 = vmatpush2.bf16.msra.mxu0 %v2303
    %2546 = vmatprep.subr.bf16.mxu0 %v2296
    %2547 = vmatpush2.bf16.msra.mxu0 %v2295
    %2548 = vmatprep.subr.bf16.mxu0 %v2288
    %2549 = vmatpush2.bf16.msra.mxu0 %v2287
    %2550 = vmatprep.mubr.bf16.mxu0 %v1708
    %2551 = vmatmul.mubr.bf16.gmra.mxu0 %v1707
    %v2552 = vpop.f32.mrf.mxu0
    %v2553 = vadd.f32 0.0, %v2552
    %v2554 = vpop.f32.mrf.mxu0
    %v2555 = vadd.f32 0.0, %v2554
    %v2556 = vpop.f32.mrf.mxu0
    %v2557 = vpop.f32.mrf.mxu0
    %2558 = vdwg.mxu0
    %2559 = vmatprep.subr.bf16.mxu0 %v2282
    %2560 = vmatpush1.bf16.msra.mxu0 %v2281
    %2561 = vmatprep.subr.bf16.mxu0 %v2274
    %2562 = vmatpush1.bf16.msra.mxu0 %v2273
    %2563 = vmatprep.subr.bf16.mxu0 %v2266
    %2564 = vmatpush1.bf16.msra.mxu0 %v2265
    %2565 = vmatprep.subr.bf16.mxu0 %v2258
    %2566 = vmatpush1.bf16.msra.mxu0 %v2257
    %2567 = vmatprep.subr.bf16.mxu0 %v2250
    %2568 = vmatpush1.bf16.msra.mxu0 %v2249
    %2569 = vmatprep.subr.bf16.mxu0 %v2242
    %2570 = vmatpush1.bf16.msra.mxu0 %v2241
    %2571 = vmatprep.subr.bf16.mxu0 %v2234
    %2572 = vmatpush1.bf16.msra.mxu0 %v2233
    %2573 = vmatprep.subr.bf16.mxu0 %v2226
    %2574 = vmatpush1.bf16.msra.mxu0 %v2225
    %2575 = vmatprep.subr.bf16.mxu0 %v2346
    %2576 = vmatpush2.bf16.msra.mxu0 %v2345
    %2577 = vmatprep.subr.bf16.mxu0 %v2338
    %2578 = vmatpush2.bf16.msra.mxu0 %v2337
    %2579 = vmatprep.subr.bf16.mxu0 %v2330
    %2580 = vmatpush2.bf16.msra.mxu0 %v2329
    %2581 = vmatprep.subr.bf16.mxu0 %v2322
    %2582 = vmatpush2.bf16.msra.mxu0 %v2321
    %2583 = vmatprep.subr.bf16.mxu0 %v2314
    %2584 = vmatpush2.bf16.msra.mxu0 %v2313
    %2585 = vmatprep.subr.bf16.mxu0 %v2306
    %2586 = vmatpush2.bf16.msra.mxu0 %v2305
    %2587 = vmatprep.subr.bf16.mxu0 %v2298
    %2588 = vmatpush2.bf16.msra.mxu0 %v2297
    %2589 = vmatprep.subr.bf16.mxu0 %v2290
    %2590 = vmatpush2.bf16.msra.mxu0 %v2289
    %2591 = vmatprep.mubr.bf16.mxu0 %v1708
    %2592 = vmatmul.mubr.bf16.gmra.mxu0 %v1707
    %v2593 = vpop.f32.mrf.mxu0
    %v2594 = vadd.f32 0.0, %v2593
    %v2595 = vpop.f32.mrf.mxu0
    %v2596 = vadd.f32 0.0, %v2595
    %v2597 = vpop.f32.mrf.mxu0
    %v2598 = vpop.f32.mrf.mxu0
    %2599 = vdwg.mxu0
    %2600 = vmatprep.subr.bf16.mxu0 %v2284
    %2601 = vmatpush1.bf16.msra.mxu0 %v2283
    %2602 = vmatprep.subr.bf16.mxu0 %v2276
    %2603 = vmatpush1.bf16.msra.mxu0 %v2275
    %2604 = vmatprep.subr.bf16.mxu0 %v2268
    %2605 = vmatpush1.bf16.msra.mxu0 %v2267
    %2606 = vmatprep.subr.bf16.mxu0 %v2260
    %2607 = vmatpush1.bf16.msra.mxu0 %v2259
    %2608 = vmatprep.subr.bf16.mxu0 %v2252
    %2609 = vmatpush1.bf16.msra.mxu0 %v2251
    %2610 = vmatprep.subr.bf16.mxu0 %v2244
    %2611 = vmatpush1.bf16.msra.mxu0 %v2243
    %2612 = vmatprep.subr.bf16.mxu0 %v2236
    %2613 = vmatpush1.bf16.msra.mxu0 %v2235
    %2614 = vmatprep.subr.bf16.mxu0 %v2228
    %2615 = vmatpush1.bf16.msra.mxu0 %v2227
    %2616 = vmatprep.subr.bf16.mxu0 %v2348
    %2617 = vmatpush2.bf16.msra.mxu0 %v2347
    %2618 = vmatprep.subr.bf16.mxu0 %v2340
    %2619 = vmatpush2.bf16.msra.mxu0 %v2339
    %2620 = vmatprep.subr.bf16.mxu0 %v2332
    %2621 = vmatpush2.bf16.msra.mxu0 %v2331
    %2622 = vmatprep.subr.bf16.mxu0 %v2324
    %2623 = vmatpush2.bf16.msra.mxu0 %v2323
    %2624 = vmatprep.subr.bf16.mxu0 %v2316
    %2625 = vmatpush2.bf16.msra.mxu0 %v2315
    %2626 = vmatprep.subr.bf16.mxu0 %v2308
    %2627 = vmatpush2.bf16.msra.mxu0 %v2307
    %2628 = vmatprep.subr.bf16.mxu0 %v2300
    %2629 = vmatpush2.bf16.msra.mxu0 %v2299
    %2630 = vmatprep.subr.bf16.mxu0 %v2292
    %2631 = vmatpush2.bf16.msra.mxu0 %v2291
    %2632 = vmatprep.mubr.bf16.mxu0 %v1708
    %2633 = vmatmul.mubr.bf16.gmra.mxu0 %v1707
    %v2634 = vpop.f32.mrf.mxu0
    %v2635 = vadd.f32 0.0, %v2634
    %v2636 = vpop.f32.mrf.mxu0
    %v2637 = vadd.f32 0.0, %v2636
    %v2638 = vpop.f32.mrf.mxu0
    %v2639 = vpop.f32.mrf.mxu0
    %2640 = vdwg.mxu0
    %v2641 = vadd.f32 %v1699, %v2512
    %v2642 = vadd.f32 %v1700, %v2514
    %v2643 = vadd.f32 %v1701, %v2553
    %v2644 = vadd.f32 %v1702, %v2555
    %v2645 = vadd.f32 %v1703, %v2594
    %v2646 = vadd.f32 %v1704, %v2596
    %v2647 = vadd.f32 %v1705, %v2635
    %v2648 = vadd.f32 %v1706, %v2637
    %v2649 = vxor.u32 %v2641, 2147483648
    %v2650 = vxor.u32 %v2642, 2147483648
    %v2651 = vxor.u32 %v2643, 2147483648
    %v2652 = vxor.u32 %v2644, 2147483648
    %v2653 = vxor.u32 %v2645, 2147483648
    %v2654 = vxor.u32 %v2646, 2147483648
    %v2655 = vmul.f32 %v2649, 1.442695
    %v2656 = vpow.pop %v2655
    %v2657 = vmul.f32 %v2650, 1.442695
    %v2658 = vpow.pop %v2657
    %v2659 = vmul.f32 %v2651, 1.442695
    %v2660 = vpow.pop %v2659
    %v2661 = vmul.f32 %v2652, 1.442695
    %v2662 = vpow.pop %v2661
    %v2663 = vmul.f32 %v2653, 1.442695
    %v2664 = vpow.pop %v2663
    %v2665 = vmul.f32 %v2654, 1.442695
    %v2666 = vpow.pop %v2665
    %v2667 = vadd.f32 %v2656, 1.0
    %v2668 = vadd.f32 %v2658, 1.0
    %v2669 = vadd.f32 %v2660, 1.0
    %v2670 = vadd.f32 %v2662, 1.0
    %v2671 = vadd.f32 %v2664, 1.0
    %v2672 = vadd.f32 %v2666, 1.0
    %v2673 = vrcp.pop %v2667
    %v2674 = vmul.f32 1.0, %v2673
    %v2675 = vrcp.pop %v2668
    %v2676 = vmul.f32 1.0, %v2675
    %v2677 = vrcp.pop %v2669
    %v2678 = vmul.f32 1.0, %v2677
    %v2679 = vrcp.pop %v2670
    %v2680 = vmul.f32 1.0, %v2679
    %v2681 = vrcp.pop %v2671
    %v2682 = vmul.f32 1.0, %v2681
    %v2683 = vrcp.pop %v2672
    %v2684 = vmul.f32 1.0, %v2683
    %v2685 = vtanh.pop %v2647
    %v2686 = vtanh.pop %v2648
    %v2687 = vmul.f32 %v2678, %v1688
    %v2688 = vmul.f32 %v2680, %v1689
    %v2689 = vmul.f32 %v2674, %v2685
    %v2690 = vmul.f32 %v2676, %v2686
    %v2691 = vadd.f32 %v2687, %v2689
    %v2692 = vadd.f32 %v2688, %v2690
    %v2693 = vtanh.pop %v2691
    %v2694 = vtanh.pop %v2692
    %v2695 = vmul.f32 %v2682, %v2693
    %v2696 = vmul.f32 %v2684, %v2694
    %v2698 = vrot.slane %v2695, 1
    %2700 = vst [vmem:[#allocation3 + $0x1] sm:$0x1] %v2698
    %2701 = vst [vmem:[#allocation3 + $0xe] sm:$0x1] %v2696
    %v2702 = vld [vmem:[#allocation2 + $0x80] sm:$0xff]
    %v2703 = vld [vmem:[#allocation2 + $0x88] sm:$0xff]
    %v2704 = vld [vmem:[#allocation2 + $0x90] sm:$0xff]
    %v2705 = vld [vmem:[#allocation2 + $0x98] sm:$0xff]
    %v2706 = vld [vmem:[#allocation2 + $0xa0] sm:$0xff]
    %v2707 = vld [vmem:[#allocation2 + $0xa8] sm:$0xff]
    %v2708 = vld [vmem:[#allocation2 + $0xb0] sm:$0xff]
    %v2709 = vld [vmem:[#allocation2 + $0xb8] sm:$0xff]
    %v2710 = vpack.c.bf16 %v2695, %v2695
    %v2711 = vpack.c.bf16 %v2696, %v2696
    %v2712 = vld [vmem:[#allocation7] sm:$0xff]
    %v2713 = vld [vmem:[#allocation7 + $0x8] sm:$0xff]
    %v2714 = vld [vmem:[#allocation7 + $0x10] sm:$0xff]
    %v2715 = vld [vmem:[#allocation7 + $0x18] sm:$0xff]
    %v2716 = vld [vmem:[#allocation7 + $0x20] sm:$0xff]
    %v2717 = vld [vmem:[#allocation7 + $0x28] sm:$0xff]
    %v2718 = vld [vmem:[#allocation7 + $0x30] sm:$0xff]
    %v2719 = vld [vmem:[#allocation7 + $0x38] sm:$0xff]
    %v2720 = vld [vmem:[#allocation7 + $0x40] sm:$0xff]
    %v2721 = vld [vmem:[#allocation7 + $0x48] sm:$0xff]
    %v2722 = vld [vmem:[#allocation7 + $0x50] sm:$0xff]
    %v2723 = vld [vmem:[#allocation7 + $0x58] sm:$0xff]
    %v2724 = vld [vmem:[#allocation7 + $0x60] sm:$0xff]
    %v2725 = vld [vmem:[#allocation7 + $0x68] sm:$0xff]
    %v2726 = vld [vmem:[#allocation7 + $0x70] sm:$0xff]
    %v2727 = vld [vmem:[#allocation7 + $0x78] sm:$0xff]
    %v2728 = vld [vmem:[#allocation7 + $0x80] sm:$0xff]
    %v2729 = vld [vmem:[#allocation7 + $0x88] sm:$0xff]
    %v2730 = vld [vmem:[#allocation7 + $0x90] sm:$0xff]
    %v2731 = vld [vmem:[#allocation7 + $0x98] sm:$0xff]
    %v2732 = vld [vmem:[#allocation7 + $0xa0] sm:$0xff]
    %v2733 = vld [vmem:[#allocation7 + $0xa8] sm:$0xff]
    %v2734 = vld [vmem:[#allocation7 + $0xb0] sm:$0xff]
    %v2735 = vld [vmem:[#allocation7 + $0xb8] sm:$0xff]
    %v2736 = vld [vmem:[#allocation7 + $0xc0] sm:$0xff]
    %v2737 = vld [vmem:[#allocation7 + $0xc8] sm:$0xff]
    %v2738 = vld [vmem:[#allocation7 + $0xd0] sm:$0xff]
    %v2739 = vld [vmem:[#allocation7 + $0xd8] sm:$0xff]
    %v2740 = vld [vmem:[#allocation7 + $0xe0] sm:$0xff]
    %v2741 = vld [vmem:[#allocation7 + $0xe8] sm:$0xff]
    %v2742 = vld [vmem:[#allocation7 + $0xf0] sm:$0xff]
    %v2743 = vld [vmem:[#allocation7 + $0xf8] sm:$0xff]
    %v2744 = vld [vmem:[#allocation7 + $0x100] sm:$0xff]
    %v2745 = vld [vmem:[#allocation7 + $0x108] sm:$0xff]
    %v2746 = vld [vmem:[#allocation7 + $0x110] sm:$0xff]
    %v2747 = vld [vmem:[#allocation7 + $0x118] sm:$0xff]
    %v2748 = vld [vmem:[#allocation7 + $0x120] sm:$0xff]
    %v2749 = vld [vmem:[#allocation7 + $0x128] sm:$0xff]
    %v2750 = vld [vmem:[#allocation7 + $0x130] sm:$0xff]
    %v2751 = vld [vmem:[#allocation7 + $0x138] sm:$0xff]
    %v2752 = vld [vmem:[#allocation7 + $0x140] sm:$0xff]
    %v2753 = vld [vmem:[#allocation7 + $0x148] sm:$0xff]
    %v2754 = vld [vmem:[#allocation7 + $0x150] sm:$0xff]
    %v2755 = vld [vmem:[#allocation7 + $0x158] sm:$0xff]
    %v2756 = vld [vmem:[#allocation7 + $0x160] sm:$0xff]
    %v2757 = vld [vmem:[#allocation7 + $0x168] sm:$0xff]
    %v2758 = vld [vmem:[#allocation7 + $0x170] sm:$0xff]
    %v2759 = vld [vmem:[#allocation7 + $0x178] sm:$0xff]
    %v2760 = vld [vmem:[#allocation7 + $0x180] sm:$0xff]
    %v2761 = vld [vmem:[#allocation7 + $0x188] sm:$0xff]
    %v2762 = vld [vmem:[#allocation7 + $0x190] sm:$0xff]
    %v2763 = vld [vmem:[#allocation7 + $0x198] sm:$0xff]
    %v2764 = vld [vmem:[#allocation7 + $0x1a0] sm:$0xff]
    %v2765 = vld [vmem:[#allocation7 + $0x1a8] sm:$0xff]
    %v2766 = vld [vmem:[#allocation7 + $0x1b0] sm:$0xff]
    %v2767 = vld [vmem:[#allocation7 + $0x1b8] sm:$0xff]
    %v2768 = vld [vmem:[#allocation7 + $0x1c0] sm:$0xff]
    %v2769 = vld [vmem:[#allocation7 + $0x1c8] sm:$0xff]
    %v2770 = vld [vmem:[#allocation7 + $0x1d0] sm:$0xff]
    %v2771 = vld [vmem:[#allocation7 + $0x1d8] sm:$0xff]
    %v2772 = vld [vmem:[#allocation7 + $0x1e0] sm:$0xff]
    %v2773 = vld [vmem:[#allocation7 + $0x1e8] sm:$0xff]
    %v2774 = vld [vmem:[#allocation7 + $0x1f0] sm:$0xff]
    %v2775 = vld [vmem:[#allocation7 + $0x1f8] sm:$0xff]
    %v2776 = vld [vmem:[#allocation7 + $0x200] sm:$0xff]
    %v2777 = vld [vmem:[#allocation7 + $0x208] sm:$0xff]
    %v2778 = vld [vmem:[#allocation7 + $0x210] sm:$0xff]
    %v2779 = vld [vmem:[#allocation7 + $0x218] sm:$0xff]
    %v2780 = vld [vmem:[#allocation7 + $0x220] sm:$0xff]
    %v2781 = vld [vmem:[#allocation7 + $0x228] sm:$0xff]
    %v2782 = vld [vmem:[#allocation7 + $0x230] sm:$0xff]
    %v2783 = vld [vmem:[#allocation7 + $0x238] sm:$0xff]
    %v2784 = vld [vmem:[#allocation7 + $0x240] sm:$0xff]
    %v2785 = vld [vmem:[#allocation7 + $0x248] sm:$0xff]
    %v2786 = vld [vmem:[#allocation7 + $0x250] sm:$0xff]
    %v2787 = vld [vmem:[#allocation7 + $0x258] sm:$0xff]
    %v2788 = vld [vmem:[#allocation7 + $0x260] sm:$0xff]
    %v2789 = vld [vmem:[#allocation7 + $0x268] sm:$0xff]
    %v2790 = vld [vmem:[#allocation7 + $0x270] sm:$0xff]
    %v2791 = vld [vmem:[#allocation7 + $0x278] sm:$0xff]
    %v2792 = vld [vmem:[#allocation7 + $0x280] sm:$0xff]
    %v2793 = vld [vmem:[#allocation7 + $0x288] sm:$0xff]
    %v2794 = vld [vmem:[#allocation7 + $0x290] sm:$0xff]
    %v2795 = vld [vmem:[#allocation7 + $0x298] sm:$0xff]
    %v2796 = vld [vmem:[#allocation7 + $0x2a0] sm:$0xff]
    %v2797 = vld [vmem:[#allocation7 + $0x2a8] sm:$0xff]
    %v2798 = vld [vmem:[#allocation7 + $0x2b0] sm:$0xff]
    %v2799 = vld [vmem:[#allocation7 + $0x2b8] sm:$0xff]
    %v2800 = vld [vmem:[#allocation7 + $0x2c0] sm:$0xff]
    %v2801 = vld [vmem:[#allocation7 + $0x2c8] sm:$0xff]
    %v2802 = vld [vmem:[#allocation7 + $0x2d0] sm:$0xff]
    %v2803 = vld [vmem:[#allocation7 + $0x2d8] sm:$0xff]
    %v2804 = vld [vmem:[#allocation7 + $0x2e0] sm:$0xff]
    %v2805 = vld [vmem:[#allocation7 + $0x2e8] sm:$0xff]
    %v2806 = vld [vmem:[#allocation7 + $0x2f0] sm:$0xff]
    %v2807 = vld [vmem:[#allocation7 + $0x2f8] sm:$0xff]
    %v2808 = vld [vmem:[#allocation7 + $0x300] sm:$0xff]
    %v2809 = vld [vmem:[#allocation7 + $0x308] sm:$0xff]
    %v2810 = vld [vmem:[#allocation7 + $0x310] sm:$0xff]
    %v2811 = vld [vmem:[#allocation7 + $0x318] sm:$0xff]
    %v2812 = vld [vmem:[#allocation7 + $0x320] sm:$0xff]
    %v2813 = vld [vmem:[#allocation7 + $0x328] sm:$0xff]
    %v2814 = vld [vmem:[#allocation7 + $0x330] sm:$0xff]
    %v2815 = vld [vmem:[#allocation7 + $0x338] sm:$0xff]
    %v2816 = vld [vmem:[#allocation7 + $0x340] sm:$0xff]
    %v2817 = vld [vmem:[#allocation7 + $0x348] sm:$0xff]
    %v2818 = vld [vmem:[#allocation7 + $0x350] sm:$0xff]
    %v2819 = vld [vmem:[#allocation7 + $0x358] sm:$0xff]
    %v2820 = vld [vmem:[#allocation7 + $0x360] sm:$0xff]
    %v2821 = vld [vmem:[#allocation7 + $0x368] sm:$0xff]
    %v2822 = vld [vmem:[#allocation7 + $0x370] sm:$0xff]
    %v2823 = vld [vmem:[#allocation7 + $0x378] sm:$0xff]
    %v2824 = vld [vmem:[#allocation7 + $0x380] sm:$0xff]
    %v2825 = vld [vmem:[#allocation7 + $0x388] sm:$0xff]
    %v2826 = vld [vmem:[#allocation7 + $0x390] sm:$0xff]
    %v2827 = vld [vmem:[#allocation7 + $0x398] sm:$0xff]
    %v2828 = vld [vmem:[#allocation7 + $0x3a0] sm:$0xff]
    %v2829 = vld [vmem:[#allocation7 + $0x3a8] sm:$0xff]
    %v2830 = vld [vmem:[#allocation7 + $0x3b0] sm:$0xff]
    %v2831 = vld [vmem:[#allocation7 + $0x3b8] sm:$0xff]
    %v2832 = vld [vmem:[#allocation7 + $0x3c0] sm:$0xff]
    %v2833 = vld [vmem:[#allocation7 + $0x3c8] sm:$0xff]
    %v2834 = vld [vmem:[#allocation7 + $0x3d0] sm:$0xff]
    %v2835 = vld [vmem:[#allocation7 + $0x3d8] sm:$0xff]
    %v2836 = vld [vmem:[#allocation7 + $0x3e0] sm:$0xff]
    %v2837 = vld [vmem:[#allocation7 + $0x3e8] sm:$0xff]
    %v2838 = vld [vmem:[#allocation7 + $0x3f0] sm:$0xff]
    %v2839 = vld [vmem:[#allocation7 + $0x3f8] sm:$0xff]
    %v2968 = vunpack.c.l.b16 %v2712
    %v2969 = vunpack.c.h.b16 %v2712
    %v2970 = vunpack.c.l.b16 %v2713
    %v2971 = vunpack.c.h.b16 %v2713
    %v2972 = vunpack.c.l.b16 %v2714
    %v2973 = vunpack.c.h.b16 %v2714
    %v2974 = vunpack.c.l.b16 %v2715
    %v2975 = vunpack.c.h.b16 %v2715
    %v2976 = vunpack.c.l.b16 %v2716
    %v2977 = vunpack.c.h.b16 %v2716
    %v2978 = vunpack.c.l.b16 %v2717
    %v2979 = vunpack.c.h.b16 %v2717
    %v2980 = vunpack.c.l.b16 %v2718
    %v2981 = vunpack.c.h.b16 %v2718
    %v2982 = vunpack.c.l.b16 %v2719
    %v2983 = vunpack.c.h.b16 %v2719
    %v2984 = vunpack.c.l.b16 %v2720
    %v2985 = vunpack.c.h.b16 %v2720
    %v2986 = vunpack.c.l.b16 %v2721
    %v2987 = vunpack.c.h.b16 %v2721
    %v2988 = vunpack.c.l.b16 %v2722
    %v2989 = vunpack.c.h.b16 %v2722
    %v2990 = vunpack.c.l.b16 %v2723
    %v2991 = vunpack.c.h.b16 %v2723
    %v2992 = vunpack.c.l.b16 %v2724
    %v2993 = vunpack.c.h.b16 %v2724
    %v2994 = vunpack.c.l.b16 %v2725
    %v2995 = vunpack.c.h.b16 %v2725
    %v2996 = vunpack.c.l.b16 %v2726
    %v2997 = vunpack.c.h.b16 %v2726
    %v2998 = vunpack.c.l.b16 %v2727
    %v2999 = vunpack.c.h.b16 %v2727
    %v3000 = vunpack.c.l.b16 %v2728
    %v3001 = vunpack.c.h.b16 %v2728
    %v3002 = vunpack.c.l.b16 %v2729
    %v3003 = vunpack.c.h.b16 %v2729
    %v3004 = vunpack.c.l.b16 %v2730
    %v3005 = vunpack.c.h.b16 %v2730
    %v3006 = vunpack.c.l.b16 %v2731
    %v3007 = vunpack.c.h.b16 %v2731
    %v3008 = vunpack.c.l.b16 %v2732
    %v3009 = vunpack.c.h.b16 %v2732
    %v3010 = vunpack.c.l.b16 %v2733
    %v3011 = vunpack.c.h.b16 %v2733
    %v3012 = vunpack.c.l.b16 %v2734
    %v3013 = vunpack.c.h.b16 %v2734
    %v3014 = vunpack.c.l.b16 %v2735
    %v3015 = vunpack.c.h.b16 %v2735
    %v3016 = vunpack.c.l.b16 %v2736
    %v3017 = vunpack.c.h.b16 %v2736
    %v3018 = vunpack.c.l.b16 %v2737
    %v3019 = vunpack.c.h.b16 %v2737
    %v3020 = vunpack.c.l.b16 %v2738
    %v3021 = vunpack.c.h.b16 %v2738
    %v3022 = vunpack.c.l.b16 %v2739
    %v3023 = vunpack.c.h.b16 %v2739
    %v3024 = vunpack.c.l.b16 %v2740
    %v3025 = vunpack.c.h.b16 %v2740
    %v3026 = vunpack.c.l.b16 %v2741
    %v3027 = vunpack.c.h.b16 %v2741
    %v3028 = vunpack.c.l.b16 %v2742
    %v3029 = vunpack.c.h.b16 %v2742
    %v3030 = vunpack.c.l.b16 %v2743
    %v3031 = vunpack.c.h.b16 %v2743
    %v3032 = vunpack.c.l.b16 %v2744
    %v3033 = vunpack.c.h.b16 %v2744
    %v3034 = vunpack.c.l.b16 %v2745
    %v3035 = vunpack.c.h.b16 %v2745
    %v3036 = vunpack.c.l.b16 %v2746
    %v3037 = vunpack.c.h.b16 %v2746
    %v3038 = vunpack.c.l.b16 %v2747
    %v3039 = vunpack.c.h.b16 %v2747
    %v3040 = vunpack.c.l.b16 %v2748
    %v3041 = vunpack.c.h.b16 %v2748
    %v3042 = vunpack.c.l.b16 %v2749
    %v3043 = vunpack.c.h.b16 %v2749
    %v3044 = vunpack.c.l.b16 %v2750
    %v3045 = vunpack.c.h.b16 %v2750
    %v3046 = vunpack.c.l.b16 %v2751
    %v3047 = vunpack.c.h.b16 %v2751
    %v3048 = vunpack.c.l.b16 %v2752
    %v3049 = vunpack.c.h.b16 %v2752
    %v3050 = vunpack.c.l.b16 %v2753
    %v3051 = vunpack.c.h.b16 %v2753
    %v3052 = vunpack.c.l.b16 %v2754
    %v3053 = vunpack.c.h.b16 %v2754
    %v3054 = vunpack.c.l.b16 %v2755
    %v3055 = vunpack.c.h.b16 %v2755
    %v3056 = vunpack.c.l.b16 %v2756
    %v3057 = vunpack.c.h.b16 %v2756
    %v3058 = vunpack.c.l.b16 %v2757
    %v3059 = vunpack.c.h.b16 %v2757
    %v3060 = vunpack.c.l.b16 %v2758
    %v3061 = vunpack.c.h.b16 %v2758
    %v3062 = vunpack.c.l.b16 %v2759
    %v3063 = vunpack.c.h.b16 %v2759
    %v3064 = vunpack.c.l.b16 %v2760
    %v3065 = vunpack.c.h.b16 %v2760
    %v3066 = vunpack.c.l.b16 %v2761
    %v3067 = vunpack.c.h.b16 %v2761
    %v3068 = vunpack.c.l.b16 %v2762
    %v3069 = vunpack.c.h.b16 %v2762
    %v3070 = vunpack.c.l.b16 %v2763
    %v3071 = vunpack.c.h.b16 %v2763
    %v3072 = vunpack.c.l.b16 %v2764
    %v3073 = vunpack.c.h.b16 %v2764
    %v3074 = vunpack.c.l.b16 %v2765
    %v3075 = vunpack.c.h.b16 %v2765
    %v3076 = vunpack.c.l.b16 %v2766
    %v3077 = vunpack.c.h.b16 %v2766
    %v3078 = vunpack.c.l.b16 %v2767
    %v3079 = vunpack.c.h.b16 %v2767
    %v3080 = vunpack.c.l.b16 %v2768
    %v3081 = vunpack.c.h.b16 %v2768
    %v3082 = vunpack.c.l.b16 %v2769
    %v3083 = vunpack.c.h.b16 %v2769
    %v3084 = vunpack.c.l.b16 %v2770
    %v3085 = vunpack.c.h.b16 %v2770
    %v3086 = vunpack.c.l.b16 %v2771
    %v3087 = vunpack.c.h.b16 %v2771
    %v3088 = vunpack.c.l.b16 %v2772
    %v3089 = vunpack.c.h.b16 %v2772
    %v3090 = vunpack.c.l.b16 %v2773
    %v3091 = vunpack.c.h.b16 %v2773
    %v3092 = vunpack.c.l.b16 %v2774
    %v3093 = vunpack.c.h.b16 %v2774
    %v3094 = vunpack.c.l.b16 %v2775
    %v3095 = vunpack.c.h.b16 %v2775
    %v3096 = vunpack.c.l.b16 %v2776
    %v3097 = vunpack.c.h.b16 %v2776
    %v3098 = vunpack.c.l.b16 %v2777
    %v3099 = vunpack.c.h.b16 %v2777
    %v3100 = vunpack.c.l.b16 %v2778
    %v3101 = vunpack.c.h.b16 %v2778
    %v3102 = vunpack.c.l.b16 %v2779
    %v3103 = vunpack.c.h.b16 %v2779
    %v3104 = vunpack.c.l.b16 %v2780
    %v3105 = vunpack.c.h.b16 %v2780
    %v3106 = vunpack.c.l.b16 %v2781
    %v3107 = vunpack.c.h.b16 %v2781
    %v3108 = vunpack.c.l.b16 %v2782
    %v3109 = vunpack.c.h.b16 %v2782
    %v3110 = vunpack.c.l.b16 %v2783
    %v3111 = vunpack.c.h.b16 %v2783
    %v3112 = vunpack.c.l.b16 %v2784
    %v3113 = vunpack.c.h.b16 %v2784
    %v3114 = vunpack.c.l.b16 %v2785
    %v3115 = vunpack.c.h.b16 %v2785
    %v3116 = vunpack.c.l.b16 %v2786
    %v3117 = vunpack.c.h.b16 %v2786
    %v3118 = vunpack.c.l.b16 %v2787
    %v3119 = vunpack.c.h.b16 %v2787
    %v3120 = vunpack.c.l.b16 %v2788
    %v3121 = vunpack.c.h.b16 %v2788
    %v3122 = vunpack.c.l.b16 %v2789
    %v3123 = vunpack.c.h.b16 %v2789
    %v3124 = vunpack.c.l.b16 %v2790
    %v3125 = vunpack.c.h.b16 %v2790
    %v3126 = vunpack.c.l.b16 %v2791
    %v3127 = vunpack.c.h.b16 %v2791
    %v3128 = vunpack.c.l.b16 %v2792
    %v3129 = vunpack.c.h.b16 %v2792
    %v3130 = vunpack.c.l.b16 %v2793
    %v3131 = vunpack.c.h.b16 %v2793
    %v3132 = vunpack.c.l.b16 %v2794
    %v3133 = vunpack.c.h.b16 %v2794
    %v3134 = vunpack.c.l.b16 %v2795
    %v3135 = vunpack.c.h.b16 %v2795
    %v3136 = vunpack.c.l.b16 %v2796
    %v3137 = vunpack.c.h.b16 %v2796
    %v3138 = vunpack.c.l.b16 %v2797
    %v3139 = vunpack.c.h.b16 %v2797
    %v3140 = vunpack.c.l.b16 %v2798
    %v3141 = vunpack.c.h.b16 %v2798
    %v3142 = vunpack.c.l.b16 %v2799
    %v3143 = vunpack.c.h.b16 %v2799
    %v3144 = vunpack.c.l.b16 %v2800
    %v3145 = vunpack.c.h.b16 %v2800
    %v3146 = vunpack.c.l.b16 %v2801
    %v3147 = vunpack.c.h.b16 %v2801
    %v3148 = vunpack.c.l.b16 %v2802
    %v3149 = vunpack.c.h.b16 %v2802
    %v3150 = vunpack.c.l.b16 %v2803
    %v3151 = vunpack.c.h.b16 %v2803
    %v3152 = vunpack.c.l.b16 %v2804
    %v3153 = vunpack.c.h.b16 %v2804
    %v3154 = vunpack.c.l.b16 %v2805
    %v3155 = vunpack.c.h.b16 %v2805
    %v3156 = vunpack.c.l.b16 %v2806
    %v3157 = vunpack.c.h.b16 %v2806
    %v3158 = vunpack.c.l.b16 %v2807
    %v3159 = vunpack.c.h.b16 %v2807
    %v3160 = vunpack.c.l.b16 %v2808
    %v3161 = vunpack.c.h.b16 %v2808
    %v3162 = vunpack.c.l.b16 %v2809
    %v3163 = vunpack.c.h.b16 %v2809
    %v3164 = vunpack.c.l.b16 %v2810
    %v3165 = vunpack.c.h.b16 %v2810
    %v3166 = vunpack.c.l.b16 %v2811
    %v3167 = vunpack.c.h.b16 %v2811
    %v3168 = vunpack.c.l.b16 %v2812
    %v3169 = vunpack.c.h.b16 %v2812
    %v3170 = vunpack.c.l.b16 %v2813
    %v3171 = vunpack.c.h.b16 %v2813
    %v3172 = vunpack.c.l.b16 %v2814
    %v3173 = vunpack.c.h.b16 %v2814
    %v3174 = vunpack.c.l.b16 %v2815
    %v3175 = vunpack.c.h.b16 %v2815
    %v3176 = vunpack.c.l.b16 %v2816
    %v3177 = vunpack.c.h.b16 %v2816
    %v3178 = vunpack.c.l.b16 %v2817
    %v3179 = vunpack.c.h.b16 %v2817
    %v3180 = vunpack.c.l.b16 %v2818
    %v3181 = vunpack.c.h.b16 %v2818
    %v3182 = vunpack.c.l.b16 %v2819
    %v3183 = vunpack.c.h.b16 %v2819
    %v3184 = vunpack.c.l.b16 %v2820
    %v3185 = vunpack.c.h.b16 %v2820
    %v3186 = vunpack.c.l.b16 %v2821
    %v3187 = vunpack.c.h.b16 %v2821
    %v3188 = vunpack.c.l.b16 %v2822
    %v3189 = vunpack.c.h.b16 %v2822
    %v3190 = vunpack.c.l.b16 %v2823
    %v3191 = vunpack.c.h.b16 %v2823
    %v3192 = vunpack.c.l.b16 %v2824
    %v3193 = vunpack.c.h.b16 %v2824
    %v3194 = vunpack.c.l.b16 %v2825
    %v3195 = vunpack.c.h.b16 %v2825
    %v3196 = vunpack.c.l.b16 %v2826
    %v3197 = vunpack.c.h.b16 %v2826
    %v3198 = vunpack.c.l.b16 %v2827
    %v3199 = vunpack.c.h.b16 %v2827
    %v3200 = vunpack.c.l.b16 %v2828
    %v3201 = vunpack.c.h.b16 %v2828
    %v3202 = vunpack.c.l.b16 %v2829
    %v3203 = vunpack.c.h.b16 %v2829
    %v3204 = vunpack.c.l.b16 %v2830
    %v3205 = vunpack.c.h.b16 %v2830
    %v3206 = vunpack.c.l.b16 %v2831
    %v3207 = vunpack.c.h.b16 %v2831
    %v3208 = vunpack.c.l.b16 %v2832
    %v3209 = vunpack.c.h.b16 %v2832
    %v3210 = vunpack.c.l.b16 %v2833
    %v3211 = vunpack.c.h.b16 %v2833
    %v3212 = vunpack.c.l.b16 %v2834
    %v3213 = vunpack.c.h.b16 %v2834
    %v3214 = vunpack.c.l.b16 %v2835
    %v3215 = vunpack.c.h.b16 %v2835
    %v3216 = vunpack.c.l.b16 %v2836
    %v3217 = vunpack.c.h.b16 %v2836
    %v3218 = vunpack.c.l.b16 %v2837
    %v3219 = vunpack.c.h.b16 %v2837
    %v3220 = vunpack.c.l.b16 %v2838
    %v3221 = vunpack.c.h.b16 %v2838
    %v3222 = vunpack.c.l.b16 %v2839
    %v3223 = vunpack.c.h.b16 %v2839
    %v3224 = vpack.c.b16 %v2976, %v2968
    %v3225 = vpack.c.b16 %v2977, %v2969
    %v3226 = vpack.c.b16 %v2978, %v2970
    %v3227 = vpack.c.b16 %v2979, %v2971
    %v3228 = vpack.c.b16 %v2980, %v2972
    %v3229 = vpack.c.b16 %v2981, %v2973
    %v3230 = vpack.c.b16 %v2982, %v2974
    %v3231 = vpack.c.b16 %v2983, %v2975
    %v3232 = vpack.c.b16 %v2992, %v2984
    %v3233 = vpack.c.b16 %v2993, %v2985
    %v3234 = vpack.c.b16 %v2994, %v2986
    %v3235 = vpack.c.b16 %v2995, %v2987
    %v3236 = vpack.c.b16 %v2996, %v2988
    %v3237 = vpack.c.b16 %v2997, %v2989
    %v3238 = vpack.c.b16 %v2998, %v2990
    %v3239 = vpack.c.b16 %v2999, %v2991
    %v3240 = vpack.c.b16 %v3008, %v3000
    %v3241 = vpack.c.b16 %v3009, %v3001
    %v3242 = vpack.c.b16 %v3010, %v3002
    %v3243 = vpack.c.b16 %v3011, %v3003
    %v3244 = vpack.c.b16 %v3012, %v3004
    %v3245 = vpack.c.b16 %v3013, %v3005
    %v3246 = vpack.c.b16 %v3014, %v3006
    %v3247 = vpack.c.b16 %v3015, %v3007
    %v3248 = vpack.c.b16 %v3024, %v3016
    %v3249 = vpack.c.b16 %v3025, %v3017
    %v3250 = vpack.c.b16 %v3026, %v3018
    %v3251 = vpack.c.b16 %v3027, %v3019
    %v3252 = vpack.c.b16 %v3028, %v3020
    %v3253 = vpack.c.b16 %v3029, %v3021
    %v3254 = vpack.c.b16 %v3030, %v3022
    %v3255 = vpack.c.b16 %v3031, %v3023
    %v3256 = vpack.c.b16 %v3040, %v3032
    %v3257 = vpack.c.b16 %v3041, %v3033
    %v3258 = vpack.c.b16 %v3042, %v3034
    %v3259 = vpack.c.b16 %v3043, %v3035
    %v3260 = vpack.c.b16 %v3044, %v3036
    %v3261 = vpack.c.b16 %v3045, %v3037
    %v3262 = vpack.c.b16 %v3046, %v3038
    %v3263 = vpack.c.b16 %v3047, %v3039
    %v3264 = vpack.c.b16 %v3056, %v3048
    %v3265 = vpack.c.b16 %v3057, %v3049
    %v3266 = vpack.c.b16 %v3058, %v3050
    %v3267 = vpack.c.b16 %v3059, %v3051
    %v3268 = vpack.c.b16 %v3060, %v3052
    %v3269 = vpack.c.b16 %v3061, %v3053
    %v3270 = vpack.c.b16 %v3062, %v3054
    %v3271 = vpack.c.b16 %v3063, %v3055
    %v3272 = vpack.c.b16 %v3072, %v3064
    %v3273 = vpack.c.b16 %v3073, %v3065
    %v3274 = vpack.c.b16 %v3074, %v3066
    %v3275 = vpack.c.b16 %v3075, %v3067
    %v3276 = vpack.c.b16 %v3076, %v3068
    %v3277 = vpack.c.b16 %v3077, %v3069
    %v3278 = vpack.c.b16 %v3078, %v3070
    %v3279 = vpack.c.b16 %v3079, %v3071
    %v3280 = vpack.c.b16 %v3088, %v3080
    %v3281 = vpack.c.b16 %v3089, %v3081
    %v3282 = vpack.c.b16 %v3090, %v3082
    %v3283 = vpack.c.b16 %v3091, %v3083
    %v3284 = vpack.c.b16 %v3092, %v3084
    %v3285 = vpack.c.b16 %v3093, %v3085
    %v3286 = vpack.c.b16 %v3094, %v3086
    %v3287 = vpack.c.b16 %v3095, %v3087
    %v3288 = vpack.c.b16 %v3104, %v3096
    %v3289 = vpack.c.b16 %v3105, %v3097
    %v3290 = vpack.c.b16 %v3106, %v3098
    %v3291 = vpack.c.b16 %v3107, %v3099
    %v3292 = vpack.c.b16 %v3108, %v3100
    %v3293 = vpack.c.b16 %v3109, %v3101
    %v3294 = vpack.c.b16 %v3110, %v3102
    %v3295 = vpack.c.b16 %v3111, %v3103
    %v3296 = vpack.c.b16 %v3120, %v3112
    %v3297 = vpack.c.b16 %v3121, %v3113
    %v3298 = vpack.c.b16 %v3122, %v3114
    %v3299 = vpack.c.b16 %v3123, %v3115
    %v3300 = vpack.c.b16 %v3124, %v3116
    %v3301 = vpack.c.b16 %v3125, %v3117
    %v3302 = vpack.c.b16 %v3126, %v3118
    %v3303 = vpack.c.b16 %v3127, %v3119
    %v3304 = vpack.c.b16 %v3136, %v3128
    %v3305 = vpack.c.b16 %v3137, %v3129
    %v3306 = vpack.c.b16 %v3138, %v3130
    %v3307 = vpack.c.b16 %v3139, %v3131
    %v3308 = vpack.c.b16 %v3140, %v3132
    %v3309 = vpack.c.b16 %v3141, %v3133
    %v3310 = vpack.c.b16 %v3142, %v3134
    %v3311 = vpack.c.b16 %v3143, %v3135
    %v3312 = vpack.c.b16 %v3152, %v3144
    %v3313 = vpack.c.b16 %v3153, %v3145
    %v3314 = vpack.c.b16 %v3154, %v3146
    %v3315 = vpack.c.b16 %v3155, %v3147
    %v3316 = vpack.c.b16 %v3156, %v3148
    %v3317 = vpack.c.b16 %v3157, %v3149
    %v3318 = vpack.c.b16 %v3158, %v3150
    %v3319 = vpack.c.b16 %v3159, %v3151
    %v3320 = vpack.c.b16 %v3168, %v3160
    %v3321 = vpack.c.b16 %v3169, %v3161
    %v3322 = vpack.c.b16 %v3170, %v3162
    %v3323 = vpack.c.b16 %v3171, %v3163
    %v3324 = vpack.c.b16 %v3172, %v3164
    %v3325 = vpack.c.b16 %v3173, %v3165
    %v3326 = vpack.c.b16 %v3174, %v3166
    %v3327 = vpack.c.b16 %v3175, %v3167
    %v3328 = vpack.c.b16 %v3184, %v3176
    %v3329 = vpack.c.b16 %v3185, %v3177
    %v3330 = vpack.c.b16 %v3186, %v3178
    %v3331 = vpack.c.b16 %v3187, %v3179
    %v3332 = vpack.c.b16 %v3188, %v3180
    %v3333 = vpack.c.b16 %v3189, %v3181
    %v3334 = vpack.c.b16 %v3190, %v3182
    %v3335 = vpack.c.b16 %v3191, %v3183
    %v3336 = vpack.c.b16 %v3200, %v3192
    %v3337 = vpack.c.b16 %v3201, %v3193
    %v3338 = vpack.c.b16 %v3202, %v3194
    %v3339 = vpack.c.b16 %v3203, %v3195
    %v3340 = vpack.c.b16 %v3204, %v3196
    %v3341 = vpack.c.b16 %v3205, %v3197
    %v3342 = vpack.c.b16 %v3206, %v3198
    %v3343 = vpack.c.b16 %v3207, %v3199
    %v3344 = vpack.c.b16 %v3216, %v3208
    %v3345 = vpack.c.b16 %v3217, %v3209
    %v3346 = vpack.c.b16 %v3218, %v3210
    %v3347 = vpack.c.b16 %v3219, %v3211
    %v3348 = vpack.c.b16 %v3220, %v3212
    %v3349 = vpack.c.b16 %v3221, %v3213
    %v3350 = vpack.c.b16 %v3222, %v3214
    %v3351 = vpack.c.b16 %v3223, %v3215
    %3480 = vmatprep.subr.bf16.mxu0 %v3281
    %3481 = vmatpush1.bf16.msra.mxu0 %v3280
    %3482 = vmatprep.subr.bf16.mxu0 %v3273
    %3483 = vmatpush1.bf16.msra.mxu0 %v3272
    %3484 = vmatprep.subr.bf16.mxu0 %v3265
    %3485 = vmatpush1.bf16.msra.mxu0 %v3264
    %3486 = vmatprep.subr.bf16.mxu0 %v3257
    %3487 = vmatpush1.bf16.msra.mxu0 %v3256
    %3488 = vmatprep.subr.bf16.mxu0 %v3249
    %3489 = vmatpush1.bf16.msra.mxu0 %v3248
    %3490 = vmatprep.subr.bf16.mxu0 %v3241
    %3491 = vmatpush1.bf16.msra.mxu0 %v3240
    %3492 = vmatprep.subr.bf16.mxu0 %v3233
    %3493 = vmatpush1.bf16.msra.mxu0 %v3232
    %3494 = vmatprep.subr.bf16.mxu0 %v3225
    %3495 = vmatpush1.bf16.msra.mxu0 %v3224
    %3496 = vmatprep.subr.bf16.mxu0 %v3345
    %3497 = vmatpush2.bf16.msra.mxu0 %v3344
    %3498 = vmatprep.subr.bf16.mxu0 %v3337
    %3499 = vmatpush2.bf16.msra.mxu0 %v3336
    %3500 = vmatprep.subr.bf16.mxu0 %v3329
    %3501 = vmatpush2.bf16.msra.mxu0 %v3328
    %3502 = vmatprep.subr.bf16.mxu0 %v3321
    %3503 = vmatpush2.bf16.msra.mxu0 %v3320
    %3504 = vmatprep.subr.bf16.mxu0 %v3313
    %3505 = vmatpush2.bf16.msra.mxu0 %v3312
    %3506 = vmatprep.subr.bf16.mxu0 %v3305
    %3507 = vmatpush2.bf16.msra.mxu0 %v3304
    %3508 = vmatprep.subr.bf16.mxu0 %v3297
    %3509 = vmatpush2.bf16.msra.mxu0 %v3296
    %3510 = vmatprep.subr.bf16.mxu0 %v3289
    %3511 = vmatpush2.bf16.msra.mxu0 %v3288
    %3512 = vmatprep.mubr.bf16.mxu0 %v2711
    %3513 = vmatmul.mubr.bf16.gmra.mxu0 %v2710
    %v3514 = vpop.f32.mrf.mxu0
    %v3515 = vadd.f32 0.0, %v3514
    %v3516 = vpop.f32.mrf.mxu0
    %v3517 = vadd.f32 0.0, %v3516
    %v3518 = vpop.f32.mrf.mxu0
    %v3519 = vpop.f32.mrf.mxu0
    %3520 = vdwg.mxu0
    %3521 = vmatprep.subr.bf16.mxu0 %v3283
    %3522 = vmatpush1.bf16.msra.mxu0 %v3282
    %3523 = vmatprep.subr.bf16.mxu0 %v3275
    %3524 = vmatpush1.bf16.msra.mxu0 %v3274
    %3525 = vmatprep.subr.bf16.mxu0 %v3267
    %3526 = vmatpush1.bf16.msra.mxu0 %v3266
    %3527 = vmatprep.subr.bf16.mxu0 %v3259
    %3528 = vmatpush1.bf16.msra.mxu0 %v3258
    %3529 = vmatprep.subr.bf16.mxu0 %v3251
    %3530 = vmatpush1.bf16.msra.mxu0 %v3250
    %3531 = vmatprep.subr.bf16.mxu0 %v3243
    %3532 = vmatpush1.bf16.msra.mxu0 %v3242
    %3533 = vmatprep.subr.bf16.mxu0 %v3235
    %3534 = vmatpush1.bf16.msra.mxu0 %v3234
    %3535 = vmatprep.subr.bf16.mxu0 %v3227
    %3536 = vmatpush1.bf16.msra.mxu0 %v3226
    %3537 = vmatprep.subr.bf16.mxu0 %v3347
    %3538 = vmatpush2.bf16.msra.mxu0 %v3346
    %3539 = vmatprep.subr.bf16.mxu0 %v3339
    %3540 = vmatpush2.bf16.msra.mxu0 %v3338
    %3541 = vmatprep.subr.bf16.mxu0 %v3331
    %3542 = vmatpush2.bf16.msra.mxu0 %v3330
    %3543 = vmatprep.subr.bf16.mxu0 %v3323
    %3544 = vmatpush2.bf16.msra.mxu0 %v3322
    %3545 = vmatprep.subr.bf16.mxu0 %v3315
    %3546 = vmatpush2.bf16.msra.mxu0 %v3314
    %3547 = vmatprep.subr.bf16.mxu0 %v3307
    %3548 = vmatpush2.bf16.msra.mxu0 %v3306
    %3549 = vmatprep.subr.bf16.mxu0 %v3299
    %3550 = vmatpush2.bf16.msra.mxu0 %v3298
    %3551 = vmatprep.subr.bf16.mxu0 %v3291
    %3552 = vmatpush2.bf16.msra.mxu0 %v3290
    %3553 = vmatprep.mubr.bf16.mxu0 %v2711
    %3554 = vmatmul.mubr.bf16.gmra.mxu0 %v2710
    %v3555 = vpop.f32.mrf.mxu0
    %v3556 = vadd.f32 0.0, %v3555
    %v3557 = vpop.f32.mrf.mxu0
    %v3558 = vadd.f32 0.0, %v3557
    %v3559 = vpop.f32.mrf.mxu0
    %v3560 = vpop.f32.mrf.mxu0
    %3561 = vdwg.mxu0
    %3562 = vmatprep.subr.bf16.mxu0 %v3285
    %3563 = vmatpush1.bf16.msra.mxu0 %v3284
    %3564 = vmatprep.subr.bf16.mxu0 %v3277
    %3565 = vmatpush1.bf16.msra.mxu0 %v3276
    %3566 = vmatprep.subr.bf16.mxu0 %v3269
    %3567 = vmatpush1.bf16.msra.mxu0 %v3268
    %3568 = vmatprep.subr.bf16.mxu0 %v3261
    %3569 = vmatpush1.bf16.msra.mxu0 %v3260
    %3570 = vmatprep.subr.bf16.mxu0 %v3253
    %3571 = vmatpush1.bf16.msra.mxu0 %v3252
    %3572 = vmatprep.subr.bf16.mxu0 %v3245
    %3573 = vmatpush1.bf16.msra.mxu0 %v3244
    %3574 = vmatprep.subr.bf16.mxu0 %v3237
    %3575 = vmatpush1.bf16.msra.mxu0 %v3236
    %3576 = vmatprep.subr.bf16.mxu0 %v3229
    %3577 = vmatpush1.bf16.msra.mxu0 %v3228
    %3578 = vmatprep.subr.bf16.mxu0 %v3349
    %3579 = vmatpush2.bf16.msra.mxu0 %v3348
    %3580 = vmatprep.subr.bf16.mxu0 %v3341
    %3581 = vmatpush2.bf16.msra.mxu0 %v3340
    %3582 = vmatprep.subr.bf16.mxu0 %v3333
    %3583 = vmatpush2.bf16.msra.mxu0 %v3332
    %3584 = vmatprep.subr.bf16.mxu0 %v3325
    %3585 = vmatpush2.bf16.msra.mxu0 %v3324
    %3586 = vmatprep.subr.bf16.mxu0 %v3317
    %3587 = vmatpush2.bf16.msra.mxu0 %v3316
    %3588 = vmatprep.subr.bf16.mxu0 %v3309
    %3589 = vmatpush2.bf16.msra.mxu0 %v3308
    %3590 = vmatprep.subr.bf16.mxu0 %v3301
    %3591 = vmatpush2.bf16.msra.mxu0 %v3300
    %3592 = vmatprep.subr.bf16.mxu0 %v3293
    %3593 = vmatpush2.bf16.msra.mxu0 %v3292
    %3594 = vmatprep.mubr.bf16.mxu0 %v2711
    %3595 = vmatmul.mubr.bf16.gmra.mxu0 %v2710
    %v3596 = vpop.f32.mrf.mxu0
    %v3597 = vadd.f32 0.0, %v3596
    %v3598 = vpop.f32.mrf.mxu0
    %v3599 = vadd.f32 0.0, %v3598
    %v3600 = vpop.f32.mrf.mxu0
    %v3601 = vpop.f32.mrf.mxu0
    %3602 = vdwg.mxu0
    %3603 = vmatprep.subr.bf16.mxu0 %v3287
    %3604 = vmatpush1.bf16.msra.mxu0 %v3286
    %3605 = vmatprep.subr.bf16.mxu0 %v3279
    %3606 = vmatpush1.bf16.msra.mxu0 %v3278
    %3607 = vmatprep.subr.bf16.mxu0 %v3271
    %3608 = vmatpush1.bf16.msra.mxu0 %v3270
    %3609 = vmatprep.subr.bf16.mxu0 %v3263
    %3610 = vmatpush1.bf16.msra.mxu0 %v3262
    %3611 = vmatprep.subr.bf16.mxu0 %v3255
    %3612 = vmatpush1.bf16.msra.mxu0 %v3254
    %3613 = vmatprep.subr.bf16.mxu0 %v3247
    %3614 = vmatpush1.bf16.msra.mxu0 %v3246
    %3615 = vmatprep.subr.bf16.mxu0 %v3239
    %3616 = vmatpush1.bf16.msra.mxu0 %v3238
    %3617 = vmatprep.subr.bf16.mxu0 %v3231
    %3618 = vmatpush1.bf16.msra.mxu0 %v3230
    %3619 = vmatprep.subr.bf16.mxu0 %v3351
    %3620 = vmatpush2.bf16.msra.mxu0 %v3350
    %3621 = vmatprep.subr.bf16.mxu0 %v3343
    %3622 = vmatpush2.bf16.msra.mxu0 %v3342
    %3623 = vmatprep.subr.bf16.mxu0 %v3335
    %3624 = vmatpush2.bf16.msra.mxu0 %v3334
    %3625 = vmatprep.subr.bf16.mxu0 %v3327
    %3626 = vmatpush2.bf16.msra.mxu0 %v3326
    %3627 = vmatprep.subr.bf16.mxu0 %v3319
    %3628 = vmatpush2.bf16.msra.mxu0 %v3318
    %3629 = vmatprep.subr.bf16.mxu0 %v3311
    %3630 = vmatpush2.bf16.msra.mxu0 %v3310
    %3631 = vmatprep.subr.bf16.mxu0 %v3303
    %3632 = vmatpush2.bf16.msra.mxu0 %v3302
    %3633 = vmatprep.subr.bf16.mxu0 %v3295
    %3634 = vmatpush2.bf16.msra.mxu0 %v3294
    %3635 = vmatprep.mubr.bf16.mxu0 %v2711
    %3636 = vmatmul.mubr.bf16.gmra.mxu0 %v2710
    %v3637 = vpop.f32.mrf.mxu0
    %v3638 = vadd.f32 0.0, %v3637
    %v3639 = vpop.f32.mrf.mxu0
    %v3640 = vadd.f32 0.0, %v3639
    %v3641 = vpop.f32.mrf.mxu0
    %v3642 = vpop.f32.mrf.mxu0
    %3643 = vdwg.mxu0
    %v3644 = vadd.f32 %v2702, %v3515
    %v3645 = vadd.f32 %v2703, %v3517
    %v3646 = vadd.f32 %v2704, %v3556
    %v3647 = vadd.f32 %v2705, %v3558
    %v3648 = vadd.f32 %v2706, %v3597
    %v3649 = vadd.f32 %v2707, %v3599
    %v3650 = vadd.f32 %v2708, %v3638
    %v3651 = vadd.f32 %v2709, %v3640
    %v3652 = vxor.u32 %v3644, 2147483648
    %v3653 = vxor.u32 %v3645, 2147483648
    %v3654 = vxor.u32 %v3646, 2147483648
    %v3655 = vxor.u32 %v3647, 2147483648
    %v3656 = vxor.u32 %v3648, 2147483648
    %v3657 = vxor.u32 %v3649, 2147483648
    %v3658 = vmul.f32 %v3652, 1.442695
    %v3659 = vpow.pop %v3658
    %v3660 = vmul.f32 %v3653, 1.442695
    %v3661 = vpow.pop %v3660
    %v3662 = vmul.f32 %v3654, 1.442695
    %v3663 = vpow.pop %v3662
    %v3664 = vmul.f32 %v3655, 1.442695
    %v3665 = vpow.pop %v3664
    %v3666 = vmul.f32 %v3656, 1.442695
    %v3667 = vpow.pop %v3666
    %v3668 = vmul.f32 %v3657, 1.442695
    %v3669 = vpow.pop %v3668
    %v3670 = vadd.f32 %v3659, 1.0
    %v3671 = vadd.f32 %v3661, 1.0
    %v3672 = vadd.f32 %v3663, 1.0
    %v3673 = vadd.f32 %v3665, 1.0
    %v3674 = vadd.f32 %v3667, 1.0
    %v3675 = vadd.f32 %v3669, 1.0
    %v3676 = vrcp.pop %v3670
    %v3677 = vmul.f32 1.0, %v3676
    %v3678 = vrcp.pop %v3671
    %v3679 = vmul.f32 1.0, %v3678
    %v3680 = vrcp.pop %v3672
    %v3681 = vmul.f32 1.0, %v3680
    %v3682 = vrcp.pop %v3673
    %v3683 = vmul.f32 1.0, %v3682
    %v3684 = vrcp.pop %v3674
    %v3685 = vmul.f32 1.0, %v3684
    %v3686 = vrcp.pop %v3675
    %v3687 = vmul.f32 1.0, %v3686
    %v3688 = vtanh.pop %v3650
    %v3689 = vtanh.pop %v3651
    %v3690 = vmul.f32 %v3681, %v2691
    %v3691 = vmul.f32 %v3683, %v2692
    %v3692 = vmul.f32 %v3677, %v3688
    %v3693 = vmul.f32 %v3679, %v3689
    %v3694 = vadd.f32 %v3690, %v3692
    %v3695 = vadd.f32 %v3691, %v3693
    %v3696 = vtanh.pop %v3694
    %v3697 = vtanh.pop %v3695
    %v3698 = vmul.f32 %v3685, %v3696
    %v3699 = vmul.f32 %v3687, %v3697
    %v3701 = vrot.slane %v3698, 1
    %3703 = vst [vmem:[#allocation3 + $0x2] sm:$0x1] %v3701
    %3704 = vst [vmem:[#allocation3 + $0xd] sm:$0x1] %v3699
    %v3705 = vld [vmem:[#allocation2 + $0xc0] sm:$0xff]
    %v3706 = vld [vmem:[#allocation2 + $0xc8] sm:$0xff]
    %v3707 = vld [vmem:[#allocation2 + $0xd0] sm:$0xff]
    %v3708 = vld [vmem:[#allocation2 + $0xd8] sm:$0xff]
    %v3709 = vld [vmem:[#allocation2 + $0xe0] sm:$0xff]
    %v3710 = vld [vmem:[#allocation2 + $0xe8] sm:$0xff]
    %v3711 = vld [vmem:[#allocation2 + $0xf0] sm:$0xff]
    %v3712 = vld [vmem:[#allocation2 + $0xf8] sm:$0xff]
    %v3713 = vpack.c.bf16 %v3698, %v3698
    %v3714 = vpack.c.bf16 %v3699, %v3699
    %v3715 = vld [vmem:[#allocation7] sm:$0xff]
    %v3716 = vld [vmem:[#allocation7 + $0x8] sm:$0xff]
    %v3717 = vld [vmem:[#allocation7 + $0x10] sm:$0xff]
    %v3718 = vld [vmem:[#allocation7 + $0x18] sm:$0xff]
    %v3719 = vld [vmem:[#allocation7 + $0x20] sm:$0xff]
    %v3720 = vld [vmem:[#allocation7 + $0x28] sm:$0xff]
    %v3721 = vld [vmem:[#allocation7 + $0x30] sm:$0xff]
    %v3722 = vld [vmem:[#allocation7 + $0x38] sm:$0xff]
    %v3723 = vld [vmem:[#allocation7 + $0x40] sm:$0xff]
    %v3724 = vld [vmem:[#allocation7 + $0x48] sm:$0xff]
    %v3725 = vld [vmem:[#allocation7 + $0x50] sm:$0xff]
    %v3726 = vld [vmem:[#allocation7 + $0x58] sm:$0xff]
    %v3727 = vld [vmem:[#allocation7 + $0x60] sm:$0xff]
    %v3728 = vld [vmem:[#allocation7 + $0x68] sm:$0xff]
    %v3729 = vld [vmem:[#allocation7 + $0x70] sm:$0xff]
    %v3730 = vld [vmem:[#allocation7 + $0x78] sm:$0xff]
    %v3731 = vld [vmem:[#allocation7 + $0x80] sm:$0xff]
    %v3732 = vld [vmem:[#allocation7 + $0x88] sm:$0xff]
    %v3733 = vld [vmem:[#allocation7 + $0x90] sm:$0xff]
    %v3734 = vld [vmem:[#allocation7 + $0x98] sm:$0xff]
    %v3735 = vld [vmem:[#allocation7 + $0xa0] sm:$0xff]
    %v3736 = vld [vmem:[#allocation7 + $0xa8] sm:$0xff]
    %v3737 = vld [vmem:[#allocation7 + $0xb0] sm:$0xff]
    %v3738 = vld [vmem:[#allocation7 + $0xb8] sm:$0xff]
    %v3739 = vld [vmem:[#allocation7 + $0xc0] sm:$0xff]
    %v3740 = vld [vmem:[#allocation7 + $0xc8] sm:$0xff]
    %v3741 = vld [vmem:[#allocation7 + $0xd0] sm:$0xff]
    %v3742 = vld [vmem:[#allocation7 + $0xd8] sm:$0xff]
    %v3743 = vld [vmem:[#allocation7 + $0xe0] sm:$0xff]
    %v3744 = vld [vmem:[#allocation7 + $0xe8] sm:$0xff]
    %v3745 = vld [vmem:[#allocation7 + $0xf0] sm:$0xff]
    %v3746 = vld [vmem:[#allocation7 + $0xf8] sm:$0xff]
    %v3747 = vld [vmem:[#allocation7 + $0x100] sm:$0xff]
    %v3748 = vld [vmem:[#allocation7 + $0x108] sm:$0xff]
    %v3749 = vld [vmem:[#allocation7 + $0x110] sm:$0xff]
    %v3750 = vld [vmem:[#allocation7 + $0x118] sm:$0xff]
    %v3751 = vld [vmem:[#allocation7 + $0x120] sm:$0xff]
    %v3752 = vld [vmem:[#allocation7 + $0x128] sm:$0xff]
    %v3753 = vld [vmem:[#allocation7 + $0x130] sm:$0xff]
    %v3754 = vld [vmem:[#allocation7 + $0x138] sm:$0xff]
    %v3755 = vld [vmem:[#allocation7 + $0x140] sm:$0xff]
    %v3756 = vld [vmem:[#allocation7 + $0x148] sm:$0xff]
    %v3757 = vld [vmem:[#allocation7 + $0x150] sm:$0xff]
    %v3758 = vld [vmem:[#allocation7 + $0x158] sm:$0xff]
    %v3759 = vld [vmem:[#allocation7 + $0x160] sm:$0xff]
    %v3760 = vld [vmem:[#allocation7 + $0x168] sm:$0xff]
    %v3761 = vld [vmem:[#allocation7 + $0x170] sm:$0xff]
    %v3762 = vld [vmem:[#allocation7 + $0x178] sm:$0xff]
    %v3763 = vld [vmem:[#allocation7 + $0x180] sm:$0xff]
    %v3764 = vld [vmem:[#allocation7 + $0x188] sm:$0xff]
    %v3765 = vld [vmem:[#allocation7 + $0x190] sm:$0xff]
    %v3766 = vld [vmem:[#allocation7 + $0x198] sm:$0xff]
    %v3767 = vld [vmem:[#allocation7 + $0x1a0] sm:$0xff]
    %v3768 = vld [vmem:[#allocation7 + $0x1a8] sm:$0xff]
    %v3769 = vld [vmem:[#allocation7 + $0x1b0] sm:$0xff]
    %v3770 = vld [vmem:[#allocation7 + $0x1b8] sm:$0xff]
    %v3771 = vld [vmem:[#allocation7 + $0x1c0] sm:$0xff]
    %v3772 = vld [vmem:[#allocation7 + $0x1c8] sm:$0xff]
    %v3773 = vld [vmem:[#allocation7 + $0x1d0] sm:$0xff]
    %v3774 = vld [vmem:[#allocation7 + $0x1d8] sm:$0xff]
    %v3775 = vld [vmem:[#allocation7 + $0x1e0] sm:$0xff]
    %v3776 = vld [vmem:[#allocation7 + $0x1e8] sm:$0xff]
    %v3777 = vld [vmem:[#allocation7 + $0x1f0] sm:$0xff]
    %v3778 = vld [vmem:[#allocation7 + $0x1f8] sm:$0xff]
    %v3779 = vld [vmem:[#allocation7 + $0x200] sm:$0xff]
    %v3780 = vld [vmem:[#allocation7 + $0x208] sm:$0xff]
    %v3781 = vld [vmem:[#allocation7 + $0x210] sm:$0xff]
    %v3782 = vld [vmem:[#allocation7 + $0x218] sm:$0xff]
    %v3783 = vld [vmem:[#allocation7 + $0x220] sm:$0xff]
    %v3784 = vld [vmem:[#allocation7 + $0x228] sm:$0xff]
    %v3785 = vld [vmem:[#allocation7 + $0x230] sm:$0xff]
    %v3786 = vld [vmem:[#allocation7 + $0x238] sm:$0xff]
    %v3787 = vld [vmem:[#allocation7 + $0x240] sm:$0xff]
    %v3788 = vld [vmem:[#allocation7 + $0x248] sm:$0xff]
    %v3789 = vld [vmem:[#allocation7 + $0x250] sm:$0xff]
    %v3790 = vld [vmem:[#allocation7 + $0x258] sm:$0xff]
    %v3791 = vld [vmem:[#allocation7 + $0x260] sm:$0xff]
    %v3792 = vld [vmem:[#allocation7 + $0x268] sm:$0xff]
    %v3793 = vld [vmem:[#allocation7 + $0x270] sm:$0xff]
    %v3794 = vld [vmem:[#allocation7 + $0x278] sm:$0xff]
    %v3795 = vld [vmem:[#allocation7 + $0x280] sm:$0xff]
    %v3796 = vld [vmem:[#allocation7 + $0x288] sm:$0xff]
    %v3797 = vld [vmem:[#allocation7 + $0x290] sm:$0xff]
    %v3798 = vld [vmem:[#allocation7 + $0x298] sm:$0xff]
    %v3799 = vld [vmem:[#allocation7 + $0x2a0] sm:$0xff]
    %v3800 = vld [vmem:[#allocation7 + $0x2a8] sm:$0xff]
    %v3801 = vld [vmem:[#allocation7 + $0x2b0] sm:$0xff]
    %v3802 = vld [vmem:[#allocation7 + $0x2b8] sm:$0xff]
    %v3803 = vld [vmem:[#allocation7 + $0x2c0] sm:$0xff]
    %v3804 = vld [vmem:[#allocation7 + $0x2c8] sm:$0xff]
    %v3805 = vld [vmem:[#allocation7 + $0x2d0] sm:$0xff]
    %v3806 = vld [vmem:[#allocation7 + $0x2d8] sm:$0xff]
    %v3807 = vld [vmem:[#allocation7 + $0x2e0] sm:$0xff]
    %v3808 = vld [vmem:[#allocation7 + $0x2e8] sm:$0xff]
    %v3809 = vld [vmem:[#allocation7 + $0x2f0] sm:$0xff]
    %v3810 = vld [vmem:[#allocation7 + $0x2f8] sm:$0xff]
    %v3811 = vld [vmem:[#allocation7 + $0x300] sm:$0xff]
    %v3812 = vld [vmem:[#allocation7 + $0x308] sm:$0xff]
    %v3813 = vld [vmem:[#allocation7 + $0x310] sm:$0xff]
    %v3814 = vld [vmem:[#allocation7 + $0x318] sm:$0xff]
    %v3815 = vld [vmem:[#allocation7 + $0x320] sm:$0xff]
    %v3816 = vld [vmem:[#allocation7 + $0x328] sm:$0xff]
    %v3817 = vld [vmem:[#allocation7 + $0x330] sm:$0xff]
    %v3818 = vld [vmem:[#allocation7 + $0x338] sm:$0xff]
    %v3819 = vld [vmem:[#allocation7 + $0x340] sm:$0xff]
    %v3820 = vld [vmem:[#allocation7 + $0x348] sm:$0xff]
    %v3821 = vld [vmem:[#allocation7 + $0x350] sm:$0xff]
    %v3822 = vld [vmem:[#allocation7 + $0x358] sm:$0xff]
    %v3823 = vld [vmem:[#allocation7 + $0x360] sm:$0xff]
    %v3824 = vld [vmem:[#allocation7 + $0x368] sm:$0xff]
    %v3825 = vld [vmem:[#allocation7 + $0x370] sm:$0xff]
    %v3826 = vld [vmem:[#allocation7 + $0x378] sm:$0xff]
    %v3827 = vld [vmem:[#allocation7 + $0x380] sm:$0xff]
    %v3828 = vld [vmem:[#allocation7 + $0x388] sm:$0xff]
    %v3829 = vld [vmem:[#allocation7 + $0x390] sm:$0xff]
    %v3830 = vld [vmem:[#allocation7 + $0x398] sm:$0xff]
    %v3831 = vld [vmem:[#allocation7 + $0x3a0] sm:$0xff]
    %v3832 = vld [vmem:[#allocation7 + $0x3a8] sm:$0xff]
    %v3833 = vld [vmem:[#allocation7 + $0x3b0] sm:$0xff]
    %v3834 = vld [vmem:[#allocation7 + $0x3b8] sm:$0xff]
    %v3835 = vld [vmem:[#allocation7 + $0x3c0] sm:$0xff]
    %v3836 = vld [vmem:[#allocation7 + $0x3c8] sm:$0xff]
    %v3837 = vld [vmem:[#allocation7 + $0x3d0] sm:$0xff]
    %v3838 = vld [vmem:[#allocation7 + $0x3d8] sm:$0xff]
    %v3839 = vld [vmem:[#allocation7 + $0x3e0] sm:$0xff]
    %v3840 = vld [vmem:[#allocation7 + $0x3e8] sm:$0xff]
    %v3841 = vld [vmem:[#allocation7 + $0x3f0] sm:$0xff]
    %v3842 = vld [vmem:[#allocation7 + $0x3f8] sm:$0xff]
    %v3971 = vunpack.c.l.b16 %v3715
    %v3972 = vunpack.c.h.b16 %v3715
    %v3973 = vunpack.c.l.b16 %v3716
    %v3974 = vunpack.c.h.b16 %v3716
    %v3975 = vunpack.c.l.b16 %v3717
    %v3976 = vunpack.c.h.b16 %v3717
    %v3977 = vunpack.c.l.b16 %v3718
    %v3978 = vunpack.c.h.b16 %v3718
    %v3979 = vunpack.c.l.b16 %v3719
    %v3980 = vunpack.c.h.b16 %v3719
    %v3981 = vunpack.c.l.b16 %v3720
    %v3982 = vunpack.c.h.b16 %v3720
    %v3983 = vunpack.c.l.b16 %v3721
    %v3984 = vunpack.c.h.b16 %v3721
    %v3985 = vunpack.c.l.b16 %v3722
    %v3986 = vunpack.c.h.b16 %v3722
    %v3987 = vunpack.c.l.b16 %v3723
    %v3988 = vunpack.c.h.b16 %v3723
    %v3989 = vunpack.c.l.b16 %v3724
    %v3990 = vunpack.c.h.b16 %v3724
    %v3991 = vunpack.c.l.b16 %v3725
    %v3992 = vunpack.c.h.b16 %v3725
    %v3993 = vunpack.c.l.b16 %v3726
    %v3994 = vunpack.c.h.b16 %v3726
    %v3995 = vunpack.c.l.b16 %v3727
    %v3996 = vunpack.c.h.b16 %v3727
    %v3997 = vunpack.c.l.b16 %v3728
    %v3998 = vunpack.c.h.b16 %v3728
    %v3999 = vunpack.c.l.b16 %v3729
    %v4000 = vunpack.c.h.b16 %v3729
    %v4001 = vunpack.c.l.b16 %v3730
    %v4002 = vunpack.c.h.b16 %v3730
    %v4003 = vunpack.c.l.b16 %v3731
    %v4004 = vunpack.c.h.b16 %v3731
    %v4005 = vunpack.c.l.b16 %v3732
    %v4006 = vunpack.c.h.b16 %v3732
    %v4007 = vunpack.c.l.b16 %v3733
    %v4008 = vunpack.c.h.b16 %v3733
    %v4009 = vunpack.c.l.b16 %v3734
    %v4010 = vunpack.c.h.b16 %v3734
    %v4011 = vunpack.c.l.b16 %v3735
    %v4012 = vunpack.c.h.b16 %v3735
    %v4013 = vunpack.c.l.b16 %v3736
    %v4014 = vunpack.c.h.b16 %v3736
    %v4015 = vunpack.c.l.b16 %v3737
    %v4016 = vunpack.c.h.b16 %v3737
    %v4017 = vunpack.c.l.b16 %v3738
    %v4018 = vunpack.c.h.b16 %v3738
    %v4019 = vunpack.c.l.b16 %v3739
    %v4020 = vunpack.c.h.b16 %v3739
    %v4021 = vunpack.c.l.b16 %v3740
    %v4022 = vunpack.c.h.b16 %v3740
    %v4023 = vunpack.c.l.b16 %v3741
    %v4024 = vunpack.c.h.b16 %v3741
    %v4025 = vunpack.c.l.b16 %v3742
    %v4026 = vunpack.c.h.b16 %v3742
    %v4027 = vunpack.c.l.b16 %v3743
    %v4028 = vunpack.c.h.b16 %v3743
    %v4029 = vunpack.c.l.b16 %v3744
    %v4030 = vunpack.c.h.b16 %v3744
    %v4031 = vunpack.c.l.b16 %v3745
    %v4032 = vunpack.c.h.b16 %v3745
    %v4033 = vunpack.c.l.b16 %v3746
    %v4034 = vunpack.c.h.b16 %v3746
    %v4035 = vunpack.c.l.b16 %v3747
    %v4036 = vunpack.c.h.b16 %v3747
    %v4037 = vunpack.c.l.b16 %v3748
    %v4038 = vunpack.c.h.b16 %v3748
    %v4039 = vunpack.c.l.b16 %v3749
    %v4040 = vunpack.c.h.b16 %v3749
    %v4041 = vunpack.c.l.b16 %v3750
    %v4042 = vunpack.c.h.b16 %v3750
    %v4043 = vunpack.c.l.b16 %v3751
    %v4044 = vunpack.c.h.b16 %v3751
    %v4045 = vunpack.c.l.b16 %v3752
    %v4046 = vunpack.c.h.b16 %v3752
    %v4047 = vunpack.c.l.b16 %v3753
    %v4048 = vunpack.c.h.b16 %v3753
    %v4049 = vunpack.c.l.b16 %v3754
    %v4050 = vunpack.c.h.b16 %v3754
    %v4051 = vunpack.c.l.b16 %v3755
    %v4052 = vunpack.c.h.b16 %v3755
    %v4053 = vunpack.c.l.b16 %v3756
    %v4054 = vunpack.c.h.b16 %v3756
    %v4055 = vunpack.c.l.b16 %v3757
    %v4056 = vunpack.c.h.b16 %v3757
    %v4057 = vunpack.c.l.b16 %v3758
    %v4058 = vunpack.c.h.b16 %v3758
    %v4059 = vunpack.c.l.b16 %v3759
    %v4060 = vunpack.c.h.b16 %v3759
    %v4061 = vunpack.c.l.b16 %v3760
    %v4062 = vunpack.c.h.b16 %v3760
    %v4063 = vunpack.c.l.b16 %v3761
    %v4064 = vunpack.c.h.b16 %v3761
    %v4065 = vunpack.c.l.b16 %v3762
    %v4066 = vunpack.c.h.b16 %v3762
    %v4067 = vunpack.c.l.b16 %v3763
    %v4068 = vunpack.c.h.b16 %v3763
    %v4069 = vunpack.c.l.b16 %v3764
    %v4070 = vunpack.c.h.b16 %v3764
    %v4071 = vunpack.c.l.b16 %v3765
    %v4072 = vunpack.c.h.b16 %v3765
    %v4073 = vunpack.c.l.b16 %v3766
    %v4074 = vunpack.c.h.b16 %v3766
    %v4075 = vunpack.c.l.b16 %v3767
    %v4076 = vunpack.c.h.b16 %v3767
    %v4077 = vunpack.c.l.b16 %v3768
    %v4078 = vunpack.c.h.b16 %v3768
    %v4079 = vunpack.c.l.b16 %v3769
    %v4080 = vunpack.c.h.b16 %v3769
    %v4081 = vunpack.c.l.b16 %v3770
    %v4082 = vunpack.c.h.b16 %v3770
    %v4083 = vunpack.c.l.b16 %v3771
    %v4084 = vunpack.c.h.b16 %v3771
    %v4085 = vunpack.c.l.b16 %v3772
    %v4086 = vunpack.c.h.b16 %v3772
    %v4087 = vunpack.c.l.b16 %v3773
    %v4088 = vunpack.c.h.b16 %v3773
    %v4089 = vunpack.c.l.b16 %v3774
    %v4090 = vunpack.c.h.b16 %v3774
    %v4091 = vunpack.c.l.b16 %v3775
    %v4092 = vunpack.c.h.b16 %v3775
    %v4093 = vunpack.c.l.b16 %v3776
    %v4094 = vunpack.c.h.b16 %v3776
    %v4095 = vunpack.c.l.b16 %v3777
    %v4096 = vunpack.c.h.b16 %v3777
    %v4097 = vunpack.c.l.b16 %v3778
    %v4098 = vunpack.c.h.b16 %v3778
    %v4099 = vunpack.c.l.b16 %v3779
    %v4100 = vunpack.c.h.b16 %v3779
    %v4101 = vunpack.c.l.b16 %v3780
    %v4102 = vunpack.c.h.b16 %v3780
    %v4103 = vunpack.c.l.b16 %v3781
    %v4104 = vunpack.c.h.b16 %v3781
    %v4105 = vunpack.c.l.b16 %v3782
    %v4106 = vunpack.c.h.b16 %v3782
    %v4107 = vunpack.c.l.b16 %v3783
    %v4108 = vunpack.c.h.b16 %v3783
    %v4109 = vunpack.c.l.b16 %v3784
    %v4110 = vunpack.c.h.b16 %v3784
    %v4111 = vunpack.c.l.b16 %v3785
    %v4112 = vunpack.c.h.b16 %v3785
    %v4113 = vunpack.c.l.b16 %v3786
    %v4114 = vunpack.c.h.b16 %v3786
    %v4115 = vunpack.c.l.b16 %v3787
    %v4116 = vunpack.c.h.b16 %v3787
    %v4117 = vunpack.c.l.b16 %v3788
    %v4118 = vunpack.c.h.b16 %v3788
    %v4119 = vunpack.c.l.b16 %v3789
    %v4120 = vunpack.c.h.b16 %v3789
    %v4121 = vunpack.c.l.b16 %v3790
    %v4122 = vunpack.c.h.b16 %v3790
    %v4123 = vunpack.c.l.b16 %v3791
    %v4124 = vunpack.c.h.b16 %v3791
    %v4125 = vunpack.c.l.b16 %v3792
    %v4126 = vunpack.c.h.b16 %v3792
    %v4127 = vunpack.c.l.b16 %v3793
    %v4128 = vunpack.c.h.b16 %v3793
    %v4129 = vunpack.c.l.b16 %v3794
    %v4130 = vunpack.c.h.b16 %v3794
    %v4131 = vunpack.c.l.b16 %v3795
    %v4132 = vunpack.c.h.b16 %v3795
    %v4133 = vunpack.c.l.b16 %v3796
    %v4134 = vunpack.c.h.b16 %v3796
    %v4135 = vunpack.c.l.b16 %v3797
    %v4136 = vunpack.c.h.b16 %v3797
    %v4137 = vunpack.c.l.b16 %v3798
    %v4138 = vunpack.c.h.b16 %v3798
    %v4139 = vunpack.c.l.b16 %v3799
    %v4140 = vunpack.c.h.b16 %v3799
    %v4141 = vunpack.c.l.b16 %v3800
    %v4142 = vunpack.c.h.b16 %v3800
    %v4143 = vunpack.c.l.b16 %v3801
    %v4144 = vunpack.c.h.b16 %v3801
    %v4145 = vunpack.c.l.b16 %v3802
    %v4146 = vunpack.c.h.b16 %v3802
    %v4147 = vunpack.c.l.b16 %v3803
    %v4148 = vunpack.c.h.b16 %v3803
    %v4149 = vunpack.c.l.b16 %v3804
    %v4150 = vunpack.c.h.b16 %v3804
    %v4151 = vunpack.c.l.b16 %v3805
    %v4152 = vunpack.c.h.b16 %v3805
    %v4153 = vunpack.c.l.b16 %v3806
    %v4154 = vunpack.c.h.b16 %v3806
    %v4155 = vunpack.c.l.b16 %v3807
    %v4156 = vunpack.c.h.b16 %v3807
    %v4157 = vunpack.c.l.b16 %v3808
    %v4158 = vunpack.c.h.b16 %v3808
    %v4159 = vunpack.c.l.b16 %v3809
    %v4160 = vunpack.c.h.b16 %v3809
    %v4161 = vunpack.c.l.b16 %v3810
    %v4162 = vunpack.c.h.b16 %v3810
    %v4163 = vunpack.c.l.b16 %v3811
    %v4164 = vunpack.c.h.b16 %v3811
    %v4165 = vunpack.c.l.b16 %v3812
    %v4166 = vunpack.c.h.b16 %v3812
    %v4167 = vunpack.c.l.b16 %v3813
    %v4168 = vunpack.c.h.b16 %v3813
    %v4169 = vunpack.c.l.b16 %v3814
    %v4170 = vunpack.c.h.b16 %v3814
    %v4171 = vunpack.c.l.b16 %v3815
    %v4172 = vunpack.c.h.b16 %v3815
    %v4173 = vunpack.c.l.b16 %v3816
    %v4174 = vunpack.c.h.b16 %v3816
    %v4175 = vunpack.c.l.b16 %v3817
    %v4176 = vunpack.c.h.b16 %v3817
    %v4177 = vunpack.c.l.b16 %v3818
    %v4178 = vunpack.c.h.b16 %v3818
    %v4179 = vunpack.c.l.b16 %v3819
    %v4180 = vunpack.c.h.b16 %v3819
    %v4181 = vunpack.c.l.b16 %v3820
    %v4182 = vunpack.c.h.b16 %v3820
    %v4183 = vunpack.c.l.b16 %v3821
    %v4184 = vunpack.c.h.b16 %v3821
    %v4185 = vunpack.c.l.b16 %v3822
    %v4186 = vunpack.c.h.b16 %v3822
    %v4187 = vunpack.c.l.b16 %v3823
    %v4188 = vunpack.c.h.b16 %v3823
    %v4189 = vunpack.c.l.b16 %v3824
    %v4190 = vunpack.c.h.b16 %v3824
    %v4191 = vunpack.c.l.b16 %v3825
    %v4192 = vunpack.c.h.b16 %v3825
    %v4193 = vunpack.c.l.b16 %v3826
    %v4194 = vunpack.c.h.b16 %v3826
    %v4195 = vunpack.c.l.b16 %v3827
    %v4196 = vunpack.c.h.b16 %v3827
    %v4197 = vunpack.c.l.b16 %v3828
    %v4198 = vunpack.c.h.b16 %v3828
    %v4199 = vunpack.c.l.b16 %v3829
    %v4200 = vunpack.c.h.b16 %v3829
    %v4201 = vunpack.c.l.b16 %v3830
    %v4202 = vunpack.c.h.b16 %v3830
    %v4203 = vunpack.c.l.b16 %v3831
    %v4204 = vunpack.c.h.b16 %v3831
    %v4205 = vunpack.c.l.b16 %v3832
    %v4206 = vunpack.c.h.b16 %v3832
    %v4207 = vunpack.c.l.b16 %v3833
    %v4208 = vunpack.c.h.b16 %v3833
    %v4209 = vunpack.c.l.b16 %v3834
    %v4210 = vunpack.c.h.b16 %v3834
    %v4211 = vunpack.c.l.b16 %v3835
    %v4212 = vunpack.c.h.b16 %v3835
    %v4213 = vunpack.c.l.b16 %v3836
    %v4214 = vunpack.c.h.b16 %v3836
    %v4215 = vunpack.c.l.b16 %v3837
    %v4216 = vunpack.c.h.b16 %v3837
    %v4217 = vunpack.c.l.b16 %v3838
    %v4218 = vunpack.c.h.b16 %v3838
    %v4219 = vunpack.c.l.b16 %v3839
    %v4220 = vunpack.c.h.b16 %v3839
    %v4221 = vunpack.c.l.b16 %v3840
    %v4222 = vunpack.c.h.b16 %v3840
    %v4223 = vunpack.c.l.b16 %v3841
    %v4224 = vunpack.c.h.b16 %v3841
    %v4225 = vunpack.c.l.b16 %v3842
    %v4226 = vunpack.c.h.b16 %v3842
    %v4227 = vpack.c.b16 %v3979, %v3971
    %v4228 = vpack.c.b16 %v3980, %v3972
    %v4229 = vpack.c.b16 %v3981, %v3973
    %v4230 = vpack.c.b16 %v3982, %v3974
    %v4231 = vpack.c.b16 %v3983, %v3975
    %v4232 = vpack.c.b16 %v3984, %v3976
    %v4233 = vpack.c.b16 %v3985, %v3977
    %v4234 = vpack.c.b16 %v3986, %v3978
    %v4235 = vpack.c.b16 %v3995, %v3987
    %v4236 = vpack.c.b16 %v3996, %v3988
    %v4237 = vpack.c.b16 %v3997, %v3989
    %v4238 = vpack.c.b16 %v3998, %v3990
    %v4239 = vpack.c.b16 %v3999, %v3991
    %v4240 = vpack.c.b16 %v4000, %v3992
    %v4241 = vpack.c.b16 %v4001, %v3993
    %v4242 = vpack.c.b16 %v4002, %v3994
    %v4243 = vpack.c.b16 %v4011, %v4003
    %v4244 = vpack.c.b16 %v4012, %v4004
    %v4245 = vpack.c.b16 %v4013, %v4005
    %v4246 = vpack.c.b16 %v4014, %v4006
    %v4247 = vpack.c.b16 %v4015, %v4007
    %v4248 = vpack.c.b16 %v4016, %v4008
    %v4249 = vpack.c.b16 %v4017, %v4009
    %v4250 = vpack.c.b16 %v4018, %v4010
    %v4251 = vpack.c.b16 %v4027, %v4019
    %v4252 = vpack.c.b16 %v4028, %v4020
    %v4253 = vpack.c.b16 %v4029, %v4021
    %v4254 = vpack.c.b16 %v4030, %v4022
    %v4255 = vpack.c.b16 %v4031, %v4023
    %v4256 = vpack.c.b16 %v4032, %v4024
    %v4257 = vpack.c.b16 %v4033, %v4025
    %v4258 = vpack.c.b16 %v4034, %v4026
    %v4259 = vpack.c.b16 %v4043, %v4035
    %v4260 = vpack.c.b16 %v4044, %v4036
    %v4261 = vpack.c.b16 %v4045, %v4037
    %v4262 = vpack.c.b16 %v4046, %v4038
    %v4263 = vpack.c.b16 %v4047, %v4039
    %v4264 = vpack.c.b16 %v4048, %v4040
    %v4265 = vpack.c.b16 %v4049, %v4041
    %v4266 = vpack.c.b16 %v4050, %v4042
    %v4267 = vpack.c.b16 %v4059, %v4051
    %v4268 = vpack.c.b16 %v4060, %v4052
    %v4269 = vpack.c.b16 %v4061, %v4053
    %v4270 = vpack.c.b16 %v4062, %v4054
    %v4271 = vpack.c.b16 %v4063, %v4055
    %v4272 = vpack.c.b16 %v4064, %v4056
    %v4273 = vpack.c.b16 %v4065, %v4057
    %v4274 = vpack.c.b16 %v4066, %v4058
    %v4275 = vpack.c.b16 %v4075, %v4067
    %v4276 = vpack.c.b16 %v4076, %v4068
    %v4277 = vpack.c.b16 %v4077, %v4069
    %v4278 = vpack.c.b16 %v4078, %v4070
    %v4279 = vpack.c.b16 %v4079, %v4071
    %v4280 = vpack.c.b16 %v4080, %v4072
    %v4281 = vpack.c.b16 %v4081, %v4073
    %v4282 = vpack.c.b16 %v4082, %v4074
    %v4283 = vpack.c.b16 %v4091, %v4083
    %v4284 = vpack.c.b16 %v4092, %v4084
    %v4285 = vpack.c.b16 %v4093, %v4085
    %v4286 = vpack.c.b16 %v4094, %v4086
    %v4287 = vpack.c.b16 %v4095, %v4087
    %v4288 = vpack.c.b16 %v4096, %v4088
    %v4289 = vpack.c.b16 %v4097, %v4089
    %v4290 = vpack.c.b16 %v4098, %v4090
    %v4291 = vpack.c.b16 %v4107, %v4099
    %v4292 = vpack.c.b16 %v4108, %v4100
    %v4293 = vpack.c.b16 %v4109, %v4101
    %v4294 = vpack.c.b16 %v4110, %v4102
    %v4295 = vpack.c.b16 %v4111, %v4103
    %v4296 = vpack.c.b16 %v4112, %v4104
    %v4297 = vpack.c.b16 %v4113, %v4105
    %v4298 = vpack.c.b16 %v4114, %v4106
    %v4299 = vpack.c.b16 %v4123, %v4115
    %v4300 = vpack.c.b16 %v4124, %v4116
    %v4301 = vpack.c.b16 %v4125, %v4117
    %v4302 = vpack.c.b16 %v4126, %v4118
    %v4303 = vpack.c.b16 %v4127, %v4119
    %v4304 = vpack.c.b16 %v4128, %v4120
    %v4305 = vpack.c.b16 %v4129, %v4121
    %v4306 = vpack.c.b16 %v4130, %v4122
    %v4307 = vpack.c.b16 %v4139, %v4131
    %v4308 = vpack.c.b16 %v4140, %v4132
    %v4309 = vpack.c.b16 %v4141, %v4133
    %v4310 = vpack.c.b16 %v4142, %v4134
    %v4311 = vpack.c.b16 %v4143, %v4135
    %v4312 = vpack.c.b16 %v4144, %v4136
    %v4313 = vpack.c.b16 %v4145, %v4137
    %v4314 = vpack.c.b16 %v4146, %v4138
    %v4315 = vpack.c.b16 %v4155, %v4147
    %v4316 = vpack.c.b16 %v4156, %v4148
    %v4317 = vpack.c.b16 %v4157, %v4149
    %v4318 = vpack.c.b16 %v4158, %v4150
    %v4319 = vpack.c.b16 %v4159, %v4151
    %v4320 = vpack.c.b16 %v4160, %v4152
    %v4321 = vpack.c.b16 %v4161, %v4153
    %v4322 = vpack.c.b16 %v4162, %v4154
    %v4323 = vpack.c.b16 %v4171, %v4163
    %v4324 = vpack.c.b16 %v4172, %v4164
    %v4325 = vpack.c.b16 %v4173, %v4165
    %v4326 = vpack.c.b16 %v4174, %v4166
    %v4327 = vpack.c.b16 %v4175, %v4167
    %v4328 = vpack.c.b16 %v4176, %v4168
    %v4329 = vpack.c.b16 %v4177, %v4169
    %v4330 = vpack.c.b16 %v4178, %v4170
    %v4331 = vpack.c.b16 %v4187, %v4179
    %v4332 = vpack.c.b16 %v4188, %v4180
    %v4333 = vpack.c.b16 %v4189, %v4181
    %v4334 = vpack.c.b16 %v4190, %v4182
    %v4335 = vpack.c.b16 %v4191, %v4183
    %v4336 = vpack.c.b16 %v4192, %v4184
    %v4337 = vpack.c.b16 %v4193, %v4185
    %v4338 = vpack.c.b16 %v4194, %v4186
    %v4339 = vpack.c.b16 %v4203, %v4195
    %v4340 = vpack.c.b16 %v4204, %v4196
    %v4341 = vpack.c.b16 %v4205, %v4197
    %v4342 = vpack.c.b16 %v4206, %v4198
    %v4343 = vpack.c.b16 %v4207, %v4199
    %v4344 = vpack.c.b16 %v4208, %v4200
    %v4345 = vpack.c.b16 %v4209, %v4201
    %v4346 = vpack.c.b16 %v4210, %v4202
    %v4347 = vpack.c.b16 %v4219, %v4211
    %v4348 = vpack.c.b16 %v4220, %v4212
    %v4349 = vpack.c.b16 %v4221, %v4213
    %v4350 = vpack.c.b16 %v4222, %v4214
    %v4351 = vpack.c.b16 %v4223, %v4215
    %v4352 = vpack.c.b16 %v4224, %v4216
    %v4353 = vpack.c.b16 %v4225, %v4217
    %v4354 = vpack.c.b16 %v4226, %v4218
    %4483 = vmatprep.subr.bf16.mxu0 %v4284
    %4484 = vmatpush1.bf16.msra.mxu0 %v4283
    %4485 = vmatprep.subr.bf16.mxu0 %v4276
    %4486 = vmatpush1.bf16.msra.mxu0 %v4275
    %4487 = vmatprep.subr.bf16.mxu0 %v4268
    %4488 = vmatpush1.bf16.msra.mxu0 %v4267
    %4489 = vmatprep.subr.bf16.mxu0 %v4260
    %4490 = vmatpush1.bf16.msra.mxu0 %v4259
    %4491 = vmatprep.subr.bf16.mxu0 %v4252
    %4492 = vmatpush1.bf16.msra.mxu0 %v4251
    %4493 = vmatprep.subr.bf16.mxu0 %v4244
    %4494 = vmatpush1.bf16.msra.mxu0 %v4243
    %4495 = vmatprep.subr.bf16.mxu0 %v4236
    %4496 = vmatpush1.bf16.msra.mxu0 %v4235
    %4497 = vmatprep.subr.bf16.mxu0 %v4228
    %4498 = vmatpush1.bf16.msra.mxu0 %v4227
    %4499 = vmatprep.subr.bf16.mxu0 %v4348
    %4500 = vmatpush2.bf16.msra.mxu0 %v4347
    %4501 = vmatprep.subr.bf16.mxu0 %v4340
    %4502 = vmatpush2.bf16.msra.mxu0 %v4339
    %4503 = vmatprep.subr.bf16.mxu0 %v4332
    %4504 = vmatpush2.bf16.msra.mxu0 %v4331
    %4505 = vmatprep.subr.bf16.mxu0 %v4324
    %4506 = vmatpush2.bf16.msra.mxu0 %v4323
    %4507 = vmatprep.subr.bf16.mxu0 %v4316
    %4508 = vmatpush2.bf16.msra.mxu0 %v4315
    %4509 = vmatprep.subr.bf16.mxu0 %v4308
    %4510 = vmatpush2.bf16.msra.mxu0 %v4307
    %4511 = vmatprep.subr.bf16.mxu0 %v4300
    %4512 = vmatpush2.bf16.msra.mxu0 %v4299
    %4513 = vmatprep.subr.bf16.mxu0 %v4292
    %4514 = vmatpush2.bf16.msra.mxu0 %v4291
    %4515 = vmatprep.mubr.bf16.mxu0 %v3714
    %4516 = vmatmul.mubr.bf16.gmra.mxu0 %v3713
    %v4517 = vpop.f32.mrf.mxu0
    %v4518 = vadd.f32 0.0, %v4517
    %v4519 = vpop.f32.mrf.mxu0
    %v4520 = vadd.f32 0.0, %v4519
    %v4521 = vpop.f32.mrf.mxu0
    %v4522 = vpop.f32.mrf.mxu0
    %4523 = vdwg.mxu0
    %4524 = vmatprep.subr.bf16.mxu0 %v4286
    %4525 = vmatpush1.bf16.msra.mxu0 %v4285
    %4526 = vmatprep.subr.bf16.mxu0 %v4278
    %4527 = vmatpush1.bf16.msra.mxu0 %v4277
    %4528 = vmatprep.subr.bf16.mxu0 %v4270
    %4529 = vmatpush1.bf16.msra.mxu0 %v4269
    %4530 = vmatprep.subr.bf16.mxu0 %v4262
    %4531 = vmatpush1.bf16.msra.mxu0 %v4261
    %4532 = vmatprep.subr.bf16.mxu0 %v4254
    %4533 = vmatpush1.bf16.msra.mxu0 %v4253
    %4534 = vmatprep.subr.bf16.mxu0 %v4246
    %4535 = vmatpush1.bf16.msra.mxu0 %v4245
    %4536 = vmatprep.subr.bf16.mxu0 %v4238
    %4537 = vmatpush1.bf16.msra.mxu0 %v4237
    %4538 = vmatprep.subr.bf16.mxu0 %v4230
    %4539 = vmatpush1.bf16.msra.mxu0 %v4229
    %4540 = vmatprep.subr.bf16.mxu0 %v4350
    %4541 = vmatpush2.bf16.msra.mxu0 %v4349
    %4542 = vmatprep.subr.bf16.mxu0 %v4342
    %4543 = vmatpush2.bf16.msra.mxu0 %v4341
    %4544 = vmatprep.subr.bf16.mxu0 %v4334
    %4545 = vmatpush2.bf16.msra.mxu0 %v4333
    %4546 = vmatprep.subr.bf16.mxu0 %v4326
    %4547 = vmatpush2.bf16.msra.mxu0 %v4325
    %4548 = vmatprep.subr.bf16.mxu0 %v4318
    %4549 = vmatpush2.bf16.msra.mxu0 %v4317
    %4550 = vmatprep.subr.bf16.mxu0 %v4310
    %4551 = vmatpush2.bf16.msra.mxu0 %v4309
    %4552 = vmatprep.subr.bf16.mxu0 %v4302
    %4553 = vmatpush2.bf16.msra.mxu0 %v4301
    %4554 = vmatprep.subr.bf16.mxu0 %v4294
    %4555 = vmatpush2.bf16.msra.mxu0 %v4293
    %4556 = vmatprep.mubr.bf16.mxu0 %v3714
    %4557 = vmatmul.mubr.bf16.gmra.mxu0 %v3713
    %v4558 = vpop.f32.mrf.mxu0
    %v4559 = vadd.f32 0.0, %v4558
    %v4560 = vpop.f32.mrf.mxu0
    %v4561 = vadd.f32 0.0, %v4560
    %v4562 = vpop.f32.mrf.mxu0
    %v4563 = vpop.f32.mrf.mxu0
    %4564 = vdwg.mxu0
    %4565 = vmatprep.subr.bf16.mxu0 %v4288
    %4566 = vmatpush1.bf16.msra.mxu0 %v4287
    %4567 = vmatprep.subr.bf16.mxu0 %v4280
    %4568 = vmatpush1.bf16.msra.mxu0 %v4279
    %4569 = vmatprep.subr.bf16.mxu0 %v4272
    %4570 = vmatpush1.bf16.msra.mxu0 %v4271
    %4571 = vmatprep.subr.bf16.mxu0 %v4264
    %4572 = vmatpush1.bf16.msra.mxu0 %v4263
    %4573 = vmatprep.subr.bf16.mxu0 %v4256
    %4574 = vmatpush1.bf16.msra.mxu0 %v4255
    %4575 = vmatprep.subr.bf16.mxu0 %v4248
    %4576 = vmatpush1.bf16.msra.mxu0 %v4247
    %4577 = vmatprep.subr.bf16.mxu0 %v4240
    %4578 = vmatpush1.bf16.msra.mxu0 %v4239
    %4579 = vmatprep.subr.bf16.mxu0 %v4232
    %4580 = vmatpush1.bf16.msra.mxu0 %v4231
    %4581 = vmatprep.subr.bf16.mxu0 %v4352
    %4582 = vmatpush2.bf16.msra.mxu0 %v4351
    %4583 = vmatprep.subr.bf16.mxu0 %v4344
    %4584 = vmatpush2.bf16.msra.mxu0 %v4343
    %4585 = vmatprep.subr.bf16.mxu0 %v4336
    %4586 = vmatpush2.bf16.msra.mxu0 %v4335
    %4587 = vmatprep.subr.bf16.mxu0 %v4328
    %4588 = vmatpush2.bf16.msra.mxu0 %v4327
    %4589 = vmatprep.subr.bf16.mxu0 %v4320
    %4590 = vmatpush2.bf16.msra.mxu0 %v4319
    %4591 = vmatprep.subr.bf16.mxu0 %v4312
    %4592 = vmatpush2.bf16.msra.mxu0 %v4311
    %4593 = vmatprep.subr.bf16.mxu0 %v4304
    %4594 = vmatpush2.bf16.msra.mxu0 %v4303
    %4595 = vmatprep.subr.bf16.mxu0 %v4296
    %4596 = vmatpush2.bf16.msra.mxu0 %v4295
    %4597 = vmatprep.mubr.bf16.mxu0 %v3714
    %4598 = vmatmul.mubr.bf16.gmra.mxu0 %v3713
    %v4599 = vpop.f32.mrf.mxu0
    %v4600 = vadd.f32 0.0, %v4599
    %v4601 = vpop.f32.mrf.mxu0
    %v4602 = vadd.f32 0.0, %v4601
    %v4603 = vpop.f32.mrf.mxu0
    %v4604 = vpop.f32.mrf.mxu0
    %4605 = vdwg.mxu0
    %4606 = vmatprep.subr.bf16.mxu0 %v4290
    %4607 = vmatpush1.bf16.msra.mxu0 %v4289
    %4608 = vmatprep.subr.bf16.mxu0 %v4282
    %4609 = vmatpush1.bf16.msra.mxu0 %v4281
    %4610 = vmatprep.subr.bf16.mxu0 %v4274
    %4611 = vmatpush1.bf16.msra.mxu0 %v4273
    %4612 = vmatprep.subr.bf16.mxu0 %v4266
    %4613 = vmatpush1.bf16.msra.mxu0 %v4265
    %4614 = vmatprep.subr.bf16.mxu0 %v4258
    %4615 = vmatpush1.bf16.msra.mxu0 %v4257
    %4616 = vmatprep.subr.bf16.mxu0 %v4250
    %4617 = vmatpush1.bf16.msra.mxu0 %v4249
    %4618 = vmatprep.subr.bf16.mxu0 %v4242
    %4619 = vmatpush1.bf16.msra.mxu0 %v4241
    %4620 = vmatprep.subr.bf16.mxu0 %v4234
    %4621 = vmatpush1.bf16.msra.mxu0 %v4233
    %4622 = vmatprep.subr.bf16.mxu0 %v4354
    %4623 = vmatpush2.bf16.msra.mxu0 %v4353
    %4624 = vmatprep.subr.bf16.mxu0 %v4346
    %4625 = vmatpush2.bf16.msra.mxu0 %v4345
    %4626 = vmatprep.subr.bf16.mxu0 %v4338
    %4627 = vmatpush2.bf16.msra.mxu0 %v4337
    %4628 = vmatprep.subr.bf16.mxu0 %v4330
    %4629 = vmatpush2.bf16.msra.mxu0 %v4329
    %4630 = vmatprep.subr.bf16.mxu0 %v4322
    %4631 = vmatpush2.bf16.msra.mxu0 %v4321
    %4632 = vmatprep.subr.bf16.mxu0 %v4314
    %4633 = vmatpush2.bf16.msra.mxu0 %v4313
    %4634 = vmatprep.subr.bf16.mxu0 %v4306
    %4635 = vmatpush2.bf16.msra.mxu0 %v4305
    %4636 = vmatprep.subr.bf16.mxu0 %v4298
    %4637 = vmatpush2.bf16.msra.mxu0 %v4297
    %4638 = vmatprep.mubr.bf16.mxu0 %v3714
    %4639 = vmatmul.mubr.bf16.gmra.mxu0 %v3713
    %v4640 = vpop.f32.mrf.mxu0
    %v4641 = vadd.f32 0.0, %v4640
    %v4642 = vpop.f32.mrf.mxu0
    %v4643 = vadd.f32 0.0, %v4642
    %v4644 = vpop.f32.mrf.mxu0
    %v4645 = vpop.f32.mrf.mxu0
    %4646 = vdwg.mxu0
    %v4647 = vadd.f32 %v3705, %v4518
    %v4648 = vadd.f32 %v3706, %v4520
    %v4649 = vadd.f32 %v3707, %v4559
    %v4650 = vadd.f32 %v3708, %v4561
    %v4651 = vadd.f32 %v3709, %v4600
    %v4652 = vadd.f32 %v3710, %v4602
    %v4653 = vadd.f32 %v3711, %v4641
    %v4654 = vadd.f32 %v3712, %v4643
    %v4655 = vxor.u32 %v4647, 2147483648
    %v4656 = vxor.u32 %v4648, 2147483648
    %v4657 = vxor.u32 %v4649, 2147483648
    %v4658 = vxor.u32 %v4650, 2147483648
    %v4659 = vxor.u32 %v4651, 2147483648
    %v4660 = vxor.u32 %v4652, 2147483648
    %v4661 = vmul.f32 %v4655, 1.442695
    %v4662 = vpow.pop %v4661
    %v4663 = vmul.f32 %v4656, 1.442695
    %v4664 = vpow.pop %v4663
    %v4665 = vmul.f32 %v4657, 1.442695
    %v4666 = vpow.pop %v4665
    %v4667 = vmul.f32 %v4658, 1.442695
    %v4668 = vpow.pop %v4667
    %v4669 = vmul.f32 %v4659, 1.442695
    %v4670 = vpow.pop %v4669
    %v4671 = vmul.f32 %v4660, 1.442695
    %v4672 = vpow.pop %v4671
    %v4673 = vadd.f32 %v4662, 1.0
    %v4674 = vadd.f32 %v4664, 1.0
    %v4675 = vadd.f32 %v4666, 1.0
    %v4676 = vadd.f32 %v4668, 1.0
    %v4677 = vadd.f32 %v4670, 1.0
    %v4678 = vadd.f32 %v4672, 1.0
    %v4679 = vrcp.pop %v4673
    %v4680 = vmul.f32 1.0, %v4679
    %v4681 = vrcp.pop %v4674
    %v4682 = vmul.f32 1.0, %v4681
    %v4683 = vrcp.pop %v4675
    %v4684 = vmul.f32 1.0, %v4683
    %v4685 = vrcp.pop %v4676
    %v4686 = vmul.f32 1.0, %v4685
    %v4687 = vrcp.pop %v4677
    %v4688 = vmul.f32 1.0, %v4687
    %v4689 = vrcp.pop %v4678
    %v4690 = vmul.f32 1.0, %v4689
    %v4691 = vtanh.pop %v4653
    %v4692 = vtanh.pop %v4654
    %v4693 = vmul.f32 %v4684, %v3694
    %v4694 = vmul.f32 %v4686, %v3695
    %v4695 = vmul.f32 %v4680, %v4691
    %v4696 = vmul.f32 %v4682, %v4692
    %v4697 = vadd.f32 %v4693, %v4695
    %v4698 = vadd.f32 %v4694, %v4696
    %v4699 = vtanh.pop %v4697
    %v4700 = vtanh.pop %v4698
    %v4701 = vmul.f32 %v4688, %v4699
    %v4702 = vmul.f32 %v4690, %v4700
    %v4704 = vrot.slane %v4701, 1
    %4706 = vst [vmem:[#allocation3 + $0x3] sm:$0x1] %v4704
    %4707 = vst [vmem:[#allocation3 + $0xc] sm:$0x1] %v4702
    %v4708 = vld [vmem:[#allocation2 + $0x100] sm:$0xff]
    %v4709 = vld [vmem:[#allocation2 + $0x108] sm:$0xff]
    %v4710 = vld [vmem:[#allocation2 + $0x110] sm:$0xff]
    %v4711 = vld [vmem:[#allocation2 + $0x118] sm:$0xff]
    %v4712 = vld [vmem:[#allocation2 + $0x120] sm:$0xff]
    %v4713 = vld [vmem:[#allocation2 + $0x128] sm:$0xff]
    %v4714 = vld [vmem:[#allocation2 + $0x130] sm:$0xff]
    %v4715 = vld [vmem:[#allocation2 + $0x138] sm:$0xff]
    %v4716 = vpack.c.bf16 %v4701, %v4701
    %v4717 = vpack.c.bf16 %v4702, %v4702
    %v4718 = vld [vmem:[#allocation7] sm:$0xff]
    %v4719 = vld [vmem:[#allocation7 + $0x8] sm:$0xff]
    %v4720 = vld [vmem:[#allocation7 + $0x10] sm:$0xff]
    %v4721 = vld [vmem:[#allocation7 + $0x18] sm:$0xff]
    %v4722 = vld [vmem:[#allocation7 + $0x20] sm:$0xff]
    %v4723 = vld [vmem:[#allocation7 + $0x28] sm:$0xff]
    %v4724 = vld [vmem:[#allocation7 + $0x30] sm:$0xff]
    %v4725 = vld [vmem:[#allocation7 + $0x38] sm:$0xff]
    %v4726 = vld [vmem:[#allocation7 + $0x40] sm:$0xff]
    %v4727 = vld [vmem:[#allocation7 + $0x48] sm:$0xff]
    %v4728 = vld [vmem:[#allocation7 + $0x50] sm:$0xff]
    %v4729 = vld [vmem:[#allocation7 + $0x58] sm:$0xff]
    %v4730 = vld [vmem:[#allocation7 + $0x60] sm:$0xff]
    %v4731 = vld [vmem:[#allocation7 + $0x68] sm:$0xff]
    %v4732 = vld [vmem:[#allocation7 + $0x70] sm:$0xff]
    %v4733 = vld [vmem:[#allocation7 + $0x78] sm:$0xff]
    %v4734 = vld [vmem:[#allocation7 + $0x80] sm:$0xff]
    %v4735 = vld [vmem:[#allocation7 + $0x88] sm:$0xff]
    %v4736 = vld [vmem:[#allocation7 + $0x90] sm:$0xff]
    %v4737 = vld [vmem:[#allocation7 + $0x98] sm:$0xff]
    %v4738 = vld [vmem:[#allocation7 + $0xa0] sm:$0xff]
    %v4739 = vld [vmem:[#allocation7 + $0xa8] sm:$0xff]
    %v4740 = vld [vmem:[#allocation7 + $0xb0] sm:$0xff]
    %v4741 = vld [vmem:[#allocation7 + $0xb8] sm:$0xff]
    %v4742 = vld [vmem:[#allocation7 + $0xc0] sm:$0xff]
    %v4743 = vld [vmem:[#allocation7 + $0xc8] sm:$0xff]
    %v4744 = vld [vmem:[#allocation7 + $0xd0] sm:$0xff]
    %v4745 = vld [vmem:[#allocation7 + $0xd8] sm:$0xff]
    %v4746 = vld [vmem:[#allocation7 + $0xe0] sm:$0xff]
    %v4747 = vld [vmem:[#allocation7 + $0xe8] sm:$0xff]
    %v4748 = vld [vmem:[#allocation7 + $0xf0] sm:$0xff]
    %v4749 = vld [vmem:[#allocation7 + $0xf8] sm:$0xff]
    %v4750 = vld [vmem:[#allocation7 + $0x100] sm:$0xff]
    %v4751 = vld [vmem:[#allocation7 + $0x108] sm:$0xff]
    %v4752 = vld [vmem:[#allocation7 + $0x110] sm:$0xff]
    %v4753 = vld [vmem:[#allocation7 + $0x118] sm:$0xff]
    %v4754 = vld [vmem:[#allocation7 + $0x120] sm:$0xff]
    %v4755 = vld [vmem:[#allocation7 + $0x128] sm:$0xff]
    %v4756 = vld [vmem:[#allocation7 + $0x130] sm:$0xff]
    %v4757 = vld [vmem:[#allocation7 + $0x138] sm:$0xff]
    %v4758 = vld [vmem:[#allocation7 + $0x140] sm:$0xff]
    %v4759 = vld [vmem:[#allocation7 + $0x148] sm:$0xff]
    %v4760 = vld [vmem:[#allocation7 + $0x150] sm:$0xff]
    %v4761 = vld [vmem:[#allocation7 + $0x158] sm:$0xff]
    %v4762 = vld [vmem:[#allocation7 + $0x160] sm:$0xff]
    %v4763 = vld [vmem:[#allocation7 + $0x168] sm:$0xff]
    %v4764 = vld [vmem:[#allocation7 + $0x170] sm:$0xff]
    %v4765 = vld [vmem:[#allocation7 + $0x178] sm:$0xff]
    %v4766 = vld [vmem:[#allocation7 + $0x180] sm:$0xff]
    %v4767 = vld [vmem:[#allocation7 + $0x188] sm:$0xff]
    %v4768 = vld [vmem:[#allocation7 + $0x190] sm:$0xff]
    %v4769 = vld [vmem:[#allocation7 + $0x198] sm:$0xff]
    %v4770 = vld [vmem:[#allocation7 + $0x1a0] sm:$0xff]
    %v4771 = vld [vmem:[#allocation7 + $0x1a8] sm:$0xff]
    %v4772 = vld [vmem:[#allocation7 + $0x1b0] sm:$0xff]
    %v4773 = vld [vmem:[#allocation7 + $0x1b8] sm:$0xff]
    %v4774 = vld [vmem:[#allocation7 + $0x1c0] sm:$0xff]
    %v4775 = vld [vmem:[#allocation7 + $0x1c8] sm:$0xff]
    %v4776 = vld [vmem:[#allocation7 + $0x1d0] sm:$0xff]
    %v4777 = vld [vmem:[#allocation7 + $0x1d8] sm:$0xff]
    %v4778 = vld [vmem:[#allocation7 + $0x1e0] sm:$0xff]
    %v4779 = vld [vmem:[#allocation7 + $0x1e8] sm:$0xff]
    %v4780 = vld [vmem:[#allocation7 + $0x1f0] sm:$0xff]
    %v4781 = vld [vmem:[#allocation7 + $0x1f8] sm:$0xff]
    %v4782 = vld [vmem:[#allocation7 + $0x200] sm:$0xff]
    %v4783 = vld [vmem:[#allocation7 + $0x208] sm:$0xff]
    %v4784 = vld [vmem:[#allocation7 + $0x210] sm:$0xff]
    %v4785 = vld [vmem:[#allocation7 + $0x218] sm:$0xff]
    %v4786 = vld [vmem:[#allocation7 + $0x220] sm:$0xff]
    %v4787 = vld [vmem:[#allocation7 + $0x228] sm:$0xff]
    %v4788 = vld [vmem:[#allocation7 + $0x230] sm:$0xff]
    %v4789 = vld [vmem:[#allocation7 + $0x238] sm:$0xff]
    %v4790 = vld [vmem:[#allocation7 + $0x240] sm:$0xff]
    %v4791 = vld [vmem:[#allocation7 + $0x248] sm:$0xff]
    %v4792 = vld [vmem:[#allocation7 + $0x250] sm:$0xff]
    %v4793 = vld [vmem:[#allocation7 + $0x258] sm:$0xff]
    %v4794 = vld [vmem:[#allocation7 + $0x260] sm:$0xff]
    %v4795 = vld [vmem:[#allocation7 + $0x268] sm:$0xff]
    %v4796 = vld [vmem:[#allocation7 + $0x270] sm:$0xff]
    %v4797 = vld [vmem:[#allocation7 + $0x278] sm:$0xff]
    %v4798 = vld [vmem:[#allocation7 + $0x280] sm:$0xff]
    %v4799 = vld [vmem:[#allocation7 + $0x288] sm:$0xff]
    %v4800 = vld [vmem:[#allocation7 + $0x290] sm:$0xff]
    %v4801 = vld [vmem:[#allocation7 + $0x298] sm:$0xff]
    %v4802 = vld [vmem:[#allocation7 + $0x2a0] sm:$0xff]
    %v4803 = vld [vmem:[#allocation7 + $0x2a8] sm:$0xff]
    %v4804 = vld [vmem:[#allocation7 + $0x2b0] sm:$0xff]
    %v4805 = vld [vmem:[#allocation7 + $0x2b8] sm:$0xff]
    %v4806 = vld [vmem:[#allocation7 + $0x2c0] sm:$0xff]
    %v4807 = vld [vmem:[#allocation7 + $0x2c8] sm:$0xff]
    %v4808 = vld [vmem:[#allocation7 + $0x2d0] sm:$0xff]
    %v4809 = vld [vmem:[#allocation7 + $0x2d8] sm:$0xff]
    %v4810 = vld [vmem:[#allocation7 + $0x2e0] sm:$0xff]
    %v4811 = vld [vmem:[#allocation7 + $0x2e8] sm:$0xff]
    %v4812 = vld [vmem:[#allocation7 + $0x2f0] sm:$0xff]
    %v4813 = vld [vmem:[#allocation7 + $0x2f8] sm:$0xff]
    %v4814 = vld [vmem:[#allocation7 + $0x300] sm:$0xff]
    %v4815 = vld [vmem:[#allocation7 + $0x308] sm:$0xff]
    %v4816 = vld [vmem:[#allocation7 + $0x310] sm:$0xff]
    %v4817 = vld [vmem:[#allocation7 + $0x318] sm:$0xff]
    %v4818 = vld [vmem:[#allocation7 + $0x320] sm:$0xff]
    %v4819 = vld [vmem:[#allocation7 + $0x328] sm:$0xff]
    %v4820 = vld [vmem:[#allocation7 + $0x330] sm:$0xff]
    %v4821 = vld [vmem:[#allocation7 + $0x338] sm:$0xff]
    %v4822 = vld [vmem:[#allocation7 + $0x340] sm:$0xff]
    %v4823 = vld [vmem:[#allocation7 + $0x348] sm:$0xff]
    %v4824 = vld [vmem:[#allocation7 + $0x350] sm:$0xff]
    %v4825 = vld [vmem:[#allocation7 + $0x358] sm:$0xff]
    %v4826 = vld [vmem:[#allocation7 + $0x360] sm:$0xff]
    %v4827 = vld [vmem:[#allocation7 + $0x368] sm:$0xff]
    %v4828 = vld [vmem:[#allocation7 + $0x370] sm:$0xff]
    %v4829 = vld [vmem:[#allocation7 + $0x378] sm:$0xff]
    %v4830 = vld [vmem:[#allocation7 + $0x380] sm:$0xff]
    %v4831 = vld [vmem:[#allocation7 + $0x388] sm:$0xff]
    %v4832 = vld [vmem:[#allocation7 + $0x390] sm:$0xff]
    %v4833 = vld [vmem:[#allocation7 + $0x398] sm:$0xff]
    %v4834 = vld [vmem:[#allocation7 + $0x3a0] sm:$0xff]
    %v4835 = vld [vmem:[#allocation7 + $0x3a8] sm:$0xff]
    %v4836 = vld [vmem:[#allocation7 + $0x3b0] sm:$0xff]
    %v4837 = vld [vmem:[#allocation7 + $0x3b8] sm:$0xff]
    %v4838 = vld [vmem:[#allocation7 + $0x3c0] sm:$0xff]
    %v4839 = vld [vmem:[#allocation7 + $0x3c8] sm:$0xff]
    %v4840 = vld [vmem:[#allocation7 + $0x3d0] sm:$0xff]
    %v4841 = vld [vmem:[#allocation7 + $0x3d8] sm:$0xff]
    %v4842 = vld [vmem:[#allocation7 + $0x3e0] sm:$0xff]
    %v4843 = vld [vmem:[#allocation7 + $0x3e8] sm:$0xff]
    %v4844 = vld [vmem:[#allocation7 + $0x3f0] sm:$0xff]
    %v4845 = vld [vmem:[#allocation7 + $0x3f8] sm:$0xff]
    %v4974 = vunpack.c.l.b16 %v4718
    %v4975 = vunpack.c.h.b16 %v4718
    %v4976 = vunpack.c.l.b16 %v4719
    %v4977 = vunpack.c.h.b16 %v4719
    %v4978 = vunpack.c.l.b16 %v4720
    %v4979 = vunpack.c.h.b16 %v4720
    %v4980 = vunpack.c.l.b16 %v4721
    %v4981 = vunpack.c.h.b16 %v4721
    %v4982 = vunpack.c.l.b16 %v4722
    %v4983 = vunpack.c.h.b16 %v4722
    %v4984 = vunpack.c.l.b16 %v4723
    %v4985 = vunpack.c.h.b16 %v4723
    %v4986 = vunpack.c.l.b16 %v4724
    %v4987 = vunpack.c.h.b16 %v4724
    %v4988 = vunpack.c.l.b16 %v4725
    %v4989 = vunpack.c.h.b16 %v4725
    %v4990 = vunpack.c.l.b16 %v4726
    %v4991 = vunpack.c.h.b16 %v4726
    %v4992 = vunpack.c.l.b16 %v4727
    %v4993 = vunpack.c.h.b16 %v4727
    %v4994 = vunpack.c.l.b16 %v4728
    %v4995 = vunpack.c.h.b16 %v4728
    %v4996 = vunpack.c.l.b16 %v4729
    %v4997 = vunpack.c.h.b16 %v4729
    %v4998 = vunpack.c.l.b16 %v4730
    %v4999 = vunpack.c.h.b16 %v4730
    %v5000 = vunpack.c.l.b16 %v4731
    %v5001 = vunpack.c.h.b16 %v4731
    %v5002 = vunpack.c.l.b16 %v4732
    %v5003 = vunpack.c.h.b16 %v4732
    %v5004 = vunpack.c.l.b16 %v4733
    %v5005 = vunpack.c.h.b16 %v4733
    %v5006 = vunpack.c.l.b16 %v4734
    %v5007 = vunpack.c.h.b16 %v4734
    %v5008 = vunpack.c.l.b16 %v4735
    %v5009 = vunpack.c.h.b16 %v4735
    %v5010 = vunpack.c.l.b16 %v4736
    %v5011 = vunpack.c.h.b16 %v4736
    %v5012 = vunpack.c.l.b16 %v4737
    %v5013 = vunpack.c.h.b16 %v4737
    %v5014 = vunpack.c.l.b16 %v4738
    %v5015 = vunpack.c.h.b16 %v4738
    %v5016 = vunpack.c.l.b16 %v4739
    %v5017 = vunpack.c.h.b16 %v4739
    %v5018 = vunpack.c.l.b16 %v4740
    %v5019 = vunpack.c.h.b16 %v4740
    %v5020 = vunpack.c.l.b16 %v4741
    %v5021 = vunpack.c.h.b16 %v4741
    %v5022 = vunpack.c.l.b16 %v4742
    %v5023 = vunpack.c.h.b16 %v4742
    %v5024 = vunpack.c.l.b16 %v4743
    %v5025 = vunpack.c.h.b16 %v4743
    %v5026 = vunpack.c.l.b16 %v4744
    %v5027 = vunpack.c.h.b16 %v4744
    %v5028 = vunpack.c.l.b16 %v4745
    %v5029 = vunpack.c.h.b16 %v4745
    %v5030 = vunpack.c.l.b16 %v4746
    %v5031 = vunpack.c.h.b16 %v4746
    %v5032 = vunpack.c.l.b16 %v4747
    %v5033 = vunpack.c.h.b16 %v4747
    %v5034 = vunpack.c.l.b16 %v4748
    %v5035 = vunpack.c.h.b16 %v4748
    %v5036 = vunpack.c.l.b16 %v4749
    %v5037 = vunpack.c.h.b16 %v4749
    %v5038 = vunpack.c.l.b16 %v4750
    %v5039 = vunpack.c.h.b16 %v4750
    %v5040 = vunpack.c.l.b16 %v4751
    %v5041 = vunpack.c.h.b16 %v4751
    %v5042 = vunpack.c.l.b16 %v4752
    %v5043 = vunpack.c.h.b16 %v4752
    %v5044 = vunpack.c.l.b16 %v4753
    %v5045 = vunpack.c.h.b16 %v4753
    %v5046 = vunpack.c.l.b16 %v4754
    %v5047 = vunpack.c.h.b16 %v4754
    %v5048 = vunpack.c.l.b16 %v4755
    %v5049 = vunpack.c.h.b16 %v4755
    %v5050 = vunpack.c.l.b16 %v4756
    %v5051 = vunpack.c.h.b16 %v4756
    %v5052 = vunpack.c.l.b16 %v4757
    %v5053 = vunpack.c.h.b16 %v4757
    %v5054 = vunpack.c.l.b16 %v4758
    %v5055 = vunpack.c.h.b16 %v4758
    %v5056 = vunpack.c.l.b16 %v4759
    %v5057 = vunpack.c.h.b16 %v4759
    %v5058 = vunpack.c.l.b16 %v4760
    %v5059 = vunpack.c.h.b16 %v4760
    %v5060 = vunpack.c.l.b16 %v4761
    %v5061 = vunpack.c.h.b16 %v4761
    %v5062 = vunpack.c.l.b16 %v4762
    %v5063 = vunpack.c.h.b16 %v4762
    %v5064 = vunpack.c.l.b16 %v4763
    %v5065 = vunpack.c.h.b16 %v4763
    %v5066 = vunpack.c.l.b16 %v4764
    %v5067 = vunpack.c.h.b16 %v4764
    %v5068 = vunpack.c.l.b16 %v4765
    %v5069 = vunpack.c.h.b16 %v4765
    %v5070 = vunpack.c.l.b16 %v4766
    %v5071 = vunpack.c.h.b16 %v4766
    %v5072 = vunpack.c.l.b16 %v4767
    %v5073 = vunpack.c.h.b16 %v4767
    %v5074 = vunpack.c.l.b16 %v4768
    %v5075 = vunpack.c.h.b16 %v4768
    %v5076 = vunpack.c.l.b16 %v4769
    %v5077 = vunpack.c.h.b16 %v4769
    %v5078 = vunpack.c.l.b16 %v4770
    %v5079 = vunpack.c.h.b16 %v4770
    %v5080 = vunpack.c.l.b16 %v4771
    %v5081 = vunpack.c.h.b16 %v4771
    %v5082 = vunpack.c.l.b16 %v4772
    %v5083 = vunpack.c.h.b16 %v4772
    %v5084 = vunpack.c.l.b16 %v4773
    %v5085 = vunpack.c.h.b16 %v4773
    %v5086 = vunpack.c.l.b16 %v4774
    %v5087 = vunpack.c.h.b16 %v4774
    %v5088 = vunpack.c.l.b16 %v4775
    %v5089 = vunpack.c.h.b16 %v4775
    %v5090 = vunpack.c.l.b16 %v4776
    %v5091 = vunpack.c.h.b16 %v4776
    %v5092 = vunpack.c.l.b16 %v4777
    %v5093 = vunpack.c.h.b16 %v4777
    %v5094 = vunpack.c.l.b16 %v4778
    %v5095 = vunpack.c.h.b16 %v4778
    %v5096 = vunpack.c.l.b16 %v4779
    %v5097 = vunpack.c.h.b16 %v4779
    %v5098 = vunpack.c.l.b16 %v4780
    %v5099 = vunpack.c.h.b16 %v4780
    %v5100 = vunpack.c.l.b16 %v4781
    %v5101 = vunpack.c.h.b16 %v4781
    %v5102 = vunpack.c.l.b16 %v4782
    %v5103 = vunpack.c.h.b16 %v4782
    %v5104 = vunpack.c.l.b16 %v4783
    %v5105 = vunpack.c.h.b16 %v4783
    %v5106 = vunpack.c.l.b16 %v4784
    %v5107 = vunpack.c.h.b16 %v4784
    %v5108 = vunpack.c.l.b16 %v4785
    %v5109 = vunpack.c.h.b16 %v4785
    %v5110 = vunpack.c.l.b16 %v4786
    %v5111 = vunpack.c.h.b16 %v4786
    %v5112 = vunpack.c.l.b16 %v4787
    %v5113 = vunpack.c.h.b16 %v4787
    %v5114 = vunpack.c.l.b16 %v4788
    %v5115 = vunpack.c.h.b16 %v4788
    %v5116 = vunpack.c.l.b16 %v4789
    %v5117 = vunpack.c.h.b16 %v4789
    %v5118 = vunpack.c.l.b16 %v4790
    %v5119 = vunpack.c.h.b16 %v4790
    %v5120 = vunpack.c.l.b16 %v4791
    %v5121 = vunpack.c.h.b16 %v4791
    %v5122 = vunpack.c.l.b16 %v4792
    %v5123 = vunpack.c.h.b16 %v4792
    %v5124 = vunpack.c.l.b16 %v4793
    %v5125 = vunpack.c.h.b16 %v4793
    %v5126 = vunpack.c.l.b16 %v4794
    %v5127 = vunpack.c.h.b16 %v4794
    %v5128 = vunpack.c.l.b16 %v4795
    %v5129 = vunpack.c.h.b16 %v4795
    %v5130 = vunpack.c.l.b16 %v4796
    %v5131 = vunpack.c.h.b16 %v4796
    %v5132 = vunpack.c.l.b16 %v4797
    %v5133 = vunpack.c.h.b16 %v4797
    %v5134 = vunpack.c.l.b16 %v4798
    %v5135 = vunpack.c.h.b16 %v4798
    %v5136 = vunpack.c.l.b16 %v4799
    %v5137 = vunpack.c.h.b16 %v4799
    %v5138 = vunpack.c.l.b16 %v4800
    %v5139 = vunpack.c.h.b16 %v4800
    %v5140 = vunpack.c.l.b16 %v4801
    %v5141 = vunpack.c.h.b16 %v4801
    %v5142 = vunpack.c.l.b16 %v4802
    %v5143 = vunpack.c.h.b16 %v4802
    %v5144 = vunpack.c.l.b16 %v4803
    %v5145 = vunpack.c.h.b16 %v4803
    %v5146 = vunpack.c.l.b16 %v4804
    %v5147 = vunpack.c.h.b16 %v4804
    %v5148 = vunpack.c.l.b16 %v4805
    %v5149 = vunpack.c.h.b16 %v4805
    %v5150 = vunpack.c.l.b16 %v4806
    %v5151 = vunpack.c.h.b16 %v4806
    %v5152 = vunpack.c.l.b16 %v4807
    %v5153 = vunpack.c.h.b16 %v4807
    %v5154 = vunpack.c.l.b16 %v4808
    %v5155 = vunpack.c.h.b16 %v4808
    %v5156 = vunpack.c.l.b16 %v4809
    %v5157 = vunpack.c.h.b16 %v4809
    %v5158 = vunpack.c.l.b16 %v4810
    %v5159 = vunpack.c.h.b16 %v4810
    %v5160 = vunpack.c.l.b16 %v4811
    %v5161 = vunpack.c.h.b16 %v4811
    %v5162 = vunpack.c.l.b16 %v4812
    %v5163 = vunpack.c.h.b16 %v4812
    %v5164 = vunpack.c.l.b16 %v4813
    %v5165 = vunpack.c.h.b16 %v4813
    %v5166 = vunpack.c.l.b16 %v4814
    %v5167 = vunpack.c.h.b16 %v4814
    %v5168 = vunpack.c.l.b16 %v4815
    %v5169 = vunpack.c.h.b16 %v4815
    %v5170 = vunpack.c.l.b16 %v4816
    %v5171 = vunpack.c.h.b16 %v4816
    %v5172 = vunpack.c.l.b16 %v4817
    %v5173 = vunpack.c.h.b16 %v4817
    %v5174 = vunpack.c.l.b16 %v4818
    %v5175 = vunpack.c.h.b16 %v4818
    %v5176 = vunpack.c.l.b16 %v4819
    %v5177 = vunpack.c.h.b16 %v4819
    %v5178 = vunpack.c.l.b16 %v4820
    %v5179 = vunpack.c.h.b16 %v4820
    %v5180 = vunpack.c.l.b16 %v4821
    %v5181 = vunpack.c.h.b16 %v4821
    %v5182 = vunpack.c.l.b16 %v4822
    %v5183 = vunpack.c.h.b16 %v4822
    %v5184 = vunpack.c.l.b16 %v4823
    %v5185 = vunpack.c.h.b16 %v4823
    %v5186 = vunpack.c.l.b16 %v4824
    %v5187 = vunpack.c.h.b16 %v4824
    %v5188 = vunpack.c.l.b16 %v4825
    %v5189 = vunpack.c.h.b16 %v4825
    %v5190 = vunpack.c.l.b16 %v4826
    %v5191 = vunpack.c.h.b16 %v4826
    %v5192 = vunpack.c.l.b16 %v4827
    %v5193 = vunpack.c.h.b16 %v4827
    %v5194 = vunpack.c.l.b16 %v4828
    %v5195 = vunpack.c.h.b16 %v4828
    %v5196 = vunpack.c.l.b16 %v4829
    %v5197 = vunpack.c.h.b16 %v4829
    %v5198 = vunpack.c.l.b16 %v4830
    %v5199 = vunpack.c.h.b16 %v4830
    %v5200 = vunpack.c.l.b16 %v4831
    %v5201 = vunpack.c.h.b16 %v4831
    %v5202 = vunpack.c.l.b16 %v4832
    %v5203 = vunpack.c.h.b16 %v4832
    %v5204 = vunpack.c.l.b16 %v4833
    %v5205 = vunpack.c.h.b16 %v4833
    %v5206 = vunpack.c.l.b16 %v4834
    %v5207 = vunpack.c.h.b16 %v4834
    %v5208 = vunpack.c.l.b16 %v4835
    %v5209 = vunpack.c.h.b16 %v4835
    %v5210 = vunpack.c.l.b16 %v4836
    %v5211 = vunpack.c.h.b16 %v4836
    %v5212 = vunpack.c.l.b16 %v4837
    %v5213 = vunpack.c.h.b16 %v4837
    %v5214 = vunpack.c.l.b16 %v4838
    %v5215 = vunpack.c.h.b16 %v4838
    %v5216 = vunpack.c.l.b16 %v4839
    %v5217 = vunpack.c.h.b16 %v4839
    %v5218 = vunpack.c.l.b16 %v4840
    %v5219 = vunpack.c.h.b16 %v4840
    %v5220 = vunpack.c.l.b16 %v4841
    %v5221 = vunpack.c.h.b16 %v4841
    %v5222 = vunpack.c.l.b16 %v4842
    %v5223 = vunpack.c.h.b16 %v4842
    %v5224 = vunpack.c.l.b16 %v4843
    %v5225 = vunpack.c.h.b16 %v4843
    %v5226 = vunpack.c.l.b16 %v4844
    %v5227 = vunpack.c.h.b16 %v4844
    %v5228 = vunpack.c.l.b16 %v4845
    %v5229 = vunpack.c.h.b16 %v4845
    %v5230 = vpack.c.b16 %v4982, %v4974
    %v5231 = vpack.c.b16 %v4983, %v4975
    %v5232 = vpack.c.b16 %v4984, %v4976
    %v5233 = vpack.c.b16 %v4985, %v4977
    %v5234 = vpack.c.b16 %v4986, %v4978
    %v5235 = vpack.c.b16 %v4987, %v4979
    %v5236 = vpack.c.b16 %v4988, %v4980
    %v5237 = vpack.c.b16 %v4989, %v4981
    %v5238 = vpack.c.b16 %v4998, %v4990
    %v5239 = vpack.c.b16 %v4999, %v4991
    %v5240 = vpack.c.b16 %v5000, %v4992
    %v5241 = vpack.c.b16 %v5001, %v4993
    %v5242 = vpack.c.b16 %v5002, %v4994
    %v5243 = vpack.c.b16 %v5003, %v4995
    %v5244 = vpack.c.b16 %v5004, %v4996
    %v5245 = vpack.c.b16 %v5005, %v4997
    %v5246 = vpack.c.b16 %v5014, %v5006
    %v5247 = vpack.c.b16 %v5015, %v5007
    %v5248 = vpack.c.b16 %v5016, %v5008
    %v5249 = vpack.c.b16 %v5017, %v5009
    %v5250 = vpack.c.b16 %v5018, %v5010
    %v5251 = vpack.c.b16 %v5019, %v5011
    %v5252 = vpack.c.b16 %v5020, %v5012
    %v5253 = vpack.c.b16 %v5021, %v5013
    %v5254 = vpack.c.b16 %v5030, %v5022
    %v5255 = vpack.c.b16 %v5031, %v5023
    %v5256 = vpack.c.b16 %v5032, %v5024
    %v5257 = vpack.c.b16 %v5033, %v5025
    %v5258 = vpack.c.b16 %v5034, %v5026
    %v5259 = vpack.c.b16 %v5035, %v5027
    %v5260 = vpack.c.b16 %v5036, %v5028
    %v5261 = vpack.c.b16 %v5037, %v5029
    %v5262 = vpack.c.b16 %v5046, %v5038
    %v5263 = vpack.c.b16 %v5047, %v5039
    %v5264 = vpack.c.b16 %v5048, %v5040
    %v5265 = vpack.c.b16 %v5049, %v5041
    %v5266 = vpack.c.b16 %v5050, %v5042
    %v5267 = vpack.c.b16 %v5051, %v5043
    %v5268 = vpack.c.b16 %v5052, %v5044
    %v5269 = vpack.c.b16 %v5053, %v5045
    %v5270 = vpack.c.b16 %v5062, %v5054
    %v5271 = vpack.c.b16 %v5063, %v5055
    %v5272 = vpack.c.b16 %v5064, %v5056
    %v5273 = vpack.c.b16 %v5065, %v5057
    %v5274 = vpack.c.b16 %v5066, %v5058
    %v5275 = vpack.c.b16 %v5067, %v5059
    %v5276 = vpack.c.b16 %v5068, %v5060
    %v5277 = vpack.c.b16 %v5069, %v5061
    %v5278 = vpack.c.b16 %v5078, %v5070
    %v5279 = vpack.c.b16 %v5079, %v5071
    %v5280 = vpack.c.b16 %v5080, %v5072
    %v5281 = vpack.c.b16 %v5081, %v5073
    %v5282 = vpack.c.b16 %v5082, %v5074
    %v5283 = vpack.c.b16 %v5083, %v5075
    %v5284 = vpack.c.b16 %v5084, %v5076
    %v5285 = vpack.c.b16 %v5085, %v5077
    %v5286 = vpack.c.b16 %v5094, %v5086
    %v5287 = vpack.c.b16 %v5095, %v5087
    %v5288 = vpack.c.b16 %v5096, %v5088
    %v5289 = vpack.c.b16 %v5097, %v5089
    %v5290 = vpack.c.b16 %v5098, %v5090
    %v5291 = vpack.c.b16 %v5099, %v5091
    %v5292 = vpack.c.b16 %v5100, %v5092
    %v5293 = vpack.c.b16 %v5101, %v5093
    %v5294 = vpack.c.b16 %v5110, %v5102
    %v5295 = vpack.c.b16 %v5111, %v5103
    %v5296 = vpack.c.b16 %v5112, %v5104
    %v5297 = vpack.c.b16 %v5113, %v5105
    %v5298 = vpack.c.b16 %v5114, %v5106
    %v5299 = vpack.c.b16 %v5115, %v5107
    %v5300 = vpack.c.b16 %v5116, %v5108
    %v5301 = vpack.c.b16 %v5117, %v5109
    %v5302 = vpack.c.b16 %v5126, %v5118
    %v5303 = vpack.c.b16 %v5127, %v5119
    %v5304 = vpack.c.b16 %v5128, %v5120
    %v5305 = vpack.c.b16 %v5129, %v5121
    %v5306 = vpack.c.b16 %v5130, %v5122
    %v5307 = vpack.c.b16 %v5131, %v5123
    %v5308 = vpack.c.b16 %v5132, %v5124
    %v5309 = vpack.c.b16 %v5133, %v5125
    %v5310 = vpack.c.b16 %v5142, %v5134
    %v5311 = vpack.c.b16 %v5143, %v5135
    %v5312 = vpack.c.b16 %v5144, %v5136
    %v5313 = vpack.c.b16 %v5145, %v5137
    %v5314 = vpack.c.b16 %v5146, %v5138
    %v5315 = vpack.c.b16 %v5147, %v5139
    %v5316 = vpack.c.b16 %v5148, %v5140
    %v5317 = vpack.c.b16 %v5149, %v5141
    %v5318 = vpack.c.b16 %v5158, %v5150
    %v5319 = vpack.c.b16 %v5159, %v5151
    %v5320 = vpack.c.b16 %v5160, %v5152
    %v5321 = vpack.c.b16 %v5161, %v5153
    %v5322 = vpack.c.b16 %v5162, %v5154
    %v5323 = vpack.c.b16 %v5163, %v5155
    %v5324 = vpack.c.b16 %v5164, %v5156
    %v5325 = vpack.c.b16 %v5165, %v5157
    %v5326 = vpack.c.b16 %v5174, %v5166
    %v5327 = vpack.c.b16 %v5175, %v5167
    %v5328 = vpack.c.b16 %v5176, %v5168
    %v5329 = vpack.c.b16 %v5177, %v5169
    %v5330 = vpack.c.b16 %v5178, %v5170
    %v5331 = vpack.c.b16 %v5179, %v5171
    %v5332 = vpack.c.b16 %v5180, %v5172
    %v5333 = vpack.c.b16 %v5181, %v5173
    %v5334 = vpack.c.b16 %v5190, %v5182
    %v5335 = vpack.c.b16 %v5191, %v5183
    %v5336 = vpack.c.b16 %v5192, %v5184
    %v5337 = vpack.c.b16 %v5193, %v5185
    %v5338 = vpack.c.b16 %v5194, %v5186
    %v5339 = vpack.c.b16 %v5195, %v5187
    %v5340 = vpack.c.b16 %v5196, %v5188
    %v5341 = vpack.c.b16 %v5197, %v5189
    %v5342 = vpack.c.b16 %v5206, %v5198
    %v5343 = vpack.c.b16 %v5207, %v5199
    %v5344 = vpack.c.b16 %v5208, %v5200
    %v5345 = vpack.c.b16 %v5209, %v5201
    %v5346 = vpack.c.b16 %v5210, %v5202
    %v5347 = vpack.c.b16 %v5211, %v5203
    %v5348 = vpack.c.b16 %v5212, %v5204
    %v5349 = vpack.c.b16 %v5213, %v5205
    %v5350 = vpack.c.b16 %v5222, %v5214
    %v5351 = vpack.c.b16 %v5223, %v5215
    %v5352 = vpack.c.b16 %v5224, %v5216
    %v5353 = vpack.c.b16 %v5225, %v5217
    %v5354 = vpack.c.b16 %v5226, %v5218
    %v5355 = vpack.c.b16 %v5227, %v5219
    %v5356 = vpack.c.b16 %v5228, %v5220
    %v5357 = vpack.c.b16 %v5229, %v5221
    %5486 = vmatprep.subr.bf16.mxu0 %v5287
    %5487 = vmatpush1.bf16.msra.mxu0 %v5286
    %5488 = vmatprep.subr.bf16.mxu0 %v5279
    %5489 = vmatpush1.bf16.msra.mxu0 %v5278
    %5490 = vmatprep.subr.bf16.mxu0 %v5271
    %5491 = vmatpush1.bf16.msra.mxu0 %v5270
    %5492 = vmatprep.subr.bf16.mxu0 %v5263
    %5493 = vmatpush1.bf16.msra.mxu0 %v5262
    %5494 = vmatprep.subr.bf16.mxu0 %v5255
    %5495 = vmatpush1.bf16.msra.mxu0 %v5254
    %5496 = vmatprep.subr.bf16.mxu0 %v5247
    %5497 = vmatpush1.bf16.msra.mxu0 %v5246
    %5498 = vmatprep.subr.bf16.mxu0 %v5239
    %5499 = vmatpush1.bf16.msra.mxu0 %v5238
    %5500 = vmatprep.subr.bf16.mxu0 %v5231
    %5501 = vmatpush1.bf16.msra.mxu0 %v5230
    %5502 = vmatprep.subr.bf16.mxu0 %v5351
    %5503 = vmatpush2.bf16.msra.mxu0 %v5350
    %5504 = vmatprep.subr.bf16.mxu0 %v5343
    %5505 = vmatpush2.bf16.msra.mxu0 %v5342
    %5506 = vmatprep.subr.bf16.mxu0 %v5335
    %5507 = vmatpush2.bf16.msra.mxu0 %v5334
    %5508 = vmatprep.subr.bf16.mxu0 %v5327
    %5509 = vmatpush2.bf16.msra.mxu0 %v5326
    %5510 = vmatprep.subr.bf16.mxu0 %v5319
    %5511 = vmatpush2.bf16.msra.mxu0 %v5318
    %5512 = vmatprep.subr.bf16.mxu0 %v5311
    %5513 = vmatpush2.bf16.msra.mxu0 %v5310
    %5514 = vmatprep.subr.bf16.mxu0 %v5303
    %5515 = vmatpush2.bf16.msra.mxu0 %v5302
    %5516 = vmatprep.subr.bf16.mxu0 %v5295
    %5517 = vmatpush2.bf16.msra.mxu0 %v5294
    %5518 = vmatprep.mubr.bf16.mxu0 %v4717
    %5519 = vmatmul.mubr.bf16.gmra.mxu0 %v4716
    %v5520 = vpop.f32.mrf.mxu0
    %v5521 = vadd.f32 0.0, %v5520
    %v5522 = vpop.f32.mrf.mxu0
    %v5523 = vadd.f32 0.0, %v5522
    %v5524 = vpop.f32.mrf.mxu0
    %v5525 = vpop.f32.mrf.mxu0
    %5526 = vdwg.mxu0
    %5527 = vmatprep.subr.bf16.mxu0 %v5289
    %5528 = vmatpush1.bf16.msra.mxu0 %v5288
    %5529 = vmatprep.subr.bf16.mxu0 %v5281
    %5530 = vmatpush1.bf16.msra.mxu0 %v5280
    %5531 = vmatprep.subr.bf16.mxu0 %v5273
    %5532 = vmatpush1.bf16.msra.mxu0 %v5272
    %5533 = vmatprep.subr.bf16.mxu0 %v5265
    %5534 = vmatpush1.bf16.msra.mxu0 %v5264
    %5535 = vmatprep.subr.bf16.mxu0 %v5257
    %5536 = vmatpush1.bf16.msra.mxu0 %v5256
    %5537 = vmatprep.subr.bf16.mxu0 %v5249
    %5538 = vmatpush1.bf16.msra.mxu0 %v5248
    %5539 = vmatprep.subr.bf16.mxu0 %v5241
    %5540 = vmatpush1.bf16.msra.mxu0 %v5240
    %5541 = vmatprep.subr.bf16.mxu0 %v5233
    %5542 = vmatpush1.bf16.msra.mxu0 %v5232
    %5543 = vmatprep.subr.bf16.mxu0 %v5353
    %5544 = vmatpush2.bf16.msra.mxu0 %v5352
    %5545 = vmatprep.subr.bf16.mxu0 %v5345
    %5546 = vmatpush2.bf16.msra.mxu0 %v5344
    %5547 = vmatprep.subr.bf16.mxu0 %v5337
    %5548 = vmatpush2.bf16.msra.mxu0 %v5336
    %5549 = vmatprep.subr.bf16.mxu0 %v5329
    %5550 = vmatpush2.bf16.msra.mxu0 %v5328
    %5551 = vmatprep.subr.bf16.mxu0 %v5321
    %5552 = vmatpush2.bf16.msra.mxu0 %v5320
    %5553 = vmatprep.subr.bf16.mxu0 %v5313
    %5554 = vmatpush2.bf16.msra.mxu0 %v5312
    %5555 = vmatprep.subr.bf16.mxu0 %v5305
    %5556 = vmatpush2.bf16.msra.mxu0 %v5304
    %5557 = vmatprep.subr.bf16.mxu0 %v5297
    %5558 = vmatpush2.bf16.msra.mxu0 %v5296
    %5559 = vmatprep.mubr.bf16.mxu0 %v4717
    %5560 = vmatmul.mubr.bf16.gmra.mxu0 %v4716
    %v5561 = vpop.f32.mrf.mxu0
    %v5562 = vadd.f32 0.0, %v5561
    %v5563 = vpop.f32.mrf.mxu0
    %v5564 = vadd.f32 0.0, %v5563
    %v5565 = vpop.f32.mrf.mxu0
    %v5566 = vpop.f32.mrf.mxu0
    %5567 = vdwg.mxu0
    %5568 = vmatprep.subr.bf16.mxu0 %v5291
    %5569 = vmatpush1.bf16.msra.mxu0 %v5290
    %5570 = vmatprep.subr.bf16.mxu0 %v5283
    %5571 = vmatpush1.bf16.msra.mxu0 %v5282
    %5572 = vmatprep.subr.bf16.mxu0 %v5275
    %5573 = vmatpush1.bf16.msra.mxu0 %v5274
    %5574 = vmatprep.subr.bf16.mxu0 %v5267
    %5575 = vmatpush1.bf16.msra.mxu0 %v5266
    %5576 = vmatprep.subr.bf16.mxu0 %v5259
    %5577 = vmatpush1.bf16.msra.mxu0 %v5258
    %5578 = vmatprep.subr.bf16.mxu0 %v5251
    %5579 = vmatpush1.bf16.msra.mxu0 %v5250
    %5580 = vmatprep.subr.bf16.mxu0 %v5243
    %5581 = vmatpush1.bf16.msra.mxu0 %v5242
    %5582 = vmatprep.subr.bf16.mxu0 %v5235
    %5583 = vmatpush1.bf16.msra.mxu0 %v5234
    %5584 = vmatprep.subr.bf16.mxu0 %v5355
    %5585 = vmatpush2.bf16.msra.mxu0 %v5354
    %5586 = vmatprep.subr.bf16.mxu0 %v5347
    %5587 = vmatpush2.bf16.msra.mxu0 %v5346
    %5588 = vmatprep.subr.bf16.mxu0 %v5339
    %5589 = vmatpush2.bf16.msra.mxu0 %v5338
    %5590 = vmatprep.subr.bf16.mxu0 %v5331
    %5591 = vmatpush2.bf16.msra.mxu0 %v5330
    %5592 = vmatprep.subr.bf16.mxu0 %v5323
    %5593 = vmatpush2.bf16.msra.mxu0 %v5322
    %5594 = vmatprep.subr.bf16.mxu0 %v5315
    %5595 = vmatpush2.bf16.msra.mxu0 %v5314
    %5596 = vmatprep.subr.bf16.mxu0 %v5307
    %5597 = vmatpush2.bf16.msra.mxu0 %v5306
    %5598 = vmatprep.subr.bf16.mxu0 %v5299
    %5599 = vmatpush2.bf16.msra.mxu0 %v5298
    %5600 = vmatprep.mubr.bf16.mxu0 %v4717
    %5601 = vmatmul.mubr.bf16.gmra.mxu0 %v4716
    %v5602 = vpop.f32.mrf.mxu0
    %v5603 = vadd.f32 0.0, %v5602
    %v5604 = vpop.f32.mrf.mxu0
    %v5605 = vadd.f32 0.0, %v5604
    %v5606 = vpop.f32.mrf.mxu0
    %v5607 = vpop.f32.mrf.mxu0
    %5608 = vdwg.mxu0
    %5609 = vmatprep.subr.bf16.mxu0 %v5293
    %5610 = vmatpush1.bf16.msra.mxu0 %v5292
    %5611 = vmatprep.subr.bf16.mxu0 %v5285
    %5612 = vmatpush1.bf16.msra.mxu0 %v5284
    %5613 = vmatprep.subr.bf16.mxu0 %v5277
    %5614 = vmatpush1.bf16.msra.mxu0 %v5276
    %5615 = vmatprep.subr.bf16.mxu0 %v5269
    %5616 = vmatpush1.bf16.msra.mxu0 %v5268
    %5617 = vmatprep.subr.bf16.mxu0 %v5261
    %5618 = vmatpush1.bf16.msra.mxu0 %v5260
    %5619 = vmatprep.subr.bf16.mxu0 %v5253
    %5620 = vmatpush1.bf16.msra.mxu0 %v5252
    %5621 = vmatprep.subr.bf16.mxu0 %v5245
    %5622 = vmatpush1.bf16.msra.mxu0 %v5244
    %5623 = vmatprep.subr.bf16.mxu0 %v5237
    %5624 = vmatpush1.bf16.msra.mxu0 %v5236
    %5625 = vmatprep.subr.bf16.mxu0 %v5357
    %5626 = vmatpush2.bf16.msra.mxu0 %v5356
    %5627 = vmatprep.subr.bf16.mxu0 %v5349
    %5628 = vmatpush2.bf16.msra.mxu0 %v5348
    %5629 = vmatprep.subr.bf16.mxu0 %v5341
    %5630 = vmatpush2.bf16.msra.mxu0 %v5340
    %5631 = vmatprep.subr.bf16.mxu0 %v5333
    %5632 = vmatpush2.bf16.msra.mxu0 %v5332
    %5633 = vmatprep.subr.bf16.mxu0 %v5325
    %5634 = vmatpush2.bf16.msra.mxu0 %v5324
    %5635 = vmatprep.subr.bf16.mxu0 %v5317
    %5636 = vmatpush2.bf16.msra.mxu0 %v5316
    %5637 = vmatprep.subr.bf16.mxu0 %v5309
    %5638 = vmatpush2.bf16.msra.mxu0 %v5308
    %5639 = vmatprep.subr.bf16.mxu0 %v5301
    %5640 = vmatpush2.bf16.msra.mxu0 %v5300
    %5641 = vmatprep.mubr.bf16.mxu0 %v4717
    %5642 = vmatmul.mubr.bf16.gmra.mxu0 %v4716
    %v5643 = vpop.f32.mrf.mxu0
    %v5644 = vadd.f32 0.0, %v5643
    %v5645 = vpop.f32.mrf.mxu0
    %v5646 = vadd.f32 0.0, %v5645
    %v5647 = vpop.f32.mrf.mxu0
    %v5648 = vpop.f32.mrf.mxu0
    %5649 = vdwg.mxu0
    %v5650 = vadd.f32 %v4708, %v5521
    %v5651 = vadd.f32 %v4709, %v5523
    %v5652 = vadd.f32 %v4710, %v5562
    %v5653 = vadd.f32 %v4711, %v5564
    %v5654 = vadd.f32 %v4712, %v5603
    %v5655 = vadd.f32 %v4713, %v5605
    %v5656 = vadd.f32 %v4714, %v5644
    %v5657 = vadd.f32 %v4715, %v5646
    %v5658 = vxor.u32 %v5650, 2147483648
    %v5659 = vxor.u32 %v5651, 2147483648
    %v5660 = vxor.u32 %v5652, 2147483648
    %v5661 = vxor.u32 %v5653, 2147483648
    %v5662 = vxor.u32 %v5654, 2147483648
    %v5663 = vxor.u32 %v5655, 2147483648
    %v5664 = vmul.f32 %v5658, 1.442695
    %v5665 = vpow.pop %v5664
    %v5666 = vmul.f32 %v5659, 1.442695
    %v5667 = vpow.pop %v5666
    %v5668 = vmul.f32 %v5660, 1.442695
    %v5669 = vpow.pop %v5668
    %v5670 = vmul.f32 %v5661, 1.442695
    %v5671 = vpow.pop %v5670
    %v5672 = vmul.f32 %v5662, 1.442695
    %v5673 = vpow.pop %v5672
    %v5674 = vmul.f32 %v5663, 1.442695
    %v5675 = vpow.pop %v5674
    %v5676 = vadd.f32 %v5665, 1.0
    %v5677 = vadd.f32 %v5667, 1.0
    %v5678 = vadd.f32 %v5669, 1.0
    %v5679 = vadd.f32 %v5671, 1.0
    %v5680 = vadd.f32 %v5673, 1.0
    %v5681 = vadd.f32 %v5675, 1.0
    %v5682 = vrcp.pop %v5676
    %v5683 = vmul.f32 1.0, %v5682
    %v5684 = vrcp.pop %v5677
    %v5685 = vmul.f32 1.0, %v5684
    %v5686 = vrcp.pop %v5678
    %v5687 = vmul.f32 1.0, %v5686
    %v5688 = vrcp.pop %v5679
    %v5689 = vmul.f32 1.0, %v5688
    %v5690 = vrcp.pop %v5680
    %v5691 = vmul.f32 1.0, %v5690
    %v5692 = vrcp.pop %v5681
    %v5693 = vmul.f32 1.0, %v5692
    %v5694 = vtanh.pop %v5656
    %v5695 = vtanh.pop %v5657
    %v5696 = vmul.f32 %v5687, %v4697
    %v5697 = vmul.f32 %v5689, %v4698
    %v5698 = vmul.f32 %v5683, %v5694
    %v5699 = vmul.f32 %v5685, %v5695
    %v5700 = vadd.f32 %v5696, %v5698
    %v5701 = vadd.f32 %v5697, %v5699
    %v5702 = vtanh.pop %v5700
    %v5703 = vtanh.pop %v5701
    %v5704 = vmul.f32 %v5691, %v5702
    %v5705 = vmul.f32 %v5693, %v5703
    %v5707 = vrot.slane %v5704, 1
    %5709 = vst [vmem:[#allocation3 + $0x4] sm:$0x1] %v5707
    %5710 = vst [vmem:[#allocation3 + $0xb] sm:$0x1] %v5705
    %v5711 = vld [vmem:[#allocation2 + $0x140] sm:$0xff]
    %v5712 = vld [vmem:[#allocation2 + $0x148] sm:$0xff]
    %v5713 = vld [vmem:[#allocation2 + $0x150] sm:$0xff]
    %v5714 = vld [vmem:[#allocation2 + $0x158] sm:$0xff]
    %v5715 = vld [vmem:[#allocation2 + $0x160] sm:$0xff]
    %v5716 = vld [vmem:[#allocation2 + $0x168] sm:$0xff]
    %v5717 = vld [vmem:[#allocation2 + $0x170] sm:$0xff]
    %v5718 = vld [vmem:[#allocation2 + $0x178] sm:$0xff]
    %v5719 = vpack.c.bf16 %v5704, %v5704
    %v5720 = vpack.c.bf16 %v5705, %v5705
    %v5721 = vld [vmem:[#allocation7] sm:$0xff]
    %v5722 = vld [vmem:[#allocation7 + $0x8] sm:$0xff]
    %v5723 = vld [vmem:[#allocation7 + $0x10] sm:$0xff]
    %v5724 = vld [vmem:[#allocation7 + $0x18] sm:$0xff]
    %v5725 = vld [vmem:[#allocation7 + $0x20] sm:$0xff]
    %v5726 = vld [vmem:[#allocation7 + $0x28] sm:$0xff]
    %v5727 = vld [vmem:[#allocation7 + $0x30] sm:$0xff]
    %v5728 = vld [vmem:[#allocation7 + $0x38] sm:$0xff]
    %v5729 = vld [vmem:[#allocation7 + $0x40] sm:$0xff]
    %v5730 = vld [vmem:[#allocation7 + $0x48] sm:$0xff]
    %v5731 = vld [vmem:[#allocation7 + $0x50] sm:$0xff]
    %v5732 = vld [vmem:[#allocation7 + $0x58] sm:$0xff]
    %v5733 = vld [vmem:[#allocation7 + $0x60] sm:$0xff]
    %v5734 = vld [vmem:[#allocation7 + $0x68] sm:$0xff]
    %v5735 = vld [vmem:[#allocation7 + $0x70] sm:$0xff]
    %v5736 = vld [vmem:[#allocation7 + $0x78] sm:$0xff]
    %v5737 = vld [vmem:[#allocation7 + $0x80] sm:$0xff]
    %v5738 = vld [vmem:[#allocation7 + $0x88] sm:$0xff]
    %v5739 = vld [vmem:[#allocation7 + $0x90] sm:$0xff]
    %v5740 = vld [vmem:[#allocation7 + $0x98] sm:$0xff]
    %v5741 = vld [vmem:[#allocation7 + $0xa0] sm:$0xff]
    %v5742 = vld [vmem:[#allocation7 + $0xa8] sm:$0xff]
    %v5743 = vld [vmem:[#allocation7 + $0xb0] sm:$0xff]
    %v5744 = vld [vmem:[#allocation7 + $0xb8] sm:$0xff]
    %v5745 = vld [vmem:[#allocation7 + $0xc0] sm:$0xff]
    %v5746 = vld [vmem:[#allocation7 + $0xc8] sm:$0xff]
    %v5747 = vld [vmem:[#allocation7 + $0xd0] sm:$0xff]
    %v5748 = vld [vmem:[#allocation7 + $0xd8] sm:$0xff]
    %v5749 = vld [vmem:[#allocation7 + $0xe0] sm:$0xff]
    %v5750 = vld [vmem:[#allocation7 + $0xe8] sm:$0xff]
    %v5751 = vld [vmem:[#allocation7 + $0xf0] sm:$0xff]
    %v5752 = vld [vmem:[#allocation7 + $0xf8] sm:$0xff]
    %v5753 = vld [vmem:[#allocation7 + $0x100] sm:$0xff]
    %v5754 = vld [vmem:[#allocation7 + $0x108] sm:$0xff]
    %v5755 = vld [vmem:[#allocation7 + $0x110] sm:$0xff]
    %v5756 = vld [vmem:[#allocation7 + $0x118] sm:$0xff]
    %v5757 = vld [vmem:[#allocation7 + $0x120] sm:$0xff]
    %v5758 = vld [vmem:[#allocation7 + $0x128] sm:$0xff]
    %v5759 = vld [vmem:[#allocation7 + $0x130] sm:$0xff]
    %v5760 = vld [vmem:[#allocation7 + $0x138] sm:$0xff]
    %v5761 = vld [vmem:[#allocation7 + $0x140] sm:$0xff]
    %v5762 = vld [vmem:[#allocation7 + $0x148] sm:$0xff]
    %v5763 = vld [vmem:[#allocation7 + $0x150] sm:$0xff]
    %v5764 = vld [vmem:[#allocation7 + $0x158] sm:$0xff]
    %v5765 = vld [vmem:[#allocation7 + $0x160] sm:$0xff]
    %v5766 = vld [vmem:[#allocation7 + $0x168] sm:$0xff]
    %v5767 = vld [vmem:[#allocation7 + $0x170] sm:$0xff]
    %v5768 = vld [vmem:[#allocation7 + $0x178] sm:$0xff]
    %v5769 = vld [vmem:[#allocation7 + $0x180] sm:$0xff]
    %v5770 = vld [vmem:[#allocation7 + $0x188] sm:$0xff]
    %v5771 = vld [vmem:[#allocation7 + $0x190] sm:$0xff]
    %v5772 = vld [vmem:[#allocation7 + $0x198] sm:$0xff]
    %v5773 = vld [vmem:[#allocation7 + $0x1a0] sm:$0xff]
    %v5774 = vld [vmem:[#allocation7 + $0x1a8] sm:$0xff]
    %v5775 = vld [vmem:[#allocation7 + $0x1b0] sm:$0xff]
    %v5776 = vld [vmem:[#allocation7 + $0x1b8] sm:$0xff]
    %v5777 = vld [vmem:[#allocation7 + $0x1c0] sm:$0xff]
    %v5778 = vld [vmem:[#allocation7 + $0x1c8] sm:$0xff]
    %v5779 = vld [vmem:[#allocation7 + $0x1d0] sm:$0xff]
    %v5780 = vld [vmem:[#allocation7 + $0x1d8] sm:$0xff]
    %v5781 = vld [vmem:[#allocation7 + $0x1e0] sm:$0xff]
    %v5782 = vld [vmem:[#allocation7 + $0x1e8] sm:$0xff]
    %v5783 = vld [vmem:[#allocation7 + $0x1f0] sm:$0xff]
    %v5784 = vld [vmem:[#allocation7 + $0x1f8] sm:$0xff]
    %v5785 = vld [vmem:[#allocation7 + $0x200] sm:$0xff]
    %v5786 = vld [vmem:[#allocation7 + $0x208] sm:$0xff]
    %v5787 = vld [vmem:[#allocation7 + $0x210] sm:$0xff]
    %v5788 = vld [vmem:[#allocation7 + $0x218] sm:$0xff]
    %v5789 = vld [vmem:[#allocation7 + $0x220] sm:$0xff]
    %v5790 = vld [vmem:[#allocation7 + $0x228] sm:$0xff]
    %v5791 = vld [vmem:[#allocation7 + $0x230] sm:$0xff]
    %v5792 = vld [vmem:[#allocation7 + $0x238] sm:$0xff]
    %v5793 = vld [vmem:[#allocation7 + $0x240] sm:$0xff]
    %v5794 = vld [vmem:[#allocation7 + $0x248] sm:$0xff]
    %v5795 = vld [vmem:[#allocation7 + $0x250] sm:$0xff]
    %v5796 = vld [vmem:[#allocation7 + $0x258] sm:$0xff]
    %v5797 = vld [vmem:[#allocation7 + $0x260] sm:$0xff]
    %v5798 = vld [vmem:[#allocation7 + $0x268] sm:$0xff]
    %v5799 = vld [vmem:[#allocation7 + $0x270] sm:$0xff]
    %v5800 = vld [vmem:[#allocation7 + $0x278] sm:$0xff]
    %v5801 = vld [vmem:[#allocation7 + $0x280] sm:$0xff]
    %v5802 = vld [vmem:[#allocation7 + $0x288] sm:$0xff]
    %v5803 = vld [vmem:[#allocation7 + $0x290] sm:$0xff]
    %v5804 = vld [vmem:[#allocation7 + $0x298] sm:$0xff]
    %v5805 = vld [vmem:[#allocation7 + $0x2a0] sm:$0xff]
    %v5806 = vld [vmem:[#allocation7 + $0x2a8] sm:$0xff]
    %v5807 = vld [vmem:[#allocation7 + $0x2b0] sm:$0xff]
    %v5808 = vld [vmem:[#allocation7 + $0x2b8] sm:$0xff]
    %v5809 = vld [vmem:[#allocation7 + $0x2c0] sm:$0xff]
    %v5810 = vld [vmem:[#allocation7 + $0x2c8] sm:$0xff]
    %v5811 = vld [vmem:[#allocation7 + $0x2d0] sm:$0xff]
    %v5812 = vld [vmem:[#allocation7 + $0x2d8] sm:$0xff]
    %v5813 = vld [vmem:[#allocation7 + $0x2e0] sm:$0xff]
    %v5814 = vld [vmem:[#allocation7 + $0x2e8] sm:$0xff]
    %v5815 = vld [vmem:[#allocation7 + $0x2f0] sm:$0xff]
    %v5816 = vld [vmem:[#allocation7 + $0x2f8] sm:$0xff]
    %v5817 = vld [vmem:[#allocation7 + $0x300] sm:$0xff]
    %v5818 = vld [vmem:[#allocation7 + $0x308] sm:$0xff]
    %v5819 = vld [vmem:[#allocation7 + $0x310] sm:$0xff]
    %v5820 = vld [vmem:[#allocation7 + $0x318] sm:$0xff]
    %v5821 = vld [vmem:[#allocation7 + $0x320] sm:$0xff]
    %v5822 = vld [vmem:[#allocation7 + $0x328] sm:$0xff]
    %v5823 = vld [vmem:[#allocation7 + $0x330] sm:$0xff]
    %v5824 = vld [vmem:[#allocation7 + $0x338] sm:$0xff]
    %v5825 = vld [vmem:[#allocation7 + $0x340] sm:$0xff]
    %v5826 = vld [vmem:[#allocation7 + $0x348] sm:$0xff]
    %v5827 = vld [vmem:[#allocation7 + $0x350] sm:$0xff]
    %v5828 = vld [vmem:[#allocation7 + $0x358] sm:$0xff]
    %v5829 = vld [vmem:[#allocation7 + $0x360] sm:$0xff]
    %v5830 = vld [vmem:[#allocation7 + $0x368] sm:$0xff]
    %v5831 = vld [vmem:[#allocation7 + $0x370] sm:$0xff]
    %v5832 = vld [vmem:[#allocation7 + $0x378] sm:$0xff]
    %v5833 = vld [vmem:[#allocation7 + $0x380] sm:$0xff]
    %v5834 = vld [vmem:[#allocation7 + $0x388] sm:$0xff]
    %v5835 = vld [vmem:[#allocation7 + $0x390] sm:$0xff]
    %v5836 = vld [vmem:[#allocation7 + $0x398] sm:$0xff]
    %v5837 = vld [vmem:[#allocation7 + $0x3a0] sm:$0xff]
    %v5838 = vld [vmem:[#allocation7 + $0x3a8] sm:$0xff]
    %v5839 = vld [vmem:[#allocation7 + $0x3b0] sm:$0xff]
    %v5840 = vld [vmem:[#allocation7 + $0x3b8] sm:$0xff]
    %v5841 = vld [vmem:[#allocation7 + $0x3c0] sm:$0xff]
    %v5842 = vld [vmem:[#allocation7 + $0x3c8] sm:$0xff]
    %v5843 = vld [vmem:[#allocation7 + $0x3d0] sm:$0xff]
    %v5844 = vld [vmem:[#allocation7 + $0x3d8] sm:$0xff]
    %v5845 = vld [vmem:[#allocation7 + $0x3e0] sm:$0xff]
    %v5846 = vld [vmem:[#allocation7 + $0x3e8] sm:$0xff]
    %v5847 = vld [vmem:[#allocation7 + $0x3f0] sm:$0xff]
    %v5848 = vld [vmem:[#allocation7 + $0x3f8] sm:$0xff]
    %v5977 = vunpack.c.l.b16 %v5721
    %v5978 = vunpack.c.h.b16 %v5721
    %v5979 = vunpack.c.l.b16 %v5722
    %v5980 = vunpack.c.h.b16 %v5722
    %v5981 = vunpack.c.l.b16 %v5723
    %v5982 = vunpack.c.h.b16 %v5723
    %v5983 = vunpack.c.l.b16 %v5724
    %v5984 = vunpack.c.h.b16 %v5724
    %v5985 = vunpack.c.l.b16 %v5725
    %v5986 = vunpack.c.h.b16 %v5725
    %v5987 = vunpack.c.l.b16 %v5726
    %v5988 = vunpack.c.h.b16 %v5726
    %v5989 = vunpack.c.l.b16 %v5727
    %v5990 = vunpack.c.h.b16 %v5727
    %v5991 = vunpack.c.l.b16 %v5728
    %v5992 = vunpack.c.h.b16 %v5728
    %v5993 = vunpack.c.l.b16 %v5729
    %v5994 = vunpack.c.h.b16 %v5729
    %v5995 = vunpack.c.l.b16 %v5730
    %v5996 = vunpack.c.h.b16 %v5730
    %v5997 = vunpack.c.l.b16 %v5731
    %v5998 = vunpack.c.h.b16 %v5731
    %v5999 = vunpack.c.l.b16 %v5732
    %v6000 = vunpack.c.h.b16 %v5732
    %v6001 = vunpack.c.l.b16 %v5733
    %v6002 = vunpack.c.h.b16 %v5733
    %v6003 = vunpack.c.l.b16 %v5734
    %v6004 = vunpack.c.h.b16 %v5734
    %v6005 = vunpack.c.l.b16 %v5735
    %v6006 = vunpack.c.h.b16 %v5735
    %v6007 = vunpack.c.l.b16 %v5736
    %v6008 = vunpack.c.h.b16 %v5736
    %v6009 = vunpack.c.l.b16 %v5737
    %v6010 = vunpack.c.h.b16 %v5737
    %v6011 = vunpack.c.l.b16 %v5738
    %v6012 = vunpack.c.h.b16 %v5738
    %v6013 = vunpack.c.l.b16 %v5739
    %v6014 = vunpack.c.h.b16 %v5739
    %v6015 = vunpack.c.l.b16 %v5740
    %v6016 = vunpack.c.h.b16 %v5740
    %v6017 = vunpack.c.l.b16 %v5741
    %v6018 = vunpack.c.h.b16 %v5741
    %v6019 = vunpack.c.l.b16 %v5742
    %v6020 = vunpack.c.h.b16 %v5742
    %v6021 = vunpack.c.l.b16 %v5743
    %v6022 = vunpack.c.h.b16 %v5743
    %v6023 = vunpack.c.l.b16 %v5744
    %v6024 = vunpack.c.h.b16 %v5744
    %v6025 = vunpack.c.l.b16 %v5745
    %v6026 = vunpack.c.h.b16 %v5745
    %v6027 = vunpack.c.l.b16 %v5746
    %v6028 = vunpack.c.h.b16 %v5746
    %v6029 = vunpack.c.l.b16 %v5747
    %v6030 = vunpack.c.h.b16 %v5747
    %v6031 = vunpack.c.l.b16 %v5748
    %v6032 = vunpack.c.h.b16 %v5748
    %v6033 = vunpack.c.l.b16 %v5749
    %v6034 = vunpack.c.h.b16 %v5749
    %v6035 = vunpack.c.l.b16 %v5750
    %v6036 = vunpack.c.h.b16 %v5750
    %v6037 = vunpack.c.l.b16 %v5751
    %v6038 = vunpack.c.h.b16 %v5751
    %v6039 = vunpack.c.l.b16 %v5752
    %v6040 = vunpack.c.h.b16 %v5752
    %v6041 = vunpack.c.l.b16 %v5753
    %v6042 = vunpack.c.h.b16 %v5753
    %v6043 = vunpack.c.l.b16 %v5754
    %v6044 = vunpack.c.h.b16 %v5754
    %v6045 = vunpack.c.l.b16 %v5755
    %v6046 = vunpack.c.h.b16 %v5755
    %v6047 = vunpack.c.l.b16 %v5756
    %v6048 = vunpack.c.h.b16 %v5756
    %v6049 = vunpack.c.l.b16 %v5757
    %v6050 = vunpack.c.h.b16 %v5757
    %v6051 = vunpack.c.l.b16 %v5758
    %v6052 = vunpack.c.h.b16 %v5758
    %v6053 = vunpack.c.l.b16 %v5759
    %v6054 = vunpack.c.h.b16 %v5759
    %v6055 = vunpack.c.l.b16 %v5760
    %v6056 = vunpack.c.h.b16 %v5760
    %v6057 = vunpack.c.l.b16 %v5761
    %v6058 = vunpack.c.h.b16 %v5761
    %v6059 = vunpack.c.l.b16 %v5762
    %v6060 = vunpack.c.h.b16 %v5762
    %v6061 = vunpack.c.l.b16 %v5763
    %v6062 = vunpack.c.h.b16 %v5763
    %v6063 = vunpack.c.l.b16 %v5764
    %v6064 = vunpack.c.h.b16 %v5764
    %v6065 = vunpack.c.l.b16 %v5765
    %v6066 = vunpack.c.h.b16 %v5765
    %v6067 = vunpack.c.l.b16 %v5766
    %v6068 = vunpack.c.h.b16 %v5766
    %v6069 = vunpack.c.l.b16 %v5767
    %v6070 = vunpack.c.h.b16 %v5767
    %v6071 = vunpack.c.l.b16 %v5768
    %v6072 = vunpack.c.h.b16 %v5768
    %v6073 = vunpack.c.l.b16 %v5769
    %v6074 = vunpack.c.h.b16 %v5769
    %v6075 = vunpack.c.l.b16 %v5770
    %v6076 = vunpack.c.h.b16 %v5770
    %v6077 = vunpack.c.l.b16 %v5771
    %v6078 = vunpack.c.h.b16 %v5771
    %v6079 = vunpack.c.l.b16 %v5772
    %v6080 = vunpack.c.h.b16 %v5772
    %v6081 = vunpack.c.l.b16 %v5773
    %v6082 = vunpack.c.h.b16 %v5773
    %v6083 = vunpack.c.l.b16 %v5774
    %v6084 = vunpack.c.h.b16 %v5774
    %v6085 = vunpack.c.l.b16 %v5775
    %v6086 = vunpack.c.h.b16 %v5775
    %v6087 = vunpack.c.l.b16 %v5776
    %v6088 = vunpack.c.h.b16 %v5776
    %v6089 = vunpack.c.l.b16 %v5777
    %v6090 = vunpack.c.h.b16 %v5777
    %v6091 = vunpack.c.l.b16 %v5778
    %v6092 = vunpack.c.h.b16 %v5778
    %v6093 = vunpack.c.l.b16 %v5779
    %v6094 = vunpack.c.h.b16 %v5779
    %v6095 = vunpack.c.l.b16 %v5780
    %v6096 = vunpack.c.h.b16 %v5780
    %v6097 = vunpack.c.l.b16 %v5781
    %v6098 = vunpack.c.h.b16 %v5781
    %v6099 = vunpack.c.l.b16 %v5782
    %v6100 = vunpack.c.h.b16 %v5782
    %v6101 = vunpack.c.l.b16 %v5783
    %v6102 = vunpack.c.h.b16 %v5783
    %v6103 = vunpack.c.l.b16 %v5784
    %v6104 = vunpack.c.h.b16 %v5784
    %v6105 = vunpack.c.l.b16 %v5785
    %v6106 = vunpack.c.h.b16 %v5785
    %v6107 = vunpack.c.l.b16 %v5786
    %v6108 = vunpack.c.h.b16 %v5786
    %v6109 = vunpack.c.l.b16 %v5787
    %v6110 = vunpack.c.h.b16 %v5787
    %v6111 = vunpack.c.l.b16 %v5788
    %v6112 = vunpack.c.h.b16 %v5788
    %v6113 = vunpack.c.l.b16 %v5789
    %v6114 = vunpack.c.h.b16 %v5789
    %v6115 = vunpack.c.l.b16 %v5790
    %v6116 = vunpack.c.h.b16 %v5790
    %v6117 = vunpack.c.l.b16 %v5791
    %v6118 = vunpack.c.h.b16 %v5791
    %v6119 = vunpack.c.l.b16 %v5792
    %v6120 = vunpack.c.h.b16 %v5792
    %v6121 = vunpack.c.l.b16 %v5793
    %v6122 = vunpack.c.h.b16 %v5793
    %v6123 = vunpack.c.l.b16 %v5794
    %v6124 = vunpack.c.h.b16 %v5794
    %v6125 = vunpack.c.l.b16 %v5795
    %v6126 = vunpack.c.h.b16 %v5795
    %v6127 = vunpack.c.l.b16 %v5796
    %v6128 = vunpack.c.h.b16 %v5796
    %v6129 = vunpack.c.l.b16 %v5797
    %v6130 = vunpack.c.h.b16 %v5797
    %v6131 = vunpack.c.l.b16 %v5798
    %v6132 = vunpack.c.h.b16 %v5798
    %v6133 = vunpack.c.l.b16 %v5799
    %v6134 = vunpack.c.h.b16 %v5799
    %v6135 = vunpack.c.l.b16 %v5800
    %v6136 = vunpack.c.h.b16 %v5800
    %v6137 = vunpack.c.l.b16 %v5801
    %v6138 = vunpack.c.h.b16 %v5801
    %v6139 = vunpack.c.l.b16 %v5802
    %v6140 = vunpack.c.h.b16 %v5802
    %v6141 = vunpack.c.l.b16 %v5803
    %v6142 = vunpack.c.h.b16 %v5803
    %v6143 = vunpack.c.l.b16 %v5804
    %v6144 = vunpack.c.h.b16 %v5804
    %v6145 = vunpack.c.l.b16 %v5805
    %v6146 = vunpack.c.h.b16 %v5805
    %v6147 = vunpack.c.l.b16 %v5806
    %v6148 = vunpack.c.h.b16 %v5806
    %v6149 = vunpack.c.l.b16 %v5807
    %v6150 = vunpack.c.h.b16 %v5807
    %v6151 = vunpack.c.l.b16 %v5808
    %v6152 = vunpack.c.h.b16 %v5808
    %v6153 = vunpack.c.l.b16 %v5809
    %v6154 = vunpack.c.h.b16 %v5809
    %v6155 = vunpack.c.l.b16 %v5810
    %v6156 = vunpack.c.h.b16 %v5810
    %v6157 = vunpack.c.l.b16 %v5811
    %v6158 = vunpack.c.h.b16 %v5811
    %v6159 = vunpack.c.l.b16 %v5812
    %v6160 = vunpack.c.h.b16 %v5812
    %v6161 = vunpack.c.l.b16 %v5813
    %v6162 = vunpack.c.h.b16 %v5813
    %v6163 = vunpack.c.l.b16 %v5814
    %v6164 = vunpack.c.h.b16 %v5814
    %v6165 = vunpack.c.l.b16 %v5815
    %v6166 = vunpack.c.h.b16 %v5815
    %v6167 = vunpack.c.l.b16 %v5816
    %v6168 = vunpack.c.h.b16 %v5816
    %v6169 = vunpack.c.l.b16 %v5817
    %v6170 = vunpack.c.h.b16 %v5817
    %v6171 = vunpack.c.l.b16 %v5818
    %v6172 = vunpack.c.h.b16 %v5818
    %v6173 = vunpack.c.l.b16 %v5819
    %v6174 = vunpack.c.h.b16 %v5819
    %v6175 = vunpack.c.l.b16 %v5820
    %v6176 = vunpack.c.h.b16 %v5820
    %v6177 = vunpack.c.l.b16 %v5821
    %v6178 = vunpack.c.h.b16 %v5821
    %v6179 = vunpack.c.l.b16 %v5822
    %v6180 = vunpack.c.h.b16 %v5822
    %v6181 = vunpack.c.l.b16 %v5823
    %v6182 = vunpack.c.h.b16 %v5823
    %v6183 = vunpack.c.l.b16 %v5824
    %v6184 = vunpack.c.h.b16 %v5824
    %v6185 = vunpack.c.l.b16 %v5825
    %v6186 = vunpack.c.h.b16 %v5825
    %v6187 = vunpack.c.l.b16 %v5826
    %v6188 = vunpack.c.h.b16 %v5826
    %v6189 = vunpack.c.l.b16 %v5827
    %v6190 = vunpack.c.h.b16 %v5827
    %v6191 = vunpack.c.l.b16 %v5828
    %v6192 = vunpack.c.h.b16 %v5828
    %v6193 = vunpack.c.l.b16 %v5829
    %v6194 = vunpack.c.h.b16 %v5829
    %v6195 = vunpack.c.l.b16 %v5830
    %v6196 = vunpack.c.h.b16 %v5830
    %v6197 = vunpack.c.l.b16 %v5831
    %v6198 = vunpack.c.h.b16 %v5831
    %v6199 = vunpack.c.l.b16 %v5832
    %v6200 = vunpack.c.h.b16 %v5832
    %v6201 = vunpack.c.l.b16 %v5833
    %v6202 = vunpack.c.h.b16 %v5833
    %v6203 = vunpack.c.l.b16 %v5834
    %v6204 = vunpack.c.h.b16 %v5834
    %v6205 = vunpack.c.l.b16 %v5835
    %v6206 = vunpack.c.h.b16 %v5835
    %v6207 = vunpack.c.l.b16 %v5836
    %v6208 = vunpack.c.h.b16 %v5836
    %v6209 = vunpack.c.l.b16 %v5837
    %v6210 = vunpack.c.h.b16 %v5837
    %v6211 = vunpack.c.l.b16 %v5838
    %v6212 = vunpack.c.h.b16 %v5838
    %v6213 = vunpack.c.l.b16 %v5839
    %v6214 = vunpack.c.h.b16 %v5839
    %v6215 = vunpack.c.l.b16 %v5840
    %v6216 = vunpack.c.h.b16 %v5840
    %v6217 = vunpack.c.l.b16 %v5841
    %v6218 = vunpack.c.h.b16 %v5841
    %v6219 = vunpack.c.l.b16 %v5842
    %v6220 = vunpack.c.h.b16 %v5842
    %v6221 = vunpack.c.l.b16 %v5843
    %v6222 = vunpack.c.h.b16 %v5843
    %v6223 = vunpack.c.l.b16 %v5844
    %v6224 = vunpack.c.h.b16 %v5844
    %v6225 = vunpack.c.l.b16 %v5845
    %v6226 = vunpack.c.h.b16 %v5845
    %v6227 = vunpack.c.l.b16 %v5846
    %v6228 = vunpack.c.h.b16 %v5846
    %v6229 = vunpack.c.l.b16 %v5847
    %v6230 = vunpack.c.h.b16 %v5847
    %v6231 = vunpack.c.l.b16 %v5848
    %v6232 = vunpack.c.h.b16 %v5848
    %v6233 = vpack.c.b16 %v5985, %v5977
    %v6234 = vpack.c.b16 %v5986, %v5978
    %v6235 = vpack.c.b16 %v5987, %v5979
    %v6236 = vpack.c.b16 %v5988, %v5980
    %v6237 = vpack.c.b16 %v5989, %v5981
    %v6238 = vpack.c.b16 %v5990, %v5982
    %v6239 = vpack.c.b16 %v5991, %v5983
    %v6240 = vpack.c.b16 %v5992, %v5984
    %v6241 = vpack.c.b16 %v6001, %v5993
    %v6242 = vpack.c.b16 %v6002, %v5994
    %v6243 = vpack.c.b16 %v6003, %v5995
    %v6244 = vpack.c.b16 %v6004, %v5996
    %v6245 = vpack.c.b16 %v6005, %v5997
    %v6246 = vpack.c.b16 %v6006, %v5998
    %v6247 = vpack.c.b16 %v6007, %v5999
    %v6248 = vpack.c.b16 %v6008, %v6000
    %v6249 = vpack.c.b16 %v6017, %v6009
    %v6250 = vpack.c.b16 %v6018, %v6010
    %v6251 = vpack.c.b16 %v6019, %v6011
    %v6252 = vpack.c.b16 %v6020, %v6012
    %v6253 = vpack.c.b16 %v6021, %v6013
    %v6254 = vpack.c.b16 %v6022, %v6014
    %v6255 = vpack.c.b16 %v6023, %v6015
    %v6256 = vpack.c.b16 %v6024, %v6016
    %v6257 = vpack.c.b16 %v6033, %v6025
    %v6258 = vpack.c.b16 %v6034, %v6026
    %v6259 = vpack.c.b16 %v6035, %v6027
    %v6260 = vpack.c.b16 %v6036, %v6028
    %v6261 = vpack.c.b16 %v6037, %v6029
    %v6262 = vpack.c.b16 %v6038, %v6030
    %v6263 = vpack.c.b16 %v6039, %v6031
    %v6264 = vpack.c.b16 %v6040, %v6032
    %v6265 = vpack.c.b16 %v6049, %v6041
    %v6266 = vpack.c.b16 %v6050, %v6042
    %v6267 = vpack.c.b16 %v6051, %v6043
    %v6268 = vpack.c.b16 %v6052, %v6044
    %v6269 = vpack.c.b16 %v6053, %v6045
    %v6270 = vpack.c.b16 %v6054, %v6046
    %v6271 = vpack.c.b16 %v6055, %v6047
    %v6272 = vpack.c.b16 %v6056, %v6048
    %v6273 = vpack.c.b16 %v6065, %v6057
    %v6274 = vpack.c.b16 %v6066, %v6058
    %v6275 = vpack.c.b16 %v6067, %v6059
    %v6276 = vpack.c.b16 %v6068, %v6060
    %v6277 = vpack.c.b16 %v6069, %v6061
    %v6278 = vpack.c.b16 %v6070, %v6062
    %v6279 = vpack.c.b16 %v6071, %v6063
    %v6280 = vpack.c.b16 %v6072, %v6064
    %v6281 = vpack.c.b16 %v6081, %v6073
    %v6282 = vpack.c.b16 %v6082, %v6074
    %v6283 = vpack.c.b16 %v6083, %v6075
    %v6284 = vpack.c.b16 %v6084, %v6076
    %v6285 = vpack.c.b16 %v6085, %v6077
    %v6286 = vpack.c.b16 %v6086, %v6078
    %v6287 = vpack.c.b16 %v6087, %v6079
    %v6288 = vpack.c.b16 %v6088, %v6080
    %v6289 = vpack.c.b16 %v6097, %v6089
    %v6290 = vpack.c.b16 %v6098, %v6090
    %v6291 = vpack.c.b16 %v6099, %v6091
    %v6292 = vpack.c.b16 %v6100, %v6092
    %v6293 = vpack.c.b16 %v6101, %v6093
    %v6294 = vpack.c.b16 %v6102, %v6094
    %v6295 = vpack.c.b16 %v6103, %v6095
    %v6296 = vpack.c.b16 %v6104, %v6096
    %v6297 = vpack.c.b16 %v6113, %v6105
    %v6298 = vpack.c.b16 %v6114, %v6106
    %v6299 = vpack.c.b16 %v6115, %v6107
    %v6300 = vpack.c.b16 %v6116, %v6108
    %v6301 = vpack.c.b16 %v6117, %v6109
    %v6302 = vpack.c.b16 %v6118, %v6110
    %v6303 = vpack.c.b16 %v6119, %v6111
    %v6304 = vpack.c.b16 %v6120, %v6112
    %v6305 = vpack.c.b16 %v6129, %v6121
    %v6306 = vpack.c.b16 %v6130, %v6122
    %v6307 = vpack.c.b16 %v6131, %v6123
    %v6308 = vpack.c.b16 %v6132, %v6124
    %v6309 = vpack.c.b16 %v6133, %v6125
    %v6310 = vpack.c.b16 %v6134, %v6126
    %v6311 = vpack.c.b16 %v6135, %v6127
    %v6312 = vpack.c.b16 %v6136, %v6128
    %v6313 = vpack.c.b16 %v6145, %v6137
    %v6314 = vpack.c.b16 %v6146, %v6138
    %v6315 = vpack.c.b16 %v6147, %v6139
    %v6316 = vpack.c.b16 %v6148, %v6140
    %v6317 = vpack.c.b16 %v6149, %v6141
    %v6318 = vpack.c.b16 %v6150, %v6142
    %v6319 = vpack.c.b16 %v6151, %v6143
    %v6320 = vpack.c.b16 %v6152, %v6144
    %v6321 = vpack.c.b16 %v6161, %v6153
    %v6322 = vpack.c.b16 %v6162, %v6154
    %v6323 = vpack.c.b16 %v6163, %v6155
    %v6324 = vpack.c.b16 %v6164, %v6156
    %v6325 = vpack.c.b16 %v6165, %v6157
    %v6326 = vpack.c.b16 %v6166, %v6158
    %v6327 = vpack.c.b16 %v6167, %v6159
    %v6328 = vpack.c.b16 %v6168, %v6160
    %v6329 = vpack.c.b16 %v6177, %v6169
    %v6330 = vpack.c.b16 %v6178, %v6170
    %v6331 = vpack.c.b16 %v6179, %v6171
    %v6332 = vpack.c.b16 %v6180, %v6172
    %v6333 = vpack.c.b16 %v6181, %v6173
    %v6334 = vpack.c.b16 %v6182, %v6174
    %v6335 = vpack.c.b16 %v6183, %v6175
    %v6336 = vpack.c.b16 %v6184, %v6176
    %v6337 = vpack.c.b16 %v6193, %v6185
    %v6338 = vpack.c.b16 %v6194, %v6186
    %v6339 = vpack.c.b16 %v6195, %v6187
    %v6340 = vpack.c.b16 %v6196, %v6188
    %v6341 = vpack.c.b16 %v6197, %v6189
    %v6342 = vpack.c.b16 %v6198, %v6190
    %v6343 = vpack.c.b16 %v6199, %v6191
    %v6344 = vpack.c.b16 %v6200, %v6192
    %v6345 = vpack.c.b16 %v6209, %v6201
    %v6346 = vpack.c.b16 %v6210, %v6202
    %v6347 = vpack.c.b16 %v6211, %v6203
    %v6348 = vpack.c.b16 %v6212, %v6204
    %v6349 = vpack.c.b16 %v6213, %v6205
    %v6350 = vpack.c.b16 %v6214, %v6206
    %v6351 = vpack.c.b16 %v6215, %v6207
    %v6352 = vpack.c.b16 %v6216, %v6208
    %v6353 = vpack.c.b16 %v6225, %v6217
    %v6354 = vpack.c.b16 %v6226, %v6218
    %v6355 = vpack.c.b16 %v6227, %v6219
    %v6356 = vpack.c.b16 %v6228, %v6220
    %v6357 = vpack.c.b16 %v6229, %v6221
    %v6358 = vpack.c.b16 %v6230, %v6222
    %v6359 = vpack.c.b16 %v6231, %v6223
    %v6360 = vpack.c.b16 %v6232, %v6224
    %6489 = vmatprep.subr.bf16.mxu0 %v6290
    %6490 = vmatpush1.bf16.msra.mxu0 %v6289
    %6491 = vmatprep.subr.bf16.mxu0 %v6282
    %6492 = vmatpush1.bf16.msra.mxu0 %v6281
    %6493 = vmatprep.subr.bf16.mxu0 %v6274
    %6494 = vmatpush1.bf16.msra.mxu0 %v6273
    %6495 = vmatprep.subr.bf16.mxu0 %v6266
    %6496 = vmatpush1.bf16.msra.mxu0 %v6265
    %6497 = vmatprep.subr.bf16.mxu0 %v6258
    %6498 = vmatpush1.bf16.msra.mxu0 %v6257
    %6499 = vmatprep.subr.bf16.mxu0 %v6250
    %6500 = vmatpush1.bf16.msra.mxu0 %v6249
    %6501 = vmatprep.subr.bf16.mxu0 %v6242
    %6502 = vmatpush1.bf16.msra.mxu0 %v6241
    %6503 = vmatprep.subr.bf16.mxu0 %v6234
    %6504 = vmatpush1.bf16.msra.mxu0 %v6233
    %6505 = vmatprep.subr.bf16.mxu0 %v6354
    %6506 = vmatpush2.bf16.msra.mxu0 %v6353
    %6507 = vmatprep.subr.bf16.mxu0 %v6346
    %6508 = vmatpush2.bf16.msra.mxu0 %v6345
    %6509 = vmatprep.subr.bf16.mxu0 %v6338
    %6510 = vmatpush2.bf16.msra.mxu0 %v6337
    %6511 = vmatprep.subr.bf16.mxu0 %v6330
    %6512 = vmatpush2.bf16.msra.mxu0 %v6329
    %6513 = vmatprep.subr.bf16.mxu0 %v6322
    %6514 = vmatpush2.bf16.msra.mxu0 %v6321
    %6515 = vmatprep.subr.bf16.mxu0 %v6314
    %6516 = vmatpush2.bf16.msra.mxu0 %v6313
    %6517 = vmatprep.subr.bf16.mxu0 %v6306
    %6518 = vmatpush2.bf16.msra.mxu0 %v6305
    %6519 = vmatprep.subr.bf16.mxu0 %v6298
    %6520 = vmatpush2.bf16.msra.mxu0 %v6297
    %6521 = vmatprep.mubr.bf16.mxu0 %v5720
    %6522 = vmatmul.mubr.bf16.gmra.mxu0 %v5719
    %v6523 = vpop.f32.mrf.mxu0
    %v6524 = vadd.f32 0.0, %v6523
    %v6525 = vpop.f32.mrf.mxu0
    %v6526 = vadd.f32 0.0, %v6525
    %v6527 = vpop.f32.mrf.mxu0
    %v6528 = vpop.f32.mrf.mxu0
    %6529 = vdwg.mxu0
    %6530 = vmatprep.subr.bf16.mxu0 %v6292
    %6531 = vmatpush1.bf16.msra.mxu0 %v6291
    %6532 = vmatprep.subr.bf16.mxu0 %v6284
    %6533 = vmatpush1.bf16.msra.mxu0 %v6283
    %6534 = vmatprep.subr.bf16.mxu0 %v6276
    %6535 = vmatpush1.bf16.msra.mxu0 %v6275
    %6536 = vmatprep.subr.bf16.mxu0 %v6268
    %6537 = vmatpush1.bf16.msra.mxu0 %v6267
    %6538 = vmatprep.subr.bf16.mxu0 %v6260
    %6539 = vmatpush1.bf16.msra.mxu0 %v6259
    %6540 = vmatprep.subr.bf16.mxu0 %v6252
    %6541 = vmatpush1.bf16.msra.mxu0 %v6251
    %6542 = vmatprep.subr.bf16.mxu0 %v6244
    %6543 = vmatpush1.bf16.msra.mxu0 %v6243
    %6544 = vmatprep.subr.bf16.mxu0 %v6236
    %6545 = vmatpush1.bf16.msra.mxu0 %v6235
    %6546 = vmatprep.subr.bf16.mxu0 %v6356
    %6547 = vmatpush2.bf16.msra.mxu0 %v6355
    %6548 = vmatprep.subr.bf16.mxu0 %v6348
    %6549 = vmatpush2.bf16.msra.mxu0 %v6347
    %6550 = vmatprep.subr.bf16.mxu0 %v6340
    %6551 = vmatpush2.bf16.msra.mxu0 %v6339
    %6552 = vmatprep.subr.bf16.mxu0 %v6332
    %6553 = vmatpush2.bf16.msra.mxu0 %v6331
    %6554 = vmatprep.subr.bf16.mxu0 %v6324
    %6555 = vmatpush2.bf16.msra.mxu0 %v6323
    %6556 = vmatprep.subr.bf16.mxu0 %v6316
    %6557 = vmatpush2.bf16.msra.mxu0 %v6315
    %6558 = vmatprep.subr.bf16.mxu0 %v6308
    %6559 = vmatpush2.bf16.msra.mxu0 %v6307
    %6560 = vmatprep.subr.bf16.mxu0 %v6300
    %6561 = vmatpush2.bf16.msra.mxu0 %v6299
    %6562 = vmatprep.mubr.bf16.mxu0 %v5720
    %6563 = vmatmul.mubr.bf16.gmra.mxu0 %v5719
    %v6564 = vpop.f32.mrf.mxu0
    %v6565 = vadd.f32 0.0, %v6564
    %v6566 = vpop.f32.mrf.mxu0
    %v6567 = vadd.f32 0.0, %v6566
    %v6568 = vpop.f32.mrf.mxu0
    %v6569 = vpop.f32.mrf.mxu0
    %6570 = vdwg.mxu0
    %6571 = vmatprep.subr.bf16.mxu0 %v6294
    %6572 = vmatpush1.bf16.msra.mxu0 %v6293
    %6573 = vmatprep.subr.bf16.mxu0 %v6286
    %6574 = vmatpush1.bf16.msra.mxu0 %v6285
    %6575 = vmatprep.subr.bf16.mxu0 %v6278
    %6576 = vmatpush1.bf16.msra.mxu0 %v6277
    %6577 = vmatprep.subr.bf16.mxu0 %v6270
    %6578 = vmatpush1.bf16.msra.mxu0 %v6269
    %6579 = vmatprep.subr.bf16.mxu0 %v6262
    %6580 = vmatpush1.bf16.msra.mxu0 %v6261
    %6581 = vmatprep.subr.bf16.mxu0 %v6254
    %6582 = vmatpush1.bf16.msra.mxu0 %v6253
    %6583 = vmatprep.subr.bf16.mxu0 %v6246
    %6584 = vmatpush1.bf16.msra.mxu0 %v6245
    %6585 = vmatprep.subr.bf16.mxu0 %v6238
    %6586 = vmatpush1.bf16.msra.mxu0 %v6237
    %6587 = vmatprep.subr.bf16.mxu0 %v6358
    %6588 = vmatpush2.bf16.msra.mxu0 %v6357
    %6589 = vmatprep.subr.bf16.mxu0 %v6350
    %6590 = vmatpush2.bf16.msra.mxu0 %v6349
    %6591 = vmatprep.subr.bf16.mxu0 %v6342
    %6592 = vmatpush2.bf16.msra.mxu0 %v6341
    %6593 = vmatprep.subr.bf16.mxu0 %v6334
    %6594 = vmatpush2.bf16.msra.mxu0 %v6333
    %6595 = vmatprep.subr.bf16.mxu0 %v6326
    %6596 = vmatpush2.bf16.msra.mxu0 %v6325
    %6597 = vmatprep.subr.bf16.mxu0 %v6318
    %6598 = vmatpush2.bf16.msra.mxu0 %v6317
    %6599 = vmatprep.subr.bf16.mxu0 %v6310
    %6600 = vmatpush2.bf16.msra.mxu0 %v6309
    %6601 = vmatprep.subr.bf16.mxu0 %v6302
    %6602 = vmatpush2.bf16.msra.mxu0 %v6301
    %6603 = vmatprep.mubr.bf16.mxu0 %v5720
    %6604 = vmatmul.mubr.bf16.gmra.mxu0 %v5719
    %v6605 = vpop.f32.mrf.mxu0
    %v6606 = vadd.f32 0.0, %v6605
    %v6607 = vpop.f32.mrf.mxu0
    %v6608 = vadd.f32 0.0, %v6607
    %v6609 = vpop.f32.mrf.mxu0
    %v6610 = vpop.f32.mrf.mxu0
    %6611 = vdwg.mxu0
    %6612 = vmatprep.subr.bf16.mxu0 %v6296
    %6613 = vmatpush1.bf16.msra.mxu0 %v6295
    %6614 = vmatprep.subr.bf16.mxu0 %v6288
    %6615 = vmatpush1.bf16.msra.mxu0 %v6287
    %6616 = vmatprep.subr.bf16.mxu0 %v6280
    %6617 = vmatpush1.bf16.msra.mxu0 %v6279
    %6618 = vmatprep.subr.bf16.mxu0 %v6272
    %6619 = vmatpush1.bf16.msra.mxu0 %v6271
    %6620 = vmatprep.subr.bf16.mxu0 %v6264
    %6621 = vmatpush1.bf16.msra.mxu0 %v6263
    %6622 = vmatprep.subr.bf16.mxu0 %v6256
    %6623 = vmatpush1.bf16.msra.mxu0 %v6255
    %6624 = vmatprep.subr.bf16.mxu0 %v6248
    %6625 = vmatpush1.bf16.msra.mxu0 %v6247
    %6626 = vmatprep.subr.bf16.mxu0 %v6240
    %6627 = vmatpush1.bf16.msra.mxu0 %v6239
    %6628 = vmatprep.subr.bf16.mxu0 %v6360
    %6629 = vmatpush2.bf16.msra.mxu0 %v6359
    %6630 = vmatprep.subr.bf16.mxu0 %v6352
    %6631 = vmatpush2.bf16.msra.mxu0 %v6351
    %6632 = vmatprep.subr.bf16.mxu0 %v6344
    %6633 = vmatpush2.bf16.msra.mxu0 %v6343
    %6634 = vmatprep.subr.bf16.mxu0 %v6336
    %6635 = vmatpush2.bf16.msra.mxu0 %v6335
    %6636 = vmatprep.subr.bf16.mxu0 %v6328
    %6637 = vmatpush2.bf16.msra.mxu0 %v6327
    %6638 = vmatprep.subr.bf16.mxu0 %v6320
    %6639 = vmatpush2.bf16.msra.mxu0 %v6319
    %6640 = vmatprep.subr.bf16.mxu0 %v6312
    %6641 = vmatpush2.bf16.msra.mxu0 %v6311
    %6642 = vmatprep.subr.bf16.mxu0 %v6304
    %6643 = vmatpush2.bf16.msra.mxu0 %v6303
    %6644 = vmatprep.mubr.bf16.mxu0 %v5720
    %6645 = vmatmul.mubr.bf16.gmra.mxu0 %v5719
    %v6646 = vpop.f32.mrf.mxu0
    %v6647 = vadd.f32 0.0, %v6646
    %v6648 = vpop.f32.mrf.mxu0
    %v6649 = vadd.f32 0.0, %v6648
    %v6650 = vpop.f32.mrf.mxu0
    %v6651 = vpop.f32.mrf.mxu0
    %6652 = vdwg.mxu0
    %v6653 = vadd.f32 %v5711, %v6524
    %v6654 = vadd.f32 %v5712, %v6526
    %v6655 = vadd.f32 %v5713, %v6565
    %v6656 = vadd.f32 %v5714, %v6567
    %v6657 = vadd.f32 %v5715, %v6606
    %v6658 = vadd.f32 %v5716, %v6608
    %v6659 = vadd.f32 %v5717, %v6647
    %v6660 = vadd.f32 %v5718, %v6649
    %v6661 = vxor.u32 %v6653, 2147483648
    %v6662 = vxor.u32 %v6654, 2147483648
    %v6663 = vxor.u32 %v6655, 2147483648
    %v6664 = vxor.u32 %v6656, 2147483648
    %v6665 = vxor.u32 %v6657, 2147483648
    %v6666 = vxor.u32 %v6658, 2147483648
    %v6667 = vmul.f32 %v6661, 1.442695
    %v6668 = vpow.pop %v6667
    %v6669 = vmul.f32 %v6662, 1.442695
    %v6670 = vpow.pop %v6669
    %v6671 = vmul.f32 %v6663, 1.442695
    %v6672 = vpow.pop %v6671
    %v6673 = vmul.f32 %v6664, 1.442695
    %v6674 = vpow.pop %v6673
    %v6675 = vmul.f32 %v6665, 1.442695
    %v6676 = vpow.pop %v6675
    %v6677 = vmul.f32 %v6666, 1.442695
    %v6678 = vpow.pop %v6677
    %v6679 = vadd.f32 %v6668, 1.0
    %v6680 = vadd.f32 %v6670, 1.0
    %v6681 = vadd.f32 %v6672, 1.0
    %v6682 = vadd.f32 %v6674, 1.0
    %v6683 = vadd.f32 %v6676, 1.0
    %v6684 = vadd.f32 %v6678, 1.0
    %v6685 = vrcp.pop %v6679
    %v6686 = vmul.f32 1.0, %v6685
    %v6687 = vrcp.pop %v6680
    %v6688 = vmul.f32 1.0, %v6687
    %v6689 = vrcp.pop %v6681
    %v6690 = vmul.f32 1.0, %v6689
    %v6691 = vrcp.pop %v6682
    %v6692 = vmul.f32 1.0, %v6691
    %v6693 = vrcp.pop %v6683
    %v6694 = vmul.f32 1.0, %v6693
    %v6695 = vrcp.pop %v6684
    %v6696 = vmul.f32 1.0, %v6695
    %v6697 = vtanh.pop %v6659
    %v6698 = vtanh.pop %v6660
    %v6699 = vmul.f32 %v6690, %v5700
    %v6700 = vmul.f32 %v6692, %v5701
    %v6701 = vmul.f32 %v6686, %v6697
    %v6702 = vmul.f32 %v6688, %v6698
    %v6703 = vadd.f32 %v6699, %v6701
    %v6704 = vadd.f32 %v6700, %v6702
    %v6705 = vtanh.pop %v6703
    %v6706 = vtanh.pop %v6704
    %v6707 = vmul.f32 %v6694, %v6705
    %v6708 = vmul.f32 %v6696, %v6706
    %v6710 = vrot.slane %v6707, 1
    %6712 = vst [vmem:[#allocation3 + $0x5] sm:$0x1] %v6710
    %6713 = vst [vmem:[#allocation3 + $0xa] sm:$0x1] %v6708
    %v6714 = vld [vmem:[#allocation2 + $0x180] sm:$0xff]
    %v6715 = vld [vmem:[#allocation2 + $0x188] sm:$0xff]
    %v6716 = vld [vmem:[#allocation2 + $0x190] sm:$0xff]
    %v6717 = vld [vmem:[#allocation2 + $0x198] sm:$0xff]
    %v6718 = vld [vmem:[#allocation2 + $0x1a0] sm:$0xff]
    %v6719 = vld [vmem:[#allocation2 + $0x1a8] sm:$0xff]
    %v6720 = vld [vmem:[#allocation2 + $0x1b0] sm:$0xff]
    %v6721 = vld [vmem:[#allocation2 + $0x1b8] sm:$0xff]
    %v6722 = vpack.c.bf16 %v6707, %v6707
    %v6723 = vpack.c.bf16 %v6708, %v6708
    %v6724 = vld [vmem:[#allocation7] sm:$0xff]
    %v6725 = vld [vmem:[#allocation7 + $0x8] sm:$0xff]
    %v6726 = vld [vmem:[#allocation7 + $0x10] sm:$0xff]
    %v6727 = vld [vmem:[#allocation7 + $0x18] sm:$0xff]
    %v6728 = vld [vmem:[#allocation7 + $0x20] sm:$0xff]
    %v6729 = vld [vmem:[#allocation7 + $0x28] sm:$0xff]
    %v6730 = vld [vmem:[#allocation7 + $0x30] sm:$0xff]
    %v6731 = vld [vmem:[#allocation7 + $0x38] sm:$0xff]
    %v6732 = vld [vmem:[#allocation7 + $0x40] sm:$0xff]
    %v6733 = vld [vmem:[#allocation7 + $0x48] sm:$0xff]
    %v6734 = vld [vmem:[#allocation7 + $0x50] sm:$0xff]
    %v6735 = vld [vmem:[#allocation7 + $0x58] sm:$0xff]
    %v6736 = vld [vmem:[#allocation7 + $0x60] sm:$0xff]
    %v6737 = vld [vmem:[#allocation7 + $0x68] sm:$0xff]
    %v6738 = vld [vmem:[#allocation7 + $0x70] sm:$0xff]
    %v6739 = vld [vmem:[#allocation7 + $0x78] sm:$0xff]
    %v6740 = vld [vmem:[#allocation7 + $0x80] sm:$0xff]
    %v6741 = vld [vmem:[#allocation7 + $0x88] sm:$0xff]
    %v6742 = vld [vmem:[#allocation7 + $0x90] sm:$0xff]
    %v6743 = vld [vmem:[#allocation7 + $0x98] sm:$0xff]
    %v6744 = vld [vmem:[#allocation7 + $0xa0] sm:$0xff]
    %v6745 = vld [vmem:[#allocation7 + $0xa8] sm:$0xff]
    %v6746 = vld [vmem:[#allocation7 + $0xb0] sm:$0xff]
    %v6747 = vld [vmem:[#allocation7 + $0xb8] sm:$0xff]
    %v6748 = vld [vmem:[#allocation7 + $0xc0] sm:$0xff]
    %v6749 = vld [vmem:[#allocation7 + $0xc8] sm:$0xff]
    %v6750 = vld [vmem:[#allocation7 + $0xd0] sm:$0xff]
    %v6751 = vld [vmem:[#allocation7 + $0xd8] sm:$0xff]
    %v6752 = vld [vmem:[#allocation7 + $0xe0] sm:$0xff]
    %v6753 = vld [vmem:[#allocation7 + $0xe8] sm:$0xff]
    %v6754 = vld [vmem:[#allocation7 + $0xf0] sm:$0xff]
    %v6755 = vld [vmem:[#allocation7 + $0xf8] sm:$0xff]
    %v6756 = vld [vmem:[#allocation7 + $0x100] sm:$0xff]
    %v6757 = vld [vmem:[#allocation7 + $0x108] sm:$0xff]
    %v6758 = vld [vmem:[#allocation7 + $0x110] sm:$0xff]
    %v6759 = vld [vmem:[#allocation7 + $0x118] sm:$0xff]
    %v6760 = vld [vmem:[#allocation7 + $0x120] sm:$0xff]
    %v6761 = vld [vmem:[#allocation7 + $0x128] sm:$0xff]
    %v6762 = vld [vmem:[#allocation7 + $0x130] sm:$0xff]
    %v6763 = vld [vmem:[#allocation7 + $0x138] sm:$0xff]
    %v6764 = vld [vmem:[#allocation7 + $0x140] sm:$0xff]
    %v6765 = vld [vmem:[#allocation7 + $0x148] sm:$0xff]
    %v6766 = vld [vmem:[#allocation7 + $0x150] sm:$0xff]
    %v6767 = vld [vmem:[#allocation7 + $0x158] sm:$0xff]
    %v6768 = vld [vmem:[#allocation7 + $0x160] sm:$0xff]
    %v6769 = vld [vmem:[#allocation7 + $0x168] sm:$0xff]
    %v6770 = vld [vmem:[#allocation7 + $0x170] sm:$0xff]
    %v6771 = vld [vmem:[#allocation7 + $0x178] sm:$0xff]
    %v6772 = vld [vmem:[#allocation7 + $0x180] sm:$0xff]
    %v6773 = vld [vmem:[#allocation7 + $0x188] sm:$0xff]
    %v6774 = vld [vmem:[#allocation7 + $0x190] sm:$0xff]
    %v6775 = vld [vmem:[#allocation7 + $0x198] sm:$0xff]
    %v6776 = vld [vmem:[#allocation7 + $0x1a0] sm:$0xff]
    %v6777 = vld [vmem:[#allocation7 + $0x1a8] sm:$0xff]
    %v6778 = vld [vmem:[#allocation7 + $0x1b0] sm:$0xff]
    %v6779 = vld [vmem:[#allocation7 + $0x1b8] sm:$0xff]
    %v6780 = vld [vmem:[#allocation7 + $0x1c0] sm:$0xff]
    %v6781 = vld [vmem:[#allocation7 + $0x1c8] sm:$0xff]
    %v6782 = vld [vmem:[#allocation7 + $0x1d0] sm:$0xff]
    %v6783 = vld [vmem:[#allocation7 + $0x1d8] sm:$0xff]
    %v6784 = vld [vmem:[#allocation7 + $0x1e0] sm:$0xff]
    %v6785 = vld [vmem:[#allocation7 + $0x1e8] sm:$0xff]
    %v6786 = vld [vmem:[#allocation7 + $0x1f0] sm:$0xff]
    %v6787 = vld [vmem:[#allocation7 + $0x1f8] sm:$0xff]
    %v6788 = vld [vmem:[#allocation7 + $0x200] sm:$0xff]
    %v6789 = vld [vmem:[#allocation7 + $0x208] sm:$0xff]
    %v6790 = vld [vmem:[#allocation7 + $0x210] sm:$0xff]
    %v6791 = vld [vmem:[#allocation7 + $0x218] sm:$0xff]
    %v6792 = vld [vmem:[#allocation7 + $0x220] sm:$0xff]
    %v6793 = vld [vmem:[#allocation7 + $0x228] sm:$0xff]
    %v6794 = vld [vmem:[#allocation7 + $0x230] sm:$0xff]
    %v6795 = vld [vmem:[#allocation7 + $0x238] sm:$0xff]
    %v6796 = vld [vmem:[#allocation7 + $0x240] sm:$0xff]
    %v6797 = vld [vmem:[#allocation7 + $0x248] sm:$0xff]
    %v6798 = vld [vmem:[#allocation7 + $0x250] sm:$0xff]
    %v6799 = vld [vmem:[#allocation7 + $0x258] sm:$0xff]
    %v6800 = vld [vmem:[#allocation7 + $0x260] sm:$0xff]
    %v6801 = vld [vmem:[#allocation7 + $0x268] sm:$0xff]
    %v6802 = vld [vmem:[#allocation7 + $0x270] sm:$0xff]
    %v6803 = vld [vmem:[#allocation7 + $0x278] sm:$0xff]
    %v6804 = vld [vmem:[#allocation7 + $0x280] sm:$0xff]
    %v6805 = vld [vmem:[#allocation7 + $0x288] sm:$0xff]
    %v6806 = vld [vmem:[#allocation7 + $0x290] sm:$0xff]
    %v6807 = vld [vmem:[#allocation7 + $0x298] sm:$0xff]
    %v6808 = vld [vmem:[#allocation7 + $0x2a0] sm:$0xff]
    %v6809 = vld [vmem:[#allocation7 + $0x2a8] sm:$0xff]
    %v6810 = vld [vmem:[#allocation7 + $0x2b0] sm:$0xff]
    %v6811 = vld [vmem:[#allocation7 + $0x2b8] sm:$0xff]
    %v6812 = vld [vmem:[#allocation7 + $0x2c0] sm:$0xff]
    %v6813 = vld [vmem:[#allocation7 + $0x2c8] sm:$0xff]
    %v6814 = vld [vmem:[#allocation7 + $0x2d0] sm:$0xff]
    %v6815 = vld [vmem:[#allocation7 + $0x2d8] sm:$0xff]
    %v6816 = vld [vmem:[#allocation7 + $0x2e0] sm:$0xff]
    %v6817 = vld [vmem:[#allocation7 + $0x2e8] sm:$0xff]
    %v6818 = vld [vmem:[#allocation7 + $0x2f0] sm:$0xff]
    %v6819 = vld [vmem:[#allocation7 + $0x2f8] sm:$0xff]
    %v6820 = vld [vmem:[#allocation7 + $0x300] sm:$0xff]
    %v6821 = vld [vmem:[#allocation7 + $0x308] sm:$0xff]
    %v6822 = vld [vmem:[#allocation7 + $0x310] sm:$0xff]
    %v6823 = vld [vmem:[#allocation7 + $0x318] sm:$0xff]
    %v6824 = vld [vmem:[#allocation7 + $0x320] sm:$0xff]
    %v6825 = vld [vmem:[#allocation7 + $0x328] sm:$0xff]
    %v6826 = vld [vmem:[#allocation7 + $0x330] sm:$0xff]
    %v6827 = vld [vmem:[#allocation7 + $0x338] sm:$0xff]
    %v6828 = vld [vmem:[#allocation7 + $0x340] sm:$0xff]
    %v6829 = vld [vmem:[#allocation7 + $0x348] sm:$0xff]
    %v6830 = vld [vmem:[#allocation7 + $0x350] sm:$0xff]
    %v6831 = vld [vmem:[#allocation7 + $0x358] sm:$0xff]
    %v6832 = vld [vmem:[#allocation7 + $0x360] sm:$0xff]
    %v6833 = vld [vmem:[#allocation7 + $0x368] sm:$0xff]
    %v6834 = vld [vmem:[#allocation7 + $0x370] sm:$0xff]
    %v6835 = vld [vmem:[#allocation7 + $0x378] sm:$0xff]
    %v6836 = vld [vmem:[#allocation7 + $0x380] sm:$0xff]
    %v6837 = vld [vmem:[#allocation7 + $0x388] sm:$0xff]
    %v6838 = vld [vmem:[#allocation7 + $0x390] sm:$0xff]
    %v6839 = vld [vmem:[#allocation7 + $0x398] sm:$0xff]
    %v6840 = vld [vmem:[#allocation7 + $0x3a0] sm:$0xff]
    %v6841 = vld [vmem:[#allocation7 + $0x3a8] sm:$0xff]
    %v6842 = vld [vmem:[#allocation7 + $0x3b0] sm:$0xff]
    %v6843 = vld [vmem:[#allocation7 + $0x3b8] sm:$0xff]
    %v6844 = vld [vmem:[#allocation7 + $0x3c0] sm:$0xff]
    %v6845 = vld [vmem:[#allocation7 + $0x3c8] sm:$0xff]
    %v6846 = vld [vmem:[#allocation7 + $0x3d0] sm:$0xff]
    %v6847 = vld [vmem:[#allocation7 + $0x3d8] sm:$0xff]
    %v6848 = vld [vmem:[#allocation7 + $0x3e0] sm:$0xff]
    %v6849 = vld [vmem:[#allocation7 + $0x3e8] sm:$0xff]
    %v6850 = vld [vmem:[#allocation7 + $0x3f0] sm:$0xff]
    %v6851 = vld [vmem:[#allocation7 + $0x3f8] sm:$0xff]
    %v6980 = vunpack.c.l.b16 %v6724
    %v6981 = vunpack.c.h.b16 %v6724
    %v6982 = vunpack.c.l.b16 %v6725
    %v6983 = vunpack.c.h.b16 %v6725
    %v6984 = vunpack.c.l.b16 %v6726
    %v6985 = vunpack.c.h.b16 %v6726
    %v6986 = vunpack.c.l.b16 %v6727
    %v6987 = vunpack.c.h.b16 %v6727
    %v6988 = vunpack.c.l.b16 %v6728
    %v6989 = vunpack.c.h.b16 %v6728
    %v6990 = vunpack.c.l.b16 %v6729
    %v6991 = vunpack.c.h.b16 %v6729
    %v6992 = vunpack.c.l.b16 %v6730
    %v6993 = vunpack.c.h.b16 %v6730
    %v6994 = vunpack.c.l.b16 %v6731
    %v6995 = vunpack.c.h.b16 %v6731
    %v6996 = vunpack.c.l.b16 %v6732
    %v6997 = vunpack.c.h.b16 %v6732
    %v6998 = vunpack.c.l.b16 %v6733
    %v6999 = vunpack.c.h.b16 %v6733
    %v7000 = vunpack.c.l.b16 %v6734
    %v7001 = vunpack.c.h.b16 %v6734
    %v7002 = vunpack.c.l.b16 %v6735
    %v7003 = vunpack.c.h.b16 %v6735
    %v7004 = vunpack.c.l.b16 %v6736
    %v7005 = vunpack.c.h.b16 %v6736
    %v7006 = vunpack.c.l.b16 %v6737
    %v7007 = vunpack.c.h.b16 %v6737
    %v7008 = vunpack.c.l.b16 %v6738
    %v7009 = vunpack.c.h.b16 %v6738
    %v7010 = vunpack.c.l.b16 %v6739
    %v7011 = vunpack.c.h.b16 %v6739
    %v7012 = vunpack.c.l.b16 %v6740
    %v7013 = vunpack.c.h.b16 %v6740
    %v7014 = vunpack.c.l.b16 %v6741
    %v7015 = vunpack.c.h.b16 %v6741
    %v7016 = vunpack.c.l.b16 %v6742
    %v7017 = vunpack.c.h.b16 %v6742
    %v7018 = vunpack.c.l.b16 %v6743
    %v7019 = vunpack.c.h.b16 %v6743
    %v7020 = vunpack.c.l.b16 %v6744
    %v7021 = vunpack.c.h.b16 %v6744
    %v7022 = vunpack.c.l.b16 %v6745
    %v7023 = vunpack.c.h.b16 %v6745
    %v7024 = vunpack.c.l.b16 %v6746
    %v7025 = vunpack.c.h.b16 %v6746
    %v7026 = vunpack.c.l.b16 %v6747
    %v7027 = vunpack.c.h.b16 %v6747
    %v7028 = vunpack.c.l.b16 %v6748
    %v7029 = vunpack.c.h.b16 %v6748
    %v7030 = vunpack.c.l.b16 %v6749
    %v7031 = vunpack.c.h.b16 %v6749
    %v7032 = vunpack.c.l.b16 %v6750
    %v7033 = vunpack.c.h.b16 %v6750
    %v7034 = vunpack.c.l.b16 %v6751
    %v7035 = vunpack.c.h.b16 %v6751
    %v7036 = vunpack.c.l.b16 %v6752
    %v7037 = vunpack.c.h.b16 %v6752
    %v7038 = vunpack.c.l.b16 %v6753
    %v7039 = vunpack.c.h.b16 %v6753
    %v7040 = vunpack.c.l.b16 %v6754
    %v7041 = vunpack.c.h.b16 %v6754
    %v7042 = vunpack.c.l.b16 %v6755
    %v7043 = vunpack.c.h.b16 %v6755
    %v7044 = vunpack.c.l.b16 %v6756
    %v7045 = vunpack.c.h.b16 %v6756
    %v7046 = vunpack.c.l.b16 %v6757
    %v7047 = vunpack.c.h.b16 %v6757
    %v7048 = vunpack.c.l.b16 %v6758
    %v7049 = vunpack.c.h.b16 %v6758
    %v7050 = vunpack.c.l.b16 %v6759
    %v7051 = vunpack.c.h.b16 %v6759
    %v7052 = vunpack.c.l.b16 %v6760
    %v7053 = vunpack.c.h.b16 %v6760
    %v7054 = vunpack.c.l.b16 %v6761
    %v7055 = vunpack.c.h.b16 %v6761
    %v7056 = vunpack.c.l.b16 %v6762
    %v7057 = vunpack.c.h.b16 %v6762
    %v7058 = vunpack.c.l.b16 %v6763
    %v7059 = vunpack.c.h.b16 %v6763
    %v7060 = vunpack.c.l.b16 %v6764
    %v7061 = vunpack.c.h.b16 %v6764
    %v7062 = vunpack.c.l.b16 %v6765
    %v7063 = vunpack.c.h.b16 %v6765
    %v7064 = vunpack.c.l.b16 %v6766
    %v7065 = vunpack.c.h.b16 %v6766
    %v7066 = vunpack.c.l.b16 %v6767
    %v7067 = vunpack.c.h.b16 %v6767
    %v7068 = vunpack.c.l.b16 %v6768
    %v7069 = vunpack.c.h.b16 %v6768
    %v7070 = vunpack.c.l.b16 %v6769
    %v7071 = vunpack.c.h.b16 %v6769
    %v7072 = vunpack.c.l.b16 %v6770
    %v7073 = vunpack.c.h.b16 %v6770
    %v7074 = vunpack.c.l.b16 %v6771
    %v7075 = vunpack.c.h.b16 %v6771
    %v7076 = vunpack.c.l.b16 %v6772
    %v7077 = vunpack.c.h.b16 %v6772
    %v7078 = vunpack.c.l.b16 %v6773
    %v7079 = vunpack.c.h.b16 %v6773
    %v7080 = vunpack.c.l.b16 %v6774
    %v7081 = vunpack.c.h.b16 %v6774
    %v7082 = vunpack.c.l.b16 %v6775
    %v7083 = vunpack.c.h.b16 %v6775
    %v7084 = vunpack.c.l.b16 %v6776
    %v7085 = vunpack.c.h.b16 %v6776
    %v7086 = vunpack.c.l.b16 %v6777
    %v7087 = vunpack.c.h.b16 %v6777
    %v7088 = vunpack.c.l.b16 %v6778
    %v7089 = vunpack.c.h.b16 %v6778
    %v7090 = vunpack.c.l.b16 %v6779
    %v7091 = vunpack.c.h.b16 %v6779
    %v7092 = vunpack.c.l.b16 %v6780
    %v7093 = vunpack.c.h.b16 %v6780
    %v7094 = vunpack.c.l.b16 %v6781
    %v7095 = vunpack.c.h.b16 %v6781
    %v7096 = vunpack.c.l.b16 %v6782
    %v7097 = vunpack.c.h.b16 %v6782
    %v7098 = vunpack.c.l.b16 %v6783
    %v7099 = vunpack.c.h.b16 %v6783
    %v7100 = vunpack.c.l.b16 %v6784
    %v7101 = vunpack.c.h.b16 %v6784
    %v7102 = vunpack.c.l.b16 %v6785
    %v7103 = vunpack.c.h.b16 %v6785
    %v7104 = vunpack.c.l.b16 %v6786
    %v7105 = vunpack.c.h.b16 %v6786
    %v7106 = vunpack.c.l.b16 %v6787
    %v7107 = vunpack.c.h.b16 %v6787
    %v7108 = vunpack.c.l.b16 %v6788
    %v7109 = vunpack.c.h.b16 %v6788
    %v7110 = vunpack.c.l.b16 %v6789
    %v7111 = vunpack.c.h.b16 %v6789
    %v7112 = vunpack.c.l.b16 %v6790
    %v7113 = vunpack.c.h.b16 %v6790
    %v7114 = vunpack.c.l.b16 %v6791
    %v7115 = vunpack.c.h.b16 %v6791
    %v7116 = vunpack.c.l.b16 %v6792
    %v7117 = vunpack.c.h.b16 %v6792
    %v7118 = vunpack.c.l.b16 %v6793
    %v7119 = vunpack.c.h.b16 %v6793
    %v7120 = vunpack.c.l.b16 %v6794
    %v7121 = vunpack.c.h.b16 %v6794
    %v7122 = vunpack.c.l.b16 %v6795
    %v7123 = vunpack.c.h.b16 %v6795
    %v7124 = vunpack.c.l.b16 %v6796
    %v7125 = vunpack.c.h.b16 %v6796
    %v7126 = vunpack.c.l.b16 %v6797
    %v7127 = vunpack.c.h.b16 %v6797
    %v7128 = vunpack.c.l.b16 %v6798
    %v7129 = vunpack.c.h.b16 %v6798
    %v7130 = vunpack.c.l.b16 %v6799
    %v7131 = vunpack.c.h.b16 %v6799
    %v7132 = vunpack.c.l.b16 %v6800
    %v7133 = vunpack.c.h.b16 %v6800
    %v7134 = vunpack.c.l.b16 %v6801
    %v7135 = vunpack.c.h.b16 %v6801
    %v7136 = vunpack.c.l.b16 %v6802
    %v7137 = vunpack.c.h.b16 %v6802
    %v7138 = vunpack.c.l.b16 %v6803
    %v7139 = vunpack.c.h.b16 %v6803
    %v7140 = vunpack.c.l.b16 %v6804
    %v7141 = vunpack.c.h.b16 %v6804
    %v7142 = vunpack.c.l.b16 %v6805
    %v7143 = vunpack.c.h.b16 %v6805
    %v7144 = vunpack.c.l.b16 %v6806
    %v7145 = vunpack.c.h.b16 %v6806
    %v7146 = vunpack.c.l.b16 %v6807
    %v7147 = vunpack.c.h.b16 %v6807
    %v7148 = vunpack.c.l.b16 %v6808
    %v7149 = vunpack.c.h.b16 %v6808
    %v7150 = vunpack.c.l.b16 %v6809
    %v7151 = vunpack.c.h.b16 %v6809
    %v7152 = vunpack.c.l.b16 %v6810
    %v7153 = vunpack.c.h.b16 %v6810
    %v7154 = vunpack.c.l.b16 %v6811
    %v7155 = vunpack.c.h.b16 %v6811
    %v7156 = vunpack.c.l.b16 %v6812
    %v7157 = vunpack.c.h.b16 %v6812
    %v7158 = vunpack.c.l.b16 %v6813
    %v7159 = vunpack.c.h.b16 %v6813
    %v7160 = vunpack.c.l.b16 %v6814
    %v7161 = vunpack.c.h.b16 %v6814
    %v7162 = vunpack.c.l.b16 %v6815
    %v7163 = vunpack.c.h.b16 %v6815
    %v7164 = vunpack.c.l.b16 %v6816
    %v7165 = vunpack.c.h.b16 %v6816
    %v7166 = vunpack.c.l.b16 %v6817
    %v7167 = vunpack.c.h.b16 %v6817
    %v7168 = vunpack.c.l.b16 %v6818
    %v7169 = vunpack.c.h.b16 %v6818
    %v7170 = vunpack.c.l.b16 %v6819
    %v7171 = vunpack.c.h.b16 %v6819
    %v7172 = vunpack.c.l.b16 %v6820
    %v7173 = vunpack.c.h.b16 %v6820
    %v7174 = vunpack.c.l.b16 %v6821
    %v7175 = vunpack.c.h.b16 %v6821
    %v7176 = vunpack.c.l.b16 %v6822
    %v7177 = vunpack.c.h.b16 %v6822
    %v7178 = vunpack.c.l.b16 %v6823
    %v7179 = vunpack.c.h.b16 %v6823
    %v7180 = vunpack.c.l.b16 %v6824
    %v7181 = vunpack.c.h.b16 %v6824
    %v7182 = vunpack.c.l.b16 %v6825
    %v7183 = vunpack.c.h.b16 %v6825
    %v7184 = vunpack.c.l.b16 %v6826
    %v7185 = vunpack.c.h.b16 %v6826
    %v7186 = vunpack.c.l.b16 %v6827
    %v7187 = vunpack.c.h.b16 %v6827
    %v7188 = vunpack.c.l.b16 %v6828
    %v7189 = vunpack.c.h.b16 %v6828
    %v7190 = vunpack.c.l.b16 %v6829
    %v7191 = vunpack.c.h.b16 %v6829
    %v7192 = vunpack.c.l.b16 %v6830
    %v7193 = vunpack.c.h.b16 %v6830
    %v7194 = vunpack.c.l.b16 %v6831
    %v7195 = vunpack.c.h.b16 %v6831
    %v7196 = vunpack.c.l.b16 %v6832
    %v7197 = vunpack.c.h.b16 %v6832
    %v7198 = vunpack.c.l.b16 %v6833
    %v7199 = vunpack.c.h.b16 %v6833
    %v7200 = vunpack.c.l.b16 %v6834
    %v7201 = vunpack.c.h.b16 %v6834
    %v7202 = vunpack.c.l.b16 %v6835
    %v7203 = vunpack.c.h.b16 %v6835
    %v7204 = vunpack.c.l.b16 %v6836
    %v7205 = vunpack.c.h.b16 %v6836
    %v7206 = vunpack.c.l.b16 %v6837
    %v7207 = vunpack.c.h.b16 %v6837
    %v7208 = vunpack.c.l.b16 %v6838
    %v7209 = vunpack.c.h.b16 %v6838
    %v7210 = vunpack.c.l.b16 %v6839
    %v7211 = vunpack.c.h.b16 %v6839
    %v7212 = vunpack.c.l.b16 %v6840
    %v7213 = vunpack.c.h.b16 %v6840
    %v7214 = vunpack.c.l.b16 %v6841
    %v7215 = vunpack.c.h.b16 %v6841
    %v7216 = vunpack.c.l.b16 %v6842
    %v7217 = vunpack.c.h.b16 %v6842
    %v7218 = vunpack.c.l.b16 %v6843
    %v7219 = vunpack.c.h.b16 %v6843
    %v7220 = vunpack.c.l.b16 %v6844
    %v7221 = vunpack.c.h.b16 %v6844
    %v7222 = vunpack.c.l.b16 %v6845
    %v7223 = vunpack.c.h.b16 %v6845
    %v7224 = vunpack.c.l.b16 %v6846
    %v7225 = vunpack.c.h.b16 %v6846
    %v7226 = vunpack.c.l.b16 %v6847
    %v7227 = vunpack.c.h.b16 %v6847
    %v7228 = vunpack.c.l.b16 %v6848
    %v7229 = vunpack.c.h.b16 %v6848
    %v7230 = vunpack.c.l.b16 %v6849
    %v7231 = vunpack.c.h.b16 %v6849
    %v7232 = vunpack.c.l.b16 %v6850
    %v7233 = vunpack.c.h.b16 %v6850
    %v7234 = vunpack.c.l.b16 %v6851
    %v7235 = vunpack.c.h.b16 %v6851
    %v7236 = vpack.c.b16 %v6988, %v6980
    %v7237 = vpack.c.b16 %v6989, %v6981
    %v7238 = vpack.c.b16 %v6990, %v6982
    %v7239 = vpack.c.b16 %v6991, %v6983
    %v7240 = vpack.c.b16 %v6992, %v6984
    %v7241 = vpack.c.b16 %v6993, %v6985
    %v7242 = vpack.c.b16 %v6994, %v6986
    %v7243 = vpack.c.b16 %v6995, %v6987
    %v7244 = vpack.c.b16 %v7004, %v6996
    %v7245 = vpack.c.b16 %v7005, %v6997
    %v7246 = vpack.c.b16 %v7006, %v6998
    %v7247 = vpack.c.b16 %v7007, %v6999
    %v7248 = vpack.c.b16 %v7008, %v7000
    %v7249 = vpack.c.b16 %v7009, %v7001
    %v7250 = vpack.c.b16 %v7010, %v7002
    %v7251 = vpack.c.b16 %v7011, %v7003
    %v7252 = vpack.c.b16 %v7020, %v7012
    %v7253 = vpack.c.b16 %v7021, %v7013
    %v7254 = vpack.c.b16 %v7022, %v7014
    %v7255 = vpack.c.b16 %v7023, %v7015
    %v7256 = vpack.c.b16 %v7024, %v7016
    %v7257 = vpack.c.b16 %v7025, %v7017
    %v7258 = vpack.c.b16 %v7026, %v7018
    %v7259 = vpack.c.b16 %v7027, %v7019
    %v7260 = vpack.c.b16 %v7036, %v7028
    %v7261 = vpack.c.b16 %v7037, %v7029
    %v7262 = vpack.c.b16 %v7038, %v7030
    %v7263 = vpack.c.b16 %v7039, %v7031
    %v7264 = vpack.c.b16 %v7040, %v7032
    %v7265 = vpack.c.b16 %v7041, %v7033
    %v7266 = vpack.c.b16 %v7042, %v7034
    %v7267 = vpack.c.b16 %v7043, %v7035
    %v7268 = vpack.c.b16 %v7052, %v7044
    %v7269 = vpack.c.b16 %v7053, %v7045
    %v7270 = vpack.c.b16 %v7054, %v7046
    %v7271 = vpack.c.b16 %v7055, %v7047
    %v7272 = vpack.c.b16 %v7056, %v7048
    %v7273 = vpack.c.b16 %v7057, %v7049
    %v7274 = vpack.c.b16 %v7058, %v7050
    %v7275 = vpack.c.b16 %v7059, %v7051
    %v7276 = vpack.c.b16 %v7068, %v7060
    %v7277 = vpack.c.b16 %v7069, %v7061
    %v7278 = vpack.c.b16 %v7070, %v7062
    %v7279 = vpack.c.b16 %v7071, %v7063
    %v7280 = vpack.c.b16 %v7072, %v7064
    %v7281 = vpack.c.b16 %v7073, %v7065
    %v7282 = vpack.c.b16 %v7074, %v7066
    %v7283 = vpack.c.b16 %v7075, %v7067
    %v7284 = vpack.c.b16 %v7084, %v7076
    %v7285 = vpack.c.b16 %v7085, %v7077
    %v7286 = vpack.c.b16 %v7086, %v7078
    %v7287 = vpack.c.b16 %v7087, %v7079
    %v7288 = vpack.c.b16 %v7088, %v7080
    %v7289 = vpack.c.b16 %v7089, %v7081
    %v7290 = vpack.c.b16 %v7090, %v7082
    %v7291 = vpack.c.b16 %v7091, %v7083
    %v7292 = vpack.c.b16 %v7100, %v7092
    %v7293 = vpack.c.b16 %v7101, %v7093
    %v7294 = vpack.c.b16 %v7102, %v7094
    %v7295 = vpack.c.b16 %v7103, %v7095
    %v7296 = vpack.c.b16 %v7104, %v7096
    %v7297 = vpack.c.b16 %v7105, %v7097
    %v7298 = vpack.c.b16 %v7106, %v7098
    %v7299 = vpack.c.b16 %v7107, %v7099
    %v7300 = vpack.c.b16 %v7116, %v7108
    %v7301 = vpack.c.b16 %v7117, %v7109
    %v7302 = vpack.c.b16 %v7118, %v7110
    %v7303 = vpack.c.b16 %v7119, %v7111
    %v7304 = vpack.c.b16 %v7120, %v7112
    %v7305 = vpack.c.b16 %v7121, %v7113
    %v7306 = vpack.c.b16 %v7122, %v7114
    %v7307 = vpack.c.b16 %v7123, %v7115
    %v7308 = vpack.c.b16 %v7132, %v7124
    %v7309 = vpack.c.b16 %v7133, %v7125
    %v7310 = vpack.c.b16 %v7134, %v7126
    %v7311 = vpack.c.b16 %v7135, %v7127
    %v7312 = vpack.c.b16 %v7136, %v7128
    %v7313 = vpack.c.b16 %v7137, %v7129
    %v7314 = vpack.c.b16 %v7138, %v7130
    %v7315 = vpack.c.b16 %v7139, %v7131
    %v7316 = vpack.c.b16 %v7148, %v7140
    %v7317 = vpack.c.b16 %v7149, %v7141
    %v7318 = vpack.c.b16 %v7150, %v7142
    %v7319 = vpack.c.b16 %v7151, %v7143
    %v7320 = vpack.c.b16 %v7152, %v7144
    %v7321 = vpack.c.b16 %v7153, %v7145
    %v7322 = vpack.c.b16 %v7154, %v7146
    %v7323 = vpack.c.b16 %v7155, %v7147
    %v7324 = vpack.c.b16 %v7164, %v7156
    %v7325 = vpack.c.b16 %v7165, %v7157
    %v7326 = vpack.c.b16 %v7166, %v7158
    %v7327 = vpack.c.b16 %v7167, %v7159
    %v7328 = vpack.c.b16 %v7168, %v7160
    %v7329 = vpack.c.b16 %v7169, %v7161
    %v7330 = vpack.c.b16 %v7170, %v7162
    %v7331 = vpack.c.b16 %v7171, %v7163
    %v7332 = vpack.c.b16 %v7180, %v7172
    %v7333 = vpack.c.b16 %v7181, %v7173
    %v7334 = vpack.c.b16 %v7182, %v7174
    %v7335 = vpack.c.b16 %v7183, %v7175
    %v7336 = vpack.c.b16 %v7184, %v7176
    %v7337 = vpack.c.b16 %v7185, %v7177
    %v7338 = vpack.c.b16 %v7186, %v7178
    %v7339 = vpack.c.b16 %v7187, %v7179
    %v7340 = vpack.c.b16 %v7196, %v7188
    %v7341 = vpack.c.b16 %v7197, %v7189
    %v7342 = vpack.c.b16 %v7198, %v7190
    %v7343 = vpack.c.b16 %v7199, %v7191
    %v7344 = vpack.c.b16 %v7200, %v7192
    %v7345 = vpack.c.b16 %v7201, %v7193
    %v7346 = vpack.c.b16 %v7202, %v7194
    %v7347 = vpack.c.b16 %v7203, %v7195
    %v7348 = vpack.c.b16 %v7212, %v7204
    %v7349 = vpack.c.b16 %v7213, %v7205
    %v7350 = vpack.c.b16 %v7214, %v7206
    %v7351 = vpack.c.b16 %v7215, %v7207
    %v7352 = vpack.c.b16 %v7216, %v7208
    %v7353 = vpack.c.b16 %v7217, %v7209
    %v7354 = vpack.c.b16 %v7218, %v7210
    %v7355 = vpack.c.b16 %v7219, %v7211
    %v7356 = vpack.c.b16 %v7228, %v7220
    %v7357 = vpack.c.b16 %v7229, %v7221
    %v7358 = vpack.c.b16 %v7230, %v7222
    %v7359 = vpack.c.b16 %v7231, %v7223
    %v7360 = vpack.c.b16 %v7232, %v7224
    %v7361 = vpack.c.b16 %v7233, %v7225
    %v7362 = vpack.c.b16 %v7234, %v7226
    %v7363 = vpack.c.b16 %v7235, %v7227
    %7492 = vmatprep.subr.bf16.mxu0 %v7293
    %7493 = vmatpush1.bf16.msra.mxu0 %v7292
    %7494 = vmatprep.subr.bf16.mxu0 %v7285
    %7495 = vmatpush1.bf16.msra.mxu0 %v7284
    %7496 = vmatprep.subr.bf16.mxu0 %v7277
    %7497 = vmatpush1.bf16.msra.mxu0 %v7276
    %7498 = vmatprep.subr.bf16.mxu0 %v7269
    %7499 = vmatpush1.bf16.msra.mxu0 %v7268
    %7500 = vmatprep.subr.bf16.mxu0 %v7261
    %7501 = vmatpush1.bf16.msra.mxu0 %v7260
    %7502 = vmatprep.subr.bf16.mxu0 %v7253
    %7503 = vmatpush1.bf16.msra.mxu0 %v7252
    %7504 = vmatprep.subr.bf16.mxu0 %v7245
    %7505 = vmatpush1.bf16.msra.mxu0 %v7244
    %7506 = vmatprep.subr.bf16.mxu0 %v7237
    %7507 = vmatpush1.bf16.msra.mxu0 %v7236
    %7508 = vmatprep.subr.bf16.mxu0 %v7357
    %7509 = vmatpush2.bf16.msra.mxu0 %v7356
    %7510 = vmatprep.subr.bf16.mxu0 %v7349
    %7511 = vmatpush2.bf16.msra.mxu0 %v7348
    %7512 = vmatprep.subr.bf16.mxu0 %v7341
    %7513 = vmatpush2.bf16.msra.mxu0 %v7340
    %7514 = vmatprep.subr.bf16.mxu0 %v7333
    %7515 = vmatpush2.bf16.msra.mxu0 %v7332
    %7516 = vmatprep.subr.bf16.mxu0 %v7325
    %7517 = vmatpush2.bf16.msra.mxu0 %v7324
    %7518 = vmatprep.subr.bf16.mxu0 %v7317
    %7519 = vmatpush2.bf16.msra.mxu0 %v7316
    %7520 = vmatprep.subr.bf16.mxu0 %v7309
    %7521 = vmatpush2.bf16.msra.mxu0 %v7308
    %7522 = vmatprep.subr.bf16.mxu0 %v7301
    %7523 = vmatpush2.bf16.msra.mxu0 %v7300
    %7524 = vmatprep.mubr.bf16.mxu0 %v6723
    %7525 = vmatmul.mubr.bf16.gmra.mxu0 %v6722
    %v7526 = vpop.f32.mrf.mxu0
    %v7527 = vadd.f32 0.0, %v7526
    %v7528 = vpop.f32.mrf.mxu0
    %v7529 = vadd.f32 0.0, %v7528
    %v7530 = vpop.f32.mrf.mxu0
    %v7531 = vpop.f32.mrf.mxu0
    %7532 = vdwg.mxu0
    %7533 = vmatprep.subr.bf16.mxu0 %v7295
    %7534 = vmatpush1.bf16.msra.mxu0 %v7294
    %7535 = vmatprep.subr.bf16.mxu0 %v7287
    %7536 = vmatpush1.bf16.msra.mxu0 %v7286
    %7537 = vmatprep.subr.bf16.mxu0 %v7279
    %7538 = vmatpush1.bf16.msra.mxu0 %v7278
    %7539 = vmatprep.subr.bf16.mxu0 %v7271
    %7540 = vmatpush1.bf16.msra.mxu0 %v7270
    %7541 = vmatprep.subr.bf16.mxu0 %v7263
    %7542 = vmatpush1.bf16.msra.mxu0 %v7262
    %7543 = vmatprep.subr.bf16.mxu0 %v7255
    %7544 = vmatpush1.bf16.msra.mxu0 %v7254
    %7545 = vmatprep.subr.bf16.mxu0 %v7247
    %7546 = vmatpush1.bf16.msra.mxu0 %v7246
    %7547 = vmatprep.subr.bf16.mxu0 %v7239
    %7548 = vmatpush1.bf16.msra.mxu0 %v7238
    %7549 = vmatprep.subr.bf16.mxu0 %v7359
    %7550 = vmatpush2.bf16.msra.mxu0 %v7358
    %7551 = vmatprep.subr.bf16.mxu0 %v7351
    %7552 = vmatpush2.bf16.msra.mxu0 %v7350
    %7553 = vmatprep.subr.bf16.mxu0 %v7343
    %7554 = vmatpush2.bf16.msra.mxu0 %v7342
    %7555 = vmatprep.subr.bf16.mxu0 %v7335
    %7556 = vmatpush2.bf16.msra.mxu0 %v7334
    %7557 = vmatprep.subr.bf16.mxu0 %v7327
    %7558 = vmatpush2.bf16.msra.mxu0 %v7326
    %7559 = vmatprep.subr.bf16.mxu0 %v7319
    %7560 = vmatpush2.bf16.msra.mxu0 %v7318
    %7561 = vmatprep.subr.bf16.mxu0 %v7311
    %7562 = vmatpush2.bf16.msra.mxu0 %v7310
    %7563 = vmatprep.subr.bf16.mxu0 %v7303
    %7564 = vmatpush2.bf16.msra.mxu0 %v7302
    %7565 = vmatprep.mubr.bf16.mxu0 %v6723
    %7566 = vmatmul.mubr.bf16.gmra.mxu0 %v6722
    %v7567 = vpop.f32.mrf.mxu0
    %v7568 = vadd.f32 0.0, %v7567
    %v7569 = vpop.f32.mrf.mxu0
    %v7570 = vadd.f32 0.0, %v7569
    %v7571 = vpop.f32.mrf.mxu0
    %v7572 = vpop.f32.mrf.mxu0
    %7573 = vdwg.mxu0
    %7574 = vmatprep.subr.bf16.mxu0 %v7297
    %7575 = vmatpush1.bf16.msra.mxu0 %v7296
    %7576 = vmatprep.subr.bf16.mxu0 %v7289
    %7577 = vmatpush1.bf16.msra.mxu0 %v7288
    %7578 = vmatprep.subr.bf16.mxu0 %v7281
    %7579 = vmatpush1.bf16.msra.mxu0 %v7280
    %7580 = vmatprep.subr.bf16.mxu0 %v7273
    %7581 = vmatpush1.bf16.msra.mxu0 %v7272
    %7582 = vmatprep.subr.bf16.mxu0 %v7265
    %7583 = vmatpush1.bf16.msra.mxu0 %v7264
    %7584 = vmatprep.subr.bf16.mxu0 %v7257
    %7585 = vmatpush1.bf16.msra.mxu0 %v7256
    %7586 = vmatprep.subr.bf16.mxu0 %v7249
    %7587 = vmatpush1.bf16.msra.mxu0 %v7248
    %7588 = vmatprep.subr.bf16.mxu0 %v7241
    %7589 = vmatpush1.bf16.msra.mxu0 %v7240
    %7590 = vmatprep.subr.bf16.mxu0 %v7361
    %7591 = vmatpush2.bf16.msra.mxu0 %v7360
    %7592 = vmatprep.subr.bf16.mxu0 %v7353
    %7593 = vmatpush2.bf16.msra.mxu0 %v7352
    %7594 = vmatprep.subr.bf16.mxu0 %v7345
    %7595 = vmatpush2.bf16.msra.mxu0 %v7344
    %7596 = vmatprep.subr.bf16.mxu0 %v7337
    %7597 = vmatpush2.bf16.msra.mxu0 %v7336
    %7598 = vmatprep.subr.bf16.mxu0 %v7329
    %7599 = vmatpush2.bf16.msra.mxu0 %v7328
    %7600 = vmatprep.subr.bf16.mxu0 %v7321
    %7601 = vmatpush2.bf16.msra.mxu0 %v7320
    %7602 = vmatprep.subr.bf16.mxu0 %v7313
    %7603 = vmatpush2.bf16.msra.mxu0 %v7312
    %7604 = vmatprep.subr.bf16.mxu0 %v7305
    %7605 = vmatpush2.bf16.msra.mxu0 %v7304
    %7606 = vmatprep.mubr.bf16.mxu0 %v6723
    %7607 = vmatmul.mubr.bf16.gmra.mxu0 %v6722
    %v7608 = vpop.f32.mrf.mxu0
    %v7609 = vadd.f32 0.0, %v7608
    %v7610 = vpop.f32.mrf.mxu0
    %v7611 = vadd.f32 0.0, %v7610
    %v7612 = vpop.f32.mrf.mxu0
    %v7613 = vpop.f32.mrf.mxu0
    %7614 = vdwg.mxu0
    %7615 = vmatprep.subr.bf16.mxu0 %v7299
    %7616 = vmatpush1.bf16.msra.mxu0 %v7298
    %7617 = vmatprep.subr.bf16.mxu0 %v7291
    %7618 = vmatpush1.bf16.msra.mxu0 %v7290
    %7619 = vmatprep.subr.bf16.mxu0 %v7283
    %7620 = vmatpush1.bf16.msra.mxu0 %v7282
    %7621 = vmatprep.subr.bf16.mxu0 %v7275
    %7622 = vmatpush1.bf16.msra.mxu0 %v7274
    %7623 = vmatprep.subr.bf16.mxu0 %v7267
    %7624 = vmatpush1.bf16.msra.mxu0 %v7266
    %7625 = vmatprep.subr.bf16.mxu0 %v7259
    %7626 = vmatpush1.bf16.msra.mxu0 %v7258
    %7627 = vmatprep.subr.bf16.mxu0 %v7251
    %7628 = vmatpush1.bf16.msra.mxu0 %v7250
    %7629 = vmatprep.subr.bf16.mxu0 %v7243
    %7630 = vmatpush1.bf16.msra.mxu0 %v7242
    %7631 = vmatprep.subr.bf16.mxu0 %v7363
    %7632 = vmatpush2.bf16.msra.mxu0 %v7362
    %7633 = vmatprep.subr.bf16.mxu0 %v7355
    %7634 = vmatpush2.bf16.msra.mxu0 %v7354
    %7635 = vmatprep.subr.bf16.mxu0 %v7347
    %7636 = vmatpush2.bf16.msra.mxu0 %v7346
    %7637 = vmatprep.subr.bf16.mxu0 %v7339
    %7638 = vmatpush2.bf16.msra.mxu0 %v7338
    %7639 = vmatprep.subr.bf16.mxu0 %v7331
    %7640 = vmatpush2.bf16.msra.mxu0 %v7330
    %7641 = vmatprep.subr.bf16.mxu0 %v7323
    %7642 = vmatpush2.bf16.msra.mxu0 %v7322
    %7643 = vmatprep.subr.bf16.mxu0 %v7315
    %7644 = vmatpush2.bf16.msra.mxu0 %v7314
    %7645 = vmatprep.subr.bf16.mxu0 %v7307
    %7646 = vmatpush2.bf16.msra.mxu0 %v7306
    %7647 = vmatprep.mubr.bf16.mxu0 %v6723
    %7648 = vmatmul.mubr.bf16.gmra.mxu0 %v6722
    %v7649 = vpop.f32.mrf.mxu0
    %v7650 = vadd.f32 0.0, %v7649
    %v7651 = vpop.f32.mrf.mxu0
    %v7652 = vadd.f32 0.0, %v7651
    %v7653 = vpop.f32.mrf.mxu0
    %v7654 = vpop.f32.mrf.mxu0
    %7655 = vdwg.mxu0
    %v7656 = vadd.f32 %v6714, %v7527
    %v7657 = vadd.f32 %v6715, %v7529
    %v7658 = vadd.f32 %v6716, %v7568
    %v7659 = vadd.f32 %v6717, %v7570
    %v7660 = vadd.f32 %v6718, %v7609
    %v7661 = vadd.f32 %v6719, %v7611
    %v7662 = vadd.f32 %v6720, %v7650
    %v7663 = vadd.f32 %v6721, %v7652
    %v7664 = vxor.u32 %v7656, 2147483648
    %v7665 = vxor.u32 %v7657, 2147483648
    %v7666 = vxor.u32 %v7658, 2147483648
    %v7667 = vxor.u32 %v7659, 2147483648
    %v7668 = vxor.u32 %v7660, 2147483648
    %v7669 = vxor.u32 %v7661, 2147483648
    %v7670 = vmul.f32 %v7664, 1.442695
    %v7671 = vpow.pop %v7670
    %v7672 = vmul.f32 %v7665, 1.442695
    %v7673 = vpow.pop %v7672
    %v7674 = vmul.f32 %v7666, 1.442695
    %v7675 = vpow.pop %v7674
    %v7676 = vmul.f32 %v7667, 1.442695
    %v7677 = vpow.pop %v7676
    %v7678 = vmul.f32 %v7668, 1.442695
    %v7679 = vpow.pop %v7678
    %v7680 = vmul.f32 %v7669, 1.442695
    %v7681 = vpow.pop %v7680
    %v7682 = vadd.f32 %v7671, 1.0
    %v7683 = vadd.f32 %v7673, 1.0
    %v7684 = vadd.f32 %v7675, 1.0
    %v7685 = vadd.f32 %v7677, 1.0
    %v7686 = vadd.f32 %v7679, 1.0
    %v7687 = vadd.f32 %v7681, 1.0
    %v7688 = vrcp.pop %v7682
    %v7689 = vmul.f32 1.0, %v7688
    %v7690 = vrcp.pop %v7683
    %v7691 = vmul.f32 1.0, %v7690
    %v7692 = vrcp.pop %v7684
    %v7693 = vmul.f32 1.0, %v7692
    %v7694 = vrcp.pop %v7685
    %v7695 = vmul.f32 1.0, %v7694
    %v7696 = vrcp.pop %v7686
    %v7697 = vmul.f32 1.0, %v7696
    %v7698 = vrcp.pop %v7687
    %v7699 = vmul.f32 1.0, %v7698
    %v7700 = vtanh.pop %v7662
    %v7701 = vtanh.pop %v7663
    %v7702 = vmul.f32 %v7693, %v6703
    %v7703 = vmul.f32 %v7695, %v6704
    %v7704 = vmul.f32 %v7689, %v7700
    %v7705 = vmul.f32 %v7691, %v7701
    %v7706 = vadd.f32 %v7702, %v7704
    %v7707 = vadd.f32 %v7703, %v7705
    %v7708 = vtanh.pop %v7706
    %v7709 = vtanh.pop %v7707
    %v7710 = vmul.f32 %v7697, %v7708
    %v7711 = vmul.f32 %v7699, %v7709
    %v7713 = vrot.slane %v7710, 1
    %7715 = vst [vmem:[#allocation3 + $0x6] sm:$0x1] %v7713
    %7716 = vst [vmem:[#allocation3 + $0x9] sm:$0x1] %v7711
    %v7717 = vld [vmem:[#allocation2 + $0x1c0] sm:$0xff]
    %v7718 = vld [vmem:[#allocation2 + $0x1c8] sm:$0xff]
    %v7719 = vld [vmem:[#allocation2 + $0x1d0] sm:$0xff]
    %v7720 = vld [vmem:[#allocation2 + $0x1d8] sm:$0xff]
    %v7721 = vld [vmem:[#allocation2 + $0x1e0] sm:$0xff]
    %v7722 = vld [vmem:[#allocation2 + $0x1e8] sm:$0xff]
    %v7723 = vld [vmem:[#allocation2 + $0x1f0] sm:$0xff]
    %v7724 = vld [vmem:[#allocation2 + $0x1f8] sm:$0xff]
    %v7725 = vpack.c.bf16 %v7710, %v7710
    %v7726 = vpack.c.bf16 %v7711, %v7711
    %v7727 = vld [vmem:[#allocation7] sm:$0xff]
    %v7728 = vld [vmem:[#allocation7 + $0x8] sm:$0xff]
    %v7729 = vld [vmem:[#allocation7 + $0x10] sm:$0xff]
    %v7730 = vld [vmem:[#allocation7 + $0x18] sm:$0xff]
    %v7731 = vld [vmem:[#allocation7 + $0x20] sm:$0xff]
    %v7732 = vld [vmem:[#allocation7 + $0x28] sm:$0xff]
    %v7733 = vld [vmem:[#allocation7 + $0x30] sm:$0xff]
    %v7734 = vld [vmem:[#allocation7 + $0x38] sm:$0xff]
    %v7735 = vld [vmem:[#allocation7 + $0x40] sm:$0xff]
    %v7736 = vld [vmem:[#allocation7 + $0x48] sm:$0xff]
    %v7737 = vld [vmem:[#allocation7 + $0x50] sm:$0xff]
    %v7738 = vld [vmem:[#allocation7 + $0x58] sm:$0xff]
    %v7739 = vld [vmem:[#allocation7 + $0x60] sm:$0xff]
    %v7740 = vld [vmem:[#allocation7 + $0x68] sm:$0xff]
    %v7741 = vld [vmem:[#allocation7 + $0x70] sm:$0xff]
    %v7742 = vld [vmem:[#allocation7 + $0x78] sm:$0xff]
    %v7743 = vld [vmem:[#allocation7 + $0x80] sm:$0xff]
    %v7744 = vld [vmem:[#allocation7 + $0x88] sm:$0xff]
    %v7745 = vld [vmem:[#allocation7 + $0x90] sm:$0xff]
    %v7746 = vld [vmem:[#allocation7 + $0x98] sm:$0xff]
    %v7747 = vld [vmem:[#allocation7 + $0xa0] sm:$0xff]
    %v7748 = vld [vmem:[#allocation7 + $0xa8] sm:$0xff]
    %v7749 = vld [vmem:[#allocation7 + $0xb0] sm:$0xff]
    %v7750 = vld [vmem:[#allocation7 + $0xb8] sm:$0xff]
    %v7751 = vld [vmem:[#allocation7 + $0xc0] sm:$0xff]
    %v7752 = vld [vmem:[#allocation7 + $0xc8] sm:$0xff]
    %v7753 = vld [vmem:[#allocation7 + $0xd0] sm:$0xff]
    %v7754 = vld [vmem:[#allocation7 + $0xd8] sm:$0xff]
    %v7755 = vld [vmem:[#allocation7 + $0xe0] sm:$0xff]
    %v7756 = vld [vmem:[#allocation7 + $0xe8] sm:$0xff]
    %v7757 = vld [vmem:[#allocation7 + $0xf0] sm:$0xff]
    %v7758 = vld [vmem:[#allocation7 + $0xf8] sm:$0xff]
    %v7759 = vld [vmem:[#allocation7 + $0x100] sm:$0xff]
    %v7760 = vld [vmem:[#allocation7 + $0x108] sm:$0xff]
    %v7761 = vld [vmem:[#allocation7 + $0x110] sm:$0xff]
    %v7762 = vld [vmem:[#allocation7 + $0x118] sm:$0xff]
    %v7763 = vld [vmem:[#allocation7 + $0x120] sm:$0xff]
    %v7764 = vld [vmem:[#allocation7 + $0x128] sm:$0xff]
    %v7765 = vld [vmem:[#allocation7 + $0x130] sm:$0xff]
    %v7766 = vld [vmem:[#allocation7 + $0x138] sm:$0xff]
    %v7767 = vld [vmem:[#allocation7 + $0x140] sm:$0xff]
    %v7768 = vld [vmem:[#allocation7 + $0x148] sm:$0xff]
    %v7769 = vld [vmem:[#allocation7 + $0x150] sm:$0xff]
    %v7770 = vld [vmem:[#allocation7 + $0x158] sm:$0xff]
    %v7771 = vld [vmem:[#allocation7 + $0x160] sm:$0xff]
    %v7772 = vld [vmem:[#allocation7 + $0x168] sm:$0xff]
    %v7773 = vld [vmem:[#allocation7 + $0x170] sm:$0xff]
    %v7774 = vld [vmem:[#allocation7 + $0x178] sm:$0xff]
    %v7775 = vld [vmem:[#allocation7 + $0x180] sm:$0xff]
    %v7776 = vld [vmem:[#allocation7 + $0x188] sm:$0xff]
    %v7777 = vld [vmem:[#allocation7 + $0x190] sm:$0xff]
    %v7778 = vld [vmem:[#allocation7 + $0x198] sm:$0xff]
    %v7779 = vld [vmem:[#allocation7 + $0x1a0] sm:$0xff]
    %v7780 = vld [vmem:[#allocation7 + $0x1a8] sm:$0xff]
    %v7781 = vld [vmem:[#allocation7 + $0x1b0] sm:$0xff]
    %v7782 = vld [vmem:[#allocation7 + $0x1b8] sm:$0xff]
    %v7783 = vld [vmem:[#allocation7 + $0x1c0] sm:$0xff]
    %v7784 = vld [vmem:[#allocation7 + $0x1c8] sm:$0xff]
    %v7785 = vld [vmem:[#allocation7 + $0x1d0] sm:$0xff]
    %v7786 = vld [vmem:[#allocation7 + $0x1d8] sm:$0xff]
    %v7787 = vld [vmem:[#allocation7 + $0x1e0] sm:$0xff]
    %v7788 = vld [vmem:[#allocation7 + $0x1e8] sm:$0xff]
    %v7789 = vld [vmem:[#allocation7 + $0x1f0] sm:$0xff]
    %v7790 = vld [vmem:[#allocation7 + $0x1f8] sm:$0xff]
    %v7791 = vld [vmem:[#allocation7 + $0x200] sm:$0xff]
    %v7792 = vld [vmem:[#allocation7 + $0x208] sm:$0xff]
    %v7793 = vld [vmem:[#allocation7 + $0x210] sm:$0xff]
    %v7794 = vld [vmem:[#allocation7 + $0x218] sm:$0xff]
    %v7795 = vld [vmem:[#allocation7 + $0x220] sm:$0xff]
    %v7796 = vld [vmem:[#allocation7 + $0x228] sm:$0xff]
    %v7797 = vld [vmem:[#allocation7 + $0x230] sm:$0xff]
    %v7798 = vld [vmem:[#allocation7 + $0x238] sm:$0xff]
    %v7799 = vld [vmem:[#allocation7 + $0x240] sm:$0xff]
    %v7800 = vld [vmem:[#allocation7 + $0x248] sm:$0xff]
    %v7801 = vld [vmem:[#allocation7 + $0x250] sm:$0xff]
    %v7802 = vld [vmem:[#allocation7 + $0x258] sm:$0xff]
    %v7803 = vld [vmem:[#allocation7 + $0x260] sm:$0xff]
    %v7804 = vld [vmem:[#allocation7 + $0x268] sm:$0xff]
    %v7805 = vld [vmem:[#allocation7 + $0x270] sm:$0xff]
    %v7806 = vld [vmem:[#allocation7 + $0x278] sm:$0xff]
    %v7807 = vld [vmem:[#allocation7 + $0x280] sm:$0xff]
    %v7808 = vld [vmem:[#allocation7 + $0x288] sm:$0xff]
    %v7809 = vld [vmem:[#allocation7 + $0x290] sm:$0xff]
    %v7810 = vld [vmem:[#allocation7 + $0x298] sm:$0xff]
    %v7811 = vld [vmem:[#allocation7 + $0x2a0] sm:$0xff]
    %v7812 = vld [vmem:[#allocation7 + $0x2a8] sm:$0xff]
    %v7813 = vld [vmem:[#allocation7 + $0x2b0] sm:$0xff]
    %v7814 = vld [vmem:[#allocation7 + $0x2b8] sm:$0xff]
    %v7815 = vld [vmem:[#allocation7 + $0x2c0] sm:$0xff]
    %v7816 = vld [vmem:[#allocation7 + $0x2c8] sm:$0xff]
    %v7817 = vld [vmem:[#allocation7 + $0x2d0] sm:$0xff]
    %v7818 = vld [vmem:[#allocation7 + $0x2d8] sm:$0xff]
    %v7819 = vld [vmem:[#allocation7 + $0x2e0] sm:$0xff]
    %v7820 = vld [vmem:[#allocation7 + $0x2e8] sm:$0xff]
    %v7821 = vld [vmem:[#allocation7 + $0x2f0] sm:$0xff]
    %v7822 = vld [vmem:[#allocation7 + $0x2f8] sm:$0xff]
    %v7823 = vld [vmem:[#allocation7 + $0x300] sm:$0xff]
    %v7824 = vld [vmem:[#allocation7 + $0x308] sm:$0xff]
    %v7825 = vld [vmem:[#allocation7 + $0x310] sm:$0xff]
    %v7826 = vld [vmem:[#allocation7 + $0x318] sm:$0xff]
    %v7827 = vld [vmem:[#allocation7 + $0x320] sm:$0xff]
    %v7828 = vld [vmem:[#allocation7 + $0x328] sm:$0xff]
    %v7829 = vld [vmem:[#allocation7 + $0x330] sm:$0xff]
    %v7830 = vld [vmem:[#allocation7 + $0x338] sm:$0xff]
    %v7831 = vld [vmem:[#allocation7 + $0x340] sm:$0xff]
    %v7832 = vld [vmem:[#allocation7 + $0x348] sm:$0xff]
    %v7833 = vld [vmem:[#allocation7 + $0x350] sm:$0xff]
    %v7834 = vld [vmem:[#allocation7 + $0x358] sm:$0xff]
    %v7835 = vld [vmem:[#allocation7 + $0x360] sm:$0xff]
    %v7836 = vld [vmem:[#allocation7 + $0x368] sm:$0xff]
    %v7837 = vld [vmem:[#allocation7 + $0x370] sm:$0xff]
    %v7838 = vld [vmem:[#allocation7 + $0x378] sm:$0xff]
    %v7839 = vld [vmem:[#allocation7 + $0x380] sm:$0xff]
    %v7840 = vld [vmem:[#allocation7 + $0x388] sm:$0xff]
    %v7841 = vld [vmem:[#allocation7 + $0x390] sm:$0xff]
    %v7842 = vld [vmem:[#allocation7 + $0x398] sm:$0xff]
    %v7843 = vld [vmem:[#allocation7 + $0x3a0] sm:$0xff]
    %v7844 = vld [vmem:[#allocation7 + $0x3a8] sm:$0xff]
    %v7845 = vld [vmem:[#allocation7 + $0x3b0] sm:$0xff]
    %v7846 = vld [vmem:[#allocation7 + $0x3b8] sm:$0xff]
    %v7847 = vld [vmem:[#allocation7 + $0x3c0] sm:$0xff]
    %v7848 = vld [vmem:[#allocation7 + $0x3c8] sm:$0xff]
    %v7849 = vld [vmem:[#allocation7 + $0x3d0] sm:$0xff]
    %v7850 = vld [vmem:[#allocation7 + $0x3d8] sm:$0xff]
    %v7851 = vld [vmem:[#allocation7 + $0x3e0] sm:$0xff]
    %v7852 = vld [vmem:[#allocation7 + $0x3e8] sm:$0xff]
    %v7853 = vld [vmem:[#allocation7 + $0x3f0] sm:$0xff]
    %v7854 = vld [vmem:[#allocation7 + $0x3f8] sm:$0xff]
    %v7983 = vunpack.c.l.b16 %v7727
    %v7984 = vunpack.c.h.b16 %v7727
    %v7985 = vunpack.c.l.b16 %v7728
    %v7986 = vunpack.c.h.b16 %v7728
    %v7987 = vunpack.c.l.b16 %v7729
    %v7988 = vunpack.c.h.b16 %v7729
    %v7989 = vunpack.c.l.b16 %v7730
    %v7990 = vunpack.c.h.b16 %v7730
    %v7991 = vunpack.c.l.b16 %v7731
    %v7992 = vunpack.c.h.b16 %v7731
    %v7993 = vunpack.c.l.b16 %v7732
    %v7994 = vunpack.c.h.b16 %v7732
    %v7995 = vunpack.c.l.b16 %v7733
    %v7996 = vunpack.c.h.b16 %v7733
    %v7997 = vunpack.c.l.b16 %v7734
    %v7998 = vunpack.c.h.b16 %v7734
    %v7999 = vunpack.c.l.b16 %v7735
    %v8000 = vunpack.c.h.b16 %v7735
    %v8001 = vunpack.c.l.b16 %v7736
    %v8002 = vunpack.c.h.b16 %v7736
    %v8003 = vunpack.c.l.b16 %v7737
    %v8004 = vunpack.c.h.b16 %v7737
    %v8005 = vunpack.c.l.b16 %v7738
    %v8006 = vunpack.c.h.b16 %v7738
    %v8007 = vunpack.c.l.b16 %v7739
    %v8008 = vunpack.c.h.b16 %v7739
    %v8009 = vunpack.c.l.b16 %v7740
    %v8010 = vunpack.c.h.b16 %v7740
    %v8011 = vunpack.c.l.b16 %v7741
    %v8012 = vunpack.c.h.b16 %v7741
    %v8013 = vunpack.c.l.b16 %v7742
    %v8014 = vunpack.c.h.b16 %v7742
    %v8015 = vunpack.c.l.b16 %v7743
    %v8016 = vunpack.c.h.b16 %v7743
    %v8017 = vunpack.c.l.b16 %v7744
    %v8018 = vunpack.c.h.b16 %v7744
    %v8019 = vunpack.c.l.b16 %v7745
    %v8020 = vunpack.c.h.b16 %v7745
    %v8021 = vunpack.c.l.b16 %v7746
    %v8022 = vunpack.c.h.b16 %v7746
    %v8023 = vunpack.c.l.b16 %v7747
    %v8024 = vunpack.c.h.b16 %v7747
    %v8025 = vunpack.c.l.b16 %v7748
    %v8026 = vunpack.c.h.b16 %v7748
    %v8027 = vunpack.c.l.b16 %v7749
    %v8028 = vunpack.c.h.b16 %v7749
    %v8029 = vunpack.c.l.b16 %v7750
    %v8030 = vunpack.c.h.b16 %v7750
    %v8031 = vunpack.c.l.b16 %v7751
    %v8032 = vunpack.c.h.b16 %v7751
    %v8033 = vunpack.c.l.b16 %v7752
    %v8034 = vunpack.c.h.b16 %v7752
    %v8035 = vunpack.c.l.b16 %v7753
    %v8036 = vunpack.c.h.b16 %v7753
    %v8037 = vunpack.c.l.b16 %v7754
    %v8038 = vunpack.c.h.b16 %v7754
    %v8039 = vunpack.c.l.b16 %v7755
    %v8040 = vunpack.c.h.b16 %v7755
    %v8041 = vunpack.c.l.b16 %v7756
    %v8042 = vunpack.c.h.b16 %v7756
    %v8043 = vunpack.c.l.b16 %v7757
    %v8044 = vunpack.c.h.b16 %v7757
    %v8045 = vunpack.c.l.b16 %v7758
    %v8046 = vunpack.c.h.b16 %v7758
    %v8047 = vunpack.c.l.b16 %v7759
    %v8048 = vunpack.c.h.b16 %v7759
    %v8049 = vunpack.c.l.b16 %v7760
    %v8050 = vunpack.c.h.b16 %v7760
    %v8051 = vunpack.c.l.b16 %v7761
    %v8052 = vunpack.c.h.b16 %v7761
    %v8053 = vunpack.c.l.b16 %v7762
    %v8054 = vunpack.c.h.b16 %v7762
    %v8055 = vunpack.c.l.b16 %v7763
    %v8056 = vunpack.c.h.b16 %v7763
    %v8057 = vunpack.c.l.b16 %v7764
    %v8058 = vunpack.c.h.b16 %v7764
    %v8059 = vunpack.c.l.b16 %v7765
    %v8060 = vunpack.c.h.b16 %v7765
    %v8061 = vunpack.c.l.b16 %v7766
    %v8062 = vunpack.c.h.b16 %v7766
    %v8063 = vunpack.c.l.b16 %v7767
    %v8064 = vunpack.c.h.b16 %v7767
    %v8065 = vunpack.c.l.b16 %v7768
    %v8066 = vunpack.c.h.b16 %v7768
    %v8067 = vunpack.c.l.b16 %v7769
    %v8068 = vunpack.c.h.b16 %v7769
    %v8069 = vunpack.c.l.b16 %v7770
    %v8070 = vunpack.c.h.b16 %v7770
    %v8071 = vunpack.c.l.b16 %v7771
    %v8072 = vunpack.c.h.b16 %v7771
    %v8073 = vunpack.c.l.b16 %v7772
    %v8074 = vunpack.c.h.b16 %v7772
    %v8075 = vunpack.c.l.b16 %v7773
    %v8076 = vunpack.c.h.b16 %v7773
    %v8077 = vunpack.c.l.b16 %v7774
    %v8078 = vunpack.c.h.b16 %v7774
    %v8079 = vunpack.c.l.b16 %v7775
    %v8080 = vunpack.c.h.b16 %v7775
    %v8081 = vunpack.c.l.b16 %v7776
    %v8082 = vunpack.c.h.b16 %v7776
    %v8083 = vunpack.c.l.b16 %v7777
    %v8084 = vunpack.c.h.b16 %v7777
    %v8085 = vunpack.c.l.b16 %v7778
    %v8086 = vunpack.c.h.b16 %v7778
    %v8087 = vunpack.c.l.b16 %v7779
    %v8088 = vunpack.c.h.b16 %v7779
    %v8089 = vunpack.c.l.b16 %v7780
    %v8090 = vunpack.c.h.b16 %v7780
    %v8091 = vunpack.c.l.b16 %v7781
    %v8092 = vunpack.c.h.b16 %v7781
    %v8093 = vunpack.c.l.b16 %v7782
    %v8094 = vunpack.c.h.b16 %v7782
    %v8095 = vunpack.c.l.b16 %v7783
    %v8096 = vunpack.c.h.b16 %v7783
    %v8097 = vunpack.c.l.b16 %v7784
    %v8098 = vunpack.c.h.b16 %v7784
    %v8099 = vunpack.c.l.b16 %v7785
    %v8100 = vunpack.c.h.b16 %v7785
    %v8101 = vunpack.c.l.b16 %v7786
    %v8102 = vunpack.c.h.b16 %v7786
    %v8103 = vunpack.c.l.b16 %v7787
    %v8104 = vunpack.c.h.b16 %v7787
    %v8105 = vunpack.c.l.b16 %v7788
    %v8106 = vunpack.c.h.b16 %v7788
    %v8107 = vunpack.c.l.b16 %v7789
    %v8108 = vunpack.c.h.b16 %v7789
    %v8109 = vunpack.c.l.b16 %v7790
    %v8110 = vunpack.c.h.b16 %v7790
    %v8111 = vunpack.c.l.b16 %v7791
    %v8112 = vunpack.c.h.b16 %v7791
    %v8113 = vunpack.c.l.b16 %v7792
    %v8114 = vunpack.c.h.b16 %v7792
    %v8115 = vunpack.c.l.b16 %v7793
    %v8116 = vunpack.c.h.b16 %v7793
    %v8117 = vunpack.c.l.b16 %v7794
    %v8118 = vunpack.c.h.b16 %v7794
    %v8119 = vunpack.c.l.b16 %v7795
    %v8120 = vunpack.c.h.b16 %v7795
    %v8121 = vunpack.c.l.b16 %v7796
    %v8122 = vunpack.c.h.b16 %v7796
    %v8123 = vunpack.c.l.b16 %v7797
    %v8124 = vunpack.c.h.b16 %v7797
    %v8125 = vunpack.c.l.b16 %v7798
    %v8126 = vunpack.c.h.b16 %v7798
    %v8127 = vunpack.c.l.b16 %v7799
    %v8128 = vunpack.c.h.b16 %v7799
    %v8129 = vunpack.c.l.b16 %v7800
    %v8130 = vunpack.c.h.b16 %v7800
    %v8131 = vunpack.c.l.b16 %v7801
    %v8132 = vunpack.c.h.b16 %v7801
    %v8133 = vunpack.c.l.b16 %v7802
    %v8134 = vunpack.c.h.b16 %v7802
    %v8135 = vunpack.c.l.b16 %v7803
    %v8136 = vunpack.c.h.b16 %v7803
    %v8137 = vunpack.c.l.b16 %v7804
    %v8138 = vunpack.c.h.b16 %v7804
    %v8139 = vunpack.c.l.b16 %v7805
    %v8140 = vunpack.c.h.b16 %v7805
    %v8141 = vunpack.c.l.b16 %v7806
    %v8142 = vunpack.c.h.b16 %v7806
    %v8143 = vunpack.c.l.b16 %v7807
    %v8144 = vunpack.c.h.b16 %v7807
    %v8145 = vunpack.c.l.b16 %v7808
    %v8146 = vunpack.c.h.b16 %v7808
    %v8147 = vunpack.c.l.b16 %v7809
    %v8148 = vunpack.c.h.b16 %v7809
    %v8149 = vunpack.c.l.b16 %v7810
    %v8150 = vunpack.c.h.b16 %v7810
    %v8151 = vunpack.c.l.b16 %v7811
    %v8152 = vunpack.c.h.b16 %v7811
    %v8153 = vunpack.c.l.b16 %v7812
    %v8154 = vunpack.c.h.b16 %v7812
    %v8155 = vunpack.c.l.b16 %v7813
    %v8156 = vunpack.c.h.b16 %v7813
    %v8157 = vunpack.c.l.b16 %v7814
    %v8158 = vunpack.c.h.b16 %v7814
    %v8159 = vunpack.c.l.b16 %v7815
    %v8160 = vunpack.c.h.b16 %v7815
    %v8161 = vunpack.c.l.b16 %v7816
    %v8162 = vunpack.c.h.b16 %v7816
    %v8163 = vunpack.c.l.b16 %v7817
    %v8164 = vunpack.c.h.b16 %v7817
    %v8165 = vunpack.c.l.b16 %v7818
    %v8166 = vunpack.c.h.b16 %v7818
    %v8167 = vunpack.c.l.b16 %v7819
    %v8168 = vunpack.c.h.b16 %v7819
    %v8169 = vunpack.c.l.b16 %v7820
    %v8170 = vunpack.c.h.b16 %v7820
    %v8171 = vunpack.c.l.b16 %v7821
    %v8172 = vunpack.c.h.b16 %v7821
    %v8173 = vunpack.c.l.b16 %v7822
    %v8174 = vunpack.c.h.b16 %v7822
    %v8175 = vunpack.c.l.b16 %v7823
    %v8176 = vunpack.c.h.b16 %v7823
    %v8177 = vunpack.c.l.b16 %v7824
    %v8178 = vunpack.c.h.b16 %v7824
    %v8179 = vunpack.c.l.b16 %v7825
    %v8180 = vunpack.c.h.b16 %v7825
    %v8181 = vunpack.c.l.b16 %v7826
    %v8182 = vunpack.c.h.b16 %v7826
    %v8183 = vunpack.c.l.b16 %v7827
    %v8184 = vunpack.c.h.b16 %v7827
    %v8185 = vunpack.c.l.b16 %v7828
    %v8186 = vunpack.c.h.b16 %v7828
    %v8187 = vunpack.c.l.b16 %v7829
    %v8188 = vunpack.c.h.b16 %v7829
    %v8189 = vunpack.c.l.b16 %v7830
    %v8190 = vunpack.c.h.b16 %v7830
    %v8191 = vunpack.c.l.b16 %v7831
    %v8192 = vunpack.c.h.b16 %v7831
    %v8193 = vunpack.c.l.b16 %v7832
    %v8194 = vunpack.c.h.b16 %v7832
    %v8195 = vunpack.c.l.b16 %v7833
    %v8196 = vunpack.c.h.b16 %v7833
    %v8197 = vunpack.c.l.b16 %v7834
    %v8198 = vunpack.c.h.b16 %v7834
    %v8199 = vunpack.c.l.b16 %v7835
    %v8200 = vunpack.c.h.b16 %v7835
    %v8201 = vunpack.c.l.b16 %v7836
    %v8202 = vunpack.c.h.b16 %v7836
    %v8203 = vunpack.c.l.b16 %v7837
    %v8204 = vunpack.c.h.b16 %v7837
    %v8205 = vunpack.c.l.b16 %v7838
    %v8206 = vunpack.c.h.b16 %v7838
    %v8207 = vunpack.c.l.b16 %v7839
    %v8208 = vunpack.c.h.b16 %v7839
    %v8209 = vunpack.c.l.b16 %v7840
    %v8210 = vunpack.c.h.b16 %v7840
    %v8211 = vunpack.c.l.b16 %v7841
    %v8212 = vunpack.c.h.b16 %v7841
    %v8213 = vunpack.c.l.b16 %v7842
    %v8214 = vunpack.c.h.b16 %v7842
    %v8215 = vunpack.c.l.b16 %v7843
    %v8216 = vunpack.c.h.b16 %v7843
    %v8217 = vunpack.c.l.b16 %v7844
    %v8218 = vunpack.c.h.b16 %v7844
    %v8219 = vunpack.c.l.b16 %v7845
    %v8220 = vunpack.c.h.b16 %v7845
    %v8221 = vunpack.c.l.b16 %v7846
    %v8222 = vunpack.c.h.b16 %v7846
    %v8223 = vunpack.c.l.b16 %v7847
    %v8224 = vunpack.c.h.b16 %v7847
    %v8225 = vunpack.c.l.b16 %v7848
    %v8226 = vunpack.c.h.b16 %v7848
    %v8227 = vunpack.c.l.b16 %v7849
    %v8228 = vunpack.c.h.b16 %v7849
    %v8229 = vunpack.c.l.b16 %v7850
    %v8230 = vunpack.c.h.b16 %v7850
    %v8231 = vunpack.c.l.b16 %v7851
    %v8232 = vunpack.c.h.b16 %v7851
    %v8233 = vunpack.c.l.b16 %v7852
    %v8234 = vunpack.c.h.b16 %v7852
    %v8235 = vunpack.c.l.b16 %v7853
    %v8236 = vunpack.c.h.b16 %v7853
    %v8237 = vunpack.c.l.b16 %v7854
    %v8238 = vunpack.c.h.b16 %v7854
    %v8239 = vpack.c.b16 %v7991, %v7983
    %v8240 = vpack.c.b16 %v7992, %v7984
    %v8241 = vpack.c.b16 %v7993, %v7985
    %v8242 = vpack.c.b16 %v7994, %v7986
    %v8243 = vpack.c.b16 %v7995, %v7987
    %v8244 = vpack.c.b16 %v7996, %v7988
    %v8245 = vpack.c.b16 %v7997, %v7989
    %v8246 = vpack.c.b16 %v7998, %v7990
    %v8247 = vpack.c.b16 %v8007, %v7999
    %v8248 = vpack.c.b16 %v8008, %v8000
    %v8249 = vpack.c.b16 %v8009, %v8001
    %v8250 = vpack.c.b16 %v8010, %v8002
    %v8251 = vpack.c.b16 %v8011, %v8003
    %v8252 = vpack.c.b16 %v8012, %v8004
    %v8253 = vpack.c.b16 %v8013, %v8005
    %v8254 = vpack.c.b16 %v8014, %v8006
    %v8255 = vpack.c.b16 %v8023, %v8015
    %v8256 = vpack.c.b16 %v8024, %v8016
    %v8257 = vpack.c.b16 %v8025, %v8017
    %v8258 = vpack.c.b16 %v8026, %v8018
    %v8259 = vpack.c.b16 %v8027, %v8019
    %v8260 = vpack.c.b16 %v8028, %v8020
    %v8261 = vpack.c.b16 %v8029, %v8021
    %v8262 = vpack.c.b16 %v8030, %v8022
    %v8263 = vpack.c.b16 %v8039, %v8031
    %v8264 = vpack.c.b16 %v8040, %v8032
    %v8265 = vpack.c.b16 %v8041, %v8033
    %v8266 = vpack.c.b16 %v8042, %v8034
    %v8267 = vpack.c.b16 %v8043, %v8035
    %v8268 = vpack.c.b16 %v8044, %v8036
    %v8269 = vpack.c.b16 %v8045, %v8037
    %v8270 = vpack.c.b16 %v8046, %v8038
    %v8271 = vpack.c.b16 %v8055, %v8047
    %v8272 = vpack.c.b16 %v8056, %v8048
    %v8273 = vpack.c.b16 %v8057, %v8049
    %v8274 = vpack.c.b16 %v8058, %v8050
    %v8275 = vpack.c.b16 %v8059, %v8051
    %v8276 = vpack.c.b16 %v8060, %v8052
    %v8277 = vpack.c.b16 %v8061, %v8053
    %v8278 = vpack.c.b16 %v8062, %v8054
    %v8279 = vpack.c.b16 %v8071, %v8063
    %v8280 = vpack.c.b16 %v8072, %v8064
    %v8281 = vpack.c.b16 %v8073, %v8065
    %v8282 = vpack.c.b16 %v8074, %v8066
    %v8283 = vpack.c.b16 %v8075, %v8067
    %v8284 = vpack.c.b16 %v8076, %v8068
    %v8285 = vpack.c.b16 %v8077, %v8069
    %v8286 = vpack.c.b16 %v8078, %v8070
    %v8287 = vpack.c.b16 %v8087, %v8079
    %v8288 = vpack.c.b16 %v8088, %v8080
    %v8289 = vpack.c.b16 %v8089, %v8081
    %v8290 = vpack.c.b16 %v8090, %v8082
    %v8291 = vpack.c.b16 %v8091, %v8083
    %v8292 = vpack.c.b16 %v8092, %v8084
    %v8293 = vpack.c.b16 %v8093, %v8085
    %v8294 = vpack.c.b16 %v8094, %v8086
    %v8295 = vpack.c.b16 %v8103, %v8095
    %v8296 = vpack.c.b16 %v8104, %v8096
    %v8297 = vpack.c.b16 %v8105, %v8097
    %v8298 = vpack.c.b16 %v8106, %v8098
    %v8299 = vpack.c.b16 %v8107, %v8099
    %v8300 = vpack.c.b16 %v8108, %v8100
    %v8301 = vpack.c.b16 %v8109, %v8101
    %v8302 = vpack.c.b16 %v8110, %v8102
    %v8303 = vpack.c.b16 %v8119, %v8111
    %v8304 = vpack.c.b16 %v8120, %v8112
    %v8305 = vpack.c.b16 %v8121, %v8113
    %v8306 = vpack.c.b16 %v8122, %v8114
    %v8307 = vpack.c.b16 %v8123, %v8115
    %v8308 = vpack.c.b16 %v8124, %v8116
    %v8309 = vpack.c.b16 %v8125, %v8117
    %v8310 = vpack.c.b16 %v8126, %v8118
    %v8311 = vpack.c.b16 %v8135, %v8127
    %v8312 = vpack.c.b16 %v8136, %v8128
    %v8313 = vpack.c.b16 %v8137, %v8129
    %v8314 = vpack.c.b16 %v8138, %v8130
    %v8315 = vpack.c.b16 %v8139, %v8131
    %v8316 = vpack.c.b16 %v8140, %v8132
    %v8317 = vpack.c.b16 %v8141, %v8133
    %v8318 = vpack.c.b16 %v8142, %v8134
    %v8319 = vpack.c.b16 %v8151, %v8143
    %v8320 = vpack.c.b16 %v8152, %v8144
    %v8321 = vpack.c.b16 %v8153, %v8145
    %v8322 = vpack.c.b16 %v8154, %v8146
    %v8323 = vpack.c.b16 %v8155, %v8147
    %v8324 = vpack.c.b16 %v8156, %v8148
    %v8325 = vpack.c.b16 %v8157, %v8149
    %v8326 = vpack.c.b16 %v8158, %v8150
    %v8327 = vpack.c.b16 %v8167, %v8159
    %v8328 = vpack.c.b16 %v8168, %v8160
    %v8329 = vpack.c.b16 %v8169, %v8161
    %v8330 = vpack.c.b16 %v8170, %v8162
    %v8331 = vpack.c.b16 %v8171, %v8163
    %v8332 = vpack.c.b16 %v8172, %v8164
    %v8333 = vpack.c.b16 %v8173, %v8165
    %v8334 = vpack.c.b16 %v8174, %v8166
    %v8335 = vpack.c.b16 %v8183, %v8175
    %v8336 = vpack.c.b16 %v8184, %v8176
    %v8337 = vpack.c.b16 %v8185, %v8177
    %v8338 = vpack.c.b16 %v8186, %v8178
    %v8339 = vpack.c.b16 %v8187, %v8179
    %v8340 = vpack.c.b16 %v8188, %v8180
    %v8341 = vpack.c.b16 %v8189, %v8181
    %v8342 = vpack.c.b16 %v8190, %v8182
    %v8343 = vpack.c.b16 %v8199, %v8191
    %v8344 = vpack.c.b16 %v8200, %v8192
    %v8345 = vpack.c.b16 %v8201, %v8193
    %v8346 = vpack.c.b16 %v8202, %v8194
    %v8347 = vpack.c.b16 %v8203, %v8195
    %v8348 = vpack.c.b16 %v8204, %v8196
    %v8349 = vpack.c.b16 %v8205, %v8197
    %v8350 = vpack.c.b16 %v8206, %v8198
    %v8351 = vpack.c.b16 %v8215, %v8207
    %v8352 = vpack.c.b16 %v8216, %v8208
    %v8353 = vpack.c.b16 %v8217, %v8209
    %v8354 = vpack.c.b16 %v8218, %v8210
    %v8355 = vpack.c.b16 %v8219, %v8211
    %v8356 = vpack.c.b16 %v8220, %v8212
    %v8357 = vpack.c.b16 %v8221, %v8213
    %v8358 = vpack.c.b16 %v8222, %v8214
    %v8359 = vpack.c.b16 %v8231, %v8223
    %v8360 = vpack.c.b16 %v8232, %v8224
    %v8361 = vpack.c.b16 %v8233, %v8225
    %v8362 = vpack.c.b16 %v8234, %v8226
    %v8363 = vpack.c.b16 %v8235, %v8227
    %v8364 = vpack.c.b16 %v8236, %v8228
    %v8365 = vpack.c.b16 %v8237, %v8229
    %v8366 = vpack.c.b16 %v8238, %v8230
    %8495 = vmatprep.subr.bf16.mxu0 %v8296
    %8496 = vmatpush1.bf16.msra.mxu0 %v8295
    %8497 = vmatprep.subr.bf16.mxu0 %v8288
    %8498 = vmatpush1.bf16.msra.mxu0 %v8287
    %8499 = vmatprep.subr.bf16.mxu0 %v8280
    %8500 = vmatpush1.bf16.msra.mxu0 %v8279
    %8501 = vmatprep.subr.bf16.mxu0 %v8272
    %8502 = vmatpush1.bf16.msra.mxu0 %v8271
    %8503 = vmatprep.subr.bf16.mxu0 %v8264
    %8504 = vmatpush1.bf16.msra.mxu0 %v8263
    %8505 = vmatprep.subr.bf16.mxu0 %v8256
    %8506 = vmatpush1.bf16.msra.mxu0 %v8255
    %8507 = vmatprep.subr.bf16.mxu0 %v8248
    %8508 = vmatpush1.bf16.msra.mxu0 %v8247
    %8509 = vmatprep.subr.bf16.mxu0 %v8240
    %8510 = vmatpush1.bf16.msra.mxu0 %v8239
    %8511 = vmatprep.subr.bf16.mxu0 %v8360
    %8512 = vmatpush2.bf16.msra.mxu0 %v8359
    %8513 = vmatprep.subr.bf16.mxu0 %v8352
    %8514 = vmatpush2.bf16.msra.mxu0 %v8351
    %8515 = vmatprep.subr.bf16.mxu0 %v8344
    %8516 = vmatpush2.bf16.msra.mxu0 %v8343
    %8517 = vmatprep.subr.bf16.mxu0 %v8336
    %8518 = vmatpush2.bf16.msra.mxu0 %v8335
    %8519 = vmatprep.subr.bf16.mxu0 %v8328
    %8520 = vmatpush2.bf16.msra.mxu0 %v8327
    %8521 = vmatprep.subr.bf16.mxu0 %v8320
    %8522 = vmatpush2.bf16.msra.mxu0 %v8319
    %8523 = vmatprep.subr.bf16.mxu0 %v8312
    %8524 = vmatpush2.bf16.msra.mxu0 %v8311
    %8525 = vmatprep.subr.bf16.mxu0 %v8304
    %8526 = vmatpush2.bf16.msra.mxu0 %v8303
    %8527 = vmatprep.mubr.bf16.mxu0 %v7726
    %8528 = vmatmul.mubr.bf16.gmra.mxu0 %v7725
    %v8529 = vpop.f32.mrf.mxu0
    %v8530 = vadd.f32 0.0, %v8529
    %v8531 = vpop.f32.mrf.mxu0
    %v8532 = vadd.f32 0.0, %v8531
    %v8533 = vpop.f32.mrf.mxu0
    %v8534 = vpop.f32.mrf.mxu0
    %8535 = vdwg.mxu0
    %8536 = vmatprep.subr.bf16.mxu0 %v8298
    %8537 = vmatpush1.bf16.msra.mxu0 %v8297
    %8538 = vmatprep.subr.bf16.mxu0 %v8290
    %8539 = vmatpush1.bf16.msra.mxu0 %v8289
    %8540 = vmatprep.subr.bf16.mxu0 %v8282
    %8541 = vmatpush1.bf16.msra.mxu0 %v8281
    %8542 = vmatprep.subr.bf16.mxu0 %v8274
    %8543 = vmatpush1.bf16.msra.mxu0 %v8273
    %8544 = vmatprep.subr.bf16.mxu0 %v8266
    %8545 = vmatpush1.bf16.msra.mxu0 %v8265
    %8546 = vmatprep.subr.bf16.mxu0 %v8258
    %8547 = vmatpush1.bf16.msra.mxu0 %v8257
    %8548 = vmatprep.subr.bf16.mxu0 %v8250
    %8549 = vmatpush1.bf16.msra.mxu0 %v8249
    %8550 = vmatprep.subr.bf16.mxu0 %v8242
    %8551 = vmatpush1.bf16.msra.mxu0 %v8241
    %8552 = vmatprep.subr.bf16.mxu0 %v8362
    %8553 = vmatpush2.bf16.msra.mxu0 %v8361
    %8554 = vmatprep.subr.bf16.mxu0 %v8354
    %8555 = vmatpush2.bf16.msra.mxu0 %v8353
    %8556 = vmatprep.subr.bf16.mxu0 %v8346
    %8557 = vmatpush2.bf16.msra.mxu0 %v8345
    %8558 = vmatprep.subr.bf16.mxu0 %v8338
    %8559 = vmatpush2.bf16.msra.mxu0 %v8337
    %8560 = vmatprep.subr.bf16.mxu0 %v8330
    %8561 = vmatpush2.bf16.msra.mxu0 %v8329
    %8562 = vmatprep.subr.bf16.mxu0 %v8322
    %8563 = vmatpush2.bf16.msra.mxu0 %v8321
    %8564 = vmatprep.subr.bf16.mxu0 %v8314
    %8565 = vmatpush2.bf16.msra.mxu0 %v8313
    %8566 = vmatprep.subr.bf16.mxu0 %v8306
    %8567 = vmatpush2.bf16.msra.mxu0 %v8305
    %8568 = vmatprep.mubr.bf16.mxu0 %v7726
    %8569 = vmatmul.mubr.bf16.gmra.mxu0 %v7725
    %v8570 = vpop.f32.mrf.mxu0
    %v8571 = vadd.f32 0.0, %v8570
    %v8572 = vpop.f32.mrf.mxu0
    %v8573 = vadd.f32 0.0, %v8572
    %v8574 = vpop.f32.mrf.mxu0
    %v8575 = vpop.f32.mrf.mxu0
    %8576 = vdwg.mxu0
    %8577 = vmatprep.subr.bf16.mxu0 %v8300
    %8578 = vmatpush1.bf16.msra.mxu0 %v8299
    %8579 = vmatprep.subr.bf16.mxu0 %v8292
    %8580 = vmatpush1.bf16.msra.mxu0 %v8291
    %8581 = vmatprep.subr.bf16.mxu0 %v8284
    %8582 = vmatpush1.bf16.msra.mxu0 %v8283
    %8583 = vmatprep.subr.bf16.mxu0 %v8276
    %8584 = vmatpush1.bf16.msra.mxu0 %v8275
    %8585 = vmatprep.subr.bf16.mxu0 %v8268
    %8586 = vmatpush1.bf16.msra.mxu0 %v8267
    %8587 = vmatprep.subr.bf16.mxu0 %v8260
    %8588 = vmatpush1.bf16.msra.mxu0 %v8259
    %8589 = vmatprep.subr.bf16.mxu0 %v8252
    %8590 = vmatpush1.bf16.msra.mxu0 %v8251
    %8591 = vmatprep.subr.bf16.mxu0 %v8244
    %8592 = vmatpush1.bf16.msra.mxu0 %v8243
    %8593 = vmatprep.subr.bf16.mxu0 %v8364
    %8594 = vmatpush2.bf16.msra.mxu0 %v8363
    %8595 = vmatprep.subr.bf16.mxu0 %v8356
    %8596 = vmatpush2.bf16.msra.mxu0 %v8355
    %8597 = vmatprep.subr.bf16.mxu0 %v8348
    %8598 = vmatpush2.bf16.msra.mxu0 %v8347
    %8599 = vmatprep.subr.bf16.mxu0 %v8340
    %8600 = vmatpush2.bf16.msra.mxu0 %v8339
    %8601 = vmatprep.subr.bf16.mxu0 %v8332
    %8602 = vmatpush2.bf16.msra.mxu0 %v8331
    %8603 = vmatprep.subr.bf16.mxu0 %v8324
    %8604 = vmatpush2.bf16.msra.mxu0 %v8323
    %8605 = vmatprep.subr.bf16.mxu0 %v8316
    %8606 = vmatpush2.bf16.msra.mxu0 %v8315
    %8607 = vmatprep.subr.bf16.mxu0 %v8308
    %8608 = vmatpush2.bf16.msra.mxu0 %v8307
    %8609 = vmatprep.mubr.bf16.mxu0 %v7726
    %8610 = vmatmul.mubr.bf16.gmra.mxu0 %v7725
    %v8611 = vpop.f32.mrf.mxu0
    %v8612 = vadd.f32 0.0, %v8611
    %v8613 = vpop.f32.mrf.mxu0
    %v8614 = vadd.f32 0.0, %v8613
    %v8615 = vpop.f32.mrf.mxu0
    %v8616 = vpop.f32.mrf.mxu0
    %8617 = vdwg.mxu0
    %8618 = vmatprep.subr.bf16.mxu0 %v8302
    %8619 = vmatpush1.bf16.msra.mxu0 %v8301
    %8620 = vmatprep.subr.bf16.mxu0 %v8294
    %8621 = vmatpush1.bf16.msra.mxu0 %v8293
    %8622 = vmatprep.subr.bf16.mxu0 %v8286
    %8623 = vmatpush1.bf16.msra.mxu0 %v8285
    %8624 = vmatprep.subr.bf16.mxu0 %v8278
    %8625 = vmatpush1.bf16.msra.mxu0 %v8277
    %8626 = vmatprep.subr.bf16.mxu0 %v8270
    %8627 = vmatpush1.bf16.msra.mxu0 %v8269
    %8628 = vmatprep.subr.bf16.mxu0 %v8262
    %8629 = vmatpush1.bf16.msra.mxu0 %v8261
    %8630 = vmatprep.subr.bf16.mxu0 %v8254
    %8631 = vmatpush1.bf16.msra.mxu0 %v8253
    %8632 = vmatprep.subr.bf16.mxu0 %v8246
    %8633 = vmatpush1.bf16.msra.mxu0 %v8245
    %8634 = vmatprep.subr.bf16.mxu0 %v8366
    %8635 = vmatpush2.bf16.msra.mxu0 %v8365
    %8636 = vmatprep.subr.bf16.mxu0 %v8358
    %8637 = vmatpush2.bf16.msra.mxu0 %v8357
    %8638 = vmatprep.subr.bf16.mxu0 %v8350
    %8639 = vmatpush2.bf16.msra.mxu0 %v8349
    %8640 = vmatprep.subr.bf16.mxu0 %v8342
    %8641 = vmatpush2.bf16.msra.mxu0 %v8341
    %8642 = vmatprep.subr.bf16.mxu0 %v8334
    %8643 = vmatpush2.bf16.msra.mxu0 %v8333
    %8644 = vmatprep.subr.bf16.mxu0 %v8326
    %8645 = vmatpush2.bf16.msra.mxu0 %v8325
    %8646 = vmatprep.subr.bf16.mxu0 %v8318
    %8647 = vmatpush2.bf16.msra.mxu0 %v8317
    %8648 = vmatprep.subr.bf16.mxu0 %v8310
    %8649 = vmatpush2.bf16.msra.mxu0 %v8309
    %8650 = vmatprep.mubr.bf16.mxu0 %v7726
    %8651 = vmatmul.mubr.bf16.gmra.mxu0 %v7725
    %v8652 = vpop.f32.mrf.mxu0
    %v8653 = vadd.f32 0.0, %v8652
    %v8654 = vpop.f32.mrf.mxu0
    %v8655 = vadd.f32 0.0, %v8654
    %v8656 = vpop.f32.mrf.mxu0
    %v8657 = vpop.f32.mrf.mxu0
    %8658 = vdwg.mxu0
    %v8659 = vadd.f32 %v7717, %v8530
    %v8660 = vadd.f32 %v7718, %v8532
    %v8661 = vadd.f32 %v7719, %v8571
    %v8662 = vadd.f32 %v7720, %v8573
    %v8663 = vadd.f32 %v7721, %v8612
    %v8664 = vadd.f32 %v7722, %v8614
    %v8665 = vadd.f32 %v7723, %v8653
    %v8666 = vadd.f32 %v7724, %v8655
    %v8667 = vxor.u32 %v8659, 2147483648
    %v8668 = vxor.u32 %v8660, 2147483648
    %v8669 = vxor.u32 %v8661, 2147483648
    %v8670 = vxor.u32 %v8662, 2147483648
    %v8671 = vxor.u32 %v8663, 2147483648
    %v8672 = vxor.u32 %v8664, 2147483648
    %v8673 = vmul.f32 %v8667, 1.442695
    %v8674 = vpow.pop %v8673
    %v8675 = vmul.f32 %v8668, 1.442695
    %v8676 = vpow.pop %v8675
    %v8677 = vmul.f32 %v8669, 1.442695
    %v8678 = vpow.pop %v8677
    %v8679 = vmul.f32 %v8670, 1.442695
    %v8680 = vpow.pop %v8679
    %v8681 = vmul.f32 %v8671, 1.442695
    %v8682 = vpow.pop %v8681
    %v8683 = vmul.f32 %v8672, 1.442695
    %v8684 = vpow.pop %v8683
    %v8685 = vadd.f32 %v8674, 1.0
    %v8686 = vadd.f32 %v8676, 1.0
    %v8687 = vadd.f32 %v8678, 1.0
    %v8688 = vadd.f32 %v8680, 1.0
    %v8689 = vadd.f32 %v8682, 1.0
    %v8690 = vadd.f32 %v8684, 1.0
    %v8691 = vrcp.pop %v8685
    %v8692 = vmul.f32 1.0, %v8691
    %v8693 = vrcp.pop %v8686
    %v8694 = vmul.f32 1.0, %v8693
    %v8695 = vrcp.pop %v8687
    %v8696 = vmul.f32 1.0, %v8695
    %v8697 = vrcp.pop %v8688
    %v8698 = vmul.f32 1.0, %v8697
    %v8699 = vrcp.pop %v8689
    %v8700 = vmul.f32 1.0, %v8699
    %v8701 = vrcp.pop %v8690
    %v8702 = vmul.f32 1.0, %v8701
    %v8703 = vtanh.pop %v8665
    %v8704 = vtanh.pop %v8666
    %v8705 = vmul.f32 %v8696, %v7706
    %v8706 = vmul.f32 %v8698, %v7707
    %v8707 = vmul.f32 %v8692, %v8703
    %v8708 = vmul.f32 %v8694, %v8704
    %v8709 = vadd.f32 %v8705, %v8707
    %v8710 = vadd.f32 %v8706, %v8708
    %v8711 = vtanh.pop %v8709
    %v8712 = vtanh.pop %v8710
    %v8713 = vmul.f32 %v8700, %v8711
    %v8714 = vmul.f32 %v8702, %v8712
    %v8716 = vrot.slane %v8713, 1
    %8718 = vst [vmem:[#allocation3 + $0x7] sm:$0x1] %v8716
    %8719 = vst [vmem:[#allocation3 + $0x8] sm:$0x1] %v8714
    %v8720 = vld [vmem:[#allocation3] sm:$0xff]
    %v8721 = vld [vmem:[#allocation3 + $0x8] sm:$0xff]
    %v8722 = vpack.c.bf16 %v8720, %v8720
    %v8723 = vpack.c.bf16 %v8721, %v8721
    %v8724 = vld [vmem:[#allocation9] sm:$0xf]
    %v8725 = vld [vmem:[#allocation9 + $0x4] sm:$0xf]
    %v8726 = vld [vmem:[#allocation9 + $0x8] sm:$0xf]
    %v8727 = vld [vmem:[#allocation9 + $0xc] sm:$0xf]
    %v8728 = vld [vmem:[#allocation9 + $0x10] sm:$0xf]
    %v8729 = vld [vmem:[#allocation9 + $0x14] sm:$0xf]
    %v8730 = vld [vmem:[#allocation9 + $0x18] sm:$0xf]
    %v8731 = vld [vmem:[#allocation9 + $0x1c] sm:$0xf]
    %v8732 = vld [vmem:[#allocation9 + $0x20] sm:$0xf]
    %v8733 = vld [vmem:[#allocation9 + $0x24] sm:$0xf]
    %v8734 = vld [vmem:[#allocation9 + $0x28] sm:$0xf]
    %v8735 = vld [vmem:[#allocation9 + $0x2c] sm:$0xf]
    %v8736 = vld [vmem:[#allocation9 + $0x30] sm:$0xf]
    %v8737 = vld [vmem:[#allocation9 + $0x34] sm:$0xf]
    %v8738 = vld [vmem:[#allocation9 + $0x38] sm:$0xf]
    %v8739 = vld [vmem:[#allocation9 + $0x3c] sm:$0xf]
    %v8740 = vld [vmem:[#allocation9 + $0x40] sm:$0xf]
    %v8741 = vld [vmem:[#allocation9 + $0x44] sm:$0xf]
    %v8742 = vld [vmem:[#allocation9 + $0x48] sm:$0xf]
    %v8743 = vld [vmem:[#allocation9 + $0x4c] sm:$0xf]
    %v8744 = vld [vmem:[#allocation9 + $0x50] sm:$0xf]
    %v8745 = vld [vmem:[#allocation9 + $0x54] sm:$0xf]
    %v8746 = vld [vmem:[#allocation9 + $0x58] sm:$0xf]
    %v8747 = vld [vmem:[#allocation9 + $0x5c] sm:$0xf]
    %v8748 = vld [vmem:[#allocation9 + $0x60] sm:$0xf]
    %v8749 = vld [vmem:[#allocation9 + $0x64] sm:$0xf]
    %v8750 = vld [vmem:[#allocation9 + $0x68] sm:$0xf]
    %v8751 = vld [vmem:[#allocation9 + $0x6c] sm:$0xf]
    %v8752 = vld [vmem:[#allocation9 + $0x70] sm:$0xf]
    %v8753 = vld [vmem:[#allocation9 + $0x74] sm:$0xf]
    %v8754 = vld [vmem:[#allocation9 + $0x78] sm:$0xf]
    %v8755 = vld [vmem:[#allocation9 + $0x7c] sm:$0xf]
    %v8756 = vld [vmem:[%s5] sm:$0x1]
    %v8758 = vlaneseq
    %v8759 = vshrl.u32 %v8758, 7
    %v8760 = vsub.s32 0, %v8759
    %v8761 = vrot.slane %v8756, %v8760
    %v8795 = vunpack.c.l.b16 %v8724
    %v8796 = vunpack.c.l.b16 %v8725
    %v8797 = vunpack.c.l.b16 %v8726
    %v8798 = vunpack.c.l.b16 %v8727
    %v8799 = vunpack.c.l.b16 %v8728
    %v8800 = vunpack.c.l.b16 %v8729
    %v8801 = vunpack.c.l.b16 %v8730
    %v8802 = vunpack.c.l.b16 %v8731
    %v8803 = vunpack.c.l.b16 %v8732
    %v8804 = vunpack.c.l.b16 %v8733
    %v8805 = vunpack.c.l.b16 %v8734
    %v8806 = vunpack.c.l.b16 %v8735
    %v8807 = vunpack.c.l.b16 %v8736
    %v8808 = vunpack.c.l.b16 %v8737
    %v8809 = vunpack.c.l.b16 %v8738
    %v8810 = vunpack.c.l.b16 %v8739
    %v8811 = vunpack.c.l.b16 %v8740
    %v8812 = vunpack.c.l.b16 %v8741
    %v8813 = vunpack.c.l.b16 %v8742
    %v8814 = vunpack.c.l.b16 %v8743
    %v8815 = vunpack.c.l.b16 %v8744
    %v8816 = vunpack.c.l.b16 %v8745
    %v8817 = vunpack.c.l.b16 %v8746
    %v8818 = vunpack.c.l.b16 %v8747
    %v8819 = vunpack.c.l.b16 %v8748
    %v8820 = vunpack.c.l.b16 %v8749
    %v8821 = vunpack.c.l.b16 %v8750
    %v8822 = vunpack.c.l.b16 %v8751
    %v8823 = vunpack.c.l.b16 %v8752
    %v8824 = vunpack.c.l.b16 %v8753
    %v8825 = vunpack.c.l.b16 %v8754
    %v8826 = vunpack.c.l.b16 %v8755
    %v8827 = vpack.c.b16 %v8796, %v8795
    %v8828 = vpack.c.b16 %v8798, %v8797
    %v8829 = vpack.c.b16 %v8800, %v8799
    %v8830 = vpack.c.b16 %v8802, %v8801
    %v8831 = vpack.c.b16 %v8804, %v8803
    %v8832 = vpack.c.b16 %v8806, %v8805
    %v8833 = vpack.c.b16 %v8808, %v8807
    %v8834 = vpack.c.b16 %v8810, %v8809
    %v8835 = vpack.c.b16 %v8812, %v8811
    %v8836 = vpack.c.b16 %v8814, %v8813
    %v8837 = vpack.c.b16 %v8816, %v8815
    %v8838 = vpack.c.b16 %v8818, %v8817
    %v8839 = vpack.c.b16 %v8820, %v8819
    %v8840 = vpack.c.b16 %v8822, %v8821
    %v8841 = vpack.c.b16 %v8824, %v8823
    %v8842 = vpack.c.b16 %v8826, %v8825
    %8859 = vmatprep.subr.bf16.mxu0 0
    %8860 = vmatpush1.bf16.msra.mxu0 %v8834
    %8861 = vmatprep.subr.bf16.mxu0 0
    %8862 = vmatpush1.bf16.msra.mxu0 %v8833
    %8863 = vmatprep.subr.bf16.mxu0 0
    %8864 = vmatpush1.bf16.msra.mxu0 %v8832
    %8865 = vmatprep.subr.bf16.mxu0 0
    %8866 = vmatpush1.bf16.msra.mxu0 %v8831
    %8867 = vmatprep.subr.bf16.mxu0 0
    %8868 = vmatpush1.bf16.msra.mxu0 %v8830
    %8869 = vmatprep.subr.bf16.mxu0 0
    %8870 = vmatpush1.bf16.msra.mxu0 %v8829
    %8871 = vmatprep.subr.bf16.mxu0 0
    %8872 = vmatpush1.bf16.msra.mxu0 %v8828
    %8873 = vmatprep.subr.bf16.mxu0 0
    %8874 = vmatpush1.bf16.msra.mxu0 %v8827
    %8875 = vmatprep.subr.bf16.mxu0 0
    %8876 = vmatpush2.bf16.msra.mxu0 %v8842
    %8877 = vmatprep.subr.bf16.mxu0 0
    %8878 = vmatpush2.bf16.msra.mxu0 %v8841
    %8879 = vmatprep.subr.bf16.mxu0 0
    %8880 = vmatpush2.bf16.msra.mxu0 %v8840
    %8881 = vmatprep.subr.bf16.mxu0 0
    %8882 = vmatpush2.bf16.msra.mxu0 %v8839
    %8883 = vmatprep.subr.bf16.mxu0 0
    %8884 = vmatpush2.bf16.msra.mxu0 %v8838
    %8885 = vmatprep.subr.bf16.mxu0 0
    %8886 = vmatpush2.bf16.msra.mxu0 %v8837
    %8887 = vmatprep.subr.bf16.mxu0 0
    %8888 = vmatpush2.bf16.msra.mxu0 %v8836
    %8889 = vmatprep.subr.bf16.mxu0 0
    %8890 = vmatpush2.bf16.msra.mxu0 %v8835
    %8891 = vmatprep.mubr.bf16.mxu0 %v8723
    %8892 = vmatmul.mubr.bf16.gmra.mxu0 %v8722
    %v8893 = vpop.f32.mrf.mxu0
    %v8894 = vadd.f32 %v8761, %v8893
    %v8895 = vpop.f32.mrf.mxu0
    %v8896 = vpop.f32.mrf.mxu0
    %v8897 = vpop.f32.mrf.mxu0
    %8898 = vdwg.mxu0
    %8899 = vst [vmem:[#allocation10] sm:$0xff] %v8894
    // Predicated region
    $region38: #{tpu_custom_call.1} parent=1 // pred_check
      _
    $region39: #{tpu_custom_call.1} parent=1 // pred_check_branch
      %8901 = sbr.rel (0) target = $region41
    $region40: #{tpu_custom_call.1} parent=1 // pred_region
      %s8903 = ssub.s32 128, 128
      %8904 = vsyncadd [#allocation6], %s8903
      %s8906 = sshll.u32 [#allocation10], 4
      %s8907 = int_to_ptr.vmem [resolvable:$true] %s8906
      %8909 = dma.vmem_to_hbm [thread:$0]  %s8907, 128, %s6, [#allocation6]
    $region41: #{tpu_custom_call.1} parent=1 // pred_fallthru
      _
    // Predicated region
    $region42: #{tpu_custom_call.1} parent=1 // pred_check
      _
    $region43: #{tpu_custom_call.1} parent=1 // pred_check_branch
      %8911 = sbr.rel (0) target = $region45
    $region44: #{tpu_custom_call.1} parent=1 // pred_region
      %8912 = dma.done [#allocation6], 128
    $region45: #{tpu_custom_call.1} parent=1 // pred_fallthru
      _
    %8913 = vsyncpa [#allocation5], 1
    %8914 = vsyncpa [#allocation8], 1
    %8915 = vsyncpa [#allocation6], 1

</llo_original>
